<compile_context>
chip_gen: v7x
topology: tpu7x:2x2x1
jax: 0.10.0
libtpu: 0.0.40
codegen_flags: <defaults>
</compile_context>

<pallas_src>
import functools

import numpy as np
import jax
import jax.numpy as jnp
from jax.experimental import pallas as pl
from jax.experimental.pallas import tpu as pltpu


# ----------------------------------------------------------------------------
# Pallas kernels
# ----------------------------------------------------------------------------

def _conv3x3_kernel(x_ref, w_ref, scale_ref, shift_ref,
                    y_ref, sum_ref, sumsq_ref, xs_ref,
                    *, N, H, W, HB, fuse_prebn):
    """3x3 conv, padding=1, bias=False; dx folded into K, M tiled over H bands.

    x_ref:     (N, H, W, Cin)        f32/bf16  un-padded activation (same block for all Cout tiles)
    w_ref:     (3, 3*Cin, TC)        bf16      weight tile, dy major, (dx, cin) flattened into K
    scale_ref: (1, Cin)              f32       fused pre-BN scale (unused if not fuse_prebn)
    shift_ref: (1, Cin)              f32       fused pre-BN shift
    y_ref:     (N, H, W, TC)         f32/bf16  conv output tile
    sum_ref:   (1, TC)               f32       per-channel sum of the conv output
    sumsq_ref: (1, TC)               f32       per-channel sum of squares
    xs_ref:    (N, H+2, W, 3*Cin)    bf16      scratch: zero-padded rows, dx-shifted copies on K
    """
    cin = x_ref.shape[-1]
    tc = y_ref.shape[-1]
    k3 = 3 * cin

    # Build the padded / shifted / (optionally BN+ReLU'd) bf16 activation once.  The
    # scratch persists across the (sequential) Cout-tile grid axis, so that axis must stay
    # "arbitrary" (do NOT mark it "parallel" / core-shard without restructuring this).
    @pl.when(pl.program_id(0) == 0)
    def _():
        a = x_ref[...]
        if fuse_prebn:
            a = jnp.maximum(a.astype(jnp.float32) * scale_ref[...] + shift_ref[...], 0.0)
        a = a.astype(jnp.bfloat16)
        zc = jnp.zeros((N, H, 1, cin), jnp.bfloat16)
        # xs[n, h, w, dx*cin + c] == zero_padded_x[n, h, w + dx, c]
        left = jnp.concatenate([zc, a[:, :, :W - 1, :]], axis=2)    # dx = 0
        right = jnp.concatenate([a[:, :, 1:, :], zc], axis=2)       # dx = 2
        xs_ref[:, 1:H + 1, :, :] = jnp.concatenate([left, a, right], axis=-1)
        # Zero only the two halo rows (halo columns already zero via `zc` above).
        zrow = jnp.zeros((N, 1, W, k3), jnp.bfloat16)
        xs_ref[:, 0:1, :, :] = zrow
        xs_ref[:, H + 1:H + 2, :, :] = zrow

    rows = N * HB * W
    total_s = jnp.zeros((1, tc), jnp.float32)
    total_ss = jnp.zeros((1, tc), jnp.float32)
    # Static band loop over H keeps the f32 accumulator bounded (~rows x tc).
    for h0 in range(0, H, HB):
        acc = jnp.zeros((rows, tc), jnp.float32)
        for dy in range(3):
            # Slices only touch major dims; reshape collapses major dims (lane dim fixed).
            patch = xs_ref[:, h0 + dy:h0 + dy + HB, :, :].reshape(rows, k3)
            acc = acc + jnp.dot(patch, w_ref[dy],
                                preferred_element_type=jnp.float32)
        y_ref[:, h0:h0 + HB, :, :] = acc.reshape(N, HB, W, tc).astype(y_ref.dtype)
        total_s = total_s + jnp.sum(acc, axis=0, keepdims=True)
        total_ss = total_ss + jnp.sum(acc * acc, axis=0, keepdims=True)
    sum_ref[...] = total_s
    sumsq_ref[...] = total_ss


def _scale_shift_relu_kernel(x_ref, scale_ref, shift_ref, o_ref):
    # x_ref: (TM, Cp) f32; scale/shift: (1, Cp) f32; o_ref: (TM, Cp) f32
    o_ref[...] = jnp.maximum(x_ref[...] * scale_ref[...] + shift_ref[...], 0.0)


# ----------------------------------------------------------------------------
# Tiling helpers
# ----------------------------------------------------------------------------

_VMEM_LIMIT = 60 * 1024 * 1024   # above default scoped limits, below v7x's 64 MiB physical


def _cout_tile(cout):
    # 128 is safe on every generation (v5e's MXU is 128 wide; halves the y double-buffer
    # for v7x's 64 MiB VMEM).  MXU-bound shapes on v6e/v7x could prefer 256.
    if cout % 128 == 0:
        return 128
    return cout


def _h_band(N, H, W, target_rows=256):
    """Largest divisor of H whose band has at most ~target_rows accumulator rows."""
    hb = 1
    for cand in range(1, H + 1):
        if H % cand == 0 and N * cand * W <= target_rows:
            hb = cand
    return hb


def _row_tile(m):
    for t in (1024, 512, 256, 128, 64, 32, 16, 8):
        if m % t == 0:
            return t
    return m


# ----------------------------------------------------------------------------
# Wrappers (pallas_call + tiny glue)
# ----------------------------------------------------------------------------

def conv3x3_stats(x, w, prebn_scale=None, prebn_shift=None, out_dtype=jnp.float32):
    """3x3 conv (pad=1, no bias) + per-channel sum/sumsq of the (f32) conv output.

    Optionally fuses relu(x * prebn_scale + prebn_shift) onto the input (the previous
    layer's BatchNorm + ReLU) before padding/convolving.
    """
    N, H, W, Cin = x.shape
    Cout = w.shape[-1]
    fuse = prebn_scale is not None
    if not fuse:
        prebn_scale = jnp.ones((Cin,), jnp.float32)
        prebn_shift = jnp.zeros((Cin,), jnp.float32)

    # (9, Cin, Cout) -> (3, 3*Cin, Cout): dy major, (dx, cin) folded into K (row-major).
    w3 = w.astype(jnp.bfloat16).reshape(3, 3 * Cin, Cout)

    tc = _cout_tile(Cout)
    ncb = Cout // tc
    HB = _h_band(N, H, W)
    kernel = functools.partial(_conv3x3_kernel, N=N, H=H, W=W, HB=HB, fuse_prebn=fuse)

    y, s, ss = pl.pallas_call(
        kernel,
        out_shape=(
            jax.ShapeDtypeStruct((N, H, W, Cout), out_dtype),
            jax.ShapeDtypeStruct((1, Cout), jnp.float32),
            jax.ShapeDtypeStruct((1, Cout), jnp.float32),
        ),
        grid=(ncb,),
        in_specs=[
            # NOTE: x is the same block for every j; pipeline_mode=pl.Buffered(1) would
            # single-buffer it (left at the default to keep lowering conservative).
            pl.BlockSpec((N, H, W, Cin), lambda j: (0, 0, 0, 0)),
            pl.BlockSpec((3, 3 * Cin, tc), lambda j: (0, 0, j)),
            pl.BlockSpec((1, Cin), lambda j: (0, 0)),
            pl.BlockSpec((1, Cin), lambda j: (0, 0)),
        ],
        out_specs=[
            pl.BlockSpec((N, H, W, tc), lambda j: (0, 0, 0, j)),
            pl.BlockSpec((1, tc), lambda j: (0, j)),
            pl.BlockSpec((1, tc), lambda j: (0, j)),
        ],
        scratch_shapes=[pltpu.VMEM((N, H + 2, W, 3 * Cin), jnp.bfloat16)],
        # Scratch is initialized at j == 0 and reused -> Cout axis must run sequentially.
        compiler_params=pltpu.CompilerParams(
            dimension_semantics=("arbitrary",),
            vmem_limit_bytes=_VMEM_LIMIT),
    )(x,
      w3,
      prebn_scale.reshape(1, Cin).astype(jnp.float32),
      prebn_shift.reshape(1, Cin).astype(jnp.float32))
    return y, s, ss


def bn_affine(s, ss, gamma, beta, count, eps=1e-5):
    """Fold training-mode BatchNorm (batch statistics) into per-channel scale/shift."""
    mean = s[0] / count
    var = jnp.maximum(ss[0] / count - mean * mean, 0.0)   # clamp: no rsqrt of negatives
    scale = gamma * jax.lax.rsqrt(var + eps)
    shift = beta - mean * scale
    return scale, shift


def scale_shift_relu(x, scale, shift):
    """Tiled elementwise y = relu(x * scale + shift), lane-dense output when C < 128."""
    N, H, W, C = x.shape
    M = N * H * W
    # Pack consecutive rows into the lane dim so stores are unmasked 128-lane vst
    # (C=64 -> rows of 128); a pure wrapper-level (contiguous) reshape.
    pack = 1
    if C < 128 and 128 % C == 0 and M % (128 // C) == 0:
        pack = 128 // C
    Mp, Cp = M // pack, C * pack
    tm = _row_tile(Mp)

    y = pl.pallas_call(
        _scale_shift_relu_kernel,
        out_shape=jax.ShapeDtypeStruct((Mp, Cp), jnp.float32),
        grid=(Mp // tm,),
        in_specs=[
            pl.BlockSpec((tm, Cp), lambda i: (i, 0)),
            pl.BlockSpec((1, Cp), lambda i: (0, 0)),
            pl.BlockSpec((1, Cp), lambda i: (0, 0)),
        ],
        out_specs=pl.BlockSpec((tm, Cp), lambda i: (i, 0)),
        compiler_params=pltpu.CompilerParams(dimension_semantics=("parallel",)),
    )(x.reshape(Mp, Cp).astype(jnp.float32),
      jnp.tile(scale.reshape(1, C).astype(jnp.float32), (1, pack)),
      jnp.tile(shift.reshape(1, C).astype(jnp.float32), (1, pack)))
    return y.reshape(N, H, W, C)


# ----------------------------------------------------------------------------
# DoubleConv forward: Conv -> BN -> ReLU -> Conv -> BN -> ReLU (training-mode BN)
# ----------------------------------------------------------------------------

def double_conv(x, p):
    N, H, W, _ = x.shape
    cnt = N * H * W
    # Conv1 emits bf16 (it is only re-read by conv2's bf16 prologue); stats stay f32.
    y1, s1, ss1 = conv3x3_stats(x, p["w1"], out_dtype=jnp.bfloat16)
    sc1, sh1 = bn_affine(s1, ss1, p["g1"], p["b1"], cnt)
    # BN1 + ReLU are applied inside the second conv kernel's prologue (no extra HBM pass).
    y2, s2, ss2 = conv3x3_stats(y1, p["w2"], prebn_scale=sc1, prebn_shift=sh1,
                                out_dtype=jnp.float32)
    sc2, sh2 = bn_affine(s2, ss2, p["g2"], p["b2"], cnt)
    return scale_shift_relu(y2, sc2, sh2)


# ----------------------------------------------------------------------------
# Plain-JAX reference (f32 conv via XLA) for a numerical cross-check
# ----------------------------------------------------------------------------

def _reference_double_conv(x, p):
    def conv(h, w):
        w4 = w.astype(jnp.float32).reshape(3, 3, w.shape[1], w.shape[2])   # HWIO
        return jax.lax.conv_general_dilated(
            h, w4, window_strides=(1, 1), padding="SAME",
            dimension_numbers=("NHWC", "HWIO", "NHWC"))

    def bn_relu(h, g, b):
        mean = jnp.mean(h, axis=(0, 1, 2))
        var = jnp.maximum(jnp.mean(h * h, axis=(0, 1, 2)) - mean * mean, 0.0)
        y = (h - mean) * jax.lax.rsqrt(var + 1e-5) * g + b
        return jnp.maximum(y, 0.0)

    h = bn_relu(conv(x, p["w1"]), p["g1"], p["b1"])
    return bn_relu(conv(h, p["w2"]), p["g2"], p["b2"])


# ----------------------------------------------------------------------------
# Deterministic parameter initialization (PyTorch-like scales, weights stored bf16)
# ----------------------------------------------------------------------------

def init_params(key, in_ch, out_ch):
    k1, k2 = jax.random.split(key)

    def conv_w(k, cin, cout):   # (9, Cin, Cout) == (3, 3, Cin, Cout) flattened, bf16
        std = 1.0 / np.sqrt(cin * 9)
        return (jax.random.normal(k, (9, cin, cout), jnp.float32) * std).astype(jnp.bfloat16)

    return {
        "w1": conv_w(k1, in_ch, out_ch),
        "g1": jnp.ones((out_ch,), jnp.float32),
        "b1": jnp.zeros((out_ch,), jnp.float32),
        "w2": conv_w(k2, out_ch, out_ch),
        "g2": jnp.ones((out_ch,), jnp.float32),
        "b2": jnp.zeros((out_ch,), jnp.float32),
    }


# ----------------------------------------------------------------------------

if __name__ == "__main__":
    key = jax.random.PRNGKey(0)
    kx, kp = jax.random.split(key)

    N, CIN, H, W = 2, 4, 16, 16      # PyTorch-convention NCHW input shape (2, 4, 16, 16)
    COUT = 64

    x_nchw = jax.random.normal(kx, (N, CIN, H, W), jnp.float32)
    x_nhwc = jnp.transpose(x_nchw, (0, 2, 3, 1))

    params = init_params(kp, CIN, COUT)

    fwd = jax.jit(double_conv)
    y_nhwc = fwd(x_nhwc, params)
    jax.block_until_ready(y_nhwc)
    y_nchw = jnp.transpose(y_nhwc, (0, 3, 1, 2))   # back to NCHW like the PyTorch module

    assert y_nchw.shape == (N, COUT, H, W)
    assert bool(jnp.all(jnp.isfinite(y_nchw)))
    assert bool(jnp.all(y_nchw >= 0.0))            # ReLU output range

    # Cross-check against the plain-JAX f32 reference (same bf16-quantized weights;
    # differences come from bf16 activation rounding / the bf16 intermediate y1).
    y_ref = _reference_double_conv(x_nhwc, params)
    max_err = float(jnp.max(jnp.abs(y_nhwc - y_ref)))
    assert max_err < 2e-1, f"mismatch vs reference: max |diff| = {max_err}"

    print("KERNEL_OK")
</pallas_src>

<mosaic_0001>
module attributes {stable_mosaic.version = 11 : i64} {
  func.func @_conv3x3_kernel(%arg0: i32, %arg1: memref<2x16x16x4xf32, #tpu.memory_space<vmem>>, %arg2: memref<3x12x64xbf16, #tpu.memory_space<vmem>>, %arg3: memref<1x4xf32, #tpu.memory_space<vmem>>, %arg4: memref<1x4xf32, #tpu.memory_space<vmem>>, %arg5: memref<2x16x16x64xbf16, #tpu.memory_space<vmem>>, %arg6: memref<1x64xf32, #tpu.memory_space<vmem>>, %arg7: memref<1x64xf32, #tpu.memory_space<vmem>>, %arg8: memref<2x18x16x12xbf16, #tpu.memory_space<vmem>>) attributes {dimension_semantics = [#tpu.dimension_semantics<arbitrary>], iteration_bounds = array<i64: 1>, scalar_prefetch = 0 : i64, scratch_operands = 1 : i64, tpu.core_type = #tpu.core_type<tc>, window_params = [{pipeline_mode = #tpu.pipeline_mode<synchronous>, transform_indices = @transform_0, window_bounds = array<i64: 2, 16, 16, 4>}, {transform_indices = @transform_1, window_bounds = array<i64: 3, 12, 64>}, {pipeline_mode = #tpu.pipeline_mode<synchronous>, transform_indices = @transform_2, window_bounds = array<i64: 1, 4>}, {pipeline_mode = #tpu.pipeline_mode<synchronous>, transform_indices = @transform_3, window_bounds = array<i64: 1, 4>}, {transform_indices = @transform_4, window_bounds = array<i64: 2, 16, 16, 64>}, {transform_indices = @transform_5, window_bounds = array<i64: 1, 64>}, {transform_indices = @transform_6, window_bounds = array<i64: 1, 64>}]} {
    %c0_i32 = arith.constant 0 : i32
    %0 = arith.cmpi eq, %arg0, %c0_i32 : i32
    %1 = arith.extui %0 : i1 to i32
    %c0_i32_0 = arith.constant 0 : i32
    %2 = arith.cmpi ne, %1, %c0_i32_0 : i32
    scf.if %2 {
      %c0_62 = arith.constant 0 : index
      %c0_63 = arith.constant 0 : index
      %c0_64 = arith.constant 0 : index
      %c0_65 = arith.constant 0 : index
      %65 = vector.load %arg1[%c0_62, %c0_63, %c0_64, %c0_65] : memref<2x16x16x4xf32, #tpu.memory_space<vmem>>, vector<2x16x16x4xf32>
      %66 = arith.truncf %65 : vector<2x16x16x4xf32> to vector<2x16x16x4xbf16>
      %cst_66 = arith.constant 0.000000e+00 : bf16
      %67 = vector.broadcast %cst_66 : bf16 to vector<2x16x1x4xbf16>
      %68 = vector.extract_strided_slice %66 {offsets = [0, 0, 0, 0], sizes = [2, 16, 15, 4], strides = [1, 1, 1, 1]} : vector<2x16x16x4xbf16> to vector<2x16x15x4xbf16>
      %69 = tpu.concatenate %67, %68 in 2 : vector<2x16x1x4xbf16>, vector<2x16x15x4xbf16> -> vector<2x16x16x4xbf16>
      %70 = vector.extract_strided_slice %66 {offsets = [0, 0, 1, 0], sizes = [2, 16, 15, 4], strides = [1, 1, 1, 1]} : vector<2x16x16x4xbf16> to vector<2x16x15x4xbf16>
      %71 = tpu.concatenate %70, %67 in 2 : vector<2x16x15x4xbf16>, vector<2x16x1x4xbf16> -> vector<2x16x16x4xbf16>
      %72 = tpu.concatenate %69, %66, %71 in 3 : vector<2x16x16x4xbf16>, vector<2x16x16x4xbf16>, vector<2x16x16x4xbf16> -> vector<2x16x16x12xbf16>
      %c0_67 = arith.constant 0 : index
      %c1_68 = arith.constant 1 : index
      %c0_69 = arith.constant 0 : index
      %c0_70 = arith.constant 0 : index
      %73 = vector.load %arg8[%c0_67, %c1_68, %c0_69, %c0_70] : memref<2x18x16x12xbf16, #tpu.memory_space<vmem>>, vector<2x16x16x12xbf16>
      tpu.vector_store %arg8[%c0_67, %c1_68, %c0_69, %c0_70], %72 {strides = array<i32>} : memref<2x18x16x12xbf16, #tpu.memory_space<vmem>>, vector<2x16x16x12xbf16>,
      %cst_71 = arith.constant 0.000000e+00 : bf16
      %74 = vector.broadcast %cst_71 : bf16 to vector<2x1x16x12xbf16>
      %c0_72 = arith.constant 0 : index
      %c0_73 = arith.constant 0 : index
      %c0_74 = arith.constant 0 : index
      %c0_75 = arith.constant 0 : index
      %75 = vector.load %arg8[%c0_72, %c0_73, %c0_74, %c0_75] : memref<2x18x16x12xbf16, #tpu.memory_space<vmem>>, vector<2x1x16x12xbf16>
      tpu.vector_store %arg8[%c0_72, %c0_73, %c0_74, %c0_75], %74 {strides = array<i32>} : memref<2x18x16x12xbf16, #tpu.memory_space<vmem>>, vector<2x1x16x12xbf16>,
      %c0_76 = arith.constant 0 : index
      %c17 = arith.constant 17 : index
      %c0_77 = arith.constant 0 : index
      %c0_78 = arith.constant 0 : index
      %76 = vector.load %arg8[%c0_76, %c17, %c0_77, %c0_78] : memref<2x18x16x12xbf16, #tpu.memory_space<vmem>>, vector<2x1x16x12xbf16>
      tpu.vector_store %arg8[%c0_76, %c17, %c0_77, %c0_78], %74 {strides = array<i32>} : memref<2x18x16x12xbf16, #tpu.memory_space<vmem>>, vector<2x1x16x12xbf16>,
    } else {
    }
    %cst = arith.constant 0.000000e+00 : f32
    %3 = vector.broadcast %cst : f32 to vector<1x64xf32>
    %cst_1 = arith.constant 0.000000e+00 : f32
    %4 = vector.broadcast %cst_1 : f32 to vector<1x64xf32>
    %cst_2 = arith.constant 0.000000e+00 : f32
    %5 = vector.broadcast %cst_2 : f32 to vector<256x64xf32>
    %c0 = arith.constant 0 : index
    %c0_3 = arith.constant 0 : index
    %c0_4 = arith.constant 0 : index
    %c0_5 = arith.constant 0 : index
    %6 = vector.load %arg8[%c0, %c0_3, %c0_4, %c0_5] : memref<2x18x16x12xbf16, #tpu.memory_space<vmem>>, vector<2x8x16x12xbf16>
    %7 = vector.shape_cast %6 : vector<2x8x16x12xbf16> to vector<256x12xbf16>
    %c0_6 = arith.constant 0 : index
    %c0_7 = arith.constant 0 : index
    %c0_8 = arith.constant 0 : index
    %8 = vector.load %arg2[%c0_6, %c0_7, %c0_8] : memref<3x12x64xbf16, #tpu.memory_space<vmem>>, vector<1x12x64xbf16>
    %9 = vector.shape_cast %8 : vector<1x12x64xbf16> to vector<12x64xbf16>
    %cst_9 = arith.constant dense<0.000000e+00> : vector<256x64xf32>
    %10 = tpu.matmul %7, %9, %cst_9 {dimension_numbers = #tpu.dot_dimension_numbers<[1], [0], [0], [1], [0, 0, 1, 1], [], []>} : vector<256x12xbf16>, vector<12x64xbf16>, vector<256x64xf32> -> vector<256x64xf32>
    %11 = arith.addf %5, %10 : vector<256x64xf32>
    %c0_10 = arith.constant 0 : index
    %c1 = arith.constant 1 : index
    %c0_11 = arith.constant 0 : index
    %c0_12 = arith.constant 0 : index
    %12 = vector.load %arg8[%c0_10, %c1, %c0_11, %c0_12] : memref<2x18x16x12xbf16, #tpu.memory_space<vmem>>, vector<2x8x16x12xbf16>
    %13 = vector.shape_cast %12 : vector<2x8x16x12xbf16> to vector<256x12xbf16>
    %c1_13 = arith.constant 1 : index
    %c0_14 = arith.constant 0 : index
    %c0_15 = arith.constant 0 : index
    %14 = vector.load %arg2[%c1_13, %c0_14, %c0_15] : memref<3x12x64xbf16, #tpu.memory_space<vmem>>, vector<1x12x64xbf16>
    %15 = vector.shape_cast %14 : vector<1x12x64xbf16> to vector<12x64xbf16>
    %cst_16 = arith.constant dense<0.000000e+00> : vector<256x64xf32>
    %16 = tpu.matmul %13, %15, %cst_16 {dimension_numbers = #tpu.dot_dimension_numbers<[1], [0], [0], [1], [0, 0, 1, 1], [], []>} : vector<256x12xbf16>, vector<12x64xbf16>, vector<256x64xf32> -> vector<256x64xf32>
    %17 = arith.addf %11, %16 : vector<256x64xf32>
    %c0_17 = arith.constant 0 : index
    %c2 = arith.constant 2 : index
    %c0_18 = arith.constant 0 : index
    %c0_19 = arith.constant 0 : index
    %18 = vector.load %arg8[%c0_17, %c2, %c0_18, %c0_19] : memref<2x18x16x12xbf16, #tpu.memory_space<vmem>>, vector<2x8x16x12xbf16>
    %19 = vector.shape_cast %18 : vector<2x8x16x12xbf16> to vector<256x12xbf16>
    %c2_20 = arith.constant 2 : index
    %c0_21 = arith.constant 0 : index
    %c0_22 = arith.constant 0 : index
    %20 = vector.load %arg2[%c2_20, %c0_21, %c0_22] : memref<3x12x64xbf16, #tpu.memory_space<vmem>>, vector<1x12x64xbf16>
    %21 = vector.shape_cast %20 : vector<1x12x64xbf16> to vector<12x64xbf16>
    %cst_23 = arith.constant dense<0.000000e+00> : vector<256x64xf32>
    %22 = tpu.matmul %19, %21, %cst_23 {dimension_numbers = #tpu.dot_dimension_numbers<[1], [0], [0], [1], [0, 0, 1, 1], [], []>} : vector<256x12xbf16>, vector<12x64xbf16>, vector<256x64xf32> -> vector<256x64xf32>
    %23 = arith.addf %17, %22 : vector<256x64xf32>
    %24 = vector.shape_cast %23 : vector<256x64xf32> to vector<2x8x16x64xf32>
    %25 = arith.truncf %24 : vector<2x8x16x64xf32> to vector<2x8x16x64xbf16>
    %c0_24 = arith.constant 0 : index
    %c0_25 = arith.constant 0 : index
    %c0_26 = arith.constant 0 : index
    %c0_27 = arith.constant 0 : index
    %26 = vector.load %arg5[%c0_24, %c0_25, %c0_26, %c0_27] : memref<2x16x16x64xbf16, #tpu.memory_space<vmem>>, vector<2x8x16x64xbf16>
    tpu.vector_store %arg5[%c0_24, %c0_25, %c0_26, %c0_27], %25 {strides = array<i32>} : memref<2x16x16x64xbf16, #tpu.memory_space<vmem>>, vector<2x8x16x64xbf16>,
    %cst_28 = arith.constant dense<0.000000e+00> : vector<64xf32>
    %27 = vector.multi_reduction <add>, %23, %cst_28 [0] : vector<256x64xf32> to vector<64xf32>
    %28 = vector.shape_cast %27 : vector<64xf32> to vector<1x64xf32>
    %29 = arith.addf %3, %28 : vector<1x64xf32>
    %30 = arith.mulf %23, %23 : vector<256x64xf32>
    %cst_29 = arith.constant dense<0.000000e+00> : vector<64xf32>
    %31 = vector.multi_reduction <add>, %30, %cst_29 [0] : vector<256x64xf32> to vector<64xf32>
    %32 = vector.shape_cast %31 : vector<64xf32> to vector<1x64xf32>
    %33 = arith.addf %4, %32 : vector<1x64xf32>
    %cst_30 = arith.constant 0.000000e+00 : f32
    %34 = vector.broadcast %cst_30 : f32 to vector<256x64xf32>
    %c0_31 = arith.constant 0 : index
    %c8 = arith.constant 8 : index
    %c0_32 = arith.constant 0 : index
    %c0_33 = arith.constant 0 : index
    %35 = vector.load %arg8[%c0_31, %c8, %c0_32, %c0_33] : memref<2x18x16x12xbf16, #tpu.memory_space<vmem>>, vector<2x8x16x12xbf16>
    %36 = vector.shape_cast %35 : vector<2x8x16x12xbf16> to vector<256x12xbf16>
    %c0_34 = arith.constant 0 : index
    %c0_35 = arith.constant 0 : index
    %c0_36 = arith.constant 0 : index
    %37 = vector.load %arg2[%c0_34, %c0_35, %c0_36] : memref<3x12x64xbf16, #tpu.memory_space<vmem>>, vector<1x12x64xbf16>
    %38 = vector.shape_cast %37 : vector<1x12x64xbf16> to vector<12x64xbf16>
    %cst_37 = arith.constant dense<0.000000e+00> : vector<256x64xf32>
    %39 = tpu.matmul %36, %38, %cst_37 {dimension_numbers = #tpu.dot_dimension_numbers<[1], [0], [0], [1], [0, 0, 1, 1], [], []>} : vector<256x12xbf16>, vector<12x64xbf16>, vector<256x64xf32> -> vector<256x64xf32>
    %40 = arith.addf %34, %39 : vector<256x64xf32>
    %c0_38 = arith.constant 0 : index
    %c9 = arith.constant 9 : index
    %c0_39 = arith.constant 0 : index
    %c0_40 = arith.constant 0 : index
    %41 = vector.load %arg8[%c0_38, %c9, %c0_39, %c0_40] : memref<2x18x16x12xbf16, #tpu.memory_space<vmem>>, vector<2x8x16x12xbf16>
    %42 = vector.shape_cast %41 : vector<2x8x16x12xbf16> to vector<256x12xbf16>
    %c1_41 = arith.constant 1 : index
    %c0_42 = arith.constant 0 : index
    %c0_43 = arith.constant 0 : index
    %43 = vector.load %arg2[%c1_41, %c0_42, %c0_43] : memref<3x12x64xbf16, #tpu.memory_space<vmem>>, vector<1x12x64xbf16>
    %44 = vector.shape_cast %43 : vector<1x12x64xbf16> to vector<12x64xbf16>
    %cst_44 = arith.constant dense<0.000000e+00> : vector<256x64xf32>
    %45 = tpu.matmul %42, %44, %cst_44 {dimension_numbers = #tpu.dot_dimension_numbers<[1], [0], [0], [1], [0, 0, 1, 1], [], []>} : vector<256x12xbf16>, vector<12x64xbf16>, vector<256x64xf32> -> vector<256x64xf32>
    %46 = arith.addf %40, %45 : vector<256x64xf32>
    %c0_45 = arith.constant 0 : index
    %c10 = arith.constant 10 : index
    %c0_46 = arith.constant 0 : index
    %c0_47 = arith.constant 0 : index
    %47 = vector.load %arg8[%c0_45, %c10, %c0_46, %c0_47] : memref<2x18x16x12xbf16, #tpu.memory_space<vmem>>, vector<2x8x16x12xbf16>
    %48 = vector.shape_cast %47 : vector<2x8x16x12xbf16> to vector<256x12xbf16>
    %c2_48 = arith.constant 2 : index
    %c0_49 = arith.constant 0 : index
    %c0_50 = arith.constant 0 : index
    %49 = vector.load %arg2[%c2_48, %c0_49, %c0_50] : memref<3x12x64xbf16, #tpu.memory_space<vmem>>, vector<1x12x64xbf16>
    %50 = vector.shape_cast %49 : vector<1x12x64xbf16> to vector<12x64xbf16>
    %cst_51 = arith.constant dense<0.000000e+00> : vector<256x64xf32>
    %51 = tpu.matmul %48, %50, %cst_51 {dimension_numbers = #tpu.dot_dimension_numbers<[1], [0], [0], [1], [0, 0, 1, 1], [], []>} : vector<256x12xbf16>, vector<12x64xbf16>, vector<256x64xf32> -> vector<256x64xf32>
    %52 = arith.addf %46, %51 : vector<256x64xf32>
    %53 = vector.shape_cast %52 : vector<256x64xf32> to vector<2x8x16x64xf32>
    %54 = arith.truncf %53 : vector<2x8x16x64xf32> to vector<2x8x16x64xbf16>
    %c0_52 = arith.constant 0 : index
    %c8_53 = arith.constant 8 : index
    %c0_54 = arith.constant 0 : index
    %c0_55 = arith.constant 0 : index
    %55 = vector.load %arg5[%c0_52, %c8_53, %c0_54, %c0_55] : memref<2x16x16x64xbf16, #tpu.memory_space<vmem>>, vector<2x8x16x64xbf16>
    tpu.vector_store %arg5[%c0_52, %c8_53, %c0_54, %c0_55], %54 {strides = array<i32>} : memref<2x16x16x64xbf16, #tpu.memory_space<vmem>>, vector<2x8x16x64xbf16>,
    %cst_56 = arith.constant dense<0.000000e+00> : vector<64xf32>
    %56 = vector.multi_reduction <add>, %52, %cst_56 [0] : vector<256x64xf32> to vector<64xf32>
    %57 = vector.shape_cast %56 : vector<64xf32> to vector<1x64xf32>
    %58 = arith.addf %29, %57 : vector<1x64xf32>
    %59 = arith.mulf %52, %52 : vector<256x64xf32>
    %cst_57 = arith.constant dense<0.000000e+00> : vector<64xf32>
    %60 = vector.multi_reduction <add>, %59, %cst_57 [0] : vector<256x64xf32> to vector<64xf32>
    %61 = vector.shape_cast %60 : vector<64xf32> to vector<1x64xf32>
    %62 = arith.addf %33, %61 : vector<1x64xf32>
    %c0_58 = arith.constant 0 : index
    %c0_59 = arith.constant 0 : index
    %63 = vector.load %arg6[%c0_58, %c0_59] : memref<1x64xf32, #tpu.memory_space<vmem>>, vector<1x64xf32>
    tpu.vector_store %arg6[%c0_58, %c0_59], %58 {strides = array<i32>} : memref<1x64xf32, #tpu.memory_space<vmem>>, vector<1x64xf32>,
    %c0_60 = arith.constant 0 : index
    %c0_61 = arith.constant 0 : index
    %64 = vector.load %arg7[%c0_60, %c0_61] : memref<1x64xf32, #tpu.memory_space<vmem>>, vector<1x64xf32>
    tpu.vector_store %arg7[%c0_60, %c0_61], %62 {strides = array<i32>} : memref<1x64xf32, #tpu.memory_space<vmem>>, vector<1x64xf32>,
    return
  }
  func.func @transform_0(%arg0: i32) -> (i32, i32, i32, i32) {
    %c0_i32 = arith.constant 0 : i32
    %c0_i32_0 = arith.constant 0 : i32
    %c0_i32_1 = arith.constant 0 : i32
    %c0_i32_2 = arith.constant 0 : i32
    %c0_i32_3 = arith.constant 0 : i32
    return %c0_i32, %c0_i32_0, %c0_i32_1, %c0_i32_2 : i32, i32, i32, i32
  }
  func.func @transform_1(%arg0: i32) -> (i32, i32, i32) {
    %c0_i32 = arith.constant 0 : i32
    %c0_i32_0 = arith.constant 0 : i32
    %c0_i32_1 = arith.constant 0 : i32
    return %c0_i32, %c0_i32_0, %arg0 : i32, i32, i32
  }
  func.func @transform_2(%arg0: i32) -> (i32, i32) {
    %c0_i32 = arith.constant 0 : i32
    %c0_i32_0 = arith.constant 0 : i32
    %c0_i32_1 = arith.constant 0 : i32
    return %c0_i32, %c0_i32_0 : i32, i32
  }
  func.func @transform_3(%arg0: i32) -> (i32, i32) {
    %c0_i32 = arith.constant 0 : i32
    %c0_i32_0 = arith.constant 0 : i32
    %c0_i32_1 = arith.constant 0 : i32
    return %c0_i32, %c0_i32_0 : i32, i32
  }
  func.func @transform_4(%arg0: i32) -> (i32, i32, i32, i32) {
    %c0_i32 = arith.constant 0 : i32
    %c0_i32_0 = arith.constant 0 : i32
    %c0_i32_1 = arith.constant 0 : i32
    %c0_i32_2 = arith.constant 0 : i32
    return %c0_i32, %c0_i32_0, %c0_i32_1, %arg0 : i32, i32, i32, i32
  }
  func.func @transform_5(%arg0: i32) -> (i32, i32) {
    %c0_i32 = arith.constant 0 : i32
    %c0_i32_0 = arith.constant 0 : i32
    return %c0_i32, %arg0 : i32, i32
  }
  func.func @transform_6(%arg0: i32) -> (i32, i32) {
    %c0_i32 = arith.constant 0 : i32
    %c0_i32_0 = arith.constant 0 : i32
    return %c0_i32, %arg0 : i32, i32
  }
}

module attributes {stable_mosaic.version = 11 : i64} {
  func.func @_conv3x3_kernel(%arg0: i32, %arg1: memref<2x16x16x64xbf16, #tpu.memory_space<vmem>>, %arg2: memref<3x192x64xbf16, #tpu.memory_space<vmem>>, %arg3: memref<1x64xf32, #tpu.memory_space<vmem>>, %arg4: memref<1x64xf32, #tpu.memory_space<vmem>>, %arg5: memref<2x16x16x64xf32, #tpu.memory_space<vmem>>, %arg6: memref<1x64xf32, #tpu.memory_space<vmem>>, %arg7: memref<1x64xf32, #tpu.memory_space<vmem>>, %arg8: memref<2x18x16x192xbf16, #tpu.memory_space<vmem>>) attributes {dimension_semantics = [#tpu.dimension_semantics<arbitrary>], iteration_bounds = array<i64: 1>, scalar_prefetch = 0 : i64, scratch_operands = 1 : i64, tpu.core_type = #tpu.core_type<tc>, window_params = [{pipeline_mode = #tpu.pipeline_mode<synchronous>, transform_indices = @transform_0, window_bounds = array<i64: 2, 16, 16, 64>}, {transform_indices = @transform_1, window_bounds = array<i64: 3, 192, 64>}, {pipeline_mode = #tpu.pipeline_mode<synchronous>, transform_indices = @transform_2, window_bounds = array<i64: 1, 64>}, {pipeline_mode = #tpu.pipeline_mode<synchronous>, transform_indices = @transform_3, window_bounds = array<i64: 1, 64>}, {transform_indices = @transform_4, window_bounds = array<i64: 2, 16, 16, 64>}, {transform_indices = @transform_5, window_bounds = array<i64: 1, 64>}, {transform_indices = @transform_6, window_bounds = array<i64: 1, 64>}]} {
    %c0_i32 = arith.constant 0 : i32
    %0 = arith.cmpi eq, %arg0, %c0_i32 : i32
    %1 = arith.extui %0 : i1 to i32
    %c0_i32_0 = arith.constant 0 : i32
    %2 = arith.cmpi ne, %1, %c0_i32_0 : i32
    scf.if %2 {
      %c0_62 = arith.constant 0 : index
      %c0_63 = arith.constant 0 : index
      %c0_64 = arith.constant 0 : index
      %c0_65 = arith.constant 0 : index
      %63 = vector.load %arg1[%c0_62, %c0_63, %c0_64, %c0_65] : memref<2x16x16x64xbf16, #tpu.memory_space<vmem>>, vector<2x16x16x64xbf16>
      %64 = arith.extf %63 : vector<2x16x16x64xbf16> to vector<2x16x16x64xf32>
      %c0_66 = arith.constant 0 : index
      %c0_67 = arith.constant 0 : index
      %65 = vector.load %arg3[%c0_66, %c0_67] : memref<1x64xf32, #tpu.memory_space<vmem>>, vector<1x64xf32>
      %66 = vector.shape_cast %65 : vector<1x64xf32> to vector<1x1x1x64xf32>
      %67 = vector.broadcast %66 : vector<1x1x1x64xf32> to vector<2x16x16x64xf32>
      %68 = arith.mulf %64, %67 : vector<2x16x16x64xf32>
      %c0_68 = arith.constant 0 : index
      %c0_69 = arith.constant 0 : index
      %69 = vector.load %arg4[%c0_68, %c0_69] : memref<1x64xf32, #tpu.memory_space<vmem>>, vector<1x64xf32>
      %70 = vector.shape_cast %69 : vector<1x64xf32> to vector<1x1x1x64xf32>
      %71 = vector.broadcast %70 : vector<1x1x1x64xf32> to vector<2x16x16x64xf32>
      %72 = arith.addf %68, %71 : vector<2x16x16x64xf32>
      %cst_70 = arith.constant 0.000000e+00 : f32
      %73 = vector.broadcast %cst_70 : f32 to vector<2x16x16x64xf32>
      %74 = arith.maximumf %72, %73 : vector<2x16x16x64xf32>
      %75 = arith.truncf %74 : vector<2x16x16x64xf32> to vector<2x16x16x64xbf16>
      %cst_71 = arith.constant 0.000000e+00 : bf16
      %76 = vector.broadcast %cst_71 : bf16 to vector<2x16x1x64xbf16>
      %77 = vector.extract_strided_slice %75 {offsets = [0, 0, 0, 0], sizes = [2, 16, 15, 64], strides = [1, 1, 1, 1]} : vector<2x16x16x64xbf16> to vector<2x16x15x64xbf16>
      %78 = tpu.concatenate %76, %77 in 2 : vector<2x16x1x64xbf16>, vector<2x16x15x64xbf16> -> vector<2x16x16x64xbf16>
      %79 = vector.extract_strided_slice %75 {offsets = [0, 0, 1, 0], sizes = [2, 16, 15, 64], strides = [1, 1, 1, 1]} : vector<2x16x16x64xbf16> to vector<2x16x15x64xbf16>
      %80 = tpu.concatenate %79, %76 in 2 : vector<2x16x15x64xbf16>, vector<2x16x1x64xbf16> -> vector<2x16x16x64xbf16>
      %81 = tpu.concatenate %78, %75, %80 in 3 : vector<2x16x16x64xbf16>, vector<2x16x16x64xbf16>, vector<2x16x16x64xbf16> -> vector<2x16x16x192xbf16>
      %c0_72 = arith.constant 0 : index
      %c1_73 = arith.constant 1 : index
      %c0_74 = arith.constant 0 : index
      %c0_75 = arith.constant 0 : index
      %82 = vector.load %arg8[%c0_72, %c1_73, %c0_74, %c0_75] : memref<2x18x16x192xbf16, #tpu.memory_space<vmem>>, vector<2x16x16x192xbf16>
      tpu.vector_store %arg8[%c0_72, %c1_73, %c0_74, %c0_75], %81 {strides = array<i32>} : memref<2x18x16x192xbf16, #tpu.memory_space<vmem>>, vector<2x16x16x192xbf16>,
      %cst_76 = arith.constant 0.000000e+00 : bf16
      %83 = vector.broadcast %cst_76 : bf16 to vector<2x1x16x192xbf16>
      %c0_77 = arith.constant 0 : index
      %c0_78 = arith.constant 0 : index
      %c0_79 = arith.constant 0 : index
      %c0_80 = arith.constant 0 : index
      %84 = vector.load %arg8[%c0_77, %c0_78, %c0_79, %c0_80] : memref<2x18x16x192xbf16, #tpu.memory_space<vmem>>, vector<2x1x16x192xbf16>
      tpu.vector_store %arg8[%c0_77, %c0_78, %c0_79, %c0_80], %83 {strides = array<i32>} : memref<2x18x16x192xbf16, #tpu.memory_space<vmem>>, vector<2x1x16x192xbf16>,
      %c0_81 = arith.constant 0 : index
      %c17 = arith.constant 17 : index
      %c0_82 = arith.constant 0 : index
      %c0_83 = arith.constant 0 : index
      %85 = vector.load %arg8[%c0_81, %c17, %c0_82, %c0_83] : memref<2x18x16x192xbf16, #tpu.memory_space<vmem>>, vector<2x1x16x192xbf16>
      tpu.vector_store %arg8[%c0_81, %c17, %c0_82, %c0_83], %83 {strides = array<i32>} : memref<2x18x16x192xbf16, #tpu.memory_space<vmem>>, vector<2x1x16x192xbf16>,
    } else {
    }
    %cst = arith.constant 0.000000e+00 : f32
    %3 = vector.broadcast %cst : f32 to vector<1x64xf32>
    %cst_1 = arith.constant 0.000000e+00 : f32
    %4 = vector.broadcast %cst_1 : f32 to vector<1x64xf32>
    %cst_2 = arith.constant 0.000000e+00 : f32
    %5 = vector.broadcast %cst_2 : f32 to vector<256x64xf32>
    %c0 = arith.constant 0 : index
    %c0_3 = arith.constant 0 : index
    %c0_4 = arith.constant 0 : index
    %c0_5 = arith.constant 0 : index
    %6 = vector.load %arg8[%c0, %c0_3, %c0_4, %c0_5] : memref<2x18x16x192xbf16, #tpu.memory_space<vmem>>, vector<2x8x16x192xbf16>
    %7 = vector.shape_cast %6 : vector<2x8x16x192xbf16> to vector<256x192xbf16>
    %c0_6 = arith.constant 0 : index
    %c0_7 = arith.constant 0 : index
    %c0_8 = arith.constant 0 : index
    %8 = vector.load %arg2[%c0_6, %c0_7, %c0_8] : memref<3x192x64xbf16, #tpu.memory_space<vmem>>, vector<1x192x64xbf16>
    %9 = vector.shape_cast %8 : vector<1x192x64xbf16> to vector<192x64xbf16>
    %cst_9 = arith.constant dense<0.000000e+00> : vector<256x64xf32>
    %10 = tpu.matmul %7, %9, %cst_9 {dimension_numbers = #tpu.dot_dimension_numbers<[1], [0], [0], [1], [0, 0, 1, 1], [], []>} : vector<256x192xbf16>, vector<192x64xbf16>, vector<256x64xf32> -> vector<256x64xf32>
    %11 = arith.addf %5, %10 : vector<256x64xf32>
    %c0_10 = arith.constant 0 : index
    %c1 = arith.constant 1 : index
    %c0_11 = arith.constant 0 : index
    %c0_12 = arith.constant 0 : index
    %12 = vector.load %arg8[%c0_10, %c1, %c0_11, %c0_12] : memref<2x18x16x192xbf16, #tpu.memory_space<vmem>>, vector<2x8x16x192xbf16>
    %13 = vector.shape_cast %12 : vector<2x8x16x192xbf16> to vector<256x192xbf16>
    %c1_13 = arith.constant 1 : index
    %c0_14 = arith.constant 0 : index
    %c0_15 = arith.constant 0 : index
    %14 = vector.load %arg2[%c1_13, %c0_14, %c0_15] : memref<3x192x64xbf16, #tpu.memory_space<vmem>>, vector<1x192x64xbf16>
    %15 = vector.shape_cast %14 : vector<1x192x64xbf16> to vector<192x64xbf16>
    %cst_16 = arith.constant dense<0.000000e+00> : vector<256x64xf32>
    %16 = tpu.matmul %13, %15, %cst_16 {dimension_numbers = #tpu.dot_dimension_numbers<[1], [0], [0], [1], [0, 0, 1, 1], [], []>} : vector<256x192xbf16>, vector<192x64xbf16>, vector<256x64xf32> -> vector<256x64xf32>
    %17 = arith.addf %11, %16 : vector<256x64xf32>
    %c0_17 = arith.constant 0 : index
    %c2 = arith.constant 2 : index
    %c0_18 = arith.constant 0 : index
    %c0_19 = arith.constant 0 : index
    %18 = vector.load %arg8[%c0_17, %c2, %c0_18, %c0_19] : memref<2x18x16x192xbf16, #tpu.memory_space<vmem>>, vector<2x8x16x192xbf16>
    %19 = vector.shape_cast %18 : vector<2x8x16x192xbf16> to vector<256x192xbf16>
    %c2_20 = arith.constant 2 : index
    %c0_21 = arith.constant 0 : index
    %c0_22 = arith.constant 0 : index
    %20 = vector.load %arg2[%c2_20, %c0_21, %c0_22] : memref<3x192x64xbf16, #tpu.memory_space<vmem>>, vector<1x192x64xbf16>
    %21 = vector.shape_cast %20 : vector<1x192x64xbf16> to vector<192x64xbf16>
    %cst_23 = arith.constant dense<0.000000e+00> : vector<256x64xf32>
    %22 = tpu.matmul %19, %21, %cst_23 {dimension_numbers = #tpu.dot_dimension_numbers<[1], [0], [0], [1], [0, 0, 1, 1], [], []>} : vector<256x192xbf16>, vector<192x64xbf16>, vector<256x64xf32> -> vector<256x64xf32>
    %23 = arith.addf %17, %22 : vector<256x64xf32>
    %24 = vector.shape_cast %23 : vector<256x64xf32> to vector<2x8x16x64xf32>
    %c0_24 = arith.constant 0 : index
    %c0_25 = arith.constant 0 : index
    %c0_26 = arith.constant 0 : index
    %c0_27 = arith.constant 0 : index
    %25 = vector.load %arg5[%c0_24, %c0_25, %c0_26, %c0_27] : memref<2x16x16x64xf32, #tpu.memory_space<vmem>>, vector<2x8x16x64xf32>
    tpu.vector_store %arg5[%c0_24, %c0_25, %c0_26, %c0_27], %24 {strides = array<i32>} : memref<2x16x16x64xf32, #tpu.memory_space<vmem>>, vector<2x8x16x64xf32>,
    %cst_28 = arith.constant dense<0.000000e+00> : vector<64xf32>
    %26 = vector.multi_reduction <add>, %23, %cst_28 [0] : vector<256x64xf32> to vector<64xf32>
    %27 = vector.shape_cast %26 : vector<64xf32> to vector<1x64xf32>
    %28 = arith.addf %3, %27 : vector<1x64xf32>
    %29 = arith.mulf %23, %23 : vector<256x64xf32>
    %cst_29 = arith.constant dense<0.000000e+00> : vector<64xf32>
    %30 = vector.multi_reduction <add>, %29, %cst_29 [0] : vector<256x64xf32> to vector<64xf32>
    %31 = vector.shape_cast %30 : vector<64xf32> to vector<1x64xf32>
    %32 = arith.addf %4, %31 : vector<1x64xf32>
    %cst_30 = arith.constant 0.000000e+00 : f32
    %33 = vector.broadcast %cst_30 : f32 to vector<256x64xf32>
    %c0_31 = arith.constant 0 : index
    %c8 = arith.constant 8 : index
    %c0_32 = arith.constant 0 : index
    %c0_33 = arith.constant 0 : index
    %34 = vector.load %arg8[%c0_31, %c8, %c0_32, %c0_33] : memref<2x18x16x192xbf16, #tpu.memory_space<vmem>>, vector<2x8x16x192xbf16>
    %35 = vector.shape_cast %34 : vector<2x8x16x192xbf16> to vector<256x192xbf16>
    %c0_34 = arith.constant 0 : index
    %c0_35 = arith.constant 0 : index
    %c0_36 = arith.constant 0 : index
    %36 = vector.load %arg2[%c0_34, %c0_35, %c0_36] : memref<3x192x64xbf16, #tpu.memory_space<vmem>>, vector<1x192x64xbf16>
    %37 = vector.shape_cast %36 : vector<1x192x64xbf16> to vector<192x64xbf16>
    %cst_37 = arith.constant dense<0.000000e+00> : vector<256x64xf32>
    %38 = tpu.matmul %35, %37, %cst_37 {dimension_numbers = #tpu.dot_dimension_numbers<[1], [0], [0], [1], [0, 0, 1, 1], [], []>} : vector<256x192xbf16>, vector<192x64xbf16>, vector<256x64xf32> -> vector<256x64xf32>
    %39 = arith.addf %33, %38 : vector<256x64xf32>
    %c0_38 = arith.constant 0 : index
    %c9 = arith.constant 9 : index
    %c0_39 = arith.constant 0 : index
    %c0_40 = arith.constant 0 : index
    %40 = vector.load %arg8[%c0_38, %c9, %c0_39, %c0_40] : memref<2x18x16x192xbf16, #tpu.memory_space<vmem>>, vector<2x8x16x192xbf16>
    %41 = vector.shape_cast %40 : vector<2x8x16x192xbf16> to vector<256x192xbf16>
    %c1_41 = arith.constant 1 : index
    %c0_42 = arith.constant 0 : index
    %c0_43 = arith.constant 0 : index
    %42 = vector.load %arg2[%c1_41, %c0_42, %c0_43] : memref<3x192x64xbf16, #tpu.memory_space<vmem>>, vector<1x192x64xbf16>
    %43 = vector.shape_cast %42 : vector<1x192x64xbf16> to vector<192x64xbf16>
    %cst_44 = arith.constant dense<0.000000e+00> : vector<256x64xf32>
    %44 = tpu.matmul %41, %43, %cst_44 {dimension_numbers = #tpu.dot_dimension_numbers<[1], [0], [0], [1], [0, 0, 1, 1], [], []>} : vector<256x192xbf16>, vector<192x64xbf16>, vector<256x64xf32> -> vector<256x64xf32>
    %45 = arith.addf %39, %44 : vector<256x64xf32>
    %c0_45 = arith.constant 0 : index
    %c10 = arith.constant 10 : index
    %c0_46 = arith.constant 0 : index
    %c0_47 = arith.constant 0 : index
    %46 = vector.load %arg8[%c0_45, %c10, %c0_46, %c0_47] : memref<2x18x16x192xbf16, #tpu.memory_space<vmem>>, vector<2x8x16x192xbf16>
    %47 = vector.shape_cast %46 : vector<2x8x16x192xbf16> to vector<256x192xbf16>
    %c2_48 = arith.constant 2 : index
    %c0_49 = arith.constant 0 : index
    %c0_50 = arith.constant 0 : index
    %48 = vector.load %arg2[%c2_48, %c0_49, %c0_50] : memref<3x192x64xbf16, #tpu.memory_space<vmem>>, vector<1x192x64xbf16>
    %49 = vector.shape_cast %48 : vector<1x192x64xbf16> to vector<192x64xbf16>
    %cst_51 = arith.constant dense<0.000000e+00> : vector<256x64xf32>
    %50 = tpu.matmul %47, %49, %cst_51 {dimension_numbers = #tpu.dot_dimension_numbers<[1], [0], [0], [1], [0, 0, 1, 1], [], []>} : vector<256x192xbf16>, vector<192x64xbf16>, vector<256x64xf32> -> vector<256x64xf32>
    %51 = arith.addf %45, %50 : vector<256x64xf32>
    %52 = vector.shape_cast %51 : vector<256x64xf32> to vector<2x8x16x64xf32>
    %c0_52 = arith.constant 0 : index
    %c8_53 = arith.constant 8 : index
    %c0_54 = arith.constant 0 : index
    %c0_55 = arith.constant 0 : index
    %53 = vector.load %arg5[%c0_52, %c8_53, %c0_54, %c0_55] : memref<2x16x16x64xf32, #tpu.memory_space<vmem>>, vector<2x8x16x64xf32>
    tpu.vector_store %arg5[%c0_52, %c8_53, %c0_54, %c0_55], %52 {strides = array<i32>} : memref<2x16x16x64xf32, #tpu.memory_space<vmem>>, vector<2x8x16x64xf32>,
    %cst_56 = arith.constant dense<0.000000e+00> : vector<64xf32>
    %54 = vector.multi_reduction <add>, %51, %cst_56 [0] : vector<256x64xf32> to vector<64xf32>
    %55 = vector.shape_cast %54 : vector<64xf32> to vector<1x64xf32>
    %56 = arith.addf %28, %55 : vector<1x64xf32>
    %57 = arith.mulf %51, %51 : vector<256x64xf32>
    %cst_57 = arith.constant dense<0.000000e+00> : vector<64xf32>
    %58 = vector.multi_reduction <add>, %57, %cst_57 [0] : vector<256x64xf32> to vector<64xf32>
    %59 = vector.shape_cast %58 : vector<64xf32> to vector<1x64xf32>
    %60 = arith.addf %32, %59 : vector<1x64xf32>
    %c0_58 = arith.constant 0 : index
    %c0_59 = arith.constant 0 : index
    %61 = vector.load %arg6[%c0_58, %c0_59] : memref<1x64xf32, #tpu.memory_space<vmem>>, vector<1x64xf32>
    tpu.vector_store %arg6[%c0_58, %c0_59], %56 {strides = array<i32>} : memref<1x64xf32, #tpu.memory_space<vmem>>, vector<1x64xf32>,
    %c0_60 = arith.constant 0 : index
    %c0_61 = arith.constant 0 : index
    %62 = vector.load %arg7[%c0_60, %c0_61] : memref<1x64xf32, #tpu.memory_space<vmem>>, vector<1x64xf32>
    tpu.vector_store %arg7[%c0_60, %c0_61], %60 {strides = array<i32>} : memref<1x64xf32, #tpu.memory_space<vmem>>, vector<1x64xf32>,
    return
  }
  func.func @transform_0(%arg0: i32) -> (i32, i32, i32, i32) {
    %c0_i32 = arith.constant 0 : i32
    %c0_i32_0 = arith.constant 0 : i32
    %c0_i32_1 = arith.constant 0 : i32
    %c0_i32_2 = arith.constant 0 : i32
    %c0_i32_3 = arith.constant 0 : i32
    return %c0_i32, %c0_i32_0, %c0_i32_1, %c0_i32_2 : i32, i32, i32, i32
  }
  func.func @transform_1(%arg0: i32) -> (i32, i32, i32) {
    %c0_i32 = arith.constant 0 : i32
    %c0_i32_0 = arith.constant 0 : i32
    %c0_i32_1 = arith.constant 0 : i32
    return %c0_i32, %c0_i32_0, %arg0 : i32, i32, i32
  }
  func.func @transform_2(%arg0: i32) -> (i32, i32) {
    %c0_i32 = arith.constant 0 : i32
    %c0_i32_0 = arith.constant 0 : i32
    %c0_i32_1 = arith.constant 0 : i32
    return %c0_i32, %c0_i32_0 : i32, i32
  }
  func.func @transform_3(%arg0: i32) -> (i32, i32) {
    %c0_i32 = arith.constant 0 : i32
    %c0_i32_0 = arith.constant 0 : i32
    %c0_i32_1 = arith.constant 0 : i32
    return %c0_i32, %c0_i32_0 : i32, i32
  }
  func.func @transform_4(%arg0: i32) -> (i32, i32, i32, i32) {
    %c0_i32 = arith.constant 0 : i32
    %c0_i32_0 = arith.constant 0 : i32
    %c0_i32_1 = arith.constant 0 : i32
    %c0_i32_2 = arith.constant 0 : i32
    return %c0_i32, %c0_i32_0, %c0_i32_1, %arg0 : i32, i32, i32, i32
  }
  func.func @transform_5(%arg0: i32) -> (i32, i32) {
    %c0_i32 = arith.constant 0 : i32
    %c0_i32_0 = arith.constant 0 : i32
    return %c0_i32, %arg0 : i32, i32
  }
  func.func @transform_6(%arg0: i32) -> (i32, i32) {
    %c0_i32 = arith.constant 0 : i32
    %c0_i32_0 = arith.constant 0 : i32
    return %c0_i32, %arg0 : i32, i32
  }
}

module attributes {stable_mosaic.version = 11 : i64} {
  func.func @_scale_shift_relu_kernel(%arg0: i32, %arg1: memref<256x128xf32, #tpu.memory_space<vmem>>, %arg2: memref<1x128xf32, #tpu.memory_space<vmem>>, %arg3: memref<1x128xf32, #tpu.memory_space<vmem>>, %arg4: memref<256x128xf32, #tpu.memory_space<vmem>>) attributes {dimension_semantics = [#tpu.dimension_semantics<parallel>], iteration_bounds = array<i64: 1>, scalar_prefetch = 0 : i64, scratch_operands = 0 : i64, tpu.core_type = #tpu.core_type<tc>, window_params = [{transform_indices = @transform_0, window_bounds = array<i64: 256, 128>}, {pipeline_mode = #tpu.pipeline_mode<synchronous>, transform_indices = @transform_1, window_bounds = array<i64: 1, 128>}, {pipeline_mode = #tpu.pipeline_mode<synchronous>, transform_indices = @transform_2, window_bounds = array<i64: 1, 128>}, {transform_indices = @transform_3, window_bounds = array<i64: 256, 128>}]} {
    %c0 = arith.constant 0 : index
    %c0_0 = arith.constant 0 : index
    %0 = vector.load %arg1[%c0, %c0_0] : memref<256x128xf32, #tpu.memory_space<vmem>>, vector<256x128xf32>
    %c0_1 = arith.constant 0 : index
    %c0_2 = arith.constant 0 : index
    %1 = vector.load %arg2[%c0_1, %c0_2] : memref<1x128xf32, #tpu.memory_space<vmem>>, vector<1x128xf32>
    %2 = vector.broadcast %1 : vector<1x128xf32> to vector<256x128xf32>
    %3 = arith.mulf %0, %2 : vector<256x128xf32>
    %c0_3 = arith.constant 0 : index
    %c0_4 = arith.constant 0 : index
    %4 = vector.load %arg3[%c0_3, %c0_4] : memref<1x128xf32, #tpu.memory_space<vmem>>, vector<1x128xf32>
    %5 = vector.broadcast %4 : vector<1x128xf32> to vector<256x128xf32>
    %6 = arith.addf %3, %5 : vector<256x128xf32>
    %cst = arith.constant 0.000000e+00 : f32
    %7 = vector.broadcast %cst : f32 to vector<256x128xf32>
    %8 = arith.maximumf %6, %7 : vector<256x128xf32>
    %c0_5 = arith.constant 0 : index
    %c0_6 = arith.constant 0 : index
    %9 = vector.load %arg4[%c0_5, %c0_6] : memref<256x128xf32, #tpu.memory_space<vmem>>, vector<256x128xf32>
    tpu.vector_store %arg4[%c0_5, %c0_6], %8 {strides = array<i32>} : memref<256x128xf32, #tpu.memory_space<vmem>>, vector<256x128xf32>,
    return
  }
  func.func @transform_0(%arg0: i32) -> (i32, i32) {
    %c0_i32 = arith.constant 0 : i32
    %c0_i32_0 = arith.constant 0 : i32
    return %arg0, %c0_i32 : i32, i32
  }
  func.func @transform_1(%arg0: i32) -> (i32, i32) {
    %c0_i32 = arith.constant 0 : i32
    %c0_i32_0 = arith.constant 0 : i32
    %c0_i32_1 = arith.constant 0 : i32
    return %c0_i32, %c0_i32_0 : i32, i32
  }
  func.func @transform_2(%arg0: i32) -> (i32, i32) {
    %c0_i32 = arith.constant 0 : i32
    %c0_i32_0 = arith.constant 0 : i32
    %c0_i32_1 = arith.constant 0 : i32
    return %c0_i32, %c0_i32_0 : i32, i32
  }
  func.func @transform_3(%arg0: i32) -> (i32, i32) {
    %c0_i32 = arith.constant 0 : i32
    %c0_i32_0 = arith.constant 0 : i32
    return %arg0, %c0_i32 : i32, i32
  }
}

</mosaic_0001>

<llo_original>
// kernel: double_conv.5
$region0: #{double_conv.5}
  #allocation0 [shape = 'u32[]', space=smem, size = 0x4, offset = 0x4, fixed_abs, tag = 'smem constant byte address 0x4 - core index']
  #allocation1 [shape = 'u32[144,128]{1,0:T(1,128)}', space=vmem, size = 0x12000, scoped, tag = 'internal scratch']
  %s0 = inlined_call_operand.vmem [shape: f32[256,128], index: 0, kind: input, shape index: {}]
  %s1 = inlined_call_operand.vmem [shape: f32[1,128], index: 1, kind: input, shape index: {}]
  %s2 = inlined_call_operand.vmem [shape: f32[1,128], index: 2, kind: input, shape index: {}]
  %s3 = inlined_call_operand.vmem [shape: f32[256,128], index: 3, kind: output, shape index: {}]
  %s4 = sld [smem:[#allocation0]]
  $region22: #{double_conv.5} parent=0
    _
  %s6 = ssub.s32 1, %s4
  %s7 = scalar_select 0, %s6, %s4
  // Predicated region
  $region2: #{double_conv.5} parent=0 // pred_check
    _
  $region3: #{double_conv.5} parent=0 // pred_check_branch
    %9 = sbr.rel (0) target = $region5
  $region4: #{double_conv.5} parent=0 // pred_region
    _
  $region5: #{double_conv.5} parent=0 // pred_fallthru
    _
  // Predicated region
  $region6: #{double_conv.5} parent=0 // pred_check
    _
  $region7: #{double_conv.5} parent=0 // pred_check_branch
    %11 = sbr.rel (0) target = $region9
  $region8: #{double_conv.5} parent=0 // pred_region
    _
  $region9: #{double_conv.5} parent=0 // pred_fallthru
    _
  // Predicated region
  $region10: #{double_conv.5} parent=0 // pred_check
    _
  $region11: #{double_conv.5} parent=0 // pred_check_branch
    %13 = sbr.rel (0) target = $region13
  $region12: #{double_conv.5} parent=0 // pred_region
    _
  $region13: #{double_conv.5} parent=0 // pred_fallthru
    _
  %v14 = vld [vmem:[%s0] sm:$0xff]
  %v15 = vld [vmem:[%s0 + $0x8] sm:$0xff]
  %v16 = vld [vmem:[%s0 + $0x10] sm:$0xff]
  %v17 = vld [vmem:[%s0 + $0x18] sm:$0xff]
  %v18 = vld [vmem:[%s0 + $0x20] sm:$0xff]
  %v19 = vld [vmem:[%s0 + $0x28] sm:$0xff]
  %v20 = vld [vmem:[%s0 + $0x30] sm:$0xff]
  %v21 = vld [vmem:[%s0 + $0x38] sm:$0xff]
  %v22 = vld [vmem:[%s0 + $0x40] sm:$0xff]
  %v23 = vld [vmem:[%s0 + $0x48] sm:$0xff]
  %v24 = vld [vmem:[%s0 + $0x50] sm:$0xff]
  %v25 = vld [vmem:[%s0 + $0x58] sm:$0xff]
  %v26 = vld [vmem:[%s0 + $0x60] sm:$0xff]
  %v27 = vld [vmem:[%s0 + $0x68] sm:$0xff]
  %v28 = vld [vmem:[%s0 + $0x70] sm:$0xff]
  %v29 = vld [vmem:[%s0 + $0x78] sm:$0xff]
  %v30 = vld [vmem:[%s0 + $0x80] sm:$0xff]
  %v31 = vld [vmem:[%s0 + $0x88] sm:$0xff]
  %v32 = vld [vmem:[%s0 + $0x90] sm:$0xff]
  %v33 = vld [vmem:[%s0 + $0x98] sm:$0xff]
  %v34 = vld [vmem:[%s0 + $0xa0] sm:$0xff]
  %v35 = vld [vmem:[%s0 + $0xa8] sm:$0xff]
  %v36 = vld [vmem:[%s0 + $0xb0] sm:$0xff]
  %v37 = vld [vmem:[%s0 + $0xb8] sm:$0xff]
  %v38 = vld [vmem:[%s0 + $0xc0] sm:$0xff]
  %v39 = vld [vmem:[%s0 + $0xc8] sm:$0xff]
  %v40 = vld [vmem:[%s0 + $0xd0] sm:$0xff]
  %v41 = vld [vmem:[%s0 + $0xd8] sm:$0xff]
  %v42 = vld [vmem:[%s0 + $0xe0] sm:$0xff]
  %v43 = vld [vmem:[%s0 + $0xe8] sm:$0xff]
  %v44 = vld [vmem:[%s0 + $0xf0] sm:$0xff]
  %v45 = vld [vmem:[%s0 + $0xf8] sm:$0xff]
  %v46 = vld [vmem:[%s1] sm:$0x1]
  %v48 = vlaneseq
  %v49 = vshrl.u32 %v48, 7
  %v50 = vsub.s32 0, %v49
  %v51 = vrot.slane %v46, %v50
  %v53 = vmul.f32 %v14, %v51
  %v54 = vmul.f32 %v15, %v51
  %v55 = vmul.f32 %v16, %v51
  %v56 = vmul.f32 %v17, %v51
  %v57 = vmul.f32 %v18, %v51
  %v58 = vmul.f32 %v19, %v51
  %v59 = vmul.f32 %v20, %v51
  %v60 = vmul.f32 %v21, %v51
  %v61 = vmul.f32 %v22, %v51
  %v62 = vmul.f32 %v23, %v51
  %v63 = vmul.f32 %v24, %v51
  %v64 = vmul.f32 %v25, %v51
  %v65 = vmul.f32 %v26, %v51
  %v66 = vmul.f32 %v27, %v51
  %v67 = vmul.f32 %v28, %v51
  %v68 = vmul.f32 %v29, %v51
  %v69 = vmul.f32 %v30, %v51
  %v70 = vmul.f32 %v31, %v51
  %v71 = vmul.f32 %v32, %v51
  %v72 = vmul.f32 %v33, %v51
  %v73 = vmul.f32 %v34, %v51
  %v74 = vmul.f32 %v35, %v51
  %v75 = vmul.f32 %v36, %v51
  %v76 = vmul.f32 %v37, %v51
  %v77 = vmul.f32 %v38, %v51
  %v78 = vmul.f32 %v39, %v51
  %v79 = vmul.f32 %v40, %v51
  %v80 = vmul.f32 %v41, %v51
  %v81 = vmul.f32 %v42, %v51
  %v82 = vmul.f32 %v43, %v51
  %v83 = vmul.f32 %v44, %v51
  %v84 = vmul.f32 %v45, %v51
  %v85 = vld [vmem:[%s2] sm:$0x1]
  %v87 = vlaneseq
  %v88 = vshrl.u32 %v87, 7
  %v89 = vsub.s32 0, %v88
  %v90 = vrot.slane %v85, %v89
  %v92 = vadd.f32 %v53, %v90
  %v93 = vadd.f32 %v54, %v90
  %v94 = vadd.f32 %v55, %v90
  %v95 = vadd.f32 %v56, %v90
  %v96 = vadd.f32 %v57, %v90
  %v97 = vadd.f32 %v58, %v90
  %v98 = vadd.f32 %v59, %v90
  %v99 = vadd.f32 %v60, %v90
  %v100 = vadd.f32 %v61, %v90
  %v101 = vadd.f32 %v62, %v90
  %v102 = vadd.f32 %v63, %v90
  %v103 = vadd.f32 %v64, %v90
  %v104 = vadd.f32 %v65, %v90
  %v105 = vadd.f32 %v66, %v90
  %v106 = vadd.f32 %v67, %v90
  %v107 = vadd.f32 %v68, %v90
  %v108 = vadd.f32 %v69, %v90
  %v109 = vadd.f32 %v70, %v90
  %v110 = vadd.f32 %v71, %v90
  %v111 = vadd.f32 %v72, %v90
  %v112 = vadd.f32 %v73, %v90
  %v113 = vadd.f32 %v74, %v90
  %v114 = vadd.f32 %v75, %v90
  %v115 = vadd.f32 %v76, %v90
  %v116 = vadd.f32 %v77, %v90
  %v117 = vadd.f32 %v78, %v90
  %v118 = vadd.f32 %v79, %v90
  %v119 = vadd.f32 %v80, %v90
  %v120 = vadd.f32 %v81, %v90
  %v121 = vadd.f32 %v82, %v90
  %v122 = vadd.f32 %v83, %v90
  %v123 = vadd.f32 %v84, %v90
  %v124 = vmax.f32 %v92, 0.0
  %v125 = vmax.f32 %v93, 0.0
  %v126 = vmax.f32 %v94, 0.0
  %v127 = vmax.f32 %v95, 0.0
  %v128 = vmax.f32 %v96, 0.0
  %v129 = vmax.f32 %v97, 0.0
  %v130 = vmax.f32 %v98, 0.0
  %v131 = vmax.f32 %v99, 0.0
  %v132 = vmax.f32 %v100, 0.0
  %v133 = vmax.f32 %v101, 0.0
  %v134 = vmax.f32 %v102, 0.0
  %v135 = vmax.f32 %v103, 0.0
  %v136 = vmax.f32 %v104, 0.0
  %v137 = vmax.f32 %v105, 0.0
  %v138 = vmax.f32 %v106, 0.0
  %v139 = vmax.f32 %v107, 0.0
  %v140 = vmax.f32 %v108, 0.0
  %v141 = vmax.f32 %v109, 0.0
  %v142 = vmax.f32 %v110, 0.0
  %v143 = vmax.f32 %v111, 0.0
  %v144 = vmax.f32 %v112, 0.0
  %v145 = vmax.f32 %v113, 0.0
  %v146 = vmax.f32 %v114, 0.0
  %v147 = vmax.f32 %v115, 0.0
  %v148 = vmax.f32 %v116, 0.0
  %v149 = vmax.f32 %v117, 0.0
  %v150 = vmax.f32 %v118, 0.0
  %v151 = vmax.f32 %v119, 0.0
  %v152 = vmax.f32 %v120, 0.0
  %v153 = vmax.f32 %v121, 0.0
  %v154 = vmax.f32 %v122, 0.0
  %v155 = vmax.f32 %v123, 0.0
  %156 = vst [vmem:[%s3] sm:$0xff] %v124
  %157 = vst [vmem:[%s3 + $0x8] sm:$0xff] %v125
  %158 = vst [vmem:[%s3 + $0x10] sm:$0xff] %v126
  %159 = vst [vmem:[%s3 + $0x18] sm:$0xff] %v127
  %160 = vst [vmem:[%s3 + $0x20] sm:$0xff] %v128
  %161 = vst [vmem:[%s3 + $0x28] sm:$0xff] %v129
  %162 = vst [vmem:[%s3 + $0x30] sm:$0xff] %v130
  %163 = vst [vmem:[%s3 + $0x38] sm:$0xff] %v131
  %164 = vst [vmem:[%s3 + $0x40] sm:$0xff] %v132
  %165 = vst [vmem:[%s3 + $0x48] sm:$0xff] %v133
  %166 = vst [vmem:[%s3 + $0x50] sm:$0xff] %v134
  %167 = vst [vmem:[%s3 + $0x58] sm:$0xff] %v135
  %168 = vst [vmem:[%s3 + $0x60] sm:$0xff] %v136
  %169 = vst [vmem:[%s3 + $0x68] sm:$0xff] %v137
  %170 = vst [vmem:[%s3 + $0x70] sm:$0xff] %v138
  %171 = vst [vmem:[%s3 + $0x78] sm:$0xff] %v139
  %172 = vst [vmem:[%s3 + $0x80] sm:$0xff] %v140
  %173 = vst [vmem:[%s3 + $0x88] sm:$0xff] %v141
  %174 = vst [vmem:[%s3 + $0x90] sm:$0xff] %v142
  %175 = vst [vmem:[%s3 + $0x98] sm:$0xff] %v143
  %176 = vst [vmem:[%s3 + $0xa0] sm:$0xff] %v144
  %177 = vst [vmem:[%s3 + $0xa8] sm:$0xff] %v145
  %178 = vst [vmem:[%s3 + $0xb0] sm:$0xff] %v146
  %179 = vst [vmem:[%s3 + $0xb8] sm:$0xff] %v147
  %180 = vst [vmem:[%s3 + $0xc0] sm:$0xff] %v148
  %181 = vst [vmem:[%s3 + $0xc8] sm:$0xff] %v149
  %182 = vst [vmem:[%s3 + $0xd0] sm:$0xff] %v150
  %183 = vst [vmem:[%s3 + $0xd8] sm:$0xff] %v151
  %184 = vst [vmem:[%s3 + $0xe0] sm:$0xff] %v152
  %185 = vst [vmem:[%s3 + $0xe8] sm:$0xff] %v153
  %186 = vst [vmem:[%s3 + $0xf0] sm:$0xff] %v154
  %187 = vst [vmem:[%s3 + $0xf8] sm:$0xff] %v155
  // Predicated region
  $region14: #{double_conv.5} parent=0 // pred_check
    _
  $region15: #{double_conv.5} parent=0 // pred_check_branch
    %189 = sbr.rel (0) target = $region17
  $region16: #{double_conv.5} parent=0 // pred_region
    _
  $region17: #{double_conv.5} parent=0 // pred_fallthru
    _
  // Predicated region
  $region18: #{double_conv.5} parent=0 // pred_check
    _
  $region19: #{double_conv.5} parent=0 // pred_check_branch
    %191 = sbr.rel (0) target = $region21
  $region20: #{double_conv.5} parent=0 // pred_region
    _
  $region21: #{double_conv.5} parent=0 // pred_fallthru
    _

// kernel: double_conv.3
$region0: #{double_conv.3}
  #allocation0 [shape = 'u32[]', space=smem, size = 0x4, offset = 0x4, fixed_abs, tag = 'smem constant byte address 0x4 - core index']
  #allocation1 [shape = 'u32[144,128]{1,0:T(1,128)}', space=vmem, size = 0x12000, scoped, tag = 'internal scratch']
  #allocation2 [shape = 'bf16[2,18,16,12]{3,2,1,0:T(16,128)(2,1)}', space=vmem, size = 0x24000, scoped, tag = 'scratch operand']
  %s0 = inlined_call_operand.vmem [shape: f32[2,16,16,4], index: 0, kind: input, shape index: {}]
  %s1 = inlined_call_operand.vmem [shape: bf16[3,12,64], index: 1, kind: input, shape index: {}]
  %s2 = inlined_call_operand.vmem [shape: f32[1,4], index: 2, kind: input, shape index: {}]
  %s3 = inlined_call_operand.vmem [shape: f32[1,4], index: 3, kind: input, shape index: {}]
  %s4 = inlined_call_operand.vmem [shape: bf16[2,16,16,64], index: 4, kind: output, shape index: {0}]
  %s5 = inlined_call_operand.vmem [shape: f32[1,64], index: 5, kind: output, shape index: {1}]
  %s6 = inlined_call_operand.vmem [shape: f32[1,64], index: 6, kind: output, shape index: {2}]
  %7 = xla_tuple %s4, %s5, %s6
  %s8 = sld [smem:[#allocation0]]
  $region46: #{double_conv.3} parent=0
    _
  %s10 = ssub.s32 1, %s8
  %s11 = scalar_select 0, %s10, %s8
  // Predicated region
  $region2: #{double_conv.3} parent=0 // pred_check
    _
  $region3: #{double_conv.3} parent=0 // pred_check_branch
    %13 = sbr.rel (0) target = $region5
  $region4: #{double_conv.3} parent=0 // pred_region
    _
  $region5: #{double_conv.3} parent=0 // pred_fallthru
    _
  // Predicated region
  $region6: #{double_conv.3} parent=0 // pred_check
    _
  $region7: #{double_conv.3} parent=0 // pred_check_branch
    %15 = sbr.rel (0) target = $region9
  $region8: #{double_conv.3} parent=0 // pred_region
    _
  $region9: #{double_conv.3} parent=0 // pred_fallthru
    _
  // Predicated region
  $region10: #{double_conv.3} parent=0 // pred_check
    _
  $region11: #{double_conv.3} parent=0 // pred_check_branch
    %17 = sbr.rel (0) target = $region13
  $region12: #{double_conv.3} parent=0 // pred_region
    _
  $region13: #{double_conv.3} parent=0 // pred_fallthru
    _
  // Predicated region
  $region14: #{double_conv.3} parent=0 // pred_check
    _
  $region15: #{double_conv.3} parent=0 // pred_check_branch
    %19 = sbr.rel (0) target = $region17
  $region16: #{double_conv.3} parent=0 // pred_region
    _
  $region17: #{double_conv.3} parent=0 // pred_fallthru
    _
  %p21 = scmp.eq.s32.totalorder 0, 0
  // Predicated region
  $region18: #{double_conv.3} parent=0 // pred_check
    %p22 = pneg %p21
  $region19: #{double_conv.3} parent=0 // pred_check_branch
    %24 = sbr.rel (%p22) target = $region21
  $region20: #{double_conv.3} parent=0 // pred_region
    %v25 = vld [vmem:[%s0] sm:$0xff]
    %v26 = vld [vmem:[%s0 + $0x8] sm:$0xff]
    %v27 = vld [vmem:[%s0 + $0x10] sm:$0xff]
    %v28 = vld [vmem:[%s0 + $0x18] sm:$0xff]
    %v29 = vld [vmem:[%s0 + $0x20] sm:$0xff]
    %v30 = vld [vmem:[%s0 + $0x28] sm:$0xff]
    %v31 = vld [vmem:[%s0 + $0x30] sm:$0xff]
    %v32 = vld [vmem:[%s0 + $0x38] sm:$0xff]
    %v33 = vld [vmem:[%s0 + $0x40] sm:$0xff]
    %v34 = vld [vmem:[%s0 + $0x48] sm:$0xff]
    %v35 = vld [vmem:[%s0 + $0x50] sm:$0xff]
    %v36 = vld [vmem:[%s0 + $0x58] sm:$0xff]
    %v37 = vld [vmem:[%s0 + $0x60] sm:$0xff]
    %v38 = vld [vmem:[%s0 + $0x68] sm:$0xff]
    %v39 = vld [vmem:[%s0 + $0x70] sm:$0xff]
    %v40 = vld [vmem:[%s0 + $0x78] sm:$0xff]
    %v41 = vld [vmem:[%s0 + $0x80] sm:$0xff]
    %v42 = vld [vmem:[%s0 + $0x88] sm:$0xff]
    %v43 = vld [vmem:[%s0 + $0x90] sm:$0xff]
    %v44 = vld [vmem:[%s0 + $0x98] sm:$0xff]
    %v45 = vld [vmem:[%s0 + $0xa0] sm:$0xff]
    %v46 = vld [vmem:[%s0 + $0xa8] sm:$0xff]
    %v47 = vld [vmem:[%s0 + $0xb0] sm:$0xff]
    %v48 = vld [vmem:[%s0 + $0xb8] sm:$0xff]
    %v49 = vld [vmem:[%s0 + $0xc0] sm:$0xff]
    %v50 = vld [vmem:[%s0 + $0xc8] sm:$0xff]
    %v51 = vld [vmem:[%s0 + $0xd0] sm:$0xff]
    %v52 = vld [vmem:[%s0 + $0xd8] sm:$0xff]
    %v53 = vld [vmem:[%s0 + $0xe0] sm:$0xff]
    %v54 = vld [vmem:[%s0 + $0xe8] sm:$0xff]
    %v55 = vld [vmem:[%s0 + $0xf0] sm:$0xff]
    %v56 = vld [vmem:[%s0 + $0xf8] sm:$0xff]
    %v57 = vld [vmem:[%s0 + $0x100] sm:$0xff]
    %v58 = vld [vmem:[%s0 + $0x108] sm:$0xff]
    %v59 = vld [vmem:[%s0 + $0x110] sm:$0xff]
    %v60 = vld [vmem:[%s0 + $0x118] sm:$0xff]
    %v61 = vld [vmem:[%s0 + $0x120] sm:$0xff]
    %v62 = vld [vmem:[%s0 + $0x128] sm:$0xff]
    %v63 = vld [vmem:[%s0 + $0x130] sm:$0xff]
    %v64 = vld [vmem:[%s0 + $0x138] sm:$0xff]
    %v65 = vld [vmem:[%s0 + $0x140] sm:$0xff]
    %v66 = vld [vmem:[%s0 + $0x148] sm:$0xff]
    %v67 = vld [vmem:[%s0 + $0x150] sm:$0xff]
    %v68 = vld [vmem:[%s0 + $0x158] sm:$0xff]
    %v69 = vld [vmem:[%s0 + $0x160] sm:$0xff]
    %v70 = vld [vmem:[%s0 + $0x168] sm:$0xff]
    %v71 = vld [vmem:[%s0 + $0x170] sm:$0xff]
    %v72 = vld [vmem:[%s0 + $0x178] sm:$0xff]
    %v73 = vld [vmem:[%s0 + $0x180] sm:$0xff]
    %v74 = vld [vmem:[%s0 + $0x188] sm:$0xff]
    %v75 = vld [vmem:[%s0 + $0x190] sm:$0xff]
    %v76 = vld [vmem:[%s0 + $0x198] sm:$0xff]
    %v77 = vld [vmem:[%s0 + $0x1a0] sm:$0xff]
    %v78 = vld [vmem:[%s0 + $0x1a8] sm:$0xff]
    %v79 = vld [vmem:[%s0 + $0x1b0] sm:$0xff]
    %v80 = vld [vmem:[%s0 + $0x1b8] sm:$0xff]
    %v81 = vld [vmem:[%s0 + $0x1c0] sm:$0xff]
    %v82 = vld [vmem:[%s0 + $0x1c8] sm:$0xff]
    %v83 = vld [vmem:[%s0 + $0x1d0] sm:$0xff]
    %v84 = vld [vmem:[%s0 + $0x1d8] sm:$0xff]
    %v85 = vld [vmem:[%s0 + $0x1e0] sm:$0xff]
    %v86 = vld [vmem:[%s0 + $0x1e8] sm:$0xff]
    %v87 = vld [vmem:[%s0 + $0x1f0] sm:$0xff]
    %v88 = vld [vmem:[%s0 + $0x1f8] sm:$0xff]
    %v89 = vpack.c.bf16 %v26, %v25
    %v90 = vpack.c.bf16 %v28, %v27
    %v91 = vpack.c.bf16 %v30, %v29
    %v92 = vpack.c.bf16 %v32, %v31
    %v93 = vpack.c.bf16 %v34, %v33
    %v94 = vpack.c.bf16 %v36, %v35
    %v95 = vpack.c.bf16 %v38, %v37
    %v96 = vpack.c.bf16 %v40, %v39
    %v97 = vpack.c.bf16 %v42, %v41
    %v98 = vpack.c.bf16 %v44, %v43
    %v99 = vpack.c.bf16 %v46, %v45
    %v100 = vpack.c.bf16 %v48, %v47
    %v101 = vpack.c.bf16 %v50, %v49
    %v102 = vpack.c.bf16 %v52, %v51
    %v103 = vpack.c.bf16 %v54, %v53
    %v104 = vpack.c.bf16 %v56, %v55
    %v105 = vpack.c.bf16 %v58, %v57
    %v106 = vpack.c.bf16 %v60, %v59
    %v107 = vpack.c.bf16 %v62, %v61
    %v108 = vpack.c.bf16 %v64, %v63
    %v109 = vpack.c.bf16 %v66, %v65
    %v110 = vpack.c.bf16 %v68, %v67
    %v111 = vpack.c.bf16 %v70, %v69
    %v112 = vpack.c.bf16 %v72, %v71
    %v113 = vpack.c.bf16 %v74, %v73
    %v114 = vpack.c.bf16 %v76, %v75
    %v115 = vpack.c.bf16 %v78, %v77
    %v116 = vpack.c.bf16 %v80, %v79
    %v117 = vpack.c.bf16 %v82, %v81
    %v118 = vpack.c.bf16 %v84, %v83
    %v119 = vpack.c.bf16 %v86, %v85
    %v120 = vpack.c.bf16 %v88, %v87
    %v122 = vshrl.u32 %v89, 16
    %v124 = vrot.slane %v122, 7
    %v125 = vshll.u32 %v89, 16
    %v127 = vor.u32 %v124, %v125
    %v129 = vshrl.u32 %v90, 16
    %v131 = vrot.slane %v129, 7
    %v132 = vshll.u32 %v90, 16
    %v134 = vor.u32 %v131, %v132
    %v136 = vshrl.u32 %v91, 16
    %v138 = vrot.slane %v136, 7
    %v139 = vshll.u32 %v91, 16
    %v141 = vor.u32 %v138, %v139
    %v143 = vshrl.u32 %v92, 16
    %v145 = vrot.slane %v143, 7
    %v146 = vshll.u32 %v92, 16
    %v148 = vor.u32 %v145, %v146
    %v150 = vshrl.u32 %v93, 16
    %v152 = vrot.slane %v150, 7
    %v153 = vshll.u32 %v93, 16
    %v155 = vor.u32 %v152, %v153
    %v157 = vshrl.u32 %v94, 16
    %v159 = vrot.slane %v157, 7
    %v160 = vshll.u32 %v94, 16
    %v162 = vor.u32 %v159, %v160
    %v164 = vshrl.u32 %v95, 16
    %v166 = vrot.slane %v164, 7
    %v167 = vshll.u32 %v95, 16
    %v169 = vor.u32 %v166, %v167
    %v171 = vshrl.u32 %v96, 16
    %v173 = vrot.slane %v171, 7
    %v174 = vshll.u32 %v96, 16
    %v176 = vor.u32 %v173, %v174
    %v178 = vshrl.u32 %v97, 16
    %v180 = vrot.slane %v178, 7
    %v181 = vshll.u32 %v97, 16
    %v183 = vor.u32 %v180, %v181
    %v185 = vshrl.u32 %v98, 16
    %v187 = vrot.slane %v185, 7
    %v188 = vshll.u32 %v98, 16
    %v190 = vor.u32 %v187, %v188
    %v192 = vshrl.u32 %v99, 16
    %v194 = vrot.slane %v192, 7
    %v195 = vshll.u32 %v99, 16
    %v197 = vor.u32 %v194, %v195
    %v199 = vshrl.u32 %v100, 16
    %v201 = vrot.slane %v199, 7
    %v202 = vshll.u32 %v100, 16
    %v204 = vor.u32 %v201, %v202
    %v206 = vshrl.u32 %v101, 16
    %v208 = vrot.slane %v206, 7
    %v209 = vshll.u32 %v101, 16
    %v211 = vor.u32 %v208, %v209
    %v213 = vshrl.u32 %v102, 16
    %v215 = vrot.slane %v213, 7
    %v216 = vshll.u32 %v102, 16
    %v218 = vor.u32 %v215, %v216
    %v220 = vshrl.u32 %v103, 16
    %v222 = vrot.slane %v220, 7
    %v223 = vshll.u32 %v103, 16
    %v225 = vor.u32 %v222, %v223
    %v227 = vshrl.u32 %v104, 16
    %v229 = vrot.slane %v227, 7
    %v230 = vshll.u32 %v104, 16
    %v232 = vor.u32 %v229, %v230
    %v234 = vshrl.u32 %v105, 16
    %v236 = vrot.slane %v234, 7
    %v237 = vshll.u32 %v105, 16
    %v239 = vor.u32 %v236, %v237
    %v241 = vshrl.u32 %v106, 16
    %v243 = vrot.slane %v241, 7
    %v244 = vshll.u32 %v106, 16
    %v246 = vor.u32 %v243, %v244
    %v248 = vshrl.u32 %v107, 16
    %v250 = vrot.slane %v248, 7
    %v251 = vshll.u32 %v107, 16
    %v253 = vor.u32 %v250, %v251
    %v255 = vshrl.u32 %v108, 16
    %v257 = vrot.slane %v255, 7
    %v258 = vshll.u32 %v108, 16
    %v260 = vor.u32 %v257, %v258
    %v262 = vshrl.u32 %v109, 16
    %v264 = vrot.slane %v262, 7
    %v265 = vshll.u32 %v109, 16
    %v267 = vor.u32 %v264, %v265
    %v269 = vshrl.u32 %v110, 16
    %v271 = vrot.slane %v269, 7
    %v272 = vshll.u32 %v110, 16
    %v274 = vor.u32 %v271, %v272
    %v276 = vshrl.u32 %v111, 16
    %v278 = vrot.slane %v276, 7
    %v279 = vshll.u32 %v111, 16
    %v281 = vor.u32 %v278, %v279
    %v283 = vshrl.u32 %v112, 16
    %v285 = vrot.slane %v283, 7
    %v286 = vshll.u32 %v112, 16
    %v288 = vor.u32 %v285, %v286
    %v290 = vshrl.u32 %v113, 16
    %v292 = vrot.slane %v290, 7
    %v293 = vshll.u32 %v113, 16
    %v295 = vor.u32 %v292, %v293
    %v297 = vshrl.u32 %v114, 16
    %v299 = vrot.slane %v297, 7
    %v300 = vshll.u32 %v114, 16
    %v302 = vor.u32 %v299, %v300
    %v304 = vshrl.u32 %v115, 16
    %v306 = vrot.slane %v304, 7
    %v307 = vshll.u32 %v115, 16
    %v309 = vor.u32 %v306, %v307
    %v311 = vshrl.u32 %v116, 16
    %v313 = vrot.slane %v311, 7
    %v314 = vshll.u32 %v116, 16
    %v316 = vor.u32 %v313, %v314
    %v318 = vshrl.u32 %v117, 16
    %v320 = vrot.slane %v318, 7
    %v321 = vshll.u32 %v117, 16
    %v323 = vor.u32 %v320, %v321
    %v325 = vshrl.u32 %v118, 16
    %v327 = vrot.slane %v325, 7
    %v328 = vshll.u32 %v118, 16
    %v330 = vor.u32 %v327, %v328
    %v332 = vshrl.u32 %v119, 16
    %v334 = vrot.slane %v332, 7
    %v335 = vshll.u32 %v119, 16
    %v337 = vor.u32 %v334, %v335
    %v339 = vshrl.u32 %v120, 16
    %v341 = vrot.slane %v339, 7
    %v342 = vshll.u32 %v120, 16
    %v344 = vor.u32 %v341, %v342
    %vm377 = vcmask 1040384
    %vm378 = vsmask.f32 256
    %vm379 = vmand %vm377, %vm378
    %v380 = vsel %vm379, 0, %v127
    %v381 = vsel %vm379, 0, %v134
    %v382 = vsel %vm379, 0, %v141
    %v383 = vsel %vm379, 0, %v148
    %v384 = vsel %vm379, 0, %v155
    %v385 = vsel %vm379, 0, %v162
    %v386 = vsel %vm379, 0, %v169
    %v387 = vsel %vm379, 0, %v176
    %v388 = vsel %vm379, 0, %v183
    %v389 = vsel %vm379, 0, %v190
    %v390 = vsel %vm379, 0, %v197
    %v391 = vsel %vm379, 0, %v204
    %v392 = vsel %vm379, 0, %v211
    %v393 = vsel %vm379, 0, %v218
    %v394 = vsel %vm379, 0, %v225
    %v395 = vsel %vm379, 0, %v232
    %v396 = vsel %vm379, 0, %v239
    %v397 = vsel %vm379, 0, %v246
    %v398 = vsel %vm379, 0, %v253
    %v399 = vsel %vm379, 0, %v260
    %v400 = vsel %vm379, 0, %v267
    %v401 = vsel %vm379, 0, %v274
    %v402 = vsel %vm379, 0, %v281
    %v403 = vsel %vm379, 0, %v288
    %v404 = vsel %vm379, 0, %v295
    %v405 = vsel %vm379, 0, %v302
    %v406 = vsel %vm379, 0, %v309
    %v407 = vsel %vm379, 0, %v316
    %v408 = vsel %vm379, 0, %v323
    %v409 = vsel %vm379, 0, %v330
    %v410 = vsel %vm379, 0, %v337
    %v411 = vsel %vm379, 0, %v344
    %v412 = vrot.slane %v125, 1
    %v413 = vor.u32 %v122, %v412
    %v414 = vrot.slane %v132, 1
    %v415 = vor.u32 %v129, %v414
    %v416 = vrot.slane %v139, 1
    %v417 = vor.u32 %v136, %v416
    %v418 = vrot.slane %v146, 1
    %v419 = vor.u32 %v143, %v418
    %v420 = vrot.slane %v153, 1
    %v421 = vor.u32 %v150, %v420
    %v422 = vrot.slane %v160, 1
    %v423 = vor.u32 %v157, %v422
    %v424 = vrot.slane %v167, 1
    %v425 = vor.u32 %v164, %v424
    %v426 = vrot.slane %v174, 1
    %v427 = vor.u32 %v171, %v426
    %v428 = vrot.slane %v181, 1
    %v429 = vor.u32 %v178, %v428
    %v430 = vrot.slane %v188, 1
    %v431 = vor.u32 %v185, %v430
    %v432 = vrot.slane %v195, 1
    %v433 = vor.u32 %v192, %v432
    %v434 = vrot.slane %v202, 1
    %v435 = vor.u32 %v199, %v434
    %v436 = vrot.slane %v209, 1
    %v437 = vor.u32 %v206, %v436
    %v438 = vrot.slane %v216, 1
    %v439 = vor.u32 %v213, %v438
    %v440 = vrot.slane %v223, 1
    %v441 = vor.u32 %v220, %v440
    %v442 = vrot.slane %v230, 1
    %v443 = vor.u32 %v227, %v442
    %v444 = vrot.slane %v237, 1
    %v445 = vor.u32 %v234, %v444
    %v446 = vrot.slane %v244, 1
    %v447 = vor.u32 %v241, %v446
    %v448 = vrot.slane %v251, 1
    %v449 = vor.u32 %v248, %v448
    %v450 = vrot.slane %v258, 1
    %v451 = vor.u32 %v255, %v450
    %v452 = vrot.slane %v265, 1
    %v453 = vor.u32 %v262, %v452
    %v454 = vrot.slane %v272, 1
    %v455 = vor.u32 %v269, %v454
    %v456 = vrot.slane %v279, 1
    %v457 = vor.u32 %v276, %v456
    %v458 = vrot.slane %v286, 1
    %v459 = vor.u32 %v283, %v458
    %v460 = vrot.slane %v293, 1
    %v461 = vor.u32 %v290, %v460
    %v462 = vrot.slane %v300, 1
    %v463 = vor.u32 %v297, %v462
    %v464 = vrot.slane %v307, 1
    %v465 = vor.u32 %v304, %v464
    %v466 = vrot.slane %v314, 1
    %v467 = vor.u32 %v311, %v466
    %v468 = vrot.slane %v321, 1
    %v469 = vor.u32 %v318, %v468
    %v470 = vrot.slane %v328, 1
    %v471 = vor.u32 %v325, %v470
    %v472 = vrot.slane %v335, 1
    %v473 = vor.u32 %v332, %v472
    %v474 = vrot.slane %v342, 1
    %v475 = vor.u32 %v339, %v474
    %vm508 = vcmask 1047552
    %vm509 = vsmask.f32 7424
    %vm510 = vmand %vm508, %vm509
    %v511 = vsel %vm510, %v413, 0
    %v512 = vsel %vm510, %v415, 0
    %v513 = vsel %vm510, %v417, 0
    %v514 = vsel %vm510, %v419, 0
    %v515 = vsel %vm510, %v421, 0
    %v516 = vsel %vm510, %v423, 0
    %v517 = vsel %vm510, %v425, 0
    %v518 = vsel %vm510, %v427, 0
    %v519 = vsel %vm510, %v429, 0
    %v520 = vsel %vm510, %v431, 0
    %v521 = vsel %vm510, %v433, 0
    %v522 = vsel %vm510, %v435, 0
    %v523 = vsel %vm510, %v437, 0
    %v524 = vsel %vm510, %v439, 0
    %v525 = vsel %vm510, %v441, 0
    %v526 = vsel %vm510, %v443, 0
    %v527 = vsel %vm510, %v445, 0
    %v528 = vsel %vm510, %v447, 0
    %v529 = vsel %vm510, %v449, 0
    %v530 = vsel %vm510, %v451, 0
    %v531 = vsel %vm510, %v453, 0
    %v532 = vsel %vm510, %v455, 0
    %v533 = vsel %vm510, %v457, 0
    %v534 = vsel %vm510, %v459, 0
    %v535 = vsel %vm510, %v461, 0
    %v536 = vsel %vm510, %v463, 0
    %v537 = vsel %vm510, %v465, 0
    %v538 = vsel %vm510, %v467, 0
    %v539 = vsel %vm510, %v469, 0
    %v540 = vsel %vm510, %v471, 0
    %v541 = vsel %vm510, %v473, 0
    %v542 = vsel %vm510, %v475, 0
    %575 = vrot.lane.b32.xlu0 %v89, 4
    %v576 = vpop.permute.xlu0 %575
    %577 = vrot.lane.b32.xlu0 %v90, 4
    %v578 = vpop.permute.xlu0 %577
    %579 = vrot.lane.b32.xlu0 %v91, 4
    %v580 = vpop.permute.xlu0 %579
    %581 = vrot.lane.b32.xlu0 %v92, 4
    %v582 = vpop.permute.xlu0 %581
    %583 = vrot.lane.b32.xlu0 %v93, 4
    %v584 = vpop.permute.xlu0 %583
    %585 = vrot.lane.b32.xlu0 %v94, 4
    %v586 = vpop.permute.xlu0 %585
    %587 = vrot.lane.b32.xlu0 %v95, 4
    %v588 = vpop.permute.xlu0 %587
    %589 = vrot.lane.b32.xlu0 %v96, 4
    %v590 = vpop.permute.xlu0 %589
    %591 = vrot.lane.b32.xlu0 %v97, 4
    %v592 = vpop.permute.xlu0 %591
    %593 = vrot.lane.b32.xlu0 %v98, 4
    %v594 = vpop.permute.xlu0 %593
    %595 = vrot.lane.b32.xlu0 %v99, 4
    %v596 = vpop.permute.xlu0 %595
    %597 = vrot.lane.b32.xlu0 %v100, 4
    %v598 = vpop.permute.xlu0 %597
    %599 = vrot.lane.b32.xlu0 %v101, 4
    %v600 = vpop.permute.xlu0 %599
    %601 = vrot.lane.b32.xlu0 %v102, 4
    %v602 = vpop.permute.xlu0 %601
    %603 = vrot.lane.b32.xlu0 %v103, 4
    %v604 = vpop.permute.xlu0 %603
    %605 = vrot.lane.b32.xlu0 %v104, 4
    %v606 = vpop.permute.xlu0 %605
    %607 = vrot.lane.b32.xlu0 %v105, 4
    %v608 = vpop.permute.xlu0 %607
    %609 = vrot.lane.b32.xlu0 %v106, 4
    %v610 = vpop.permute.xlu0 %609
    %611 = vrot.lane.b32.xlu0 %v107, 4
    %v612 = vpop.permute.xlu0 %611
    %613 = vrot.lane.b32.xlu0 %v108, 4
    %v614 = vpop.permute.xlu0 %613
    %615 = vrot.lane.b32.xlu0 %v109, 4
    %v616 = vpop.permute.xlu0 %615
    %617 = vrot.lane.b32.xlu0 %v110, 4
    %v618 = vpop.permute.xlu0 %617
    %619 = vrot.lane.b32.xlu0 %v111, 4
    %v620 = vpop.permute.xlu0 %619
    %621 = vrot.lane.b32.xlu0 %v112, 4
    %v622 = vpop.permute.xlu0 %621
    %623 = vrot.lane.b32.xlu0 %v113, 4
    %v624 = vpop.permute.xlu0 %623
    %625 = vrot.lane.b32.xlu0 %v114, 4
    %v626 = vpop.permute.xlu0 %625
    %627 = vrot.lane.b32.xlu0 %v115, 4
    %v628 = vpop.permute.xlu0 %627
    %629 = vrot.lane.b32.xlu0 %v116, 4
    %v630 = vpop.permute.xlu0 %629
    %631 = vrot.lane.b32.xlu0 %v117, 4
    %v632 = vpop.permute.xlu0 %631
    %633 = vrot.lane.b32.xlu0 %v118, 4
    %v634 = vpop.permute.xlu0 %633
    %635 = vrot.lane.b32.xlu0 %v119, 4
    %v636 = vpop.permute.xlu0 %635
    %637 = vrot.lane.b32.xlu0 %v120, 4
    %v638 = vpop.permute.xlu0 %637
    %671 = vrot.lane.b32.xlu0 %v511, 8
    %v672 = vpop.permute.xlu0 %671
    %673 = vrot.lane.b32.xlu0 %v512, 8
    %v674 = vpop.permute.xlu0 %673
    %675 = vrot.lane.b32.xlu0 %v513, 8
    %v676 = vpop.permute.xlu0 %675
    %677 = vrot.lane.b32.xlu0 %v514, 8
    %v678 = vpop.permute.xlu0 %677
    %679 = vrot.lane.b32.xlu0 %v515, 8
    %v680 = vpop.permute.xlu0 %679
    %681 = vrot.lane.b32.xlu0 %v516, 8
    %v682 = vpop.permute.xlu0 %681
    %683 = vrot.lane.b32.xlu0 %v517, 8
    %v684 = vpop.permute.xlu0 %683
    %685 = vrot.lane.b32.xlu0 %v518, 8
    %v686 = vpop.permute.xlu0 %685
    %687 = vrot.lane.b32.xlu0 %v519, 8
    %v688 = vpop.permute.xlu0 %687
    %689 = vrot.lane.b32.xlu0 %v520, 8
    %v690 = vpop.permute.xlu0 %689
    %691 = vrot.lane.b32.xlu0 %v521, 8
    %v692 = vpop.permute.xlu0 %691
    %693 = vrot.lane.b32.xlu0 %v522, 8
    %v694 = vpop.permute.xlu0 %693
    %695 = vrot.lane.b32.xlu0 %v523, 8
    %v696 = vpop.permute.xlu0 %695
    %697 = vrot.lane.b32.xlu0 %v524, 8
    %v698 = vpop.permute.xlu0 %697
    %699 = vrot.lane.b32.xlu0 %v525, 8
    %v700 = vpop.permute.xlu0 %699
    %701 = vrot.lane.b32.xlu0 %v526, 8
    %v702 = vpop.permute.xlu0 %701
    %703 = vrot.lane.b32.xlu0 %v527, 8
    %v704 = vpop.permute.xlu0 %703
    %705 = vrot.lane.b32.xlu0 %v528, 8
    %v706 = vpop.permute.xlu0 %705
    %707 = vrot.lane.b32.xlu0 %v529, 8
    %v708 = vpop.permute.xlu0 %707
    %709 = vrot.lane.b32.xlu0 %v530, 8
    %v710 = vpop.permute.xlu0 %709
    %711 = vrot.lane.b32.xlu0 %v531, 8
    %v712 = vpop.permute.xlu0 %711
    %713 = vrot.lane.b32.xlu0 %v532, 8
    %v714 = vpop.permute.xlu0 %713
    %715 = vrot.lane.b32.xlu0 %v533, 8
    %v716 = vpop.permute.xlu0 %715
    %717 = vrot.lane.b32.xlu0 %v534, 8
    %v718 = vpop.permute.xlu0 %717
    %719 = vrot.lane.b32.xlu0 %v535, 8
    %v720 = vpop.permute.xlu0 %719
    %721 = vrot.lane.b32.xlu0 %v536, 8
    %v722 = vpop.permute.xlu0 %721
    %723 = vrot.lane.b32.xlu0 %v537, 8
    %v724 = vpop.permute.xlu0 %723
    %725 = vrot.lane.b32.xlu0 %v538, 8
    %v726 = vpop.permute.xlu0 %725
    %727 = vrot.lane.b32.xlu0 %v539, 8
    %v728 = vpop.permute.xlu0 %727
    %729 = vrot.lane.b32.xlu0 %v540, 8
    %v730 = vpop.permute.xlu0 %729
    %731 = vrot.lane.b32.xlu0 %v541, 8
    %v732 = vpop.permute.xlu0 %731
    %733 = vrot.lane.b32.xlu0 %v542, 8
    %v734 = vpop.permute.xlu0 %733
    %vm735 = vcmask 31744
    %v738 = vsel %vm735, %v380, %v576
    %v741 = vsel %vm735, %v381, %v578
    %v744 = vsel %vm735, %v382, %v580
    %v747 = vsel %vm735, %v383, %v582
    %v750 = vsel %vm735, %v384, %v584
    %v753 = vsel %vm735, %v385, %v586
    %v756 = vsel %vm735, %v386, %v588
    %v759 = vsel %vm735, %v387, %v590
    %v762 = vsel %vm735, %v388, %v592
    %v765 = vsel %vm735, %v389, %v594
    %v768 = vsel %vm735, %v390, %v596
    %v771 = vsel %vm735, %v391, %v598
    %v774 = vsel %vm735, %v392, %v600
    %v777 = vsel %vm735, %v393, %v602
    %v780 = vsel %vm735, %v394, %v604
    %v783 = vsel %vm735, %v395, %v606
    %v786 = vsel %vm735, %v396, %v608
    %v789 = vsel %vm735, %v397, %v610
    %v792 = vsel %vm735, %v398, %v612
    %v795 = vsel %vm735, %v399, %v614
    %v798 = vsel %vm735, %v400, %v616
    %v801 = vsel %vm735, %v401, %v618
    %v804 = vsel %vm735, %v402, %v620
    %v807 = vsel %vm735, %v403, %v622
    %v810 = vsel %vm735, %v404, %v624
    %v813 = vsel %vm735, %v405, %v626
    %v816 = vsel %vm735, %v406, %v628
    %v819 = vsel %vm735, %v407, %v630
    %v822 = vsel %vm735, %v408, %v632
    %v825 = vsel %vm735, %v409, %v634
    %v828 = vsel %vm735, %v410, %v636
    %v831 = vsel %vm735, %v411, %v638
    %vm832 = vcmask 64512
    %v834 = vsel %vm832, %v738, %v672
    %v837 = vsel %vm832, %v741, %v674
    %v840 = vsel %vm832, %v744, %v676
    %v843 = vsel %vm832, %v747, %v678
    %v846 = vsel %vm832, %v750, %v680
    %v849 = vsel %vm832, %v753, %v682
    %v852 = vsel %vm832, %v756, %v684
    %v855 = vsel %vm832, %v759, %v686
    %v858 = vsel %vm832, %v762, %v688
    %v861 = vsel %vm832, %v765, %v690
    %v864 = vsel %vm832, %v768, %v692
    %v867 = vsel %vm832, %v771, %v694
    %v870 = vsel %vm832, %v774, %v696
    %v873 = vsel %vm832, %v777, %v698
    %v876 = vsel %vm832, %v780, %v700
    %v879 = vsel %vm832, %v783, %v702
    %v882 = vsel %vm832, %v786, %v704
    %v885 = vsel %vm832, %v789, %v706
    %v888 = vsel %vm832, %v792, %v708
    %v891 = vsel %vm832, %v795, %v710
    %v894 = vsel %vm832, %v798, %v712
    %v897 = vsel %vm832, %v801, %v714
    %v900 = vsel %vm832, %v804, %v716
    %v903 = vsel %vm832, %v807, %v718
    %v906 = vsel %vm832, %v810, %v720
    %v909 = vsel %vm832, %v813, %v722
    %v912 = vsel %vm832, %v816, %v724
    %v915 = vsel %vm832, %v819, %v726
    %v918 = vsel %vm832, %v822, %v728
    %v921 = vsel %vm832, %v825, %v730
    %v924 = vsel %vm832, %v828, %v732
    %v927 = vsel %vm832, %v831, %v734
    %s929 = scalar_lea.vmem [#allocation2], 8
    %vm930 = vcmask 97280
    %931 = vst.msk [vmem:[%s929] sm:$0xff] %vm930, %v834
    %932 = vst.msk [vmem:[%s929 + $0x8] sm:$0xff] %vm930, %v837
    %933 = vst.msk [vmem:[%s929 + $0x10] sm:$0xff] %vm930, %v840
    %934 = vst.msk [vmem:[%s929 + $0x18] sm:$0xff] %vm930, %v843
    %935 = vst.msk [vmem:[%s929 + $0x20] sm:$0xff] %vm930, %v846
    %936 = vst.msk [vmem:[%s929 + $0x28] sm:$0xff] %vm930, %v849
    %937 = vst.msk [vmem:[%s929 + $0x30] sm:$0xff] %vm930, %v852
    %938 = vst.msk [vmem:[%s929 + $0x38] sm:$0xff] %vm930, %v855
    %939 = vst.msk [vmem:[%s929 + $0x40] sm:$0xff] %vm930, %v858
    %940 = vst.msk [vmem:[%s929 + $0x48] sm:$0xff] %vm930, %v861
    %941 = vst.msk [vmem:[%s929 + $0x50] sm:$0xff] %vm930, %v864
    %942 = vst.msk [vmem:[%s929 + $0x58] sm:$0xff] %vm930, %v867
    %943 = vst.msk [vmem:[%s929 + $0x60] sm:$0xff] %vm930, %v870
    %944 = vst.msk [vmem:[%s929 + $0x68] sm:$0xff] %vm930, %v873
    %945 = vst.msk [vmem:[%s929 + $0x70] sm:$0xff] %vm930, %v876
    %946 = vst.msk [vmem:[%s929 + $0x78] sm:$0xff] %vm930, %v879
    %947 = vst.msk [vmem:[%s929 + $0x90] sm:$0xff] %vm930, %v882
    %948 = vst.msk [vmem:[%s929 + $0x98] sm:$0xff] %vm930, %v885
    %949 = vst.msk [vmem:[%s929 + $0xa0] sm:$0xff] %vm930, %v888
    %950 = vst.msk [vmem:[%s929 + $0xa8] sm:$0xff] %vm930, %v891
    %951 = vst.msk [vmem:[%s929 + $0xb0] sm:$0xff] %vm930, %v894
    %952 = vst.msk [vmem:[%s929 + $0xb8] sm:$0xff] %vm930, %v897
    %953 = vst.msk [vmem:[%s929 + $0xc0] sm:$0xff] %vm930, %v900
    %954 = vst.msk [vmem:[%s929 + $0xc8] sm:$0xff] %vm930, %v903
    %955 = vst.msk [vmem:[%s929 + $0xd0] sm:$0xff] %vm930, %v906
    %956 = vst.msk [vmem:[%s929 + $0xd8] sm:$0xff] %vm930, %v909
    %957 = vst.msk [vmem:[%s929 + $0xe0] sm:$0xff] %vm930, %v912
    %958 = vst.msk [vmem:[%s929 + $0xe8] sm:$0xff] %vm930, %v915
    %959 = vst.msk [vmem:[%s929 + $0xf0] sm:$0xff] %vm930, %v918
    %960 = vst.msk [vmem:[%s929 + $0xf8] sm:$0xff] %vm930, %v921
    %961 = vst.msk [vmem:[%s929 + $0x100] sm:$0xff] %vm930, %v924
    %962 = vst.msk [vmem:[%s929 + $0x108] sm:$0xff] %vm930, %v927
    %963 = vst.msk [vmem:[#allocation2] sm:$0xff] %vm930, 0
    %964 = vst.msk [vmem:[#allocation2 + $0x90] sm:$0xff] %vm930, 0
    %s965 = scalar_lea.vmem [#allocation2], 136
    %966 = vst.msk [vmem:[%s965] sm:$0xff] %vm930, 0
    %967 = vst.msk [vmem:[%s965 + $0x90] sm:$0xff] %vm930, 0
  $region21: #{double_conv.3} parent=0 // pred_fallthru
    _
  %v968 = vld [vmem:[#allocation2] sm:$0xff]
  %v969 = vld [vmem:[#allocation2 + $0x8] sm:$0xff]
  %v970 = vld [vmem:[#allocation2 + $0x10] sm:$0xff]
  %v971 = vld [vmem:[#allocation2 + $0x18] sm:$0xff]
  %v972 = vld [vmem:[#allocation2 + $0x20] sm:$0xff]
  %v973 = vld [vmem:[#allocation2 + $0x28] sm:$0xff]
  %v974 = vld [vmem:[#allocation2 + $0x30] sm:$0xff]
  %v975 = vld [vmem:[#allocation2 + $0x38] sm:$0xff]
  %v976 = vld [vmem:[#allocation2 + $0x90] sm:$0xff]
  %v977 = vld [vmem:[#allocation2 + $0x98] sm:$0xff]
  %v978 = vld [vmem:[#allocation2 + $0xa0] sm:$0xff]
  %v979 = vld [vmem:[#allocation2 + $0xa8] sm:$0xff]
  %v980 = vld [vmem:[#allocation2 + $0xb0] sm:$0xff]
  %v981 = vld [vmem:[#allocation2 + $0xb8] sm:$0xff]
  %v982 = vld [vmem:[#allocation2 + $0xc0] sm:$0xff]
  %v983 = vld [vmem:[#allocation2 + $0xc8] sm:$0xff]
  %v984 = vld [vmem:[%s1] sm:$0xf]
  %v985 = vld [vmem:[%s1 + $0x4] sm:$0x3]
  %s986 = scalar_lea.vmem [#allocation2], 8
  %v987 = vld [vmem:[%s986] sm:$0xff]
  %v988 = vld [vmem:[%s986 + $0x8] sm:$0xff]
  %v989 = vld [vmem:[%s986 + $0x10] sm:$0xff]
  %v990 = vld [vmem:[%s986 + $0x18] sm:$0xff]
  %v991 = vld [vmem:[%s986 + $0x20] sm:$0xff]
  %v992 = vld [vmem:[%s986 + $0x28] sm:$0xff]
  %v993 = vld [vmem:[%s986 + $0x30] sm:$0xff]
  %v994 = vld [vmem:[%s986 + $0x38] sm:$0xff]
  %v995 = vld [vmem:[%s986 + $0x90] sm:$0xff]
  %v996 = vld [vmem:[%s986 + $0x98] sm:$0xff]
  %v997 = vld [vmem:[%s986 + $0xa0] sm:$0xff]
  %v998 = vld [vmem:[%s986 + $0xa8] sm:$0xff]
  %v999 = vld [vmem:[%s986 + $0xb0] sm:$0xff]
  %v1000 = vld [vmem:[%s986 + $0xb8] sm:$0xff]
  %v1001 = vld [vmem:[%s986 + $0xc0] sm:$0xff]
  %v1002 = vld [vmem:[%s986 + $0xc8] sm:$0xff]
  %s1003 = scalar_lea.vmem %s1, 8
  %v1004 = vld [vmem:[%s1003] sm:$0xf]
  %v1005 = vld [vmem:[%s1003 + $0x4] sm:$0x3]
  %v1008 = vunpack.c.l.b16 %v1004
  %v1009 = vunpack.c.l.b16 %v1005
  %v1010 = vpack.c.b16 %v1009, %v1008
  %vm1011 = vcmask 97280
  %v1013 = vsel %vm1011, %v987, 0
  %v1016 = vsel %vm1011, %v988, 0
  %v1019 = vsel %vm1011, %v989, 0
  %v1022 = vsel %vm1011, %v990, 0
  %v1025 = vsel %vm1011, %v991, 0
  %v1028 = vsel %vm1011, %v992, 0
  %v1031 = vsel %vm1011, %v993, 0
  %v1034 = vsel %vm1011, %v994, 0
  %v1037 = vsel %vm1011, %v995, 0
  %v1040 = vsel %vm1011, %v996, 0
  %v1043 = vsel %vm1011, %v997, 0
  %v1046 = vsel %vm1011, %v998, 0
  %v1049 = vsel %vm1011, %v999, 0
  %v1052 = vsel %vm1011, %v1000, 0
  %v1055 = vsel %vm1011, %v1001, 0
  %v1058 = vsel %vm1011, %v1002, 0
  %vm1060 = vcmask 1045504
  %v1062 = vsel %vm1060, %v1010, 0
  %1064 = vmatprep.subr.bf16.mxu0 0
  %1065 = vmatpush1.bf16.msra.mxu0 %v1062
  %1066 = vmatprep.subr.bf16.mxu0 0
  %1067 = vmatpush1.bf16.msra.mxu0 0
  %1068 = vmatprep.subr.bf16.mxu0 0
  %1069 = vmatpush1.bf16.msra.mxu0 0
  %1070 = vmatprep.subr.bf16.mxu0 0
  %1071 = vmatpush1.bf16.msra.mxu0 0
  %1072 = vmatprep.subr.bf16.mxu0 0
  %1073 = vmatpush1.bf16.msra.mxu0 0
  %1074 = vmatprep.subr.bf16.mxu0 0
  %1075 = vmatpush1.bf16.msra.mxu0 0
  %1076 = vmatprep.subr.bf16.mxu0 0
  %1077 = vmatpush1.bf16.msra.mxu0 0
  %1078 = vmatprep.subr.bf16.mxu0 0
  %1079 = vmatpush1.bf16.msra.mxu0 0
  %1080 = vmatprep.subr.bf16.mxu0 0
  %1081 = vmatpush1.bf16.msra.mxu0 0
  %1082 = vmatprep.subr.bf16.mxu0 0
  %1083 = vmatpush1.bf16.msra.mxu0 0
  %1084 = vmatprep.subr.bf16.mxu0 0
  %1085 = vmatpush1.bf16.msra.mxu0 0
  %1086 = vmatprep.subr.bf16.mxu0 0
  %1087 = vmatpush1.bf16.msra.mxu0 0
  %1088 = vmatprep.subr.bf16.mxu0 0
  %1089 = vmatpush1.bf16.msra.mxu0 0
  %1090 = vmatprep.subr.bf16.mxu0 0
  %1091 = vmatpush1.bf16.msra.mxu0 0
  %1092 = vmatprep.subr.bf16.mxu0 0
  %1093 = vmatpush1.bf16.msra.mxu0 0
  %1094 = vmatprep.subr.bf16.mxu0 0
  %1095 = vmatpush1.bf16.msra.mxu0 0
  %1096 = vmatprep.mubr.bf16.mxu0 0
  %1097 = vmatmul.mubr.bf16.gmra.mrb[0].mxu0 %v1013
  %v1098 = vpop.f32.mrb[0].mxu0
  %v1099 = vadd.f32 0.0, %v1098
  %v1100 = vpop.f32.mrb[0].mxu0
  %v1101 = vpop.f32.mrb[0].mxu0
  %v1102 = vadd.f32 0.0, %v1101
  %v1103 = vpop.f32.mrb[0].mxu0
  %1104 = vmatprep.mubr.bf16.mxu0 0
  %1105 = vmatmul.mubr.bf16.gmra.mrb[0].mxu0 %v1016
  %v1106 = vpop.f32.mrb[0].mxu0
  %v1107 = vadd.f32 0.0, %v1106
  %v1108 = vpop.f32.mrb[0].mxu0
  %v1109 = vpop.f32.mrb[0].mxu0
  %v1110 = vadd.f32 0.0, %v1109
  %v1111 = vpop.f32.mrb[0].mxu0
  %1112 = vmatprep.mubr.bf16.mxu0 0
  %1113 = vmatmul.mubr.bf16.gmra.mrb[0].mxu0 %v1019
  %v1114 = vpop.f32.mrb[0].mxu0
  %v1115 = vadd.f32 0.0, %v1114
  %v1116 = vpop.f32.mrb[0].mxu0
  %v1117 = vpop.f32.mrb[0].mxu0
  %v1118 = vadd.f32 0.0, %v1117
  %v1119 = vpop.f32.mrb[0].mxu0
  %1120 = vmatprep.mubr.bf16.mxu0 0
  %1121 = vmatmul.mubr.bf16.gmra.mrb[0].mxu0 %v1022
  %v1122 = vpop.f32.mrb[0].mxu0
  %v1123 = vadd.f32 0.0, %v1122
  %v1124 = vpop.f32.mrb[0].mxu0
  %v1125 = vpop.f32.mrb[0].mxu0
  %v1126 = vadd.f32 0.0, %v1125
  %v1127 = vpop.f32.mrb[0].mxu0
  %1128 = vmatprep.mubr.bf16.mxu0 0
  %1129 = vmatmul.mubr.bf16.gmra.mrb[0].mxu0 %v1025
  %v1130 = vpop.f32.mrb[0].mxu0
  %v1131 = vadd.f32 0.0, %v1130
  %v1132 = vpop.f32.mrb[0].mxu0
  %v1133 = vpop.f32.mrb[0].mxu0
  %v1134 = vadd.f32 0.0, %v1133
  %v1135 = vpop.f32.mrb[0].mxu0
  %1136 = vmatprep.mubr.bf16.mxu0 0
  %1137 = vmatmul.mubr.bf16.gmra.mrb[0].mxu0 %v1028
  %v1138 = vpop.f32.mrb[0].mxu0
  %v1139 = vadd.f32 0.0, %v1138
  %v1140 = vpop.f32.mrb[0].mxu0
  %v1141 = vpop.f32.mrb[0].mxu0
  %v1142 = vadd.f32 0.0, %v1141
  %v1143 = vpop.f32.mrb[0].mxu0
  %1144 = vmatprep.mubr.bf16.mxu0 0
  %1145 = vmatmul.mubr.bf16.gmra.mrb[0].mxu0 %v1031
  %v1146 = vpop.f32.mrb[0].mxu0
  %v1147 = vadd.f32 0.0, %v1146
  %v1148 = vpop.f32.mrb[0].mxu0
  %v1149 = vpop.f32.mrb[0].mxu0
  %v1150 = vadd.f32 0.0, %v1149
  %v1151 = vpop.f32.mrb[0].mxu0
  %1152 = vmatprep.mubr.bf16.mxu0 0
  %1153 = vmatmul.mubr.bf16.gmra.mrb[0].mxu0 %v1034
  %v1154 = vpop.f32.mrb[0].mxu0
  %v1155 = vadd.f32 0.0, %v1154
  %v1156 = vpop.f32.mrb[0].mxu0
  %v1157 = vpop.f32.mrb[0].mxu0
  %v1158 = vadd.f32 0.0, %v1157
  %v1159 = vpop.f32.mrb[0].mxu0
  %1160 = vmatprep.mubr.bf16.mxu0 0
  %1161 = vmatmul.mubr.bf16.gmra.mrb[0].mxu0 %v1037
  %v1162 = vpop.f32.mrb[0].mxu0
  %v1163 = vadd.f32 0.0, %v1162
  %v1164 = vpop.f32.mrb[0].mxu0
  %v1165 = vpop.f32.mrb[0].mxu0
  %v1166 = vadd.f32 0.0, %v1165
  %v1167 = vpop.f32.mrb[0].mxu0
  %1168 = vmatprep.mubr.bf16.mxu0 0
  %1169 = vmatmul.mubr.bf16.gmra.mrb[0].mxu0 %v1040
  %v1170 = vpop.f32.mrb[0].mxu0
  %v1171 = vadd.f32 0.0, %v1170
  %v1172 = vpop.f32.mrb[0].mxu0
  %v1173 = vpop.f32.mrb[0].mxu0
  %v1174 = vadd.f32 0.0, %v1173
  %v1175 = vpop.f32.mrb[0].mxu0
  %1176 = vmatprep.mubr.bf16.mxu0 0
  %1177 = vmatmul.mubr.bf16.gmra.mrb[0].mxu0 %v1043
  %v1178 = vpop.f32.mrb[0].mxu0
  %v1179 = vadd.f32 0.0, %v1178
  %v1180 = vpop.f32.mrb[0].mxu0
  %v1181 = vpop.f32.mrb[0].mxu0
  %v1182 = vadd.f32 0.0, %v1181
  %v1183 = vpop.f32.mrb[0].mxu0
  %1184 = vmatprep.mubr.bf16.mxu0 0
  %1185 = vmatmul.mubr.bf16.gmra.mrb[0].mxu0 %v1046
  %v1186 = vpop.f32.mrb[0].mxu0
  %v1187 = vadd.f32 0.0, %v1186
  %v1188 = vpop.f32.mrb[0].mxu0
  %v1189 = vpop.f32.mrb[0].mxu0
  %v1190 = vadd.f32 0.0, %v1189
  %v1191 = vpop.f32.mrb[0].mxu0
  %1192 = vmatprep.mubr.bf16.mxu0 0
  %1193 = vmatmul.mubr.bf16.gmra.mrb[0].mxu0 %v1049
  %v1194 = vpop.f32.mrb[0].mxu0
  %v1195 = vadd.f32 0.0, %v1194
  %v1196 = vpop.f32.mrb[0].mxu0
  %v1197 = vpop.f32.mrb[0].mxu0
  %v1198 = vadd.f32 0.0, %v1197
  %v1199 = vpop.f32.mrb[0].mxu0
  %1200 = vmatprep.mubr.bf16.mxu0 0
  %1201 = vmatmul.mubr.bf16.gmra.mrb[0].mxu0 %v1052
  %v1202 = vpop.f32.mrb[0].mxu0
  %v1203 = vadd.f32 0.0, %v1202
  %v1204 = vpop.f32.mrb[0].mxu0
  %v1205 = vpop.f32.mrb[0].mxu0
  %v1206 = vadd.f32 0.0, %v1205
  %v1207 = vpop.f32.mrb[0].mxu0
  %1208 = vmatprep.mubr.bf16.mxu0 0
  %1209 = vmatmul.mubr.bf16.gmra.mrb[0].mxu0 %v1055
  %v1210 = vpop.f32.mrb[0].mxu0
  %v1211 = vadd.f32 0.0, %v1210
  %v1212 = vpop.f32.mrb[0].mxu0
  %v1213 = vpop.f32.mrb[0].mxu0
  %v1214 = vadd.f32 0.0, %v1213
  %v1215 = vpop.f32.mrb[0].mxu0
  %1216 = vmatprep.mubr.bf16.mxu0 0
  %1217 = vmatmul.mubr.bf16.gmra.mrb[0].mxu0 %v1058
  %v1218 = vpop.f32.mrb[0].mxu0
  %v1219 = vadd.f32 0.0, %v1218
  %v1220 = vpop.f32.mrb[0].mxu0
  %v1221 = vpop.f32.mrb[0].mxu0
  %v1222 = vadd.f32 0.0, %v1221
  %v1223 = vpop.f32.mrb[0].mxu0
  %1224 = vdwg.mxu0
  %v1227 = vunpack.c.l.b16 %v984
  %v1228 = vunpack.c.l.b16 %v985
  %v1229 = vpack.c.b16 %v1228, %v1227
  %v1231 = vsel %vm1011, %v968, 0
  %v1234 = vsel %vm1011, %v969, 0
  %v1237 = vsel %vm1011, %v970, 0
  %v1240 = vsel %vm1011, %v971, 0
  %v1243 = vsel %vm1011, %v972, 0
  %v1246 = vsel %vm1011, %v973, 0
  %v1249 = vsel %vm1011, %v974, 0
  %v1252 = vsel %vm1011, %v975, 0
  %v1255 = vsel %vm1011, %v976, 0
  %v1258 = vsel %vm1011, %v977, 0
  %v1261 = vsel %vm1011, %v978, 0
  %v1264 = vsel %vm1011, %v979, 0
  %v1267 = vsel %vm1011, %v980, 0
  %v1270 = vsel %vm1011, %v981, 0
  %v1273 = vsel %vm1011, %v982, 0
  %v1276 = vsel %vm1011, %v983, 0
  %v1279 = vsel %vm1060, %v1229, 0
  %1281 = vmatprep.subr.bf16.mxu0 0
  %1282 = vmatpush1.bf16.msra.mxu0 %v1279
  %1283 = vmatprep.subr.bf16.mxu0 0
  %1284 = vmatpush1.bf16.msra.mxu0 0
  %1285 = vmatprep.subr.bf16.mxu0 0
  %1286 = vmatpush1.bf16.msra.mxu0 0
  %1287 = vmatprep.subr.bf16.mxu0 0
  %1288 = vmatpush1.bf16.msra.mxu0 0
  %1289 = vmatprep.subr.bf16.mxu0 0
  %1290 = vmatpush1.bf16.msra.mxu0 0
  %1291 = vmatprep.subr.bf16.mxu0 0
  %1292 = vmatpush1.bf16.msra.mxu0 0
  %1293 = vmatprep.subr.bf16.mxu0 0
  %1294 = vmatpush1.bf16.msra.mxu0 0
  %1295 = vmatprep.subr.bf16.mxu0 0
  %1296 = vmatpush1.bf16.msra.mxu0 0
  %1297 = vmatprep.subr.bf16.mxu0 0
  %1298 = vmatpush1.bf16.msra.mxu0 0
  %1299 = vmatprep.subr.bf16.mxu0 0
  %1300 = vmatpush1.bf16.msra.mxu0 0
  %1301 = vmatprep.subr.bf16.mxu0 0
  %1302 = vmatpush1.bf16.msra.mxu0 0
  %1303 = vmatprep.subr.bf16.mxu0 0
  %1304 = vmatpush1.bf16.msra.mxu0 0
  %1305 = vmatprep.subr.bf16.mxu0 0
  %1306 = vmatpush1.bf16.msra.mxu0 0
  %1307 = vmatprep.subr.bf16.mxu0 0
  %1308 = vmatpush1.bf16.msra.mxu0 0
  %1309 = vmatprep.subr.bf16.mxu0 0
  %1310 = vmatpush1.bf16.msra.mxu0 0
  %1311 = vmatprep.subr.bf16.mxu0 0
  %1312 = vmatpush1.bf16.msra.mxu0 0
  %1313 = vmatprep.mubr.bf16.mxu0 0
  %1314 = vmatmul.mubr.bf16.gmra.mrb[0].mxu0 %v1231
  %v1315 = vpop.f32.mrb[0].mxu0
  %v1316 = vadd.f32 %v1099, %v1315
  %v1317 = vpop.f32.mrb[0].mxu0
  %v1318 = vpop.f32.mrb[0].mxu0
  %v1319 = vadd.f32 %v1102, %v1318
  %v1320 = vpop.f32.mrb[0].mxu0
  %1321 = vmatprep.mubr.bf16.mxu0 0
  %1322 = vmatmul.mubr.bf16.gmra.mrb[0].mxu0 %v1234
  %v1323 = vpop.f32.mrb[0].mxu0
  %v1324 = vadd.f32 %v1107, %v1323
  %v1325 = vpop.f32.mrb[0].mxu0
  %v1326 = vpop.f32.mrb[0].mxu0
  %v1327 = vadd.f32 %v1110, %v1326
  %v1328 = vpop.f32.mrb[0].mxu0
  %1329 = vmatprep.mubr.bf16.mxu0 0
  %1330 = vmatmul.mubr.bf16.gmra.mrb[0].mxu0 %v1237
  %v1331 = vpop.f32.mrb[0].mxu0
  %v1332 = vadd.f32 %v1115, %v1331
  %v1333 = vpop.f32.mrb[0].mxu0
  %v1334 = vpop.f32.mrb[0].mxu0
  %v1335 = vadd.f32 %v1118, %v1334
  %v1336 = vpop.f32.mrb[0].mxu0
  %1337 = vmatprep.mubr.bf16.mxu0 0
  %1338 = vmatmul.mubr.bf16.gmra.mrb[0].mxu0 %v1240
  %v1339 = vpop.f32.mrb[0].mxu0
  %v1340 = vadd.f32 %v1123, %v1339
  %v1341 = vpop.f32.mrb[0].mxu0
  %v1342 = vpop.f32.mrb[0].mxu0
  %v1343 = vadd.f32 %v1126, %v1342
  %v1344 = vpop.f32.mrb[0].mxu0
  %1345 = vmatprep.mubr.bf16.mxu0 0
  %1346 = vmatmul.mubr.bf16.gmra.mrb[0].mxu0 %v1243
  %v1347 = vpop.f32.mrb[0].mxu0
  %v1348 = vadd.f32 %v1131, %v1347
  %v1349 = vpop.f32.mrb[0].mxu0
  %v1350 = vpop.f32.mrb[0].mxu0
  %v1351 = vadd.f32 %v1134, %v1350
  %v1352 = vpop.f32.mrb[0].mxu0
  %1353 = vmatprep.mubr.bf16.mxu0 0
  %1354 = vmatmul.mubr.bf16.gmra.mrb[0].mxu0 %v1246
  %v1355 = vpop.f32.mrb[0].mxu0
  %v1356 = vadd.f32 %v1139, %v1355
  %v1357 = vpop.f32.mrb[0].mxu0
  %v1358 = vpop.f32.mrb[0].mxu0
  %v1359 = vadd.f32 %v1142, %v1358
  %v1360 = vpop.f32.mrb[0].mxu0
  %1361 = vmatprep.mubr.bf16.mxu0 0
  %1362 = vmatmul.mubr.bf16.gmra.mrb[0].mxu0 %v1249
  %v1363 = vpop.f32.mrb[0].mxu0
  %v1364 = vadd.f32 %v1147, %v1363
  %v1365 = vpop.f32.mrb[0].mxu0
  %v1366 = vpop.f32.mrb[0].mxu0
  %v1367 = vadd.f32 %v1150, %v1366
  %v1368 = vpop.f32.mrb[0].mxu0
  %1369 = vmatprep.mubr.bf16.mxu0 0
  %1370 = vmatmul.mubr.bf16.gmra.mrb[0].mxu0 %v1252
  %v1371 = vpop.f32.mrb[0].mxu0
  %v1372 = vadd.f32 %v1155, %v1371
  %v1373 = vpop.f32.mrb[0].mxu0
  %v1374 = vpop.f32.mrb[0].mxu0
  %v1375 = vadd.f32 %v1158, %v1374
  %v1376 = vpop.f32.mrb[0].mxu0
  %1377 = vmatprep.mubr.bf16.mxu0 0
  %1378 = vmatmul.mubr.bf16.gmra.mrb[0].mxu0 %v1255
  %v1379 = vpop.f32.mrb[0].mxu0
  %v1380 = vadd.f32 %v1163, %v1379
  %v1381 = vpop.f32.mrb[0].mxu0
  %v1382 = vpop.f32.mrb[0].mxu0
  %v1383 = vadd.f32 %v1166, %v1382
  %v1384 = vpop.f32.mrb[0].mxu0
  %1385 = vmatprep.mubr.bf16.mxu0 0
  %1386 = vmatmul.mubr.bf16.gmra.mrb[0].mxu0 %v1258
  %v1387 = vpop.f32.mrb[0].mxu0
  %v1388 = vadd.f32 %v1171, %v1387
  %v1389 = vpop.f32.mrb[0].mxu0
  %v1390 = vpop.f32.mrb[0].mxu0
  %v1391 = vadd.f32 %v1174, %v1390
  %v1392 = vpop.f32.mrb[0].mxu0
  %1393 = vmatprep.mubr.bf16.mxu0 0
  %1394 = vmatmul.mubr.bf16.gmra.mrb[0].mxu0 %v1261
  %v1395 = vpop.f32.mrb[0].mxu0
  %v1396 = vadd.f32 %v1179, %v1395
  %v1397 = vpop.f32.mrb[0].mxu0
  %v1398 = vpop.f32.mrb[0].mxu0
  %v1399 = vadd.f32 %v1182, %v1398
  %v1400 = vpop.f32.mrb[0].mxu0
  %1401 = vmatprep.mubr.bf16.mxu0 0
  %1402 = vmatmul.mubr.bf16.gmra.mrb[0].mxu0 %v1264
  %v1403 = vpop.f32.mrb[0].mxu0
  %v1404 = vadd.f32 %v1187, %v1403
  %v1405 = vpop.f32.mrb[0].mxu0
  %v1406 = vpop.f32.mrb[0].mxu0
  %v1407 = vadd.f32 %v1190, %v1406
  %v1408 = vpop.f32.mrb[0].mxu0
  %1409 = vmatprep.mubr.bf16.mxu0 0
  %1410 = vmatmul.mubr.bf16.gmra.mrb[0].mxu0 %v1267
  %v1411 = vpop.f32.mrb[0].mxu0
  %v1412 = vadd.f32 %v1195, %v1411
  %v1413 = vpop.f32.mrb[0].mxu0
  %v1414 = vpop.f32.mrb[0].mxu0
  %v1415 = vadd.f32 %v1198, %v1414
  %v1416 = vpop.f32.mrb[0].mxu0
  %1417 = vmatprep.mubr.bf16.mxu0 0
  %1418 = vmatmul.mubr.bf16.gmra.mrb[0].mxu0 %v1270
  %v1419 = vpop.f32.mrb[0].mxu0
  %v1420 = vadd.f32 %v1203, %v1419
  %v1421 = vpop.f32.mrb[0].mxu0
  %v1422 = vpop.f32.mrb[0].mxu0
  %v1423 = vadd.f32 %v1206, %v1422
  %v1424 = vpop.f32.mrb[0].mxu0
  %1425 = vmatprep.mubr.bf16.mxu0 0
  %1426 = vmatmul.mubr.bf16.gmra.mrb[0].mxu0 %v1273
  %v1427 = vpop.f32.mrb[0].mxu0
  %v1428 = vadd.f32 %v1211, %v1427
  %v1429 = vpop.f32.mrb[0].mxu0
  %v1430 = vpop.f32.mrb[0].mxu0
  %v1431 = vadd.f32 %v1214, %v1430
  %v1432 = vpop.f32.mrb[0].mxu0
  %1433 = vmatprep.mubr.bf16.mxu0 0
  %1434 = vmatmul.mubr.bf16.gmra.mrb[0].mxu0 %v1276
  %v1435 = vpop.f32.mrb[0].mxu0
  %v1436 = vadd.f32 %v1219, %v1435
  %v1437 = vpop.f32.mrb[0].mxu0
  %v1438 = vpop.f32.mrb[0].mxu0
  %v1439 = vadd.f32 %v1222, %v1438
  %v1440 = vpop.f32.mrb[0].mxu0
  %1441 = vdwg.mxu0
  %s1442 = scalar_lea.vmem [#allocation2], 16
  %v1443 = vld [vmem:[%s1442] sm:$0xff]
  %v1444 = vld [vmem:[%s1442 + $0x8] sm:$0xff]
  %v1445 = vld [vmem:[%s1442 + $0x10] sm:$0xff]
  %v1446 = vld [vmem:[%s1442 + $0x18] sm:$0xff]
  %v1447 = vld [vmem:[%s1442 + $0x20] sm:$0xff]
  %v1448 = vld [vmem:[%s1442 + $0x28] sm:$0xff]
  %v1449 = vld [vmem:[%s1442 + $0x30] sm:$0xff]
  %v1450 = vld [vmem:[%s1442 + $0x38] sm:$0xff]
  %v1451 = vld [vmem:[%s1442 + $0x90] sm:$0xff]
  %v1452 = vld [vmem:[%s1442 + $0x98] sm:$0xff]
  %v1453 = vld [vmem:[%s1442 + $0xa0] sm:$0xff]
  %v1454 = vld [vmem:[%s1442 + $0xa8] sm:$0xff]
  %v1455 = vld [vmem:[%s1442 + $0xb0] sm:$0xff]
  %v1456 = vld [vmem:[%s1442 + $0xb8] sm:$0xff]
  %v1457 = vld [vmem:[%s1442 + $0xc0] sm:$0xff]
  %v1458 = vld [vmem:[%s1442 + $0xc8] sm:$0xff]
  %s1459 = scalar_lea.vmem %s1, 16
  %v1460 = vld [vmem:[%s1459] sm:$0xf]
  %v1461 = vld [vmem:[%s1459 + $0x4] sm:$0x3]
  %v1464 = vunpack.c.l.b16 %v1460
  %v1465 = vunpack.c.l.b16 %v1461
  %v1466 = vpack.c.b16 %v1465, %v1464
  %v1468 = vsel %vm1011, %v1443, 0
  %v1471 = vsel %vm1011, %v1444, 0
  %v1474 = vsel %vm1011, %v1445, 0
  %v1477 = vsel %vm1011, %v1446, 0
  %v1480 = vsel %vm1011, %v1447, 0
  %v1483 = vsel %vm1011, %v1448, 0
  %v1486 = vsel %vm1011, %v1449, 0
  %v1489 = vsel %vm1011, %v1450, 0
  %v1492 = vsel %vm1011, %v1451, 0
  %v1495 = vsel %vm1011, %v1452, 0
  %v1498 = vsel %vm1011, %v1453, 0
  %v1501 = vsel %vm1011, %v1454, 0
  %v1504 = vsel %vm1011, %v1455, 0
  %v1507 = vsel %vm1011, %v1456, 0
  %v1510 = vsel %vm1011, %v1457, 0
  %v1513 = vsel %vm1011, %v1458, 0
  %v1516 = vsel %vm1060, %v1466, 0
  %1518 = vmatprep.subr.bf16.mxu0 0
  %1519 = vmatpush1.bf16.msra.mxu0 %v1516
  %1520 = vmatprep.subr.bf16.mxu0 0
  %1521 = vmatpush1.bf16.msra.mxu0 0
  %1522 = vmatprep.subr.bf16.mxu0 0
  %1523 = vmatpush1.bf16.msra.mxu0 0
  %1524 = vmatprep.subr.bf16.mxu0 0
  %1525 = vmatpush1.bf16.msra.mxu0 0
  %1526 = vmatprep.subr.bf16.mxu0 0
  %1527 = vmatpush1.bf16.msra.mxu0 0
  %1528 = vmatprep.subr.bf16.mxu0 0
  %1529 = vmatpush1.bf16.msra.mxu0 0
  %1530 = vmatprep.subr.bf16.mxu0 0
  %1531 = vmatpush1.bf16.msra.mxu0 0
  %1532 = vmatprep.subr.bf16.mxu0 0
  %1533 = vmatpush1.bf16.msra.mxu0 0
  %1534 = vmatprep.subr.bf16.mxu0 0
  %1535 = vmatpush1.bf16.msra.mxu0 0
  %1536 = vmatprep.subr.bf16.mxu0 0
  %1537 = vmatpush1.bf16.msra.mxu0 0
  %1538 = vmatprep.subr.bf16.mxu0 0
  %1539 = vmatpush1.bf16.msra.mxu0 0
  %1540 = vmatprep.subr.bf16.mxu0 0
  %1541 = vmatpush1.bf16.msra.mxu0 0
  %1542 = vmatprep.subr.bf16.mxu0 0
  %1543 = vmatpush1.bf16.msra.mxu0 0
  %1544 = vmatprep.subr.bf16.mxu0 0
  %1545 = vmatpush1.bf16.msra.mxu0 0
  %1546 = vmatprep.subr.bf16.mxu0 0
  %1547 = vmatpush1.bf16.msra.mxu0 0
  %1548 = vmatprep.subr.bf16.mxu0 0
  %1549 = vmatpush1.bf16.msra.mxu0 0
  %1550 = vmatprep.mubr.bf16.mxu0 0
  %1551 = vmatmul.mubr.bf16.gmra.mrb[0].mxu0 %v1468
  %v1552 = vpop.f32.mrb[0].mxu0
  %v1553 = vadd.f32 0.0, %v1552
  %v1554 = vpop.f32.mrb[0].mxu0
  %v1555 = vpop.f32.mrb[0].mxu0
  %v1556 = vadd.f32 0.0, %v1555
  %v1557 = vpop.f32.mrb[0].mxu0
  %1558 = vmatprep.mubr.bf16.mxu0 0
  %1559 = vmatmul.mubr.bf16.gmra.mrb[0].mxu0 %v1471
  %v1560 = vpop.f32.mrb[0].mxu0
  %v1561 = vadd.f32 0.0, %v1560
  %v1562 = vpop.f32.mrb[0].mxu0
  %v1563 = vpop.f32.mrb[0].mxu0
  %v1564 = vadd.f32 0.0, %v1563
  %v1565 = vpop.f32.mrb[0].mxu0
  %1566 = vmatprep.mubr.bf16.mxu0 0
  %1567 = vmatmul.mubr.bf16.gmra.mrb[0].mxu0 %v1474
  %v1568 = vpop.f32.mrb[0].mxu0
  %v1569 = vadd.f32 0.0, %v1568
  %v1570 = vpop.f32.mrb[0].mxu0
  %v1571 = vpop.f32.mrb[0].mxu0
  %v1572 = vadd.f32 0.0, %v1571
  %v1573 = vpop.f32.mrb[0].mxu0
  %1574 = vmatprep.mubr.bf16.mxu0 0
  %1575 = vmatmul.mubr.bf16.gmra.mrb[0].mxu0 %v1477
  %v1576 = vpop.f32.mrb[0].mxu0
  %v1577 = vadd.f32 0.0, %v1576
  %v1578 = vpop.f32.mrb[0].mxu0
  %v1579 = vpop.f32.mrb[0].mxu0
  %v1580 = vadd.f32 0.0, %v1579
  %v1581 = vpop.f32.mrb[0].mxu0
  %1582 = vmatprep.mubr.bf16.mxu0 0
  %1583 = vmatmul.mubr.bf16.gmra.mrb[0].mxu0 %v1480
  %v1584 = vpop.f32.mrb[0].mxu0
  %v1585 = vadd.f32 0.0, %v1584
  %v1586 = vpop.f32.mrb[0].mxu0
  %v1587 = vpop.f32.mrb[0].mxu0
  %v1588 = vadd.f32 0.0, %v1587
  %v1589 = vpop.f32.mrb[0].mxu0
  %1590 = vmatprep.mubr.bf16.mxu0 0
  %1591 = vmatmul.mubr.bf16.gmra.mrb[0].mxu0 %v1483
  %v1592 = vpop.f32.mrb[0].mxu0
  %v1593 = vadd.f32 0.0, %v1592
  %v1594 = vpop.f32.mrb[0].mxu0
  %v1595 = vpop.f32.mrb[0].mxu0
  %v1596 = vadd.f32 0.0, %v1595
  %v1597 = vpop.f32.mrb[0].mxu0
  %1598 = vmatprep.mubr.bf16.mxu0 0
  %1599 = vmatmul.mubr.bf16.gmra.mrb[0].mxu0 %v1486
  %v1600 = vpop.f32.mrb[0].mxu0
  %v1601 = vadd.f32 0.0, %v1600
  %v1602 = vpop.f32.mrb[0].mxu0
  %v1603 = vpop.f32.mrb[0].mxu0
  %v1604 = vadd.f32 0.0, %v1603
  %v1605 = vpop.f32.mrb[0].mxu0
  %1606 = vmatprep.mubr.bf16.mxu0 0
  %1607 = vmatmul.mubr.bf16.gmra.mrb[0].mxu0 %v1489
  %v1608 = vpop.f32.mrb[0].mxu0
  %v1609 = vadd.f32 0.0, %v1608
  %v1610 = vpop.f32.mrb[0].mxu0
  %v1611 = vpop.f32.mrb[0].mxu0
  %v1612 = vadd.f32 0.0, %v1611
  %v1613 = vpop.f32.mrb[0].mxu0
  %1614 = vmatprep.mubr.bf16.mxu0 0
  %1615 = vmatmul.mubr.bf16.gmra.mrb[0].mxu0 %v1492
  %v1616 = vpop.f32.mrb[0].mxu0
  %v1617 = vadd.f32 0.0, %v1616
  %v1618 = vpop.f32.mrb[0].mxu0
  %v1619 = vpop.f32.mrb[0].mxu0
  %v1620 = vadd.f32 0.0, %v1619
  %v1621 = vpop.f32.mrb[0].mxu0
  %1622 = vmatprep.mubr.bf16.mxu0 0
  %1623 = vmatmul.mubr.bf16.gmra.mrb[0].mxu0 %v1495
  %v1624 = vpop.f32.mrb[0].mxu0
  %v1625 = vadd.f32 0.0, %v1624
  %v1626 = vpop.f32.mrb[0].mxu0
  %v1627 = vpop.f32.mrb[0].mxu0
  %v1628 = vadd.f32 0.0, %v1627
  %v1629 = vpop.f32.mrb[0].mxu0
  %1630 = vmatprep.mubr.bf16.mxu0 0
  %1631 = vmatmul.mubr.bf16.gmra.mrb[0].mxu0 %v1498
  %v1632 = vpop.f32.mrb[0].mxu0
  %v1633 = vadd.f32 0.0, %v1632
  %v1634 = vpop.f32.mrb[0].mxu0
  %v1635 = vpop.f32.mrb[0].mxu0
  %v1636 = vadd.f32 0.0, %v1635
  %v1637 = vpop.f32.mrb[0].mxu0
  %1638 = vmatprep.mubr.bf16.mxu0 0
  %1639 = vmatmul.mubr.bf16.gmra.mrb[0].mxu0 %v1501
  %v1640 = vpop.f32.mrb[0].mxu0
  %v1641 = vadd.f32 0.0, %v1640
  %v1642 = vpop.f32.mrb[0].mxu0
  %v1643 = vpop.f32.mrb[0].mxu0
  %v1644 = vadd.f32 0.0, %v1643
  %v1645 = vpop.f32.mrb[0].mxu0
  %1646 = vmatprep.mubr.bf16.mxu0 0
  %1647 = vmatmul.mubr.bf16.gmra.mrb[0].mxu0 %v1504
  %v1648 = vpop.f32.mrb[0].mxu0
  %v1649 = vadd.f32 0.0, %v1648
  %v1650 = vpop.f32.mrb[0].mxu0
  %v1651 = vpop.f32.mrb[0].mxu0
  %v1652 = vadd.f32 0.0, %v1651
  %v1653 = vpop.f32.mrb[0].mxu0
  %1654 = vmatprep.mubr.bf16.mxu0 0
  %1655 = vmatmul.mubr.bf16.gmra.mrb[0].mxu0 %v1507
  %v1656 = vpop.f32.mrb[0].mxu0
  %v1657 = vadd.f32 0.0, %v1656
  %v1658 = vpop.f32.mrb[0].mxu0
  %v1659 = vpop.f32.mrb[0].mxu0
  %v1660 = vadd.f32 0.0, %v1659
  %v1661 = vpop.f32.mrb[0].mxu0
  %1662 = vmatprep.mubr.bf16.mxu0 0
  %1663 = vmatmul.mubr.bf16.gmra.mrb[0].mxu0 %v1510
  %v1664 = vpop.f32.mrb[0].mxu0
  %v1665 = vadd.f32 0.0, %v1664
  %v1666 = vpop.f32.mrb[0].mxu0
  %v1667 = vpop.f32.mrb[0].mxu0
  %v1668 = vadd.f32 0.0, %v1667
  %v1669 = vpop.f32.mrb[0].mxu0
  %1670 = vmatprep.mubr.bf16.mxu0 0
  %1671 = vmatmul.mubr.bf16.gmra.mrb[0].mxu0 %v1513
  %v1672 = vpop.f32.mrb[0].mxu0
  %v1673 = vadd.f32 0.0, %v1672
  %v1674 = vpop.f32.mrb[0].mxu0
  %v1675 = vpop.f32.mrb[0].mxu0
  %v1676 = vadd.f32 0.0, %v1675
  %v1677 = vpop.f32.mrb[0].mxu0
  %1678 = vdwg.mxu0
  %v1679 = vadd.f32 %v1316, %v1553
  %v1680 = vadd.f32 %v1319, %v1556
  %v1681 = vadd.f32 %v1324, %v1561
  %v1682 = vadd.f32 %v1327, %v1564
  %v1683 = vadd.f32 %v1332, %v1569
  %v1684 = vadd.f32 %v1335, %v1572
  %v1685 = vadd.f32 %v1340, %v1577
  %v1686 = vadd.f32 %v1343, %v1580
  %v1687 = vadd.f32 %v1348, %v1585
  %v1688 = vadd.f32 %v1351, %v1588
  %v1689 = vadd.f32 %v1356, %v1593
  %v1690 = vadd.f32 %v1359, %v1596
  %v1691 = vadd.f32 %v1364, %v1601
  %v1692 = vadd.f32 %v1367, %v1604
  %v1693 = vadd.f32 %v1372, %v1609
  %v1694 = vadd.f32 %v1375, %v1612
  %v1695 = vadd.f32 %v1380, %v1617
  %v1696 = vadd.f32 %v1383, %v1620
  %v1697 = vadd.f32 %v1388, %v1625
  %v1698 = vadd.f32 %v1391, %v1628
  %v1699 = vadd.f32 %v1396, %v1633
  %v1700 = vadd.f32 %v1399, %v1636
  %v1701 = vadd.f32 %v1404, %v1641
  %v1702 = vadd.f32 %v1407, %v1644
  %v1703 = vadd.f32 %v1412, %v1649
  %v1704 = vadd.f32 %v1415, %v1652
  %v1705 = vadd.f32 %v1420, %v1657
  %v1706 = vadd.f32 %v1423, %v1660
  %v1707 = vadd.f32 %v1428, %v1665
  %v1708 = vadd.f32 %v1431, %v1668
  %v1709 = vadd.f32 %v1436, %v1673
  %v1710 = vadd.f32 %v1439, %v1676
  %v1711 = vpack.c.bf16 %v1680, %v1679
  %v1712 = vpack.c.bf16 %v1682, %v1681
  %v1713 = vpack.c.bf16 %v1684, %v1683
  %v1714 = vpack.c.bf16 %v1686, %v1685
  %v1715 = vpack.c.bf16 %v1688, %v1687
  %v1716 = vpack.c.bf16 %v1690, %v1689
  %v1717 = vpack.c.bf16 %v1692, %v1691
  %v1718 = vpack.c.bf16 %v1694, %v1693
  %v1719 = vpack.c.bf16 %v1696, %v1695
  %v1720 = vpack.c.bf16 %v1698, %v1697
  %v1721 = vpack.c.bf16 %v1700, %v1699
  %v1722 = vpack.c.bf16 %v1702, %v1701
  %v1723 = vpack.c.bf16 %v1704, %v1703
  %v1724 = vpack.c.bf16 %v1706, %v1705
  %v1725 = vpack.c.bf16 %v1708, %v1707
  %v1726 = vpack.c.bf16 %v1710, %v1709
  %v1743 = vunpack.c.l.b16 %v1711
  %v1744 = vunpack.c.h.b16 %v1711
  %v1745 = vunpack.c.l.b16 %v1712
  %v1746 = vunpack.c.h.b16 %v1712
  %v1747 = vunpack.c.l.b16 %v1713
  %v1748 = vunpack.c.h.b16 %v1713
  %v1749 = vunpack.c.l.b16 %v1714
  %v1750 = vunpack.c.h.b16 %v1714
  %v1751 = vunpack.c.l.b16 %v1715
  %v1752 = vunpack.c.h.b16 %v1715
  %v1753 = vunpack.c.l.b16 %v1716
  %v1754 = vunpack.c.h.b16 %v1716
  %v1755 = vunpack.c.l.b16 %v1717
  %v1756 = vunpack.c.h.b16 %v1717
  %v1757 = vunpack.c.l.b16 %v1718
  %v1758 = vunpack.c.h.b16 %v1718
  %v1759 = vunpack.c.l.b16 %v1719
  %v1760 = vunpack.c.h.b16 %v1719
  %v1761 = vunpack.c.l.b16 %v1720
  %v1762 = vunpack.c.h.b16 %v1720
  %v1763 = vunpack.c.l.b16 %v1721
  %v1764 = vunpack.c.h.b16 %v1721
  %v1765 = vunpack.c.l.b16 %v1722
  %v1766 = vunpack.c.h.b16 %v1722
  %v1767 = vunpack.c.l.b16 %v1723
  %v1768 = vunpack.c.h.b16 %v1723
  %v1769 = vunpack.c.l.b16 %v1724
  %v1770 = vunpack.c.h.b16 %v1724
  %v1771 = vunpack.c.l.b16 %v1725
  %v1772 = vunpack.c.h.b16 %v1725
  %v1773 = vunpack.c.l.b16 %v1726
  %v1774 = vunpack.c.h.b16 %v1726
  %v1775 = vpack.c.b16 %v1743, %v1743
  %v1776 = vpack.c.b16 %v1744, %v1744
  %v1777 = vpack.c.b16 %v1745, %v1745
  %v1778 = vpack.c.b16 %v1746, %v1746
  %v1779 = vpack.c.b16 %v1747, %v1747
  %v1780 = vpack.c.b16 %v1748, %v1748
  %v1781 = vpack.c.b16 %v1749, %v1749
  %v1782 = vpack.c.b16 %v1750, %v1750
  %v1783 = vpack.c.b16 %v1751, %v1751
  %v1784 = vpack.c.b16 %v1752, %v1752
  %v1785 = vpack.c.b16 %v1753, %v1753
  %v1786 = vpack.c.b16 %v1754, %v1754
  %v1787 = vpack.c.b16 %v1755, %v1755
  %v1788 = vpack.c.b16 %v1756, %v1756
  %v1789 = vpack.c.b16 %v1757, %v1757
  %v1790 = vpack.c.b16 %v1758, %v1758
  %v1791 = vpack.c.b16 %v1759, %v1759
  %v1792 = vpack.c.b16 %v1760, %v1760
  %v1793 = vpack.c.b16 %v1761, %v1761
  %v1794 = vpack.c.b16 %v1762, %v1762
  %v1795 = vpack.c.b16 %v1763, %v1763
  %v1796 = vpack.c.b16 %v1764, %v1764
  %v1797 = vpack.c.b16 %v1765, %v1765
  %v1798 = vpack.c.b16 %v1766, %v1766
  %v1799 = vpack.c.b16 %v1767, %v1767
  %v1800 = vpack.c.b16 %v1768, %v1768
  %v1801 = vpack.c.b16 %v1769, %v1769
  %v1802 = vpack.c.b16 %v1770, %v1770
  %v1803 = vpack.c.b16 %v1771, %v1771
  %v1804 = vpack.c.b16 %v1772, %v1772
  %v1805 = vpack.c.b16 %v1773, %v1773
  %v1806 = vpack.c.b16 %v1774, %v1774
  %vm1839 = vcmask 519168
  %1840 = vst.msk [vmem:[%s4] sm:$0xf] %vm1839, %v1775
  %1841 = vst.msk [vmem:[%s4 + $0x4] sm:$0xf] %vm1839, %v1776
  %1842 = vst.msk [vmem:[%s4 + $0x8] sm:$0xf] %vm1839, %v1777
  %1843 = vst.msk [vmem:[%s4 + $0xc] sm:$0xf] %vm1839, %v1778
  %1844 = vst.msk [vmem:[%s4 + $0x10] sm:$0xf] %vm1839, %v1779
  %1845 = vst.msk [vmem:[%s4 + $0x14] sm:$0xf] %vm1839, %v1780
  %1846 = vst.msk [vmem:[%s4 + $0x18] sm:$0xf] %vm1839, %v1781
  %1847 = vst.msk [vmem:[%s4 + $0x1c] sm:$0xf] %vm1839, %v1782
  %1848 = vst.msk [vmem:[%s4 + $0x20] sm:$0xf] %vm1839, %v1783
  %1849 = vst.msk [vmem:[%s4 + $0x24] sm:$0xf] %vm1839, %v1784
  %1850 = vst.msk [vmem:[%s4 + $0x28] sm:$0xf] %vm1839, %v1785
  %1851 = vst.msk [vmem:[%s4 + $0x2c] sm:$0xf] %vm1839, %v1786
  %1852 = vst.msk [vmem:[%s4 + $0x30] sm:$0xf] %vm1839, %v1787
  %1853 = vst.msk [vmem:[%s4 + $0x34] sm:$0xf] %vm1839, %v1788
  %1854 = vst.msk [vmem:[%s4 + $0x38] sm:$0xf] %vm1839, %v1789
  %1855 = vst.msk [vmem:[%s4 + $0x3c] sm:$0xf] %vm1839, %v1790
  %1856 = vst.msk [vmem:[%s4 + $0x80] sm:$0xf] %vm1839, %v1791
  %1857 = vst.msk [vmem:[%s4 + $0x84] sm:$0xf] %vm1839, %v1792
  %1858 = vst.msk [vmem:[%s4 + $0x88] sm:$0xf] %vm1839, %v1793
  %1859 = vst.msk [vmem:[%s4 + $0x8c] sm:$0xf] %vm1839, %v1794
  %1860 = vst.msk [vmem:[%s4 + $0x90] sm:$0xf] %vm1839, %v1795
  %1861 = vst.msk [vmem:[%s4 + $0x94] sm:$0xf] %vm1839, %v1796
  %1862 = vst.msk [vmem:[%s4 + $0x98] sm:$0xf] %vm1839, %v1797
  %1863 = vst.msk [vmem:[%s4 + $0x9c] sm:$0xf] %vm1839, %v1798
  %1864 = vst.msk [vmem:[%s4 + $0xa0] sm:$0xf] %vm1839, %v1799
  %1865 = vst.msk [vmem:[%s4 + $0xa4] sm:$0xf] %vm1839, %v1800
  %1866 = vst.msk [vmem:[%s4 + $0xa8] sm:$0xf] %vm1839, %v1801
  %1867 = vst.msk [vmem:[%s4 + $0xac] sm:$0xf] %vm1839, %v1802
  %1868 = vst.msk [vmem:[%s4 + $0xb0] sm:$0xf] %vm1839, %v1803
  %1869 = vst.msk [vmem:[%s4 + $0xb4] sm:$0xf] %vm1839, %v1804
  %1870 = vst.msk [vmem:[%s4 + $0xb8] sm:$0xf] %vm1839, %v1805
  %1871 = vst.msk [vmem:[%s4 + $0xbc] sm:$0xf] %vm1839, %v1806
  %vm1872 = vcmask 523264
  %v1873 = vsel %vm1872, %v1679, 0.0
  %v1874 = vsel %vm1872, %v1680, 0.0
  %v1875 = vadd.f32 %v1873, %v1874
  %v1876 = vsel %vm1872, %v1681, 0.0
  %v1877 = vadd.f32 %v1875, %v1876
  %v1878 = vsel %vm1872, %v1682, 0.0
  %v1879 = vadd.f32 %v1877, %v1878
  %v1880 = vsel %vm1872, %v1683, 0.0
  %v1881 = vadd.f32 %v1879, %v1880
  %v1882 = vsel %vm1872, %v1684, 0.0
  %v1883 = vadd.f32 %v1881, %v1882
  %v1884 = vsel %vm1872, %v1685, 0.0
  %v1885 = vadd.f32 %v1883, %v1884
  %v1886 = vsel %vm1872, %v1686, 0.0
  %v1887 = vadd.f32 %v1885, %v1886
  %v1888 = vsel %vm1872, %v1687, 0.0
  %v1889 = vadd.f32 %v1887, %v1888
  %v1890 = vsel %vm1872, %v1688, 0.0
  %v1891 = vadd.f32 %v1889, %v1890
  %v1892 = vsel %vm1872, %v1689, 0.0
  %v1893 = vadd.f32 %v1891, %v1892
  %v1894 = vsel %vm1872, %v1690, 0.0
  %v1895 = vadd.f32 %v1893, %v1894
  %v1896 = vsel %vm1872, %v1691, 0.0
  %v1897 = vadd.f32 %v1895, %v1896
  %v1898 = vsel %vm1872, %v1692, 0.0
  %v1899 = vadd.f32 %v1897, %v1898
  %v1900 = vsel %vm1872, %v1693, 0.0
  %v1901 = vadd.f32 %v1899, %v1900
  %v1902 = vsel %vm1872, %v1694, 0.0
  %v1903 = vadd.f32 %v1901, %v1902
  %v1904 = vsel %vm1872, %v1695, 0.0
  %v1905 = vadd.f32 %v1903, %v1904
  %v1906 = vsel %vm1872, %v1696, 0.0
  %v1907 = vadd.f32 %v1905, %v1906
  %v1908 = vsel %vm1872, %v1697, 0.0
  %v1909 = vadd.f32 %v1907, %v1908
  %v1910 = vsel %vm1872, %v1698, 0.0
  %v1911 = vadd.f32 %v1909, %v1910
  %v1912 = vsel %vm1872, %v1699, 0.0
  %v1913 = vadd.f32 %v1911, %v1912
  %v1914 = vsel %vm1872, %v1700, 0.0
  %v1915 = vadd.f32 %v1913, %v1914
  %v1916 = vsel %vm1872, %v1701, 0.0
  %v1917 = vadd.f32 %v1915, %v1916
  %v1918 = vsel %vm1872, %v1702, 0.0
  %v1919 = vadd.f32 %v1917, %v1918
  %v1920 = vsel %vm1872, %v1703, 0.0
  %v1921 = vadd.f32 %v1919, %v1920
  %v1922 = vsel %vm1872, %v1704, 0.0
  %v1923 = vadd.f32 %v1921, %v1922
  %v1924 = vsel %vm1872, %v1705, 0.0
  %v1925 = vadd.f32 %v1923, %v1924
  %v1926 = vsel %vm1872, %v1706, 0.0
  %v1927 = vadd.f32 %v1925, %v1926
  %v1928 = vsel %vm1872, %v1707, 0.0
  %v1929 = vadd.f32 %v1927, %v1928
  %v1930 = vsel %vm1872, %v1708, 0.0
  %v1931 = vadd.f32 %v1929, %v1930
  %v1932 = vsel %vm1872, %v1709, 0.0
  %v1933 = vadd.f32 %v1931, %v1932
  %v1934 = vsel %vm1872, %v1710, 0.0
  %v1935 = vadd.f32 %v1933, %v1934
  %v1936 = vrot.slane %v1935, 4
  %v1937 = vadd.f32 %v1935, %v1936
  %v1938 = vrot.slane %v1937, 2
  %v1939 = vadd.f32 %v1937, %v1938
  %v1940 = vrot.slane %v1939, 1
  %v1941 = vadd.f32 %v1939, %v1940
  %v1942 = vadd.f32 %v1941, 0.0
  %v1943 = vmul.f32 %v1679, %v1679
  %v1944 = vmul.f32 %v1680, %v1680
  %v1945 = vmul.f32 %v1681, %v1681
  %v1946 = vmul.f32 %v1682, %v1682
  %v1947 = vmul.f32 %v1683, %v1683
  %v1948 = vmul.f32 %v1684, %v1684
  %v1949 = vmul.f32 %v1685, %v1685
  %v1950 = vmul.f32 %v1686, %v1686
  %v1951 = vmul.f32 %v1687, %v1687
  %v1952 = vmul.f32 %v1688, %v1688
  %v1953 = vmul.f32 %v1689, %v1689
  %v1954 = vmul.f32 %v1690, %v1690
  %v1955 = vmul.f32 %v1691, %v1691
  %v1956 = vmul.f32 %v1692, %v1692
  %v1957 = vmul.f32 %v1693, %v1693
  %v1958 = vmul.f32 %v1694, %v1694
  %v1959 = vmul.f32 %v1695, %v1695
  %v1960 = vmul.f32 %v1696, %v1696
  %v1961 = vmul.f32 %v1697, %v1697
  %v1962 = vmul.f32 %v1698, %v1698
  %v1963 = vmul.f32 %v1699, %v1699
  %v1964 = vmul.f32 %v1700, %v1700
  %v1965 = vmul.f32 %v1701, %v1701
  %v1966 = vmul.f32 %v1702, %v1702
  %v1967 = vmul.f32 %v1703, %v1703
  %v1968 = vmul.f32 %v1704, %v1704
  %v1969 = vmul.f32 %v1705, %v1705
  %v1970 = vmul.f32 %v1706, %v1706
  %v1971 = vmul.f32 %v1707, %v1707
  %v1972 = vmul.f32 %v1708, %v1708
  %v1973 = vmul.f32 %v1709, %v1709
  %v1974 = vmul.f32 %v1710, %v1710
  %v1975 = vsel %vm1872, %v1943, 0.0
  %v1976 = vsel %vm1872, %v1944, 0.0
  %v1977 = vadd.f32 %v1975, %v1976
  %v1978 = vsel %vm1872, %v1945, 0.0
  %v1979 = vadd.f32 %v1977, %v1978
  %v1980 = vsel %vm1872, %v1946, 0.0
  %v1981 = vadd.f32 %v1979, %v1980
  %v1982 = vsel %vm1872, %v1947, 0.0
  %v1983 = vadd.f32 %v1981, %v1982
  %v1984 = vsel %vm1872, %v1948, 0.0
  %v1985 = vadd.f32 %v1983, %v1984
  %v1986 = vsel %vm1872, %v1949, 0.0
  %v1987 = vadd.f32 %v1985, %v1986
  %v1988 = vsel %vm1872, %v1950, 0.0
  %v1989 = vadd.f32 %v1987, %v1988
  %v1990 = vsel %vm1872, %v1951, 0.0
  %v1991 = vadd.f32 %v1989, %v1990
  %v1992 = vsel %vm1872, %v1952, 0.0
  %v1993 = vadd.f32 %v1991, %v1992
  %v1994 = vsel %vm1872, %v1953, 0.0
  %v1995 = vadd.f32 %v1993, %v1994
  %v1996 = vsel %vm1872, %v1954, 0.0
  %v1997 = vadd.f32 %v1995, %v1996
  %v1998 = vsel %vm1872, %v1955, 0.0
  %v1999 = vadd.f32 %v1997, %v1998
  %v2000 = vsel %vm1872, %v1956, 0.0
  %v2001 = vadd.f32 %v1999, %v2000
  %v2002 = vsel %vm1872, %v1957, 0.0
  %v2003 = vadd.f32 %v2001, %v2002
  %v2004 = vsel %vm1872, %v1958, 0.0
  %v2005 = vadd.f32 %v2003, %v2004
  %v2006 = vsel %vm1872, %v1959, 0.0
  %v2007 = vadd.f32 %v2005, %v2006
  %v2008 = vsel %vm1872, %v1960, 0.0
  %v2009 = vadd.f32 %v2007, %v2008
  %v2010 = vsel %vm1872, %v1961, 0.0
  %v2011 = vadd.f32 %v2009, %v2010
  %v2012 = vsel %vm1872, %v1962, 0.0
  %v2013 = vadd.f32 %v2011, %v2012
  %v2014 = vsel %vm1872, %v1963, 0.0
  %v2015 = vadd.f32 %v2013, %v2014
  %v2016 = vsel %vm1872, %v1964, 0.0
  %v2017 = vadd.f32 %v2015, %v2016
  %v2018 = vsel %vm1872, %v1965, 0.0
  %v2019 = vadd.f32 %v2017, %v2018
  %v2020 = vsel %vm1872, %v1966, 0.0
  %v2021 = vadd.f32 %v2019, %v2020
  %v2022 = vsel %vm1872, %v1967, 0.0
  %v2023 = vadd.f32 %v2021, %v2022
  %v2024 = vsel %vm1872, %v1968, 0.0
  %v2025 = vadd.f32 %v2023, %v2024
  %v2026 = vsel %vm1872, %v1969, 0.0
  %v2027 = vadd.f32 %v2025, %v2026
  %v2028 = vsel %vm1872, %v1970, 0.0
  %v2029 = vadd.f32 %v2027, %v2028
  %v2030 = vsel %vm1872, %v1971, 0.0
  %v2031 = vadd.f32 %v2029, %v2030
  %v2032 = vsel %vm1872, %v1972, 0.0
  %v2033 = vadd.f32 %v2031, %v2032
  %v2034 = vsel %vm1872, %v1973, 0.0
  %v2035 = vadd.f32 %v2033, %v2034
  %v2036 = vsel %vm1872, %v1974, 0.0
  %v2037 = vadd.f32 %v2035, %v2036
  %v2038 = vrot.slane %v2037, 4
  %v2039 = vadd.f32 %v2037, %v2038
  %v2040 = vrot.slane %v2039, 2
  %v2041 = vadd.f32 %v2039, %v2040
  %v2042 = vrot.slane %v2041, 1
  %v2043 = vadd.f32 %v2041, %v2042
  %v2044 = vadd.f32 %v2043, 0.0
  %s2045 = scalar_lea.vmem [#allocation2], 64
  %v2046 = vld [vmem:[%s2045] sm:$0xff]
  %v2047 = vld [vmem:[%s2045 + $0x8] sm:$0xff]
  %v2048 = vld [vmem:[%s2045 + $0x10] sm:$0xff]
  %v2049 = vld [vmem:[%s2045 + $0x18] sm:$0xff]
  %v2050 = vld [vmem:[%s2045 + $0x20] sm:$0xff]
  %v2051 = vld [vmem:[%s2045 + $0x28] sm:$0xff]
  %v2052 = vld [vmem:[%s2045 + $0x30] sm:$0xff]
  %v2053 = vld [vmem:[%s2045 + $0x38] sm:$0xff]
  %v2054 = vld [vmem:[%s2045 + $0x90] sm:$0xff]
  %v2055 = vld [vmem:[%s2045 + $0x98] sm:$0xff]
  %v2056 = vld [vmem:[%s2045 + $0xa0] sm:$0xff]
  %v2057 = vld [vmem:[%s2045 + $0xa8] sm:$0xff]
  %v2058 = vld [vmem:[%s2045 + $0xb0] sm:$0xff]
  %v2059 = vld [vmem:[%s2045 + $0xb8] sm:$0xff]
  %v2060 = vld [vmem:[%s2045 + $0xc0] sm:$0xff]
  %v2061 = vld [vmem:[%s2045 + $0xc8] sm:$0xff]
  %v2062 = vld [vmem:[%s1] sm:$0xf]
  %v2063 = vld [vmem:[%s1 + $0x4] sm:$0x3]
  %s2064 = scalar_lea.vmem [#allocation2], 72
  %v2065 = vld [vmem:[%s2064] sm:$0xff]
  %v2066 = vld [vmem:[%s2064 + $0x8] sm:$0xff]
  %v2067 = vld [vmem:[%s2064 + $0x10] sm:$0xff]
  %v2068 = vld [vmem:[%s2064 + $0x18] sm:$0xff]
  %v2069 = vld [vmem:[%s2064 + $0x20] sm:$0xff]
  %v2070 = vld [vmem:[%s2064 + $0x28] sm:$0xff]
  %v2071 = vld [vmem:[%s2064 + $0x30] sm:$0xff]
  %v2072 = vld [vmem:[%s2064 + $0x38] sm:$0xff]
  %v2073 = vld [vmem:[%s2064 + $0x90] sm:$0xff]
  %v2074 = vld [vmem:[%s2064 + $0x98] sm:$0xff]
  %v2075 = vld [vmem:[%s2064 + $0xa0] sm:$0xff]
  %v2076 = vld [vmem:[%s2064 + $0xa8] sm:$0xff]
  %v2077 = vld [vmem:[%s2064 + $0xb0] sm:$0xff]
  %v2078 = vld [vmem:[%s2064 + $0xb8] sm:$0xff]
  %v2079 = vld [vmem:[%s2064 + $0xc0] sm:$0xff]
  %v2080 = vld [vmem:[%s2064 + $0xc8] sm:$0xff]
  %v2081 = vld [vmem:[%s1003] sm:$0xf]
  %v2082 = vld [vmem:[%s1003 + $0x4] sm:$0x3]
  %v2085 = vunpack.c.l.b16 %v2081
  %v2086 = vunpack.c.l.b16 %v2082
  %v2087 = vpack.c.b16 %v2086, %v2085
  %v2089 = vsel %vm1011, %v2065, 0
  %v2092 = vsel %vm1011, %v2066, 0
  %v2095 = vsel %vm1011, %v2067, 0
  %v2098 = vsel %vm1011, %v2068, 0
  %v2101 = vsel %vm1011, %v2069, 0
  %v2104 = vsel %vm1011, %v2070, 0
  %v2107 = vsel %vm1011, %v2071, 0
  %v2110 = vsel %vm1011, %v2072, 0
  %v2113 = vsel %vm1011, %v2073, 0
  %v2116 = vsel %vm1011, %v2074, 0
  %v2119 = vsel %vm1011, %v2075, 0
  %v2122 = vsel %vm1011, %v2076, 0
  %v2125 = vsel %vm1011, %v2077, 0
  %v2128 = vsel %vm1011, %v2078, 0
  %v2131 = vsel %vm1011, %v2079, 0
  %v2134 = vsel %vm1011, %v2080, 0
  %v2137 = vsel %vm1060, %v2087, 0
  %2139 = vmatprep.subr.bf16.mxu0 0
  %2140 = vmatpush1.bf16.msra.mxu0 %v2137
  %2141 = vmatprep.subr.bf16.mxu0 0
  %2142 = vmatpush1.bf16.msra.mxu0 0
  %2143 = vmatprep.subr.bf16.mxu0 0
  %2144 = vmatpush1.bf16.msra.mxu0 0
  %2145 = vmatprep.subr.bf16.mxu0 0
  %2146 = vmatpush1.bf16.msra.mxu0 0
  %2147 = vmatprep.subr.bf16.mxu0 0
  %2148 = vmatpush1.bf16.msra.mxu0 0
  %2149 = vmatprep.subr.bf16.mxu0 0
  %2150 = vmatpush1.bf16.msra.mxu0 0
  %2151 = vmatprep.subr.bf16.mxu0 0
  %2152 = vmatpush1.bf16.msra.mxu0 0
  %2153 = vmatprep.subr.bf16.mxu0 0
  %2154 = vmatpush1.bf16.msra.mxu0 0
  %2155 = vmatprep.subr.bf16.mxu0 0
  %2156 = vmatpush1.bf16.msra.mxu0 0
  %2157 = vmatprep.subr.bf16.mxu0 0
  %2158 = vmatpush1.bf16.msra.mxu0 0
  %2159 = vmatprep.subr.bf16.mxu0 0
  %2160 = vmatpush1.bf16.msra.mxu0 0
  %2161 = vmatprep.subr.bf16.mxu0 0
  %2162 = vmatpush1.bf16.msra.mxu0 0
  %2163 = vmatprep.subr.bf16.mxu0 0
  %2164 = vmatpush1.bf16.msra.mxu0 0
  %2165 = vmatprep.subr.bf16.mxu0 0
  %2166 = vmatpush1.bf16.msra.mxu0 0
  %2167 = vmatprep.subr.bf16.mxu0 0
  %2168 = vmatpush1.bf16.msra.mxu0 0
  %2169 = vmatprep.subr.bf16.mxu0 0
  %2170 = vmatpush1.bf16.msra.mxu0 0
  %2171 = vmatprep.mubr.bf16.mxu0 0
  %2172 = vmatmul.mubr.bf16.gmra.mrb[0].mxu0 %v2089
  %v2173 = vpop.f32.mrb[0].mxu0
  %v2174 = vadd.f32 0.0, %v2173
  %v2175 = vpop.f32.mrb[0].mxu0
  %v2176 = vpop.f32.mrb[0].mxu0
  %v2177 = vadd.f32 0.0, %v2176
  %v2178 = vpop.f32.mrb[0].mxu0
  %2179 = vmatprep.mubr.bf16.mxu0 0
  %2180 = vmatmul.mubr.bf16.gmra.mrb[0].mxu0 %v2092
  %v2181 = vpop.f32.mrb[0].mxu0
  %v2182 = vadd.f32 0.0, %v2181
  %v2183 = vpop.f32.mrb[0].mxu0
  %v2184 = vpop.f32.mrb[0].mxu0
  %v2185 = vadd.f32 0.0, %v2184
  %v2186 = vpop.f32.mrb[0].mxu0
  %2187 = vmatprep.mubr.bf16.mxu0 0
  %2188 = vmatmul.mubr.bf16.gmra.mrb[0].mxu0 %v2095
  %v2189 = vpop.f32.mrb[0].mxu0
  %v2190 = vadd.f32 0.0, %v2189
  %v2191 = vpop.f32.mrb[0].mxu0
  %v2192 = vpop.f32.mrb[0].mxu0
  %v2193 = vadd.f32 0.0, %v2192
  %v2194 = vpop.f32.mrb[0].mxu0
  %2195 = vmatprep.mubr.bf16.mxu0 0
  %2196 = vmatmul.mubr.bf16.gmra.mrb[0].mxu0 %v2098
  %v2197 = vpop.f32.mrb[0].mxu0
  %v2198 = vadd.f32 0.0, %v2197
  %v2199 = vpop.f32.mrb[0].mxu0
  %v2200 = vpop.f32.mrb[0].mxu0
  %v2201 = vadd.f32 0.0, %v2200
  %v2202 = vpop.f32.mrb[0].mxu0
  %2203 = vmatprep.mubr.bf16.mxu0 0
  %2204 = vmatmul.mubr.bf16.gmra.mrb[0].mxu0 %v2101
  %v2205 = vpop.f32.mrb[0].mxu0
  %v2206 = vadd.f32 0.0, %v2205
  %v2207 = vpop.f32.mrb[0].mxu0
  %v2208 = vpop.f32.mrb[0].mxu0
  %v2209 = vadd.f32 0.0, %v2208
  %v2210 = vpop.f32.mrb[0].mxu0
  %2211 = vmatprep.mubr.bf16.mxu0 0
  %2212 = vmatmul.mubr.bf16.gmra.mrb[0].mxu0 %v2104
  %v2213 = vpop.f32.mrb[0].mxu0
  %v2214 = vadd.f32 0.0, %v2213
  %v2215 = vpop.f32.mrb[0].mxu0
  %v2216 = vpop.f32.mrb[0].mxu0
  %v2217 = vadd.f32 0.0, %v2216
  %v2218 = vpop.f32.mrb[0].mxu0
  %2219 = vmatprep.mubr.bf16.mxu0 0
  %2220 = vmatmul.mubr.bf16.gmra.mrb[0].mxu0 %v2107
  %v2221 = vpop.f32.mrb[0].mxu0
  %v2222 = vadd.f32 0.0, %v2221
  %v2223 = vpop.f32.mrb[0].mxu0
  %v2224 = vpop.f32.mrb[0].mxu0
  %v2225 = vadd.f32 0.0, %v2224
  %v2226 = vpop.f32.mrb[0].mxu0
  %2227 = vmatprep.mubr.bf16.mxu0 0
  %2228 = vmatmul.mubr.bf16.gmra.mrb[0].mxu0 %v2110
  %v2229 = vpop.f32.mrb[0].mxu0
  %v2230 = vadd.f32 0.0, %v2229
  %v2231 = vpop.f32.mrb[0].mxu0
  %v2232 = vpop.f32.mrb[0].mxu0
  %v2233 = vadd.f32 0.0, %v2232
  %v2234 = vpop.f32.mrb[0].mxu0
  %2235 = vmatprep.mubr.bf16.mxu0 0
  %2236 = vmatmul.mubr.bf16.gmra.mrb[0].mxu0 %v2113
  %v2237 = vpop.f32.mrb[0].mxu0
  %v2238 = vadd.f32 0.0, %v2237
  %v2239 = vpop.f32.mrb[0].mxu0
  %v2240 = vpop.f32.mrb[0].mxu0
  %v2241 = vadd.f32 0.0, %v2240
  %v2242 = vpop.f32.mrb[0].mxu0
  %2243 = vmatprep.mubr.bf16.mxu0 0
  %2244 = vmatmul.mubr.bf16.gmra.mrb[0].mxu0 %v2116
  %v2245 = vpop.f32.mrb[0].mxu0
  %v2246 = vadd.f32 0.0, %v2245
  %v2247 = vpop.f32.mrb[0].mxu0
  %v2248 = vpop.f32.mrb[0].mxu0
  %v2249 = vadd.f32 0.0, %v2248
  %v2250 = vpop.f32.mrb[0].mxu0
  %2251 = vmatprep.mubr.bf16.mxu0 0
  %2252 = vmatmul.mubr.bf16.gmra.mrb[0].mxu0 %v2119
  %v2253 = vpop.f32.mrb[0].mxu0
  %v2254 = vadd.f32 0.0, %v2253
  %v2255 = vpop.f32.mrb[0].mxu0
  %v2256 = vpop.f32.mrb[0].mxu0
  %v2257 = vadd.f32 0.0, %v2256
  %v2258 = vpop.f32.mrb[0].mxu0
  %2259 = vmatprep.mubr.bf16.mxu0 0
  %2260 = vmatmul.mubr.bf16.gmra.mrb[0].mxu0 %v2122
  %v2261 = vpop.f32.mrb[0].mxu0
  %v2262 = vadd.f32 0.0, %v2261
  %v2263 = vpop.f32.mrb[0].mxu0
  %v2264 = vpop.f32.mrb[0].mxu0
  %v2265 = vadd.f32 0.0, %v2264
  %v2266 = vpop.f32.mrb[0].mxu0
  %2267 = vmatprep.mubr.bf16.mxu0 0
  %2268 = vmatmul.mubr.bf16.gmra.mrb[0].mxu0 %v2125
  %v2269 = vpop.f32.mrb[0].mxu0
  %v2270 = vadd.f32 0.0, %v2269
  %v2271 = vpop.f32.mrb[0].mxu0
  %v2272 = vpop.f32.mrb[0].mxu0
  %v2273 = vadd.f32 0.0, %v2272
  %v2274 = vpop.f32.mrb[0].mxu0
  %2275 = vmatprep.mubr.bf16.mxu0 0
  %2276 = vmatmul.mubr.bf16.gmra.mrb[0].mxu0 %v2128
  %v2277 = vpop.f32.mrb[0].mxu0
  %v2278 = vadd.f32 0.0, %v2277
  %v2279 = vpop.f32.mrb[0].mxu0
  %v2280 = vpop.f32.mrb[0].mxu0
  %v2281 = vadd.f32 0.0, %v2280
  %v2282 = vpop.f32.mrb[0].mxu0
  %2283 = vmatprep.mubr.bf16.mxu0 0
  %2284 = vmatmul.mubr.bf16.gmra.mrb[0].mxu0 %v2131
  %v2285 = vpop.f32.mrb[0].mxu0
  %v2286 = vadd.f32 0.0, %v2285
  %v2287 = vpop.f32.mrb[0].mxu0
  %v2288 = vpop.f32.mrb[0].mxu0
  %v2289 = vadd.f32 0.0, %v2288
  %v2290 = vpop.f32.mrb[0].mxu0
  %2291 = vmatprep.mubr.bf16.mxu0 0
  %2292 = vmatmul.mubr.bf16.gmra.mrb[0].mxu0 %v2134
  %v2293 = vpop.f32.mrb[0].mxu0
  %v2294 = vadd.f32 0.0, %v2293
  %v2295 = vpop.f32.mrb[0].mxu0
  %v2296 = vpop.f32.mrb[0].mxu0
  %v2297 = vadd.f32 0.0, %v2296
  %v2298 = vpop.f32.mrb[0].mxu0
  %2299 = vdwg.mxu0
  %v2302 = vunpack.c.l.b16 %v2062
  %v2303 = vunpack.c.l.b16 %v2063
  %v2304 = vpack.c.b16 %v2303, %v2302
  %v2306 = vsel %vm1011, %v2046, 0
  %v2309 = vsel %vm1011, %v2047, 0
  %v2312 = vsel %vm1011, %v2048, 0
  %v2315 = vsel %vm1011, %v2049, 0
  %v2318 = vsel %vm1011, %v2050, 0
  %v2321 = vsel %vm1011, %v2051, 0
  %v2324 = vsel %vm1011, %v2052, 0
  %v2327 = vsel %vm1011, %v2053, 0
  %v2330 = vsel %vm1011, %v2054, 0
  %v2333 = vsel %vm1011, %v2055, 0
  %v2336 = vsel %vm1011, %v2056, 0
  %v2339 = vsel %vm1011, %v2057, 0
  %v2342 = vsel %vm1011, %v2058, 0
  %v2345 = vsel %vm1011, %v2059, 0
  %v2348 = vsel %vm1011, %v2060, 0
  %v2351 = vsel %vm1011, %v2061, 0
  %v2354 = vsel %vm1060, %v2304, 0
  %2356 = vmatprep.subr.bf16.mxu0 0
  %2357 = vmatpush1.bf16.msra.mxu0 %v2354
  %2358 = vmatprep.subr.bf16.mxu0 0
  %2359 = vmatpush1.bf16.msra.mxu0 0
  %2360 = vmatprep.subr.bf16.mxu0 0
  %2361 = vmatpush1.bf16.msra.mxu0 0
  %2362 = vmatprep.subr.bf16.mxu0 0
  %2363 = vmatpush1.bf16.msra.mxu0 0
  %2364 = vmatprep.subr.bf16.mxu0 0
  %2365 = vmatpush1.bf16.msra.mxu0 0
  %2366 = vmatprep.subr.bf16.mxu0 0
  %2367 = vmatpush1.bf16.msra.mxu0 0
  %2368 = vmatprep.subr.bf16.mxu0 0
  %2369 = vmatpush1.bf16.msra.mxu0 0
  %2370 = vmatprep.subr.bf16.mxu0 0
  %2371 = vmatpush1.bf16.msra.mxu0 0
  %2372 = vmatprep.subr.bf16.mxu0 0
  %2373 = vmatpush1.bf16.msra.mxu0 0
  %2374 = vmatprep.subr.bf16.mxu0 0
  %2375 = vmatpush1.bf16.msra.mxu0 0
  %2376 = vmatprep.subr.bf16.mxu0 0
  %2377 = vmatpush1.bf16.msra.mxu0 0
  %2378 = vmatprep.subr.bf16.mxu0 0
  %2379 = vmatpush1.bf16.msra.mxu0 0
  %2380 = vmatprep.subr.bf16.mxu0 0
  %2381 = vmatpush1.bf16.msra.mxu0 0
  %2382 = vmatprep.subr.bf16.mxu0 0
  %2383 = vmatpush1.bf16.msra.mxu0 0
  %2384 = vmatprep.subr.bf16.mxu0 0
  %2385 = vmatpush1.bf16.msra.mxu0 0
  %2386 = vmatprep.subr.bf16.mxu0 0
  %2387 = vmatpush1.bf16.msra.mxu0 0
  %2388 = vmatprep.mubr.bf16.mxu0 0
  %2389 = vmatmul.mubr.bf16.gmra.mrb[0].mxu0 %v2306
  %v2390 = vpop.f32.mrb[0].mxu0
  %v2391 = vadd.f32 %v2174, %v2390
  %v2392 = vpop.f32.mrb[0].mxu0
  %v2393 = vpop.f32.mrb[0].mxu0
  %v2394 = vadd.f32 %v2177, %v2393
  %v2395 = vpop.f32.mrb[0].mxu0
  %2396 = vmatprep.mubr.bf16.mxu0 0
  %2397 = vmatmul.mubr.bf16.gmra.mrb[0].mxu0 %v2309
  %v2398 = vpop.f32.mrb[0].mxu0
  %v2399 = vadd.f32 %v2182, %v2398
  %v2400 = vpop.f32.mrb[0].mxu0
  %v2401 = vpop.f32.mrb[0].mxu0
  %v2402 = vadd.f32 %v2185, %v2401
  %v2403 = vpop.f32.mrb[0].mxu0
  %2404 = vmatprep.mubr.bf16.mxu0 0
  %2405 = vmatmul.mubr.bf16.gmra.mrb[0].mxu0 %v2312
  %v2406 = vpop.f32.mrb[0].mxu0
  %v2407 = vadd.f32 %v2190, %v2406
  %v2408 = vpop.f32.mrb[0].mxu0
  %v2409 = vpop.f32.mrb[0].mxu0
  %v2410 = vadd.f32 %v2193, %v2409
  %v2411 = vpop.f32.mrb[0].mxu0
  %2412 = vmatprep.mubr.bf16.mxu0 0
  %2413 = vmatmul.mubr.bf16.gmra.mrb[0].mxu0 %v2315
  %v2414 = vpop.f32.mrb[0].mxu0
  %v2415 = vadd.f32 %v2198, %v2414
  %v2416 = vpop.f32.mrb[0].mxu0
  %v2417 = vpop.f32.mrb[0].mxu0
  %v2418 = vadd.f32 %v2201, %v2417
  %v2419 = vpop.f32.mrb[0].mxu0
  %2420 = vmatprep.mubr.bf16.mxu0 0
  %2421 = vmatmul.mubr.bf16.gmra.mrb[0].mxu0 %v2318
  %v2422 = vpop.f32.mrb[0].mxu0
  %v2423 = vadd.f32 %v2206, %v2422
  %v2424 = vpop.f32.mrb[0].mxu0
  %v2425 = vpop.f32.mrb[0].mxu0
  %v2426 = vadd.f32 %v2209, %v2425
  %v2427 = vpop.f32.mrb[0].mxu0
  %2428 = vmatprep.mubr.bf16.mxu0 0
  %2429 = vmatmul.mubr.bf16.gmra.mrb[0].mxu0 %v2321
  %v2430 = vpop.f32.mrb[0].mxu0
  %v2431 = vadd.f32 %v2214, %v2430
  %v2432 = vpop.f32.mrb[0].mxu0
  %v2433 = vpop.f32.mrb[0].mxu0
  %v2434 = vadd.f32 %v2217, %v2433
  %v2435 = vpop.f32.mrb[0].mxu0
  %2436 = vmatprep.mubr.bf16.mxu0 0
  %2437 = vmatmul.mubr.bf16.gmra.mrb[0].mxu0 %v2324
  %v2438 = vpop.f32.mrb[0].mxu0
  %v2439 = vadd.f32 %v2222, %v2438
  %v2440 = vpop.f32.mrb[0].mxu0
  %v2441 = vpop.f32.mrb[0].mxu0
  %v2442 = vadd.f32 %v2225, %v2441
  %v2443 = vpop.f32.mrb[0].mxu0
  %2444 = vmatprep.mubr.bf16.mxu0 0
  %2445 = vmatmul.mubr.bf16.gmra.mrb[0].mxu0 %v2327
  %v2446 = vpop.f32.mrb[0].mxu0
  %v2447 = vadd.f32 %v2230, %v2446
  %v2448 = vpop.f32.mrb[0].mxu0
  %v2449 = vpop.f32.mrb[0].mxu0
  %v2450 = vadd.f32 %v2233, %v2449
  %v2451 = vpop.f32.mrb[0].mxu0
  %2452 = vmatprep.mubr.bf16.mxu0 0
  %2453 = vmatmul.mubr.bf16.gmra.mrb[0].mxu0 %v2330
  %v2454 = vpop.f32.mrb[0].mxu0
  %v2455 = vadd.f32 %v2238, %v2454
  %v2456 = vpop.f32.mrb[0].mxu0
  %v2457 = vpop.f32.mrb[0].mxu0
  %v2458 = vadd.f32 %v2241, %v2457
  %v2459 = vpop.f32.mrb[0].mxu0
  %2460 = vmatprep.mubr.bf16.mxu0 0
  %2461 = vmatmul.mubr.bf16.gmra.mrb[0].mxu0 %v2333
  %v2462 = vpop.f32.mrb[0].mxu0
  %v2463 = vadd.f32 %v2246, %v2462
  %v2464 = vpop.f32.mrb[0].mxu0
  %v2465 = vpop.f32.mrb[0].mxu0
  %v2466 = vadd.f32 %v2249, %v2465
  %v2467 = vpop.f32.mrb[0].mxu0
  %2468 = vmatprep.mubr.bf16.mxu0 0
  %2469 = vmatmul.mubr.bf16.gmra.mrb[0].mxu0 %v2336
  %v2470 = vpop.f32.mrb[0].mxu0
  %v2471 = vadd.f32 %v2254, %v2470
  %v2472 = vpop.f32.mrb[0].mxu0
  %v2473 = vpop.f32.mrb[0].mxu0
  %v2474 = vadd.f32 %v2257, %v2473
  %v2475 = vpop.f32.mrb[0].mxu0
  %2476 = vmatprep.mubr.bf16.mxu0 0
  %2477 = vmatmul.mubr.bf16.gmra.mrb[0].mxu0 %v2339
  %v2478 = vpop.f32.mrb[0].mxu0
  %v2479 = vadd.f32 %v2262, %v2478
  %v2480 = vpop.f32.mrb[0].mxu0
  %v2481 = vpop.f32.mrb[0].mxu0
  %v2482 = vadd.f32 %v2265, %v2481
  %v2483 = vpop.f32.mrb[0].mxu0
  %2484 = vmatprep.mubr.bf16.mxu0 0
  %2485 = vmatmul.mubr.bf16.gmra.mrb[0].mxu0 %v2342
  %v2486 = vpop.f32.mrb[0].mxu0
  %v2487 = vadd.f32 %v2270, %v2486
  %v2488 = vpop.f32.mrb[0].mxu0
  %v2489 = vpop.f32.mrb[0].mxu0
  %v2490 = vadd.f32 %v2273, %v2489
  %v2491 = vpop.f32.mrb[0].mxu0
  %2492 = vmatprep.mubr.bf16.mxu0 0
  %2493 = vmatmul.mubr.bf16.gmra.mrb[0].mxu0 %v2345
  %v2494 = vpop.f32.mrb[0].mxu0
  %v2495 = vadd.f32 %v2278, %v2494
  %v2496 = vpop.f32.mrb[0].mxu0
  %v2497 = vpop.f32.mrb[0].mxu0
  %v2498 = vadd.f32 %v2281, %v2497
  %v2499 = vpop.f32.mrb[0].mxu0
  %2500 = vmatprep.mubr.bf16.mxu0 0
  %2501 = vmatmul.mubr.bf16.gmra.mrb[0].mxu0 %v2348
  %v2502 = vpop.f32.mrb[0].mxu0
  %v2503 = vadd.f32 %v2286, %v2502
  %v2504 = vpop.f32.mrb[0].mxu0
  %v2505 = vpop.f32.mrb[0].mxu0
  %v2506 = vadd.f32 %v2289, %v2505
  %v2507 = vpop.f32.mrb[0].mxu0
  %2508 = vmatprep.mubr.bf16.mxu0 0
  %2509 = vmatmul.mubr.bf16.gmra.mrb[0].mxu0 %v2351
  %v2510 = vpop.f32.mrb[0].mxu0
  %v2511 = vadd.f32 %v2294, %v2510
  %v2512 = vpop.f32.mrb[0].mxu0
  %v2513 = vpop.f32.mrb[0].mxu0
  %v2514 = vadd.f32 %v2297, %v2513
  %v2515 = vpop.f32.mrb[0].mxu0
  %2516 = vdwg.mxu0
  %s2517 = scalar_lea.vmem [#allocation2], 80
  %v2518 = vld [vmem:[%s2517] sm:$0xff]
  %v2519 = vld [vmem:[%s2517 + $0x8] sm:$0xff]
  %v2520 = vld [vmem:[%s2517 + $0x10] sm:$0xff]
  %v2521 = vld [vmem:[%s2517 + $0x18] sm:$0xff]
  %v2522 = vld [vmem:[%s2517 + $0x20] sm:$0xff]
  %v2523 = vld [vmem:[%s2517 + $0x28] sm:$0xff]
  %v2524 = vld [vmem:[%s2517 + $0x30] sm:$0xff]
  %v2525 = vld [vmem:[%s2517 + $0x38] sm:$0xff]
  %v2526 = vld [vmem:[%s2517 + $0x90] sm:$0xff]
  %v2527 = vld [vmem:[%s2517 + $0x98] sm:$0xff]
  %v2528 = vld [vmem:[%s2517 + $0xa0] sm:$0xff]
  %v2529 = vld [vmem:[%s2517 + $0xa8] sm:$0xff]
  %v2530 = vld [vmem:[%s2517 + $0xb0] sm:$0xff]
  %v2531 = vld [vmem:[%s2517 + $0xb8] sm:$0xff]
  %v2532 = vld [vmem:[%s2517 + $0xc0] sm:$0xff]
  %v2533 = vld [vmem:[%s2517 + $0xc8] sm:$0xff]
  %v2534 = vld [vmem:[%s1459] sm:$0xf]
  %v2535 = vld [vmem:[%s1459 + $0x4] sm:$0x3]
  %v2538 = vunpack.c.l.b16 %v2534
  %v2539 = vunpack.c.l.b16 %v2535
  %v2540 = vpack.c.b16 %v2539, %v2538
  %v2542 = vsel %vm1011, %v2518, 0
  %v2545 = vsel %vm1011, %v2519, 0
  %v2548 = vsel %vm1011, %v2520, 0
  %v2551 = vsel %vm1011, %v2521, 0
  %v2554 = vsel %vm1011, %v2522, 0
  %v2557 = vsel %vm1011, %v2523, 0
  %v2560 = vsel %vm1011, %v2524, 0
  %v2563 = vsel %vm1011, %v2525, 0
  %v2566 = vsel %vm1011, %v2526, 0
  %v2569 = vsel %vm1011, %v2527, 0
  %v2572 = vsel %vm1011, %v2528, 0
  %v2575 = vsel %vm1011, %v2529, 0
  %v2578 = vsel %vm1011, %v2530, 0
  %v2581 = vsel %vm1011, %v2531, 0
  %v2584 = vsel %vm1011, %v2532, 0
  %v2587 = vsel %vm1011, %v2533, 0
  %v2590 = vsel %vm1060, %v2540, 0
  %2592 = vmatprep.subr.bf16.mxu0 0
  %2593 = vmatpush1.bf16.msra.mxu0 %v2590
  %2594 = vmatprep.subr.bf16.mxu0 0
  %2595 = vmatpush1.bf16.msra.mxu0 0
  %2596 = vmatprep.subr.bf16.mxu0 0
  %2597 = vmatpush1.bf16.msra.mxu0 0
  %2598 = vmatprep.subr.bf16.mxu0 0
  %2599 = vmatpush1.bf16.msra.mxu0 0
  %2600 = vmatprep.subr.bf16.mxu0 0
  %2601 = vmatpush1.bf16.msra.mxu0 0
  %2602 = vmatprep.subr.bf16.mxu0 0
  %2603 = vmatpush1.bf16.msra.mxu0 0
  %2604 = vmatprep.subr.bf16.mxu0 0
  %2605 = vmatpush1.bf16.msra.mxu0 0
  %2606 = vmatprep.subr.bf16.mxu0 0
  %2607 = vmatpush1.bf16.msra.mxu0 0
  %2608 = vmatprep.subr.bf16.mxu0 0
  %2609 = vmatpush1.bf16.msra.mxu0 0
  %2610 = vmatprep.subr.bf16.mxu0 0
  %2611 = vmatpush1.bf16.msra.mxu0 0
  %2612 = vmatprep.subr.bf16.mxu0 0
  %2613 = vmatpush1.bf16.msra.mxu0 0
  %2614 = vmatprep.subr.bf16.mxu0 0
  %2615 = vmatpush1.bf16.msra.mxu0 0
  %2616 = vmatprep.subr.bf16.mxu0 0
  %2617 = vmatpush1.bf16.msra.mxu0 0
  %2618 = vmatprep.subr.bf16.mxu0 0
  %2619 = vmatpush1.bf16.msra.mxu0 0
  %2620 = vmatprep.subr.bf16.mxu0 0
  %2621 = vmatpush1.bf16.msra.mxu0 0
  %2622 = vmatprep.subr.bf16.mxu0 0
  %2623 = vmatpush1.bf16.msra.mxu0 0
  %2624 = vmatprep.mubr.bf16.mxu0 0
  %2625 = vmatmul.mubr.bf16.gmra.mrb[0].mxu0 %v2542
  %v2626 = vpop.f32.mrb[0].mxu0
  %v2627 = vadd.f32 0.0, %v2626
  %v2628 = vpop.f32.mrb[0].mxu0
  %v2629 = vpop.f32.mrb[0].mxu0
  %v2630 = vadd.f32 0.0, %v2629
  %v2631 = vpop.f32.mrb[0].mxu0
  %2632 = vmatprep.mubr.bf16.mxu0 0
  %2633 = vmatmul.mubr.bf16.gmra.mrb[0].mxu0 %v2545
  %v2634 = vpop.f32.mrb[0].mxu0
  %v2635 = vadd.f32 0.0, %v2634
  %v2636 = vpop.f32.mrb[0].mxu0
  %v2637 = vpop.f32.mrb[0].mxu0
  %v2638 = vadd.f32 0.0, %v2637
  %v2639 = vpop.f32.mrb[0].mxu0
  %2640 = vmatprep.mubr.bf16.mxu0 0
  %2641 = vmatmul.mubr.bf16.gmra.mrb[0].mxu0 %v2548
  %v2642 = vpop.f32.mrb[0].mxu0
  %v2643 = vadd.f32 0.0, %v2642
  %v2644 = vpop.f32.mrb[0].mxu0
  %v2645 = vpop.f32.mrb[0].mxu0
  %v2646 = vadd.f32 0.0, %v2645
  %v2647 = vpop.f32.mrb[0].mxu0
  %2648 = vmatprep.mubr.bf16.mxu0 0
  %2649 = vmatmul.mubr.bf16.gmra.mrb[0].mxu0 %v2551
  %v2650 = vpop.f32.mrb[0].mxu0
  %v2651 = vadd.f32 0.0, %v2650
  %v2652 = vpop.f32.mrb[0].mxu0
  %v2653 = vpop.f32.mrb[0].mxu0
  %v2654 = vadd.f32 0.0, %v2653
  %v2655 = vpop.f32.mrb[0].mxu0
  %2656 = vmatprep.mubr.bf16.mxu0 0
  %2657 = vmatmul.mubr.bf16.gmra.mrb[0].mxu0 %v2554
  %v2658 = vpop.f32.mrb[0].mxu0
  %v2659 = vadd.f32 0.0, %v2658
  %v2660 = vpop.f32.mrb[0].mxu0
  %v2661 = vpop.f32.mrb[0].mxu0
  %v2662 = vadd.f32 0.0, %v2661
  %v2663 = vpop.f32.mrb[0].mxu0
  %2664 = vmatprep.mubr.bf16.mxu0 0
  %2665 = vmatmul.mubr.bf16.gmra.mrb[0].mxu0 %v2557
  %v2666 = vpop.f32.mrb[0].mxu0
  %v2667 = vadd.f32 0.0, %v2666
  %v2668 = vpop.f32.mrb[0].mxu0
  %v2669 = vpop.f32.mrb[0].mxu0
  %v2670 = vadd.f32 0.0, %v2669
  %v2671 = vpop.f32.mrb[0].mxu0
  %2672 = vmatprep.mubr.bf16.mxu0 0
  %2673 = vmatmul.mubr.bf16.gmra.mrb[0].mxu0 %v2560
  %v2674 = vpop.f32.mrb[0].mxu0
  %v2675 = vadd.f32 0.0, %v2674
  %v2676 = vpop.f32.mrb[0].mxu0
  %v2677 = vpop.f32.mrb[0].mxu0
  %v2678 = vadd.f32 0.0, %v2677
  %v2679 = vpop.f32.mrb[0].mxu0
  %2680 = vmatprep.mubr.bf16.mxu0 0
  %2681 = vmatmul.mubr.bf16.gmra.mrb[0].mxu0 %v2563
  %v2682 = vpop.f32.mrb[0].mxu0
  %v2683 = vadd.f32 0.0, %v2682
  %v2684 = vpop.f32.mrb[0].mxu0
  %v2685 = vpop.f32.mrb[0].mxu0
  %v2686 = vadd.f32 0.0, %v2685
  %v2687 = vpop.f32.mrb[0].mxu0
  %2688 = vmatprep.mubr.bf16.mxu0 0
  %2689 = vmatmul.mubr.bf16.gmra.mrb[0].mxu0 %v2566
  %v2690 = vpop.f32.mrb[0].mxu0
  %v2691 = vadd.f32 0.0, %v2690
  %v2692 = vpop.f32.mrb[0].mxu0
  %v2693 = vpop.f32.mrb[0].mxu0
  %v2694 = vadd.f32 0.0, %v2693
  %v2695 = vpop.f32.mrb[0].mxu0
  %2696 = vmatprep.mubr.bf16.mxu0 0
  %2697 = vmatmul.mubr.bf16.gmra.mrb[0].mxu0 %v2569
  %v2698 = vpop.f32.mrb[0].mxu0
  %v2699 = vadd.f32 0.0, %v2698
  %v2700 = vpop.f32.mrb[0].mxu0
  %v2701 = vpop.f32.mrb[0].mxu0
  %v2702 = vadd.f32 0.0, %v2701
  %v2703 = vpop.f32.mrb[0].mxu0
  %2704 = vmatprep.mubr.bf16.mxu0 0
  %2705 = vmatmul.mubr.bf16.gmra.mrb[0].mxu0 %v2572
  %v2706 = vpop.f32.mrb[0].mxu0
  %v2707 = vadd.f32 0.0, %v2706
  %v2708 = vpop.f32.mrb[0].mxu0
  %v2709 = vpop.f32.mrb[0].mxu0
  %v2710 = vadd.f32 0.0, %v2709
  %v2711 = vpop.f32.mrb[0].mxu0
  %2712 = vmatprep.mubr.bf16.mxu0 0
  %2713 = vmatmul.mubr.bf16.gmra.mrb[0].mxu0 %v2575
  %v2714 = vpop.f32.mrb[0].mxu0
  %v2715 = vadd.f32 0.0, %v2714
  %v2716 = vpop.f32.mrb[0].mxu0
  %v2717 = vpop.f32.mrb[0].mxu0
  %v2718 = vadd.f32 0.0, %v2717
  %v2719 = vpop.f32.mrb[0].mxu0
  %2720 = vmatprep.mubr.bf16.mxu0 0
  %2721 = vmatmul.mubr.bf16.gmra.mrb[0].mxu0 %v2578
  %v2722 = vpop.f32.mrb[0].mxu0
  %v2723 = vadd.f32 0.0, %v2722
  %v2724 = vpop.f32.mrb[0].mxu0
  %v2725 = vpop.f32.mrb[0].mxu0
  %v2726 = vadd.f32 0.0, %v2725
  %v2727 = vpop.f32.mrb[0].mxu0
  %2728 = vmatprep.mubr.bf16.mxu0 0
  %2729 = vmatmul.mubr.bf16.gmra.mrb[0].mxu0 %v2581
  %v2730 = vpop.f32.mrb[0].mxu0
  %v2731 = vadd.f32 0.0, %v2730
  %v2732 = vpop.f32.mrb[0].mxu0
  %v2733 = vpop.f32.mrb[0].mxu0
  %v2734 = vadd.f32 0.0, %v2733
  %v2735 = vpop.f32.mrb[0].mxu0
  %2736 = vmatprep.mubr.bf16.mxu0 0
  %2737 = vmatmul.mubr.bf16.gmra.mrb[0].mxu0 %v2584
  %v2738 = vpop.f32.mrb[0].mxu0
  %v2739 = vadd.f32 0.0, %v2738
  %v2740 = vpop.f32.mrb[0].mxu0
  %v2741 = vpop.f32.mrb[0].mxu0
  %v2742 = vadd.f32 0.0, %v2741
  %v2743 = vpop.f32.mrb[0].mxu0
  %2744 = vmatprep.mubr.bf16.mxu0 0
  %2745 = vmatmul.mubr.bf16.gmra.mrb[0].mxu0 %v2587
  %v2746 = vpop.f32.mrb[0].mxu0
  %v2747 = vadd.f32 0.0, %v2746
  %v2748 = vpop.f32.mrb[0].mxu0
  %v2749 = vpop.f32.mrb[0].mxu0
  %v2750 = vadd.f32 0.0, %v2749
  %v2751 = vpop.f32.mrb[0].mxu0
  %2752 = vdwg.mxu0
  %v2753 = vadd.f32 %v2391, %v2627
  %v2754 = vadd.f32 %v2394, %v2630
  %v2755 = vadd.f32 %v2399, %v2635
  %v2756 = vadd.f32 %v2402, %v2638
  %v2757 = vadd.f32 %v2407, %v2643
  %v2758 = vadd.f32 %v2410, %v2646
  %v2759 = vadd.f32 %v2415, %v2651
  %v2760 = vadd.f32 %v2418, %v2654
  %v2761 = vadd.f32 %v2423, %v2659
  %v2762 = vadd.f32 %v2426, %v2662
  %v2763 = vadd.f32 %v2431, %v2667
  %v2764 = vadd.f32 %v2434, %v2670
  %v2765 = vadd.f32 %v2439, %v2675
  %v2766 = vadd.f32 %v2442, %v2678
  %v2767 = vadd.f32 %v2447, %v2683
  %v2768 = vadd.f32 %v2450, %v2686
  %v2769 = vadd.f32 %v2455, %v2691
  %v2770 = vadd.f32 %v2458, %v2694
  %v2771 = vadd.f32 %v2463, %v2699
  %v2772 = vadd.f32 %v2466, %v2702
  %v2773 = vadd.f32 %v2471, %v2707
  %v2774 = vadd.f32 %v2474, %v2710
  %v2775 = vadd.f32 %v2479, %v2715
  %v2776 = vadd.f32 %v2482, %v2718
  %v2777 = vadd.f32 %v2487, %v2723
  %v2778 = vadd.f32 %v2490, %v2726
  %v2779 = vadd.f32 %v2495, %v2731
  %v2780 = vadd.f32 %v2498, %v2734
  %v2781 = vadd.f32 %v2503, %v2739
  %v2782 = vadd.f32 %v2506, %v2742
  %v2783 = vadd.f32 %v2511, %v2747
  %v2784 = vadd.f32 %v2514, %v2750
  %v2785 = vpack.c.bf16 %v2754, %v2753
  %v2786 = vpack.c.bf16 %v2756, %v2755
  %v2787 = vpack.c.bf16 %v2758, %v2757
  %v2788 = vpack.c.bf16 %v2760, %v2759
  %v2789 = vpack.c.bf16 %v2762, %v2761
  %v2790 = vpack.c.bf16 %v2764, %v2763
  %v2791 = vpack.c.bf16 %v2766, %v2765
  %v2792 = vpack.c.bf16 %v2768, %v2767
  %v2793 = vpack.c.bf16 %v2770, %v2769
  %v2794 = vpack.c.bf16 %v2772, %v2771
  %v2795 = vpack.c.bf16 %v2774, %v2773
  %v2796 = vpack.c.bf16 %v2776, %v2775
  %v2797 = vpack.c.bf16 %v2778, %v2777
  %v2798 = vpack.c.bf16 %v2780, %v2779
  %v2799 = vpack.c.bf16 %v2782, %v2781
  %v2800 = vpack.c.bf16 %v2784, %v2783
  %v2817 = vunpack.c.l.b16 %v2785
  %v2818 = vunpack.c.h.b16 %v2785
  %v2819 = vunpack.c.l.b16 %v2786
  %v2820 = vunpack.c.h.b16 %v2786
  %v2821 = vunpack.c.l.b16 %v2787
  %v2822 = vunpack.c.h.b16 %v2787
  %v2823 = vunpack.c.l.b16 %v2788
  %v2824 = vunpack.c.h.b16 %v2788
  %v2825 = vunpack.c.l.b16 %v2789
  %v2826 = vunpack.c.h.b16 %v2789
  %v2827 = vunpack.c.l.b16 %v2790
  %v2828 = vunpack.c.h.b16 %v2790
  %v2829 = vunpack.c.l.b16 %v2791
  %v2830 = vunpack.c.h.b16 %v2791
  %v2831 = vunpack.c.l.b16 %v2792
  %v2832 = vunpack.c.h.b16 %v2792
  %v2833 = vunpack.c.l.b16 %v2793
  %v2834 = vunpack.c.h.b16 %v2793
  %v2835 = vunpack.c.l.b16 %v2794
  %v2836 = vunpack.c.h.b16 %v2794
  %v2837 = vunpack.c.l.b16 %v2795
  %v2838 = vunpack.c.h.b16 %v2795
  %v2839 = vunpack.c.l.b16 %v2796
  %v2840 = vunpack.c.h.b16 %v2796
  %v2841 = vunpack.c.l.b16 %v2797
  %v2842 = vunpack.c.h.b16 %v2797
  %v2843 = vunpack.c.l.b16 %v2798
  %v2844 = vunpack.c.h.b16 %v2798
  %v2845 = vunpack.c.l.b16 %v2799
  %v2846 = vunpack.c.h.b16 %v2799
  %v2847 = vunpack.c.l.b16 %v2800
  %v2848 = vunpack.c.h.b16 %v2800
  %v2849 = vpack.c.b16 %v2817, %v2817
  %v2850 = vpack.c.b16 %v2818, %v2818
  %v2851 = vpack.c.b16 %v2819, %v2819
  %v2852 = vpack.c.b16 %v2820, %v2820
  %v2853 = vpack.c.b16 %v2821, %v2821
  %v2854 = vpack.c.b16 %v2822, %v2822
  %v2855 = vpack.c.b16 %v2823, %v2823
  %v2856 = vpack.c.b16 %v2824, %v2824
  %v2857 = vpack.c.b16 %v2825, %v2825
  %v2858 = vpack.c.b16 %v2826, %v2826
  %v2859 = vpack.c.b16 %v2827, %v2827
  %v2860 = vpack.c.b16 %v2828, %v2828
  %v2861 = vpack.c.b16 %v2829, %v2829
  %v2862 = vpack.c.b16 %v2830, %v2830
  %v2863 = vpack.c.b16 %v2831, %v2831
  %v2864 = vpack.c.b16 %v2832, %v2832
  %v2865 = vpack.c.b16 %v2833, %v2833
  %v2866 = vpack.c.b16 %v2834, %v2834
  %v2867 = vpack.c.b16 %v2835, %v2835
  %v2868 = vpack.c.b16 %v2836, %v2836
  %v2869 = vpack.c.b16 %v2837, %v2837
  %v2870 = vpack.c.b16 %v2838, %v2838
  %v2871 = vpack.c.b16 %v2839, %v2839
  %v2872 = vpack.c.b16 %v2840, %v2840
  %v2873 = vpack.c.b16 %v2841, %v2841
  %v2874 = vpack.c.b16 %v2842, %v2842
  %v2875 = vpack.c.b16 %v2843, %v2843
  %v2876 = vpack.c.b16 %v2844, %v2844
  %v2877 = vpack.c.b16 %v2845, %v2845
  %v2878 = vpack.c.b16 %v2846, %v2846
  %v2879 = vpack.c.b16 %v2847, %v2847
  %v2880 = vpack.c.b16 %v2848, %v2848
  %s2913 = scalar_lea.vmem %s4, 64
  %2914 = vst.msk [vmem:[%s2913] sm:$0xf] %vm1839, %v2849
  %2915 = vst.msk [vmem:[%s2913 + $0x4] sm:$0xf] %vm1839, %v2850
  %2916 = vst.msk [vmem:[%s2913 + $0x8] sm:$0xf] %vm1839, %v2851
  %2917 = vst.msk [vmem:[%s2913 + $0xc] sm:$0xf] %vm1839, %v2852
  %2918 = vst.msk [vmem:[%s2913 + $0x10] sm:$0xf] %vm1839, %v2853
  %2919 = vst.msk [vmem:[%s2913 + $0x14] sm:$0xf] %vm1839, %v2854
  %2920 = vst.msk [vmem:[%s2913 + $0x18] sm:$0xf] %vm1839, %v2855
  %2921 = vst.msk [vmem:[%s2913 + $0x1c] sm:$0xf] %vm1839, %v2856
  %2922 = vst.msk [vmem:[%s2913 + $0x20] sm:$0xf] %vm1839, %v2857
  %2923 = vst.msk [vmem:[%s2913 + $0x24] sm:$0xf] %vm1839, %v2858
  %2924 = vst.msk [vmem:[%s2913 + $0x28] sm:$0xf] %vm1839, %v2859
  %2925 = vst.msk [vmem:[%s2913 + $0x2c] sm:$0xf] %vm1839, %v2860
  %2926 = vst.msk [vmem:[%s2913 + $0x30] sm:$0xf] %vm1839, %v2861
  %2927 = vst.msk [vmem:[%s2913 + $0x34] sm:$0xf] %vm1839, %v2862
  %2928 = vst.msk [vmem:[%s2913 + $0x38] sm:$0xf] %vm1839, %v2863
  %2929 = vst.msk [vmem:[%s2913 + $0x3c] sm:$0xf] %vm1839, %v2864
  %2930 = vst.msk [vmem:[%s2913 + $0x80] sm:$0xf] %vm1839, %v2865
  %2931 = vst.msk [vmem:[%s2913 + $0x84] sm:$0xf] %vm1839, %v2866
  %2932 = vst.msk [vmem:[%s2913 + $0x88] sm:$0xf] %vm1839, %v2867
  %2933 = vst.msk [vmem:[%s2913 + $0x8c] sm:$0xf] %vm1839, %v2868
  %2934 = vst.msk [vmem:[%s2913 + $0x90] sm:$0xf] %vm1839, %v2869
  %2935 = vst.msk [vmem:[%s2913 + $0x94] sm:$0xf] %vm1839, %v2870
  %2936 = vst.msk [vmem:[%s2913 + $0x98] sm:$0xf] %vm1839, %v2871
  %2937 = vst.msk [vmem:[%s2913 + $0x9c] sm:$0xf] %vm1839, %v2872
  %2938 = vst.msk [vmem:[%s2913 + $0xa0] sm:$0xf] %vm1839, %v2873
  %2939 = vst.msk [vmem:[%s2913 + $0xa4] sm:$0xf] %vm1839, %v2874
  %2940 = vst.msk [vmem:[%s2913 + $0xa8] sm:$0xf] %vm1839, %v2875
  %2941 = vst.msk [vmem:[%s2913 + $0xac] sm:$0xf] %vm1839, %v2876
  %2942 = vst.msk [vmem:[%s2913 + $0xb0] sm:$0xf] %vm1839, %v2877
  %2943 = vst.msk [vmem:[%s2913 + $0xb4] sm:$0xf] %vm1839, %v2878
  %2944 = vst.msk [vmem:[%s2913 + $0xb8] sm:$0xf] %vm1839, %v2879
  %2945 = vst.msk [vmem:[%s2913 + $0xbc] sm:$0xf] %vm1839, %v2880
  %v2946 = vsel %vm1872, %v2753, 0.0
  %v2947 = vsel %vm1872, %v2754, 0.0
  %v2948 = vadd.f32 %v2946, %v2947
  %v2949 = vsel %vm1872, %v2755, 0.0
  %v2950 = vadd.f32 %v2948, %v2949
  %v2951 = vsel %vm1872, %v2756, 0.0
  %v2952 = vadd.f32 %v2950, %v2951
  %v2953 = vsel %vm1872, %v2757, 0.0
  %v2954 = vadd.f32 %v2952, %v2953
  %v2955 = vsel %vm1872, %v2758, 0.0
  %v2956 = vadd.f32 %v2954, %v2955
  %v2957 = vsel %vm1872, %v2759, 0.0
  %v2958 = vadd.f32 %v2956, %v2957
  %v2959 = vsel %vm1872, %v2760, 0.0
  %v2960 = vadd.f32 %v2958, %v2959
  %v2961 = vsel %vm1872, %v2761, 0.0
  %v2962 = vadd.f32 %v2960, %v2961
  %v2963 = vsel %vm1872, %v2762, 0.0
  %v2964 = vadd.f32 %v2962, %v2963
  %v2965 = vsel %vm1872, %v2763, 0.0
  %v2966 = vadd.f32 %v2964, %v2965
  %v2967 = vsel %vm1872, %v2764, 0.0
  %v2968 = vadd.f32 %v2966, %v2967
  %v2969 = vsel %vm1872, %v2765, 0.0
  %v2970 = vadd.f32 %v2968, %v2969
  %v2971 = vsel %vm1872, %v2766, 0.0
  %v2972 = vadd.f32 %v2970, %v2971
  %v2973 = vsel %vm1872, %v2767, 0.0
  %v2974 = vadd.f32 %v2972, %v2973
  %v2975 = vsel %vm1872, %v2768, 0.0
  %v2976 = vadd.f32 %v2974, %v2975
  %v2977 = vsel %vm1872, %v2769, 0.0
  %v2978 = vadd.f32 %v2976, %v2977
  %v2979 = vsel %vm1872, %v2770, 0.0
  %v2980 = vadd.f32 %v2978, %v2979
  %v2981 = vsel %vm1872, %v2771, 0.0
  %v2982 = vadd.f32 %v2980, %v2981
  %v2983 = vsel %vm1872, %v2772, 0.0
  %v2984 = vadd.f32 %v2982, %v2983
  %v2985 = vsel %vm1872, %v2773, 0.0
  %v2986 = vadd.f32 %v2984, %v2985
  %v2987 = vsel %vm1872, %v2774, 0.0
  %v2988 = vadd.f32 %v2986, %v2987
  %v2989 = vsel %vm1872, %v2775, 0.0
  %v2990 = vadd.f32 %v2988, %v2989
  %v2991 = vsel %vm1872, %v2776, 0.0
  %v2992 = vadd.f32 %v2990, %v2991
  %v2993 = vsel %vm1872, %v2777, 0.0
  %v2994 = vadd.f32 %v2992, %v2993
  %v2995 = vsel %vm1872, %v2778, 0.0
  %v2996 = vadd.f32 %v2994, %v2995
  %v2997 = vsel %vm1872, %v2779, 0.0
  %v2998 = vadd.f32 %v2996, %v2997
  %v2999 = vsel %vm1872, %v2780, 0.0
  %v3000 = vadd.f32 %v2998, %v2999
  %v3001 = vsel %vm1872, %v2781, 0.0
  %v3002 = vadd.f32 %v3000, %v3001
  %v3003 = vsel %vm1872, %v2782, 0.0
  %v3004 = vadd.f32 %v3002, %v3003
  %v3005 = vsel %vm1872, %v2783, 0.0
  %v3006 = vadd.f32 %v3004, %v3005
  %v3007 = vsel %vm1872, %v2784, 0.0
  %v3008 = vadd.f32 %v3006, %v3007
  %v3009 = vrot.slane %v3008, 4
  %v3010 = vadd.f32 %v3008, %v3009
  %v3011 = vrot.slane %v3010, 2
  %v3012 = vadd.f32 %v3010, %v3011
  %v3013 = vrot.slane %v3012, 1
  %v3014 = vadd.f32 %v3012, %v3013
  %v3015 = vadd.f32 %v1942, %v3014
  %v3016 = vmul.f32 %v2753, %v2753
  %v3017 = vmul.f32 %v2754, %v2754
  %v3018 = vmul.f32 %v2755, %v2755
  %v3019 = vmul.f32 %v2756, %v2756
  %v3020 = vmul.f32 %v2757, %v2757
  %v3021 = vmul.f32 %v2758, %v2758
  %v3022 = vmul.f32 %v2759, %v2759
  %v3023 = vmul.f32 %v2760, %v2760
  %v3024 = vmul.f32 %v2761, %v2761
  %v3025 = vmul.f32 %v2762, %v2762
  %v3026 = vmul.f32 %v2763, %v2763
  %v3027 = vmul.f32 %v2764, %v2764
  %v3028 = vmul.f32 %v2765, %v2765
  %v3029 = vmul.f32 %v2766, %v2766
  %v3030 = vmul.f32 %v2767, %v2767
  %v3031 = vmul.f32 %v2768, %v2768
  %v3032 = vmul.f32 %v2769, %v2769
  %v3033 = vmul.f32 %v2770, %v2770
  %v3034 = vmul.f32 %v2771, %v2771
  %v3035 = vmul.f32 %v2772, %v2772
  %v3036 = vmul.f32 %v2773, %v2773
  %v3037 = vmul.f32 %v2774, %v2774
  %v3038 = vmul.f32 %v2775, %v2775
  %v3039 = vmul.f32 %v2776, %v2776
  %v3040 = vmul.f32 %v2777, %v2777
  %v3041 = vmul.f32 %v2778, %v2778
  %v3042 = vmul.f32 %v2779, %v2779
  %v3043 = vmul.f32 %v2780, %v2780
  %v3044 = vmul.f32 %v2781, %v2781
  %v3045 = vmul.f32 %v2782, %v2782
  %v3046 = vmul.f32 %v2783, %v2783
  %v3047 = vmul.f32 %v2784, %v2784
  %v3048 = vsel %vm1872, %v3016, 0.0
  %v3049 = vsel %vm1872, %v3017, 0.0
  %v3050 = vadd.f32 %v3048, %v3049
  %v3051 = vsel %vm1872, %v3018, 0.0
  %v3052 = vadd.f32 %v3050, %v3051
  %v3053 = vsel %vm1872, %v3019, 0.0
  %v3054 = vadd.f32 %v3052, %v3053
  %v3055 = vsel %vm1872, %v3020, 0.0
  %v3056 = vadd.f32 %v3054, %v3055
  %v3057 = vsel %vm1872, %v3021, 0.0
  %v3058 = vadd.f32 %v3056, %v3057
  %v3059 = vsel %vm1872, %v3022, 0.0
  %v3060 = vadd.f32 %v3058, %v3059
  %v3061 = vsel %vm1872, %v3023, 0.0
  %v3062 = vadd.f32 %v3060, %v3061
  %v3063 = vsel %vm1872, %v3024, 0.0
  %v3064 = vadd.f32 %v3062, %v3063
  %v3065 = vsel %vm1872, %v3025, 0.0
  %v3066 = vadd.f32 %v3064, %v3065
  %v3067 = vsel %vm1872, %v3026, 0.0
  %v3068 = vadd.f32 %v3066, %v3067
  %v3069 = vsel %vm1872, %v3027, 0.0
  %v3070 = vadd.f32 %v3068, %v3069
  %v3071 = vsel %vm1872, %v3028, 0.0
  %v3072 = vadd.f32 %v3070, %v3071
  %v3073 = vsel %vm1872, %v3029, 0.0
  %v3074 = vadd.f32 %v3072, %v3073
  %v3075 = vsel %vm1872, %v3030, 0.0
  %v3076 = vadd.f32 %v3074, %v3075
  %v3077 = vsel %vm1872, %v3031, 0.0
  %v3078 = vadd.f32 %v3076, %v3077
  %v3079 = vsel %vm1872, %v3032, 0.0
  %v3080 = vadd.f32 %v3078, %v3079
  %v3081 = vsel %vm1872, %v3033, 0.0
  %v3082 = vadd.f32 %v3080, %v3081
  %v3083 = vsel %vm1872, %v3034, 0.0
  %v3084 = vadd.f32 %v3082, %v3083
  %v3085 = vsel %vm1872, %v3035, 0.0
  %v3086 = vadd.f32 %v3084, %v3085
  %v3087 = vsel %vm1872, %v3036, 0.0
  %v3088 = vadd.f32 %v3086, %v3087
  %v3089 = vsel %vm1872, %v3037, 0.0
  %v3090 = vadd.f32 %v3088, %v3089
  %v3091 = vsel %vm1872, %v3038, 0.0
  %v3092 = vadd.f32 %v3090, %v3091
  %v3093 = vsel %vm1872, %v3039, 0.0
  %v3094 = vadd.f32 %v3092, %v3093
  %v3095 = vsel %vm1872, %v3040, 0.0
  %v3096 = vadd.f32 %v3094, %v3095
  %v3097 = vsel %vm1872, %v3041, 0.0
  %v3098 = vadd.f32 %v3096, %v3097
  %v3099 = vsel %vm1872, %v3042, 0.0
  %v3100 = vadd.f32 %v3098, %v3099
  %v3101 = vsel %vm1872, %v3043, 0.0
  %v3102 = vadd.f32 %v3100, %v3101
  %v3103 = vsel %vm1872, %v3044, 0.0
  %v3104 = vadd.f32 %v3102, %v3103
  %v3105 = vsel %vm1872, %v3045, 0.0
  %v3106 = vadd.f32 %v3104, %v3105
  %v3107 = vsel %vm1872, %v3046, 0.0
  %v3108 = vadd.f32 %v3106, %v3107
  %v3109 = vsel %vm1872, %v3047, 0.0
  %v3110 = vadd.f32 %v3108, %v3109
  %v3111 = vrot.slane %v3110, 4
  %v3112 = vadd.f32 %v3110, %v3111
  %v3113 = vrot.slane %v3112, 2
  %v3114 = vadd.f32 %v3112, %v3113
  %v3115 = vrot.slane %v3114, 1
  %v3116 = vadd.f32 %v3114, %v3115
  %v3117 = vadd.f32 %v2044, %v3116
  %vm3118 = vcmask 516096
  %3119 = vst.msk [vmem:[%s5] sm:$0x1] %vm3118, %v3015
  %3120 = vst.msk [vmem:[%s6] sm:$0x1] %vm3118, %v3117
  // Predicated region
  $region22: #{double_conv.3} parent=0 // pred_check
    _
  $region23: #{double_conv.3} parent=0 // pred_check_branch
    %3122 = sbr.rel (0) target = $region25
  $region24: #{double_conv.3} parent=0 // pred_region
    _
  $region25: #{double_conv.3} parent=0 // pred_fallthru
    _
  // Predicated region
  $region26: #{double_conv.3} parent=0 // pred_check
    _
  $region27: #{double_conv.3} parent=0 // pred_check_branch
    %3124 = sbr.rel (0) target = $region29
  $region28: #{double_conv.3} parent=0 // pred_region
    _
  $region29: #{double_conv.3} parent=0 // pred_fallthru
    _
  // Predicated region
  $region30: #{double_conv.3} parent=0 // pred_check
    _
  $region31: #{double_conv.3} parent=0 // pred_check_branch
    %3126 = sbr.rel (0) target = $region33
  $region32: #{double_conv.3} parent=0 // pred_region
    _
  $region33: #{double_conv.3} parent=0 // pred_fallthru
    _
  // Predicated region
  $region34: #{double_conv.3} parent=0 // pred_check
    _
  $region35: #{double_conv.3} parent=0 // pred_check_branch
    %3128 = sbr.rel (0) target = $region37
  $region36: #{double_conv.3} parent=0 // pred_region
    _
  $region37: #{double_conv.3} parent=0 // pred_fallthru
    _
  // Predicated region
  $region38: #{double_conv.3} parent=0 // pred_check
    _
  $region39: #{double_conv.3} parent=0 // pred_check_branch
    %3130 = sbr.rel (0) target = $region41
  $region40: #{double_conv.3} parent=0 // pred_region
    _
  $region41: #{double_conv.3} parent=0 // pred_fallthru
    _
  // Predicated region
  $region42: #{double_conv.3} parent=0 // pred_check
    _
  $region43: #{double_conv.3} parent=0 // pred_check_branch
    %3132 = sbr.rel (0) target = $region45
  $region44: #{double_conv.3} parent=0 // pred_region
    _
  $region45: #{double_conv.3} parent=0 // pred_fallthru
    _

// kernel: double_conv.4
$region0: #{double_conv.4}
  #allocation0 [shape = 'u32[]', space=smem, size = 0x4, offset = 0x4, fixed_abs, tag = 'smem constant byte address 0x4 - core index']
  #allocation1 [shape = 'u32[144,128]{1,0:T(1,128)}', space=vmem, size = 0x12000, scoped, tag = 'internal scratch']
  #allocation2 [shape = 'bf16[2,18,16,192]{3,2,1,0:T(16,128)(2,1)}', space=vmem, size = 0x48000, scoped, tag = 'scratch operand']
  %s0 = inlined_call_operand.vmem [shape: bf16[2,16,16,64], index: 0, kind: input, shape index: {}]
  %s1 = inlined_call_operand.vmem [shape: bf16[3,192,64], index: 1, kind: input, shape index: {}]
  %s2 = inlined_call_operand.vmem [shape: f32[1,64], index: 2, kind: input, shape index: {}]
  %s3 = inlined_call_operand.vmem [shape: f32[1,64], index: 3, kind: input, shape index: {}]
  %s4 = inlined_call_operand.vmem [shape: f32[2,16,16,64], index: 4, kind: output, shape index: {0}]
  %s5 = inlined_call_operand.vmem [shape: f32[1,64], index: 5, kind: output, shape index: {1}]
  %s6 = inlined_call_operand.vmem [shape: f32[1,64], index: 6, kind: output, shape index: {2}]
  %7 = xla_tuple %s4, %s5, %s6
  %s8 = sld [smem:[#allocation0]]
  $region46: #{double_conv.4} parent=0
    _
  %s10 = ssub.s32 1, %s8
  %s11 = scalar_select 0, %s10, %s8
  // Predicated region
  $region2: #{double_conv.4} parent=0 // pred_check
    _
  $region3: #{double_conv.4} parent=0 // pred_check_branch
    %13 = sbr.rel (0) target = $region5
  $region4: #{double_conv.4} parent=0 // pred_region
    _
  $region5: #{double_conv.4} parent=0 // pred_fallthru
    _
  // Predicated region
  $region6: #{double_conv.4} parent=0 // pred_check
    _
  $region7: #{double_conv.4} parent=0 // pred_check_branch
    %15 = sbr.rel (0) target = $region9
  $region8: #{double_conv.4} parent=0 // pred_region
    _
  $region9: #{double_conv.4} parent=0 // pred_fallthru
    _
  // Predicated region
  $region10: #{double_conv.4} parent=0 // pred_check
    _
  $region11: #{double_conv.4} parent=0 // pred_check_branch
    %17 = sbr.rel (0) target = $region13
  $region12: #{double_conv.4} parent=0 // pred_region
    _
  $region13: #{double_conv.4} parent=0 // pred_fallthru
    _
  // Predicated region
  $region14: #{double_conv.4} parent=0 // pred_check
    _
  $region15: #{double_conv.4} parent=0 // pred_check_branch
    %19 = sbr.rel (0) target = $region17
  $region16: #{double_conv.4} parent=0 // pred_region
    _
  $region17: #{double_conv.4} parent=0 // pred_fallthru
    _
  %p21 = scmp.eq.s32.totalorder 0, 0
  // Predicated region
  $region18: #{double_conv.4} parent=0 // pred_check
    %p22 = pneg %p21
  $region19: #{double_conv.4} parent=0 // pred_check_branch
    %24 = sbr.rel (%p22) target = $region21
  $region20: #{double_conv.4} parent=0 // pred_region
    %v25 = vld [vmem:[%s0] sm:$0xf]
    %v26 = vld [vmem:[%s0 + $0x4] sm:$0xf]
    %v27 = vld [vmem:[%s0 + $0x8] sm:$0xf]
    %v28 = vld [vmem:[%s0 + $0xc] sm:$0xf]
    %v29 = vld [vmem:[%s0 + $0x10] sm:$0xf]
    %v30 = vld [vmem:[%s0 + $0x14] sm:$0xf]
    %v31 = vld [vmem:[%s0 + $0x18] sm:$0xf]
    %v32 = vld [vmem:[%s0 + $0x1c] sm:$0xf]
    %v33 = vld [vmem:[%s0 + $0x20] sm:$0xf]
    %v34 = vld [vmem:[%s0 + $0x24] sm:$0xf]
    %v35 = vld [vmem:[%s0 + $0x28] sm:$0xf]
    %v36 = vld [vmem:[%s0 + $0x2c] sm:$0xf]
    %v37 = vld [vmem:[%s0 + $0x30] sm:$0xf]
    %v38 = vld [vmem:[%s0 + $0x34] sm:$0xf]
    %v39 = vld [vmem:[%s0 + $0x38] sm:$0xf]
    %v40 = vld [vmem:[%s0 + $0x3c] sm:$0xf]
    %v41 = vld [vmem:[%s0 + $0x40] sm:$0xf]
    %v42 = vld [vmem:[%s0 + $0x44] sm:$0xf]
    %v43 = vld [vmem:[%s0 + $0x48] sm:$0xf]
    %v44 = vld [vmem:[%s0 + $0x4c] sm:$0xf]
    %v45 = vld [vmem:[%s0 + $0x50] sm:$0xf]
    %v46 = vld [vmem:[%s0 + $0x54] sm:$0xf]
    %v47 = vld [vmem:[%s0 + $0x58] sm:$0xf]
    %v48 = vld [vmem:[%s0 + $0x5c] sm:$0xf]
    %v49 = vld [vmem:[%s0 + $0x60] sm:$0xf]
    %v50 = vld [vmem:[%s0 + $0x64] sm:$0xf]
    %v51 = vld [vmem:[%s0 + $0x68] sm:$0xf]
    %v52 = vld [vmem:[%s0 + $0x6c] sm:$0xf]
    %v53 = vld [vmem:[%s0 + $0x70] sm:$0xf]
    %v54 = vld [vmem:[%s0 + $0x74] sm:$0xf]
    %v55 = vld [vmem:[%s0 + $0x78] sm:$0xf]
    %v56 = vld [vmem:[%s0 + $0x7c] sm:$0xf]
    %v57 = vld [vmem:[%s0 + $0x80] sm:$0xf]
    %v58 = vld [vmem:[%s0 + $0x84] sm:$0xf]
    %v59 = vld [vmem:[%s0 + $0x88] sm:$0xf]
    %v60 = vld [vmem:[%s0 + $0x8c] sm:$0xf]
    %v61 = vld [vmem:[%s0 + $0x90] sm:$0xf]
    %v62 = vld [vmem:[%s0 + $0x94] sm:$0xf]
    %v63 = vld [vmem:[%s0 + $0x98] sm:$0xf]
    %v64 = vld [vmem:[%s0 + $0x9c] sm:$0xf]
    %v65 = vld [vmem:[%s0 + $0xa0] sm:$0xf]
    %v66 = vld [vmem:[%s0 + $0xa4] sm:$0xf]
    %v67 = vld [vmem:[%s0 + $0xa8] sm:$0xf]
    %v68 = vld [vmem:[%s0 + $0xac] sm:$0xf]
    %v69 = vld [vmem:[%s0 + $0xb0] sm:$0xf]
    %v70 = vld [vmem:[%s0 + $0xb4] sm:$0xf]
    %v71 = vld [vmem:[%s0 + $0xb8] sm:$0xf]
    %v72 = vld [vmem:[%s0 + $0xbc] sm:$0xf]
    %v73 = vld [vmem:[%s0 + $0xc0] sm:$0xf]
    %v74 = vld [vmem:[%s0 + $0xc4] sm:$0xf]
    %v75 = vld [vmem:[%s0 + $0xc8] sm:$0xf]
    %v76 = vld [vmem:[%s0 + $0xcc] sm:$0xf]
    %v77 = vld [vmem:[%s0 + $0xd0] sm:$0xf]
    %v78 = vld [vmem:[%s0 + $0xd4] sm:$0xf]
    %v79 = vld [vmem:[%s0 + $0xd8] sm:$0xf]
    %v80 = vld [vmem:[%s0 + $0xdc] sm:$0xf]
    %v81 = vld [vmem:[%s0 + $0xe0] sm:$0xf]
    %v82 = vld [vmem:[%s0 + $0xe4] sm:$0xf]
    %v83 = vld [vmem:[%s0 + $0xe8] sm:$0xf]
    %v84 = vld [vmem:[%s0 + $0xec] sm:$0xf]
    %v85 = vld [vmem:[%s0 + $0xf0] sm:$0xf]
    %v86 = vld [vmem:[%s0 + $0xf4] sm:$0xf]
    %v87 = vld [vmem:[%s0 + $0xf8] sm:$0xf]
    %v88 = vld [vmem:[%s0 + $0xfc] sm:$0xf]
    %v89 = vunpack.c.l.bf16 %v25
    %v90 = vunpack.c.l.bf16 %v26
    %v91 = vunpack.c.l.bf16 %v27
    %v92 = vunpack.c.l.bf16 %v28
    %v93 = vunpack.c.l.bf16 %v29
    %v94 = vunpack.c.l.bf16 %v30
    %v95 = vunpack.c.l.bf16 %v31
    %v96 = vunpack.c.l.bf16 %v32
    %v97 = vunpack.c.l.bf16 %v33
    %v98 = vunpack.c.l.bf16 %v34
    %v99 = vunpack.c.l.bf16 %v35
    %v100 = vunpack.c.l.bf16 %v36
    %v101 = vunpack.c.l.bf16 %v37
    %v102 = vunpack.c.l.bf16 %v38
    %v103 = vunpack.c.l.bf16 %v39
    %v104 = vunpack.c.l.bf16 %v40
    %v105 = vunpack.c.l.bf16 %v41
    %v106 = vunpack.c.l.bf16 %v42
    %v107 = vunpack.c.l.bf16 %v43
    %v108 = vunpack.c.l.bf16 %v44
    %v109 = vunpack.c.l.bf16 %v45
    %v110 = vunpack.c.l.bf16 %v46
    %v111 = vunpack.c.l.bf16 %v47
    %v112 = vunpack.c.l.bf16 %v48
    %v113 = vunpack.c.l.bf16 %v49
    %v114 = vunpack.c.l.bf16 %v50
    %v115 = vunpack.c.l.bf16 %v51
    %v116 = vunpack.c.l.bf16 %v52
    %v117 = vunpack.c.l.bf16 %v53
    %v118 = vunpack.c.l.bf16 %v54
    %v119 = vunpack.c.l.bf16 %v55
    %v120 = vunpack.c.l.bf16 %v56
    %v121 = vunpack.c.l.bf16 %v57
    %v122 = vunpack.c.l.bf16 %v58
    %v123 = vunpack.c.l.bf16 %v59
    %v124 = vunpack.c.l.bf16 %v60
    %v125 = vunpack.c.l.bf16 %v61
    %v126 = vunpack.c.l.bf16 %v62
    %v127 = vunpack.c.l.bf16 %v63
    %v128 = vunpack.c.l.bf16 %v64
    %v129 = vunpack.c.l.bf16 %v65
    %v130 = vunpack.c.l.bf16 %v66
    %v131 = vunpack.c.l.bf16 %v67
    %v132 = vunpack.c.l.bf16 %v68
    %v133 = vunpack.c.l.bf16 %v69
    %v134 = vunpack.c.l.bf16 %v70
    %v135 = vunpack.c.l.bf16 %v71
    %v136 = vunpack.c.l.bf16 %v72
    %v137 = vunpack.c.l.bf16 %v73
    %v138 = vunpack.c.l.bf16 %v74
    %v139 = vunpack.c.l.bf16 %v75
    %v140 = vunpack.c.l.bf16 %v76
    %v141 = vunpack.c.l.bf16 %v77
    %v142 = vunpack.c.l.bf16 %v78
    %v143 = vunpack.c.l.bf16 %v79
    %v144 = vunpack.c.l.bf16 %v80
    %v145 = vunpack.c.l.bf16 %v81
    %v146 = vunpack.c.l.bf16 %v82
    %v147 = vunpack.c.l.bf16 %v83
    %v148 = vunpack.c.l.bf16 %v84
    %v149 = vunpack.c.l.bf16 %v85
    %v150 = vunpack.c.l.bf16 %v86
    %v151 = vunpack.c.l.bf16 %v87
    %v152 = vunpack.c.l.bf16 %v88
    %v153 = vld [vmem:[%s2] sm:$0x1]
    %v155 = vlaneseq
    %v156 = vshrl.u32 %v155, 7
    %v157 = vsub.s32 0, %v156
    %v158 = vrot.slane %v153, %v157
    %v160 = vmul.f32 %v89, %v158
    %v161 = vmul.f32 %v90, %v158
    %v162 = vmul.f32 %v91, %v158
    %v163 = vmul.f32 %v92, %v158
    %v164 = vmul.f32 %v93, %v158
    %v165 = vmul.f32 %v94, %v158
    %v166 = vmul.f32 %v95, %v158
    %v167 = vmul.f32 %v96, %v158
    %v168 = vmul.f32 %v97, %v158
    %v169 = vmul.f32 %v98, %v158
    %v170 = vmul.f32 %v99, %v158
    %v171 = vmul.f32 %v100, %v158
    %v172 = vmul.f32 %v101, %v158
    %v173 = vmul.f32 %v102, %v158
    %v174 = vmul.f32 %v103, %v158
    %v175 = vmul.f32 %v104, %v158
    %v176 = vmul.f32 %v105, %v158
    %v177 = vmul.f32 %v106, %v158
    %v178 = vmul.f32 %v107, %v158
    %v179 = vmul.f32 %v108, %v158
    %v180 = vmul.f32 %v109, %v158
    %v181 = vmul.f32 %v110, %v158
    %v182 = vmul.f32 %v111, %v158
    %v183 = vmul.f32 %v112, %v158
    %v184 = vmul.f32 %v113, %v158
    %v185 = vmul.f32 %v114, %v158
    %v186 = vmul.f32 %v115, %v158
    %v187 = vmul.f32 %v116, %v158
    %v188 = vmul.f32 %v117, %v158
    %v189 = vmul.f32 %v118, %v158
    %v190 = vmul.f32 %v119, %v158
    %v191 = vmul.f32 %v120, %v158
    %v192 = vmul.f32 %v121, %v158
    %v193 = vmul.f32 %v122, %v158
    %v194 = vmul.f32 %v123, %v158
    %v195 = vmul.f32 %v124, %v158
    %v196 = vmul.f32 %v125, %v158
    %v197 = vmul.f32 %v126, %v158
    %v198 = vmul.f32 %v127, %v158
    %v199 = vmul.f32 %v128, %v158
    %v200 = vmul.f32 %v129, %v158
    %v201 = vmul.f32 %v130, %v158
    %v202 = vmul.f32 %v131, %v158
    %v203 = vmul.f32 %v132, %v158
    %v204 = vmul.f32 %v133, %v158
    %v205 = vmul.f32 %v134, %v158
    %v206 = vmul.f32 %v135, %v158
    %v207 = vmul.f32 %v136, %v158
    %v208 = vmul.f32 %v137, %v158
    %v209 = vmul.f32 %v138, %v158
    %v210 = vmul.f32 %v139, %v158
    %v211 = vmul.f32 %v140, %v158
    %v212 = vmul.f32 %v141, %v158
    %v213 = vmul.f32 %v142, %v158
    %v214 = vmul.f32 %v143, %v158
    %v215 = vmul.f32 %v144, %v158
    %v216 = vmul.f32 %v145, %v158
    %v217 = vmul.f32 %v146, %v158
    %v218 = vmul.f32 %v147, %v158
    %v219 = vmul.f32 %v148, %v158
    %v220 = vmul.f32 %v149, %v158
    %v221 = vmul.f32 %v150, %v158
    %v222 = vmul.f32 %v151, %v158
    %v223 = vmul.f32 %v152, %v158
    %v224 = vld [vmem:[%s3] sm:$0x1]
    %v226 = vlaneseq
    %v227 = vshrl.u32 %v226, 7
    %v228 = vsub.s32 0, %v227
    %v229 = vrot.slane %v224, %v228
    %v231 = vadd.f32 %v160, %v229
    %v232 = vadd.f32 %v161, %v229
    %v233 = vadd.f32 %v162, %v229
    %v234 = vadd.f32 %v163, %v229
    %v235 = vadd.f32 %v164, %v229
    %v236 = vadd.f32 %v165, %v229
    %v237 = vadd.f32 %v166, %v229
    %v238 = vadd.f32 %v167, %v229
    %v239 = vadd.f32 %v168, %v229
    %v240 = vadd.f32 %v169, %v229
    %v241 = vadd.f32 %v170, %v229
    %v242 = vadd.f32 %v171, %v229
    %v243 = vadd.f32 %v172, %v229
    %v244 = vadd.f32 %v173, %v229
    %v245 = vadd.f32 %v174, %v229
    %v246 = vadd.f32 %v175, %v229
    %v247 = vadd.f32 %v176, %v229
    %v248 = vadd.f32 %v177, %v229
    %v249 = vadd.f32 %v178, %v229
    %v250 = vadd.f32 %v179, %v229
    %v251 = vadd.f32 %v180, %v229
    %v252 = vadd.f32 %v181, %v229
    %v253 = vadd.f32 %v182, %v229
    %v254 = vadd.f32 %v183, %v229
    %v255 = vadd.f32 %v184, %v229
    %v256 = vadd.f32 %v185, %v229
    %v257 = vadd.f32 %v186, %v229
    %v258 = vadd.f32 %v187, %v229
    %v259 = vadd.f32 %v188, %v229
    %v260 = vadd.f32 %v189, %v229
    %v261 = vadd.f32 %v190, %v229
    %v262 = vadd.f32 %v191, %v229
    %v263 = vadd.f32 %v192, %v229
    %v264 = vadd.f32 %v193, %v229
    %v265 = vadd.f32 %v194, %v229
    %v266 = vadd.f32 %v195, %v229
    %v267 = vadd.f32 %v196, %v229
    %v268 = vadd.f32 %v197, %v229
    %v269 = vadd.f32 %v198, %v229
    %v270 = vadd.f32 %v199, %v229
    %v271 = vadd.f32 %v200, %v229
    %v272 = vadd.f32 %v201, %v229
    %v273 = vadd.f32 %v202, %v229
    %v274 = vadd.f32 %v203, %v229
    %v275 = vadd.f32 %v204, %v229
    %v276 = vadd.f32 %v205, %v229
    %v277 = vadd.f32 %v206, %v229
    %v278 = vadd.f32 %v207, %v229
    %v279 = vadd.f32 %v208, %v229
    %v280 = vadd.f32 %v209, %v229
    %v281 = vadd.f32 %v210, %v229
    %v282 = vadd.f32 %v211, %v229
    %v283 = vadd.f32 %v212, %v229
    %v284 = vadd.f32 %v213, %v229
    %v285 = vadd.f32 %v214, %v229
    %v286 = vadd.f32 %v215, %v229
    %v287 = vadd.f32 %v216, %v229
    %v288 = vadd.f32 %v217, %v229
    %v289 = vadd.f32 %v218, %v229
    %v290 = vadd.f32 %v219, %v229
    %v291 = vadd.f32 %v220, %v229
    %v292 = vadd.f32 %v221, %v229
    %v293 = vadd.f32 %v222, %v229
    %v294 = vadd.f32 %v223, %v229
    %v295 = vmax.f32 %v231, 0.0
    %v296 = vmax.f32 %v232, 0.0
    %v297 = vmax.f32 %v233, 0.0
    %v298 = vmax.f32 %v234, 0.0
    %v299 = vmax.f32 %v235, 0.0
    %v300 = vmax.f32 %v236, 0.0
    %v301 = vmax.f32 %v237, 0.0
    %v302 = vmax.f32 %v238, 0.0
    %v303 = vmax.f32 %v239, 0.0
    %v304 = vmax.f32 %v240, 0.0
    %v305 = vmax.f32 %v241, 0.0
    %v306 = vmax.f32 %v242, 0.0
    %v307 = vmax.f32 %v243, 0.0
    %v308 = vmax.f32 %v244, 0.0
    %v309 = vmax.f32 %v245, 0.0
    %v310 = vmax.f32 %v246, 0.0
    %v311 = vmax.f32 %v247, 0.0
    %v312 = vmax.f32 %v248, 0.0
    %v313 = vmax.f32 %v249, 0.0
    %v314 = vmax.f32 %v250, 0.0
    %v315 = vmax.f32 %v251, 0.0
    %v316 = vmax.f32 %v252, 0.0
    %v317 = vmax.f32 %v253, 0.0
    %v318 = vmax.f32 %v254, 0.0
    %v319 = vmax.f32 %v255, 0.0
    %v320 = vmax.f32 %v256, 0.0
    %v321 = vmax.f32 %v257, 0.0
    %v322 = vmax.f32 %v258, 0.0
    %v323 = vmax.f32 %v259, 0.0
    %v324 = vmax.f32 %v260, 0.0
    %v325 = vmax.f32 %v261, 0.0
    %v326 = vmax.f32 %v262, 0.0
    %v327 = vmax.f32 %v263, 0.0
    %v328 = vmax.f32 %v264, 0.0
    %v329 = vmax.f32 %v265, 0.0
    %v330 = vmax.f32 %v266, 0.0
    %v331 = vmax.f32 %v267, 0.0
    %v332 = vmax.f32 %v268, 0.0
    %v333 = vmax.f32 %v269, 0.0
    %v334 = vmax.f32 %v270, 0.0
    %v335 = vmax.f32 %v271, 0.0
    %v336 = vmax.f32 %v272, 0.0
    %v337 = vmax.f32 %v273, 0.0
    %v338 = vmax.f32 %v274, 0.0
    %v339 = vmax.f32 %v275, 0.0
    %v340 = vmax.f32 %v276, 0.0
    %v341 = vmax.f32 %v277, 0.0
    %v342 = vmax.f32 %v278, 0.0
    %v343 = vmax.f32 %v279, 0.0
    %v344 = vmax.f32 %v280, 0.0
    %v345 = vmax.f32 %v281, 0.0
    %v346 = vmax.f32 %v282, 0.0
    %v347 = vmax.f32 %v283, 0.0
    %v348 = vmax.f32 %v284, 0.0
    %v349 = vmax.f32 %v285, 0.0
    %v350 = vmax.f32 %v286, 0.0
    %v351 = vmax.f32 %v287, 0.0
    %v352 = vmax.f32 %v288, 0.0
    %v353 = vmax.f32 %v289, 0.0
    %v354 = vmax.f32 %v290, 0.0
    %v355 = vmax.f32 %v291, 0.0
    %v356 = vmax.f32 %v292, 0.0
    %v357 = vmax.f32 %v293, 0.0
    %v358 = vmax.f32 %v294, 0.0
    %v359 = vpack.c.bf16 %v296, %v295
    %v360 = vpack.c.bf16 %v298, %v297
    %v361 = vpack.c.bf16 %v300, %v299
    %v362 = vpack.c.bf16 %v302, %v301
    %v363 = vpack.c.bf16 %v304, %v303
    %v364 = vpack.c.bf16 %v306, %v305
    %v365 = vpack.c.bf16 %v308, %v307
    %v366 = vpack.c.bf16 %v310, %v309
    %v367 = vpack.c.bf16 %v312, %v311
    %v368 = vpack.c.bf16 %v314, %v313
    %v369 = vpack.c.bf16 %v316, %v315
    %v370 = vpack.c.bf16 %v318, %v317
    %v371 = vpack.c.bf16 %v320, %v319
    %v372 = vpack.c.bf16 %v322, %v321
    %v373 = vpack.c.bf16 %v324, %v323
    %v374 = vpack.c.bf16 %v326, %v325
    %v375 = vpack.c.bf16 %v328, %v327
    %v376 = vpack.c.bf16 %v330, %v329
    %v377 = vpack.c.bf16 %v332, %v331
    %v378 = vpack.c.bf16 %v334, %v333
    %v379 = vpack.c.bf16 %v336, %v335
    %v380 = vpack.c.bf16 %v338, %v337
    %v381 = vpack.c.bf16 %v340, %v339
    %v382 = vpack.c.bf16 %v342, %v341
    %v383 = vpack.c.bf16 %v344, %v343
    %v384 = vpack.c.bf16 %v346, %v345
    %v385 = vpack.c.bf16 %v348, %v347
    %v386 = vpack.c.bf16 %v350, %v349
    %v387 = vpack.c.bf16 %v352, %v351
    %v388 = vpack.c.bf16 %v354, %v353
    %v389 = vpack.c.bf16 %v356, %v355
    %v390 = vpack.c.bf16 %v358, %v357
    %v392 = vshrl.u32 %v359, 16
    %v394 = vrot.slane %v392, 7
    %v395 = vshll.u32 %v359, 16
    %v397 = vor.u32 %v394, %v395
    %v399 = vshrl.u32 %v360, 16
    %v401 = vrot.slane %v399, 7
    %v402 = vshll.u32 %v360, 16
    %v404 = vor.u32 %v401, %v402
    %v406 = vshrl.u32 %v361, 16
    %v408 = vrot.slane %v406, 7
    %v409 = vshll.u32 %v361, 16
    %v411 = vor.u32 %v408, %v409
    %v413 = vshrl.u32 %v362, 16
    %v415 = vrot.slane %v413, 7
    %v416 = vshll.u32 %v362, 16
    %v418 = vor.u32 %v415, %v416
    %v420 = vshrl.u32 %v363, 16
    %v422 = vrot.slane %v420, 7
    %v423 = vshll.u32 %v363, 16
    %v425 = vor.u32 %v422, %v423
    %v427 = vshrl.u32 %v364, 16
    %v429 = vrot.slane %v427, 7
    %v430 = vshll.u32 %v364, 16
    %v432 = vor.u32 %v429, %v430
    %v434 = vshrl.u32 %v365, 16
    %v436 = vrot.slane %v434, 7
    %v437 = vshll.u32 %v365, 16
    %v439 = vor.u32 %v436, %v437
    %v441 = vshrl.u32 %v366, 16
    %v443 = vrot.slane %v441, 7
    %v444 = vshll.u32 %v366, 16
    %v446 = vor.u32 %v443, %v444
    %v448 = vshrl.u32 %v367, 16
    %v450 = vrot.slane %v448, 7
    %v451 = vshll.u32 %v367, 16
    %v453 = vor.u32 %v450, %v451
    %v455 = vshrl.u32 %v368, 16
    %v457 = vrot.slane %v455, 7
    %v458 = vshll.u32 %v368, 16
    %v460 = vor.u32 %v457, %v458
    %v462 = vshrl.u32 %v369, 16
    %v464 = vrot.slane %v462, 7
    %v465 = vshll.u32 %v369, 16
    %v467 = vor.u32 %v464, %v465
    %v469 = vshrl.u32 %v370, 16
    %v471 = vrot.slane %v469, 7
    %v472 = vshll.u32 %v370, 16
    %v474 = vor.u32 %v471, %v472
    %v476 = vshrl.u32 %v371, 16
    %v478 = vrot.slane %v476, 7
    %v479 = vshll.u32 %v371, 16
    %v481 = vor.u32 %v478, %v479
    %v483 = vshrl.u32 %v372, 16
    %v485 = vrot.slane %v483, 7
    %v486 = vshll.u32 %v372, 16
    %v488 = vor.u32 %v485, %v486
    %v490 = vshrl.u32 %v373, 16
    %v492 = vrot.slane %v490, 7
    %v493 = vshll.u32 %v373, 16
    %v495 = vor.u32 %v492, %v493
    %v497 = vshrl.u32 %v374, 16
    %v499 = vrot.slane %v497, 7
    %v500 = vshll.u32 %v374, 16
    %v502 = vor.u32 %v499, %v500
    %v504 = vshrl.u32 %v375, 16
    %v506 = vrot.slane %v504, 7
    %v507 = vshll.u32 %v375, 16
    %v509 = vor.u32 %v506, %v507
    %v511 = vshrl.u32 %v376, 16
    %v513 = vrot.slane %v511, 7
    %v514 = vshll.u32 %v376, 16
    %v516 = vor.u32 %v513, %v514
    %v518 = vshrl.u32 %v377, 16
    %v520 = vrot.slane %v518, 7
    %v521 = vshll.u32 %v377, 16
    %v523 = vor.u32 %v520, %v521
    %v525 = vshrl.u32 %v378, 16
    %v527 = vrot.slane %v525, 7
    %v528 = vshll.u32 %v378, 16
    %v530 = vor.u32 %v527, %v528
    %v532 = vshrl.u32 %v379, 16
    %v534 = vrot.slane %v532, 7
    %v535 = vshll.u32 %v379, 16
    %v537 = vor.u32 %v534, %v535
    %v539 = vshrl.u32 %v380, 16
    %v541 = vrot.slane %v539, 7
    %v542 = vshll.u32 %v380, 16
    %v544 = vor.u32 %v541, %v542
    %v546 = vshrl.u32 %v381, 16
    %v548 = vrot.slane %v546, 7
    %v549 = vshll.u32 %v381, 16
    %v551 = vor.u32 %v548, %v549
    %v553 = vshrl.u32 %v382, 16
    %v555 = vrot.slane %v553, 7
    %v556 = vshll.u32 %v382, 16
    %v558 = vor.u32 %v555, %v556
    %v560 = vshrl.u32 %v383, 16
    %v562 = vrot.slane %v560, 7
    %v563 = vshll.u32 %v383, 16
    %v565 = vor.u32 %v562, %v563
    %v567 = vshrl.u32 %v384, 16
    %v569 = vrot.slane %v567, 7
    %v570 = vshll.u32 %v384, 16
    %v572 = vor.u32 %v569, %v570
    %v574 = vshrl.u32 %v385, 16
    %v576 = vrot.slane %v574, 7
    %v577 = vshll.u32 %v385, 16
    %v579 = vor.u32 %v576, %v577
    %v581 = vshrl.u32 %v386, 16
    %v583 = vrot.slane %v581, 7
    %v584 = vshll.u32 %v386, 16
    %v586 = vor.u32 %v583, %v584
    %v588 = vshrl.u32 %v387, 16
    %v590 = vrot.slane %v588, 7
    %v591 = vshll.u32 %v387, 16
    %v593 = vor.u32 %v590, %v591
    %v595 = vshrl.u32 %v388, 16
    %v597 = vrot.slane %v595, 7
    %v598 = vshll.u32 %v388, 16
    %v600 = vor.u32 %v597, %v598
    %v602 = vshrl.u32 %v389, 16
    %v604 = vrot.slane %v602, 7
    %v605 = vshll.u32 %v389, 16
    %v607 = vor.u32 %v604, %v605
    %v609 = vshrl.u32 %v390, 16
    %v611 = vrot.slane %v609, 7
    %v612 = vshll.u32 %v390, 16
    %v614 = vor.u32 %v611, %v612
    %vm647 = vcmask 1040384
    %vm648 = vsmask.f32 256
    %vm649 = vmand %vm647, %vm648
    %v650 = vsel %vm649, 0, %v397
    %v651 = vsel %vm649, 0, %v404
    %v652 = vsel %vm649, 0, %v411
    %v653 = vsel %vm649, 0, %v418
    %v654 = vsel %vm649, 0, %v425
    %v655 = vsel %vm649, 0, %v432
    %v656 = vsel %vm649, 0, %v439
    %v657 = vsel %vm649, 0, %v446
    %v658 = vsel %vm649, 0, %v453
    %v659 = vsel %vm649, 0, %v460
    %v660 = vsel %vm649, 0, %v467
    %v661 = vsel %vm649, 0, %v474
    %v662 = vsel %vm649, 0, %v481
    %v663 = vsel %vm649, 0, %v488
    %v664 = vsel %vm649, 0, %v495
    %v665 = vsel %vm649, 0, %v502
    %v666 = vsel %vm649, 0, %v509
    %v667 = vsel %vm649, 0, %v516
    %v668 = vsel %vm649, 0, %v523
    %v669 = vsel %vm649, 0, %v530
    %v670 = vsel %vm649, 0, %v537
    %v671 = vsel %vm649, 0, %v544
    %v672 = vsel %vm649, 0, %v551
    %v673 = vsel %vm649, 0, %v558
    %v674 = vsel %vm649, 0, %v565
    %v675 = vsel %vm649, 0, %v572
    %v676 = vsel %vm649, 0, %v579
    %v677 = vsel %vm649, 0, %v586
    %v678 = vsel %vm649, 0, %v593
    %v679 = vsel %vm649, 0, %v600
    %v680 = vsel %vm649, 0, %v607
    %v681 = vsel %vm649, 0, %v614
    %v682 = vrot.slane %v395, 1
    %v683 = vor.u32 %v392, %v682
    %v684 = vrot.slane %v402, 1
    %v685 = vor.u32 %v399, %v684
    %v686 = vrot.slane %v409, 1
    %v687 = vor.u32 %v406, %v686
    %v688 = vrot.slane %v416, 1
    %v689 = vor.u32 %v413, %v688
    %v690 = vrot.slane %v423, 1
    %v691 = vor.u32 %v420, %v690
    %v692 = vrot.slane %v430, 1
    %v693 = vor.u32 %v427, %v692
    %v694 = vrot.slane %v437, 1
    %v695 = vor.u32 %v434, %v694
    %v696 = vrot.slane %v444, 1
    %v697 = vor.u32 %v441, %v696
    %v698 = vrot.slane %v451, 1
    %v699 = vor.u32 %v448, %v698
    %v700 = vrot.slane %v458, 1
    %v701 = vor.u32 %v455, %v700
    %v702 = vrot.slane %v465, 1
    %v703 = vor.u32 %v462, %v702
    %v704 = vrot.slane %v472, 1
    %v705 = vor.u32 %v469, %v704
    %v706 = vrot.slane %v479, 1
    %v707 = vor.u32 %v476, %v706
    %v708 = vrot.slane %v486, 1
    %v709 = vor.u32 %v483, %v708
    %v710 = vrot.slane %v493, 1
    %v711 = vor.u32 %v490, %v710
    %v712 = vrot.slane %v500, 1
    %v713 = vor.u32 %v497, %v712
    %v714 = vrot.slane %v507, 1
    %v715 = vor.u32 %v504, %v714
    %v716 = vrot.slane %v514, 1
    %v717 = vor.u32 %v511, %v716
    %v718 = vrot.slane %v521, 1
    %v719 = vor.u32 %v518, %v718
    %v720 = vrot.slane %v528, 1
    %v721 = vor.u32 %v525, %v720
    %v722 = vrot.slane %v535, 1
    %v723 = vor.u32 %v532, %v722
    %v724 = vrot.slane %v542, 1
    %v725 = vor.u32 %v539, %v724
    %v726 = vrot.slane %v549, 1
    %v727 = vor.u32 %v546, %v726
    %v728 = vrot.slane %v556, 1
    %v729 = vor.u32 %v553, %v728
    %v730 = vrot.slane %v563, 1
    %v731 = vor.u32 %v560, %v730
    %v732 = vrot.slane %v570, 1
    %v733 = vor.u32 %v567, %v732
    %v734 = vrot.slane %v577, 1
    %v735 = vor.u32 %v574, %v734
    %v736 = vrot.slane %v584, 1
    %v737 = vor.u32 %v581, %v736
    %v738 = vrot.slane %v591, 1
    %v739 = vor.u32 %v588, %v738
    %v740 = vrot.slane %v598, 1
    %v741 = vor.u32 %v595, %v740
    %v742 = vrot.slane %v605, 1
    %v743 = vor.u32 %v602, %v742
    %v744 = vrot.slane %v612, 1
    %v745 = vor.u32 %v609, %v744
    %vm778 = vcmask 1047552
    %vm779 = vsmask.f32 7424
    %vm780 = vmand %vm778, %vm779
    %v781 = vsel %vm780, %v683, 0
    %v782 = vsel %vm780, %v685, 0
    %v783 = vsel %vm780, %v687, 0
    %v784 = vsel %vm780, %v689, 0
    %v785 = vsel %vm780, %v691, 0
    %v786 = vsel %vm780, %v693, 0
    %v787 = vsel %vm780, %v695, 0
    %v788 = vsel %vm780, %v697, 0
    %v789 = vsel %vm780, %v699, 0
    %v790 = vsel %vm780, %v701, 0
    %v791 = vsel %vm780, %v703, 0
    %v792 = vsel %vm780, %v705, 0
    %v793 = vsel %vm780, %v707, 0
    %v794 = vsel %vm780, %v709, 0
    %v795 = vsel %vm780, %v711, 0
    %v796 = vsel %vm780, %v713, 0
    %v797 = vsel %vm780, %v715, 0
    %v798 = vsel %vm780, %v717, 0
    %v799 = vsel %vm780, %v719, 0
    %v800 = vsel %vm780, %v721, 0
    %v801 = vsel %vm780, %v723, 0
    %v802 = vsel %vm780, %v725, 0
    %v803 = vsel %vm780, %v727, 0
    %v804 = vsel %vm780, %v729, 0
    %v805 = vsel %vm780, %v731, 0
    %v806 = vsel %vm780, %v733, 0
    %v807 = vsel %vm780, %v735, 0
    %v808 = vsel %vm780, %v737, 0
    %v809 = vsel %vm780, %v739, 0
    %v810 = vsel %vm780, %v741, 0
    %v811 = vsel %vm780, %v743, 0
    %v812 = vsel %vm780, %v745, 0
    %845 = vrot.lane.b32.xlu0 %v359, 64
    %v846 = vpop.permute.xlu0 %845
    %847 = vrot.lane.b32.xlu0 %v360, 64
    %v848 = vpop.permute.xlu0 %847
    %849 = vrot.lane.b32.xlu0 %v361, 64
    %v850 = vpop.permute.xlu0 %849
    %851 = vrot.lane.b32.xlu0 %v362, 64
    %v852 = vpop.permute.xlu0 %851
    %853 = vrot.lane.b32.xlu0 %v363, 64
    %v854 = vpop.permute.xlu0 %853
    %855 = vrot.lane.b32.xlu0 %v364, 64
    %v856 = vpop.permute.xlu0 %855
    %857 = vrot.lane.b32.xlu0 %v365, 64
    %v858 = vpop.permute.xlu0 %857
    %859 = vrot.lane.b32.xlu0 %v366, 64
    %v860 = vpop.permute.xlu0 %859
    %861 = vrot.lane.b32.xlu0 %v367, 64
    %v862 = vpop.permute.xlu0 %861
    %863 = vrot.lane.b32.xlu0 %v368, 64
    %v864 = vpop.permute.xlu0 %863
    %865 = vrot.lane.b32.xlu0 %v369, 64
    %v866 = vpop.permute.xlu0 %865
    %867 = vrot.lane.b32.xlu0 %v370, 64
    %v868 = vpop.permute.xlu0 %867
    %869 = vrot.lane.b32.xlu0 %v371, 64
    %v870 = vpop.permute.xlu0 %869
    %871 = vrot.lane.b32.xlu0 %v372, 64
    %v872 = vpop.permute.xlu0 %871
    %873 = vrot.lane.b32.xlu0 %v373, 64
    %v874 = vpop.permute.xlu0 %873
    %875 = vrot.lane.b32.xlu0 %v374, 64
    %v876 = vpop.permute.xlu0 %875
    %877 = vrot.lane.b32.xlu0 %v375, 64
    %v878 = vpop.permute.xlu0 %877
    %879 = vrot.lane.b32.xlu0 %v376, 64
    %v880 = vpop.permute.xlu0 %879
    %881 = vrot.lane.b32.xlu0 %v377, 64
    %v882 = vpop.permute.xlu0 %881
    %883 = vrot.lane.b32.xlu0 %v378, 64
    %v884 = vpop.permute.xlu0 %883
    %885 = vrot.lane.b32.xlu0 %v379, 64
    %v886 = vpop.permute.xlu0 %885
    %887 = vrot.lane.b32.xlu0 %v380, 64
    %v888 = vpop.permute.xlu0 %887
    %889 = vrot.lane.b32.xlu0 %v381, 64
    %v890 = vpop.permute.xlu0 %889
    %891 = vrot.lane.b32.xlu0 %v382, 64
    %v892 = vpop.permute.xlu0 %891
    %893 = vrot.lane.b32.xlu0 %v383, 64
    %v894 = vpop.permute.xlu0 %893
    %895 = vrot.lane.b32.xlu0 %v384, 64
    %v896 = vpop.permute.xlu0 %895
    %897 = vrot.lane.b32.xlu0 %v385, 64
    %v898 = vpop.permute.xlu0 %897
    %899 = vrot.lane.b32.xlu0 %v386, 64
    %v900 = vpop.permute.xlu0 %899
    %901 = vrot.lane.b32.xlu0 %v387, 64
    %v902 = vpop.permute.xlu0 %901
    %903 = vrot.lane.b32.xlu0 %v388, 64
    %v904 = vpop.permute.xlu0 %903
    %905 = vrot.lane.b32.xlu0 %v389, 64
    %v906 = vpop.permute.xlu0 %905
    %907 = vrot.lane.b32.xlu0 %v390, 64
    %v908 = vpop.permute.xlu0 %907
    %vm909 = vcmask 523264
    %v912 = vsel %vm909, %v650, %v846
    %v916 = vsel %vm909, %v651, %v848
    %v920 = vsel %vm909, %v652, %v850
    %v924 = vsel %vm909, %v653, %v852
    %v928 = vsel %vm909, %v654, %v854
    %v932 = vsel %vm909, %v655, %v856
    %v936 = vsel %vm909, %v656, %v858
    %v940 = vsel %vm909, %v657, %v860
    %v944 = vsel %vm909, %v658, %v862
    %v948 = vsel %vm909, %v659, %v864
    %v952 = vsel %vm909, %v660, %v866
    %v956 = vsel %vm909, %v661, %v868
    %v960 = vsel %vm909, %v662, %v870
    %v964 = vsel %vm909, %v663, %v872
    %v968 = vsel %vm909, %v664, %v874
    %v972 = vsel %vm909, %v665, %v876
    %v976 = vsel %vm909, %v666, %v878
    %v980 = vsel %vm909, %v667, %v880
    %v984 = vsel %vm909, %v668, %v882
    %v988 = vsel %vm909, %v669, %v884
    %v992 = vsel %vm909, %v670, %v886
    %v996 = vsel %vm909, %v671, %v888
    %v1000 = vsel %vm909, %v672, %v890
    %v1004 = vsel %vm909, %v673, %v892
    %v1008 = vsel %vm909, %v674, %v894
    %v1012 = vsel %vm909, %v675, %v896
    %v1016 = vsel %vm909, %v676, %v898
    %v1020 = vsel %vm909, %v677, %v900
    %v1024 = vsel %vm909, %v678, %v902
    %v1028 = vsel %vm909, %v679, %v904
    %v1032 = vsel %vm909, %v680, %v906
    %v1036 = vsel %vm909, %v681, %v908
    %s1038 = scalar_lea.vmem [#allocation2], 16
    %1039 = vst [vmem:[%s1038] sm:$0xff] %v912
    %1040 = vst.msk [vmem:[%s1038 + $0x8] sm:$0xff] %vm909, %v781
    %1041 = vst [vmem:[%s1038 + $0x10] sm:$0xff] %v916
    %1042 = vst.msk [vmem:[%s1038 + $0x18] sm:$0xff] %vm909, %v782
    %1043 = vst [vmem:[%s1038 + $0x20] sm:$0xff] %v920
    %1044 = vst.msk [vmem:[%s1038 + $0x28] sm:$0xff] %vm909, %v783
    %1045 = vst [vmem:[%s1038 + $0x30] sm:$0xff] %v924
    %1046 = vst.msk [vmem:[%s1038 + $0x38] sm:$0xff] %vm909, %v784
    %1047 = vst [vmem:[%s1038 + $0x40] sm:$0xff] %v928
    %1048 = vst.msk [vmem:[%s1038 + $0x48] sm:$0xff] %vm909, %v785
    %1049 = vst [vmem:[%s1038 + $0x50] sm:$0xff] %v932
    %1050 = vst.msk [vmem:[%s1038 + $0x58] sm:$0xff] %vm909, %v786
    %1051 = vst [vmem:[%s1038 + $0x60] sm:$0xff] %v936
    %1052 = vst.msk [vmem:[%s1038 + $0x68] sm:$0xff] %vm909, %v787
    %1053 = vst [vmem:[%s1038 + $0x70] sm:$0xff] %v940
    %1054 = vst.msk [vmem:[%s1038 + $0x78] sm:$0xff] %vm909, %v788
    %1055 = vst [vmem:[%s1038 + $0x80] sm:$0xff] %v944
    %1056 = vst.msk [vmem:[%s1038 + $0x88] sm:$0xff] %vm909, %v789
    %1057 = vst [vmem:[%s1038 + $0x90] sm:$0xff] %v948
    %1058 = vst.msk [vmem:[%s1038 + $0x98] sm:$0xff] %vm909, %v790
    %1059 = vst [vmem:[%s1038 + $0xa0] sm:$0xff] %v952
    %1060 = vst.msk [vmem:[%s1038 + $0xa8] sm:$0xff] %vm909, %v791
    %1061 = vst [vmem:[%s1038 + $0xb0] sm:$0xff] %v956
    %1062 = vst.msk [vmem:[%s1038 + $0xb8] sm:$0xff] %vm909, %v792
    %1063 = vst [vmem:[%s1038 + $0xc0] sm:$0xff] %v960
    %1064 = vst.msk [vmem:[%s1038 + $0xc8] sm:$0xff] %vm909, %v793
    %1065 = vst [vmem:[%s1038 + $0xd0] sm:$0xff] %v964
    %1066 = vst.msk [vmem:[%s1038 + $0xd8] sm:$0xff] %vm909, %v794
    %1067 = vst [vmem:[%s1038 + $0xe0] sm:$0xff] %v968
    %1068 = vst.msk [vmem:[%s1038 + $0xe8] sm:$0xff] %vm909, %v795
    %1069 = vst [vmem:[%s1038 + $0xf0] sm:$0xff] %v972
    %1070 = vst.msk [vmem:[%s1038 + $0xf8] sm:$0xff] %vm909, %v796
    %1071 = vst [vmem:[%s1038 + $0x120] sm:$0xff] %v976
    %1072 = vst.msk [vmem:[%s1038 + $0x128] sm:$0xff] %vm909, %v797
    %1073 = vst [vmem:[%s1038 + $0x130] sm:$0xff] %v980
    %1074 = vst.msk [vmem:[%s1038 + $0x138] sm:$0xff] %vm909, %v798
    %1075 = vst [vmem:[%s1038 + $0x140] sm:$0xff] %v984
    %1076 = vst.msk [vmem:[%s1038 + $0x148] sm:$0xff] %vm909, %v799
    %1077 = vst [vmem:[%s1038 + $0x150] sm:$0xff] %v988
    %1078 = vst.msk [vmem:[%s1038 + $0x158] sm:$0xff] %vm909, %v800
    %1079 = vst [vmem:[%s1038 + $0x160] sm:$0xff] %v992
    %1080 = vst.msk [vmem:[%s1038 + $0x168] sm:$0xff] %vm909, %v801
    %1081 = vst [vmem:[%s1038 + $0x170] sm:$0xff] %v996
    %1082 = vst.msk [vmem:[%s1038 + $0x178] sm:$0xff] %vm909, %v802
    %1083 = vst [vmem:[%s1038 + $0x180] sm:$0xff] %v1000
    %1084 = vst.msk [vmem:[%s1038 + $0x188] sm:$0xff] %vm909, %v803
    %1085 = vst [vmem:[%s1038 + $0x190] sm:$0xff] %v1004
    %1086 = vst.msk [vmem:[%s1038 + $0x198] sm:$0xff] %vm909, %v804
    %1087 = vst [vmem:[%s1038 + $0x1a0] sm:$0xff] %v1008
    %1088 = vst.msk [vmem:[%s1038 + $0x1a8] sm:$0xff] %vm909, %v805
    %1089 = vst [vmem:[%s1038 + $0x1b0] sm:$0xff] %v1012
    %1090 = vst.msk [vmem:[%s1038 + $0x1b8] sm:$0xff] %vm909, %v806
    %1091 = vst [vmem:[%s1038 + $0x1c0] sm:$0xff] %v1016
    %1092 = vst.msk [vmem:[%s1038 + $0x1c8] sm:$0xff] %vm909, %v807
    %1093 = vst [vmem:[%s1038 + $0x1d0] sm:$0xff] %v1020
    %1094 = vst.msk [vmem:[%s1038 + $0x1d8] sm:$0xff] %vm909, %v808
    %1095 = vst [vmem:[%s1038 + $0x1e0] sm:$0xff] %v1024
    %1096 = vst.msk [vmem:[%s1038 + $0x1e8] sm:$0xff] %vm909, %v809
    %1097 = vst [vmem:[%s1038 + $0x1f0] sm:$0xff] %v1028
    %1098 = vst.msk [vmem:[%s1038 + $0x1f8] sm:$0xff] %vm909, %v810
    %1099 = vst [vmem:[%s1038 + $0x200] sm:$0xff] %v1032
    %1100 = vst.msk [vmem:[%s1038 + $0x208] sm:$0xff] %vm909, %v811
    %1101 = vst [vmem:[%s1038 + $0x210] sm:$0xff] %v1036
    %1102 = vst.msk [vmem:[%s1038 + $0x218] sm:$0xff] %vm909, %v812
    %1103 = vst [vmem:[#allocation2] sm:$0xff] 0
    %1104 = vst.msk [vmem:[#allocation2 + $0x8] sm:$0xff] %vm909, 0
    %1105 = vst [vmem:[#allocation2 + $0x120] sm:$0xff] 0
    %1106 = vst.msk [vmem:[#allocation2 + $0x128] sm:$0xff] %vm909, 0
    %s1107 = scalar_lea.vmem [#allocation2], 272
    %1108 = vst [vmem:[%s1107] sm:$0xff] 0
    %1109 = vst.msk [vmem:[%s1107 + $0x8] sm:$0xff] %vm909, 0
    %1110 = vst [vmem:[%s1107 + $0x120] sm:$0xff] 0
    %1111 = vst.msk [vmem:[%s1107 + $0x128] sm:$0xff] %vm909, 0
  $region21: #{double_conv.4} parent=0 // pred_fallthru
    _
  %v1112 = vld [vmem:[#allocation2] sm:$0xff]
  %v1113 = vld [vmem:[#allocation2 + $0x8] sm:$0xff]
  %v1114 = vld [vmem:[#allocation2 + $0x10] sm:$0xff]
  %v1115 = vld [vmem:[#allocation2 + $0x18] sm:$0xff]
  %v1116 = vld [vmem:[#allocation2 + $0x20] sm:$0xff]
  %v1117 = vld [vmem:[#allocation2 + $0x28] sm:$0xff]
  %v1118 = vld [vmem:[#allocation2 + $0x30] sm:$0xff]
  %v1119 = vld [vmem:[#allocation2 + $0x38] sm:$0xff]
  %v1120 = vld [vmem:[#allocation2 + $0x40] sm:$0xff]
  %v1121 = vld [vmem:[#allocation2 + $0x48] sm:$0xff]
  %v1122 = vld [vmem:[#allocation2 + $0x50] sm:$0xff]
  %v1123 = vld [vmem:[#allocation2 + $0x58] sm:$0xff]
  %v1124 = vld [vmem:[#allocation2 + $0x60] sm:$0xff]
  %v1125 = vld [vmem:[#allocation2 + $0x68] sm:$0xff]
  %v1126 = vld [vmem:[#allocation2 + $0x70] sm:$0xff]
  %v1127 = vld [vmem:[#allocation2 + $0x78] sm:$0xff]
  %v1128 = vld [vmem:[#allocation2 + $0x120] sm:$0xff]
  %v1129 = vld [vmem:[#allocation2 + $0x128] sm:$0xff]
  %v1130 = vld [vmem:[#allocation2 + $0x130] sm:$0xff]
  %v1131 = vld [vmem:[#allocation2 + $0x138] sm:$0xff]
  %v1132 = vld [vmem:[#allocation2 + $0x140] sm:$0xff]
  %v1133 = vld [vmem:[#allocation2 + $0x148] sm:$0xff]
  %v1134 = vld [vmem:[#allocation2 + $0x150] sm:$0xff]
  %v1135 = vld [vmem:[#allocation2 + $0x158] sm:$0xff]
  %v1136 = vld [vmem:[#allocation2 + $0x160] sm:$0xff]
  %v1137 = vld [vmem:[#allocation2 + $0x168] sm:$0xff]
  %v1138 = vld [vmem:[#allocation2 + $0x170] sm:$0xff]
  %v1139 = vld [vmem:[#allocation2 + $0x178] sm:$0xff]
  %v1140 = vld [vmem:[#allocation2 + $0x180] sm:$0xff]
  %v1141 = vld [vmem:[#allocation2 + $0x188] sm:$0xff]
  %v1142 = vld [vmem:[#allocation2 + $0x190] sm:$0xff]
  %v1143 = vld [vmem:[#allocation2 + $0x198] sm:$0xff]
  %v1144 = vld [vmem:[%s1] sm:$0xf]
  %v1145 = vld [vmem:[%s1 + $0x4] sm:$0xf]
  %v1146 = vld [vmem:[%s1 + $0x8] sm:$0xf]
  %v1147 = vld [vmem:[%s1 + $0xc] sm:$0xf]
  %v1148 = vld [vmem:[%s1 + $0x10] sm:$0xf]
  %v1149 = vld [vmem:[%s1 + $0x14] sm:$0xf]
  %v1150 = vld [vmem:[%s1 + $0x18] sm:$0xf]
  %v1151 = vld [vmem:[%s1 + $0x1c] sm:$0xf]
  %v1152 = vld [vmem:[%s1 + $0x20] sm:$0xf]
  %v1153 = vld [vmem:[%s1 + $0x24] sm:$0xf]
  %v1154 = vld [vmem:[%s1 + $0x28] sm:$0xf]
  %v1155 = vld [vmem:[%s1 + $0x2c] sm:$0xf]
  %v1156 = vld [vmem:[%s1 + $0x30] sm:$0xf]
  %v1157 = vld [vmem:[%s1 + $0x34] sm:$0xf]
  %v1158 = vld [vmem:[%s1 + $0x38] sm:$0xf]
  %v1159 = vld [vmem:[%s1 + $0x3c] sm:$0xf]
  %v1160 = vld [vmem:[%s1 + $0x40] sm:$0xf]
  %v1161 = vld [vmem:[%s1 + $0x44] sm:$0xf]
  %v1162 = vld [vmem:[%s1 + $0x48] sm:$0xf]
  %v1163 = vld [vmem:[%s1 + $0x4c] sm:$0xf]
  %v1164 = vld [vmem:[%s1 + $0x50] sm:$0xf]
  %v1165 = vld [vmem:[%s1 + $0x54] sm:$0xf]
  %v1166 = vld [vmem:[%s1 + $0x58] sm:$0xf]
  %v1167 = vld [vmem:[%s1 + $0x5c] sm:$0xf]
  %s1168 = scalar_lea.vmem [#allocation2], 16
  %v1169 = vld [vmem:[%s1168] sm:$0xff]
  %v1170 = vld [vmem:[%s1168 + $0x8] sm:$0xff]
  %v1171 = vld [vmem:[%s1168 + $0x10] sm:$0xff]
  %v1172 = vld [vmem:[%s1168 + $0x18] sm:$0xff]
  %v1173 = vld [vmem:[%s1168 + $0x20] sm:$0xff]
  %v1174 = vld [vmem:[%s1168 + $0x28] sm:$0xff]
  %v1175 = vld [vmem:[%s1168 + $0x30] sm:$0xff]
  %v1176 = vld [vmem:[%s1168 + $0x38] sm:$0xff]
  %v1177 = vld [vmem:[%s1168 + $0x40] sm:$0xff]
  %v1178 = vld [vmem:[%s1168 + $0x48] sm:$0xff]
  %v1179 = vld [vmem:[%s1168 + $0x50] sm:$0xff]
  %v1180 = vld [vmem:[%s1168 + $0x58] sm:$0xff]
  %v1181 = vld [vmem:[%s1168 + $0x60] sm:$0xff]
  %v1182 = vld [vmem:[%s1168 + $0x68] sm:$0xff]
  %v1183 = vld [vmem:[%s1168 + $0x70] sm:$0xff]
  %v1184 = vld [vmem:[%s1168 + $0x78] sm:$0xff]
  %v1185 = vld [vmem:[%s1168 + $0x120] sm:$0xff]
  %v1186 = vld [vmem:[%s1168 + $0x128] sm:$0xff]
  %v1187 = vld [vmem:[%s1168 + $0x130] sm:$0xff]
  %v1188 = vld [vmem:[%s1168 + $0x138] sm:$0xff]
  %v1189 = vld [vmem:[%s1168 + $0x140] sm:$0xff]
  %v1190 = vld [vmem:[%s1168 + $0x148] sm:$0xff]
  %v1191 = vld [vmem:[%s1168 + $0x150] sm:$0xff]
  %v1192 = vld [vmem:[%s1168 + $0x158] sm:$0xff]
  %v1193 = vld [vmem:[%s1168 + $0x160] sm:$0xff]
  %v1194 = vld [vmem:[%s1168 + $0x168] sm:$0xff]
  %v1195 = vld [vmem:[%s1168 + $0x170] sm:$0xff]
  %v1196 = vld [vmem:[%s1168 + $0x178] sm:$0xff]
  %v1197 = vld [vmem:[%s1168 + $0x180] sm:$0xff]
  %v1198 = vld [vmem:[%s1168 + $0x188] sm:$0xff]
  %v1199 = vld [vmem:[%s1168 + $0x190] sm:$0xff]
  %v1200 = vld [vmem:[%s1168 + $0x198] sm:$0xff]
  %s1201 = scalar_lea.vmem %s1, 96
  %v1202 = vld [vmem:[%s1201] sm:$0xf]
  %v1203 = vld [vmem:[%s1201 + $0x4] sm:$0xf]
  %v1204 = vld [vmem:[%s1201 + $0x8] sm:$0xf]
  %v1205 = vld [vmem:[%s1201 + $0xc] sm:$0xf]
  %v1206 = vld [vmem:[%s1201 + $0x10] sm:$0xf]
  %v1207 = vld [vmem:[%s1201 + $0x14] sm:$0xf]
  %v1208 = vld [vmem:[%s1201 + $0x18] sm:$0xf]
  %v1209 = vld [vmem:[%s1201 + $0x1c] sm:$0xf]
  %v1210 = vld [vmem:[%s1201 + $0x20] sm:$0xf]
  %v1211 = vld [vmem:[%s1201 + $0x24] sm:$0xf]
  %v1212 = vld [vmem:[%s1201 + $0x28] sm:$0xf]
  %v1213 = vld [vmem:[%s1201 + $0x2c] sm:$0xf]
  %v1214 = vld [vmem:[%s1201 + $0x30] sm:$0xf]
  %v1215 = vld [vmem:[%s1201 + $0x34] sm:$0xf]
  %v1216 = vld [vmem:[%s1201 + $0x38] sm:$0xf]
  %v1217 = vld [vmem:[%s1201 + $0x3c] sm:$0xf]
  %v1218 = vld [vmem:[%s1201 + $0x40] sm:$0xf]
  %v1219 = vld [vmem:[%s1201 + $0x44] sm:$0xf]
  %v1220 = vld [vmem:[%s1201 + $0x48] sm:$0xf]
  %v1221 = vld [vmem:[%s1201 + $0x4c] sm:$0xf]
  %v1222 = vld [vmem:[%s1201 + $0x50] sm:$0xf]
  %v1223 = vld [vmem:[%s1201 + $0x54] sm:$0xf]
  %v1224 = vld [vmem:[%s1201 + $0x58] sm:$0xf]
  %v1225 = vld [vmem:[%s1201 + $0x5c] sm:$0xf]
  %v1250 = vunpack.c.l.b16 %v1202
  %v1251 = vunpack.c.l.b16 %v1203
  %v1252 = vunpack.c.l.b16 %v1204
  %v1253 = vunpack.c.l.b16 %v1205
  %v1254 = vunpack.c.l.b16 %v1206
  %v1255 = vunpack.c.l.b16 %v1207
  %v1256 = vunpack.c.l.b16 %v1208
  %v1257 = vunpack.c.l.b16 %v1209
  %v1258 = vunpack.c.l.b16 %v1210
  %v1259 = vunpack.c.l.b16 %v1211
  %v1260 = vunpack.c.l.b16 %v1212
  %v1261 = vunpack.c.l.b16 %v1213
  %v1262 = vunpack.c.l.b16 %v1214
  %v1263 = vunpack.c.l.b16 %v1215
  %v1264 = vunpack.c.l.b16 %v1216
  %v1265 = vunpack.c.l.b16 %v1217
  %v1266 = vunpack.c.l.b16 %v1218
  %v1267 = vunpack.c.l.b16 %v1219
  %v1268 = vunpack.c.l.b16 %v1220
  %v1269 = vunpack.c.l.b16 %v1221
  %v1270 = vunpack.c.l.b16 %v1222
  %v1271 = vunpack.c.l.b16 %v1223
  %v1272 = vunpack.c.l.b16 %v1224
  %v1273 = vunpack.c.l.b16 %v1225
  %v1274 = vpack.c.b16 %v1251, %v1250
  %v1275 = vpack.c.b16 %v1253, %v1252
  %v1276 = vpack.c.b16 %v1255, %v1254
  %v1277 = vpack.c.b16 %v1257, %v1256
  %v1278 = vpack.c.b16 %v1259, %v1258
  %v1279 = vpack.c.b16 %v1261, %v1260
  %v1280 = vpack.c.b16 %v1263, %v1262
  %v1281 = vpack.c.b16 %v1265, %v1264
  %v1282 = vpack.c.b16 %v1267, %v1266
  %v1283 = vpack.c.b16 %v1269, %v1268
  %v1284 = vpack.c.b16 %v1271, %v1270
  %v1285 = vpack.c.b16 %v1273, %v1272
  %vm1298 = vcmask 523264
  %v1300 = vsel %vm1298, %v1170, 0
  %v1303 = vsel %vm1298, %v1172, 0
  %v1306 = vsel %vm1298, %v1174, 0
  %v1309 = vsel %vm1298, %v1176, 0
  %v1312 = vsel %vm1298, %v1178, 0
  %v1315 = vsel %vm1298, %v1180, 0
  %v1318 = vsel %vm1298, %v1182, 0
  %v1321 = vsel %vm1298, %v1184, 0
  %v1324 = vsel %vm1298, %v1186, 0
  %v1327 = vsel %vm1298, %v1188, 0
  %v1330 = vsel %vm1298, %v1190, 0
  %v1333 = vsel %vm1298, %v1192, 0
  %v1336 = vsel %vm1298, %v1194, 0
  %v1339 = vsel %vm1298, %v1196, 0
  %v1342 = vsel %vm1298, %v1198, 0
  %v1345 = vsel %vm1298, %v1200, 0
  %1347 = vmatprep.subr.bf16.mxu0 0
  %1348 = vmatpush1.bf16.msra.mxu0 %v1274
  %1349 = vmatprep.subr.bf16.mxu0 0
  %1350 = vmatpush1.bf16.msra.mxu0 %v1275
  %1351 = vmatprep.subr.bf16.mxu0 0
  %1352 = vmatpush1.bf16.msra.mxu0 %v1276
  %1353 = vmatprep.subr.bf16.mxu0 0
  %1354 = vmatpush1.bf16.msra.mxu0 %v1277
  %1355 = vmatprep.subr.bf16.mxu0 0
  %1356 = vmatpush1.bf16.msra.mxu0 %v1278
  %1357 = vmatprep.subr.bf16.mxu0 0
  %1358 = vmatpush1.bf16.msra.mxu0 %v1279
  %1359 = vmatprep.subr.bf16.mxu0 0
  %1360 = vmatpush1.bf16.msra.mxu0 %v1280
  %1361 = vmatprep.subr.bf16.mxu0 0
  %1362 = vmatpush1.bf16.msra.mxu0 %v1281
  %1363 = vmatprep.subr.bf16.mxu0 0
  %1364 = vmatpush1.bf16.msra.mxu0 %v1282
  %1365 = vmatprep.subr.bf16.mxu0 0
  %1366 = vmatpush1.bf16.msra.mxu0 %v1283
  %1367 = vmatprep.subr.bf16.mxu0 0
  %1368 = vmatpush1.bf16.msra.mxu0 %v1284
  %1369 = vmatprep.subr.bf16.mxu0 0
  %1370 = vmatpush1.bf16.msra.mxu0 %v1285
  %1371 = vmatprep.subr.bf16.mxu0 0
  %1372 = vmatpush1.bf16.msra.mxu0 0
  %1373 = vmatprep.subr.bf16.mxu0 0
  %1374 = vmatpush1.bf16.msra.mxu0 0
  %1375 = vmatprep.subr.bf16.mxu0 0
  %1376 = vmatpush1.bf16.msra.mxu0 0
  %1377 = vmatprep.subr.bf16.mxu0 0
  %1378 = vmatpush1.bf16.msra.mxu0 0
  %1379 = vmatprep.mubr.bf16.mxu0 %v1300
  %1380 = vmatmul.mubr.bf16.gmra.mrb[0].mxu0 %v1169
  %v1381 = vpop.f32.mrb[0].mxu0
  %v1382 = vadd.f32 0.0, %v1381
  %v1383 = vpop.f32.mrb[0].mxu0
  %v1384 = vpop.f32.mrb[0].mxu0
  %v1385 = vadd.f32 0.0, %v1384
  %v1386 = vpop.f32.mrb[0].mxu0
  %1387 = vmatprep.mubr.bf16.mxu0 %v1303
  %1388 = vmatmul.mubr.bf16.gmra.mrb[0].mxu0 %v1171
  %v1389 = vpop.f32.mrb[0].mxu0
  %v1390 = vadd.f32 0.0, %v1389
  %v1391 = vpop.f32.mrb[0].mxu0
  %v1392 = vpop.f32.mrb[0].mxu0
  %v1393 = vadd.f32 0.0, %v1392
  %v1394 = vpop.f32.mrb[0].mxu0
  %1395 = vmatprep.mubr.bf16.mxu0 %v1306
  %1396 = vmatmul.mubr.bf16.gmra.mrb[0].mxu0 %v1173
  %v1397 = vpop.f32.mrb[0].mxu0
  %v1398 = vadd.f32 0.0, %v1397
  %v1399 = vpop.f32.mrb[0].mxu0
  %v1400 = vpop.f32.mrb[0].mxu0
  %v1401 = vadd.f32 0.0, %v1400
  %v1402 = vpop.f32.mrb[0].mxu0
  %1403 = vmatprep.mubr.bf16.mxu0 %v1309
  %1404 = vmatmul.mubr.bf16.gmra.mrb[0].mxu0 %v1175
  %v1405 = vpop.f32.mrb[0].mxu0
  %v1406 = vadd.f32 0.0, %v1405
  %v1407 = vpop.f32.mrb[0].mxu0
  %v1408 = vpop.f32.mrb[0].mxu0
  %v1409 = vadd.f32 0.0, %v1408
  %v1410 = vpop.f32.mrb[0].mxu0
  %1411 = vmatprep.mubr.bf16.mxu0 %v1312
  %1412 = vmatmul.mubr.bf16.gmra.mrb[0].mxu0 %v1177
  %v1413 = vpop.f32.mrb[0].mxu0
  %v1414 = vadd.f32 0.0, %v1413
  %v1415 = vpop.f32.mrb[0].mxu0
  %v1416 = vpop.f32.mrb[0].mxu0
  %v1417 = vadd.f32 0.0, %v1416
  %v1418 = vpop.f32.mrb[0].mxu0
  %1419 = vmatprep.mubr.bf16.mxu0 %v1315
  %1420 = vmatmul.mubr.bf16.gmra.mrb[0].mxu0 %v1179
  %v1421 = vpop.f32.mrb[0].mxu0
  %v1422 = vadd.f32 0.0, %v1421
  %v1423 = vpop.f32.mrb[0].mxu0
  %v1424 = vpop.f32.mrb[0].mxu0
  %v1425 = vadd.f32 0.0, %v1424
  %v1426 = vpop.f32.mrb[0].mxu0
  %1427 = vmatprep.mubr.bf16.mxu0 %v1318
  %1428 = vmatmul.mubr.bf16.gmra.mrb[0].mxu0 %v1181
  %v1429 = vpop.f32.mrb[0].mxu0
  %v1430 = vadd.f32 0.0, %v1429
  %v1431 = vpop.f32.mrb[0].mxu0
  %v1432 = vpop.f32.mrb[0].mxu0
  %v1433 = vadd.f32 0.0, %v1432
  %v1434 = vpop.f32.mrb[0].mxu0
  %1435 = vmatprep.mubr.bf16.mxu0 %v1321
  %1436 = vmatmul.mubr.bf16.gmra.mrb[0].mxu0 %v1183
  %v1437 = vpop.f32.mrb[0].mxu0
  %v1438 = vadd.f32 0.0, %v1437
  %v1439 = vpop.f32.mrb[0].mxu0
  %v1440 = vpop.f32.mrb[0].mxu0
  %v1441 = vadd.f32 0.0, %v1440
  %v1442 = vpop.f32.mrb[0].mxu0
  %1443 = vmatprep.mubr.bf16.mxu0 %v1324
  %1444 = vmatmul.mubr.bf16.gmra.mrb[0].mxu0 %v1185
  %v1445 = vpop.f32.mrb[0].mxu0
  %v1446 = vadd.f32 0.0, %v1445
  %v1447 = vpop.f32.mrb[0].mxu0
  %v1448 = vpop.f32.mrb[0].mxu0
  %v1449 = vadd.f32 0.0, %v1448
  %v1450 = vpop.f32.mrb[0].mxu0
  %1451 = vmatprep.mubr.bf16.mxu0 %v1327
  %1452 = vmatmul.mubr.bf16.gmra.mrb[0].mxu0 %v1187
  %v1453 = vpop.f32.mrb[0].mxu0
  %v1454 = vadd.f32 0.0, %v1453
  %v1455 = vpop.f32.mrb[0].mxu0
  %v1456 = vpop.f32.mrb[0].mxu0
  %v1457 = vadd.f32 0.0, %v1456
  %v1458 = vpop.f32.mrb[0].mxu0
  %1459 = vmatprep.mubr.bf16.mxu0 %v1330
  %1460 = vmatmul.mubr.bf16.gmra.mrb[0].mxu0 %v1189
  %v1461 = vpop.f32.mrb[0].mxu0
  %v1462 = vadd.f32 0.0, %v1461
  %v1463 = vpop.f32.mrb[0].mxu0
  %v1464 = vpop.f32.mrb[0].mxu0
  %v1465 = vadd.f32 0.0, %v1464
  %v1466 = vpop.f32.mrb[0].mxu0
  %1467 = vmatprep.mubr.bf16.mxu0 %v1333
  %1468 = vmatmul.mubr.bf16.gmra.mrb[0].mxu0 %v1191
  %v1469 = vpop.f32.mrb[0].mxu0
  %v1470 = vadd.f32 0.0, %v1469
  %v1471 = vpop.f32.mrb[0].mxu0
  %v1472 = vpop.f32.mrb[0].mxu0
  %v1473 = vadd.f32 0.0, %v1472
  %v1474 = vpop.f32.mrb[0].mxu0
  %1475 = vmatprep.mubr.bf16.mxu0 %v1336
  %1476 = vmatmul.mubr.bf16.gmra.mrb[0].mxu0 %v1193
  %v1477 = vpop.f32.mrb[0].mxu0
  %v1478 = vadd.f32 0.0, %v1477
  %v1479 = vpop.f32.mrb[0].mxu0
  %v1480 = vpop.f32.mrb[0].mxu0
  %v1481 = vadd.f32 0.0, %v1480
  %v1482 = vpop.f32.mrb[0].mxu0
  %1483 = vmatprep.mubr.bf16.mxu0 %v1339
  %1484 = vmatmul.mubr.bf16.gmra.mrb[0].mxu0 %v1195
  %v1485 = vpop.f32.mrb[0].mxu0
  %v1486 = vadd.f32 0.0, %v1485
  %v1487 = vpop.f32.mrb[0].mxu0
  %v1488 = vpop.f32.mrb[0].mxu0
  %v1489 = vadd.f32 0.0, %v1488
  %v1490 = vpop.f32.mrb[0].mxu0
  %1491 = vmatprep.mubr.bf16.mxu0 %v1342
  %1492 = vmatmul.mubr.bf16.gmra.mrb[0].mxu0 %v1197
  %v1493 = vpop.f32.mrb[0].mxu0
  %v1494 = vadd.f32 0.0, %v1493
  %v1495 = vpop.f32.mrb[0].mxu0
  %v1496 = vpop.f32.mrb[0].mxu0
  %v1497 = vadd.f32 0.0, %v1496
  %v1498 = vpop.f32.mrb[0].mxu0
  %1499 = vmatprep.mubr.bf16.mxu0 %v1345
  %1500 = vmatmul.mubr.bf16.gmra.mrb[0].mxu0 %v1199
  %v1501 = vpop.f32.mrb[0].mxu0
  %v1502 = vadd.f32 0.0, %v1501
  %v1503 = vpop.f32.mrb[0].mxu0
  %v1504 = vpop.f32.mrb[0].mxu0
  %v1505 = vadd.f32 0.0, %v1504
  %v1506 = vpop.f32.mrb[0].mxu0
  %1507 = vdwg.mxu0
  %v1532 = vunpack.c.l.b16 %v1144
  %v1533 = vunpack.c.l.b16 %v1145
  %v1534 = vunpack.c.l.b16 %v1146
  %v1535 = vunpack.c.l.b16 %v1147
  %v1536 = vunpack.c.l.b16 %v1148
  %v1537 = vunpack.c.l.b16 %v1149
  %v1538 = vunpack.c.l.b16 %v1150
  %v1539 = vunpack.c.l.b16 %v1151
  %v1540 = vunpack.c.l.b16 %v1152
  %v1541 = vunpack.c.l.b16 %v1153
  %v1542 = vunpack.c.l.b16 %v1154
  %v1543 = vunpack.c.l.b16 %v1155
  %v1544 = vunpack.c.l.b16 %v1156
  %v1545 = vunpack.c.l.b16 %v1157
  %v1546 = vunpack.c.l.b16 %v1158
  %v1547 = vunpack.c.l.b16 %v1159
  %v1548 = vunpack.c.l.b16 %v1160
  %v1549 = vunpack.c.l.b16 %v1161
  %v1550 = vunpack.c.l.b16 %v1162
  %v1551 = vunpack.c.l.b16 %v1163
  %v1552 = vunpack.c.l.b16 %v1164
  %v1553 = vunpack.c.l.b16 %v1165
  %v1554 = vunpack.c.l.b16 %v1166
  %v1555 = vunpack.c.l.b16 %v1167
  %v1556 = vpack.c.b16 %v1533, %v1532
  %v1557 = vpack.c.b16 %v1535, %v1534
  %v1558 = vpack.c.b16 %v1537, %v1536
  %v1559 = vpack.c.b16 %v1539, %v1538
  %v1560 = vpack.c.b16 %v1541, %v1540
  %v1561 = vpack.c.b16 %v1543, %v1542
  %v1562 = vpack.c.b16 %v1545, %v1544
  %v1563 = vpack.c.b16 %v1547, %v1546
  %v1564 = vpack.c.b16 %v1549, %v1548
  %v1565 = vpack.c.b16 %v1551, %v1550
  %v1566 = vpack.c.b16 %v1553, %v1552
  %v1567 = vpack.c.b16 %v1555, %v1554
  %v1581 = vsel %vm1298, %v1113, 0
  %v1584 = vsel %vm1298, %v1115, 0
  %v1587 = vsel %vm1298, %v1117, 0
  %v1590 = vsel %vm1298, %v1119, 0
  %v1593 = vsel %vm1298, %v1121, 0
  %v1596 = vsel %vm1298, %v1123, 0
  %v1599 = vsel %vm1298, %v1125, 0
  %v1602 = vsel %vm1298, %v1127, 0
  %v1605 = vsel %vm1298, %v1129, 0
  %v1608 = vsel %vm1298, %v1131, 0
  %v1611 = vsel %vm1298, %v1133, 0
  %v1614 = vsel %vm1298, %v1135, 0
  %v1617 = vsel %vm1298, %v1137, 0
  %v1620 = vsel %vm1298, %v1139, 0
  %v1623 = vsel %vm1298, %v1141, 0
  %v1626 = vsel %vm1298, %v1143, 0
  %1628 = vmatprep.subr.bf16.mxu0 0
  %1629 = vmatpush1.bf16.msra.mxu0 %v1556
  %1630 = vmatprep.subr.bf16.mxu0 0
  %1631 = vmatpush1.bf16.msra.mxu0 %v1557
  %1632 = vmatprep.subr.bf16.mxu0 0
  %1633 = vmatpush1.bf16.msra.mxu0 %v1558
  %1634 = vmatprep.subr.bf16.mxu0 0
  %1635 = vmatpush1.bf16.msra.mxu0 %v1559
  %1636 = vmatprep.subr.bf16.mxu0 0
  %1637 = vmatpush1.bf16.msra.mxu0 %v1560
  %1638 = vmatprep.subr.bf16.mxu0 0
  %1639 = vmatpush1.bf16.msra.mxu0 %v1561
  %1640 = vmatprep.subr.bf16.mxu0 0
  %1641 = vmatpush1.bf16.msra.mxu0 %v1562
  %1642 = vmatprep.subr.bf16.mxu0 0
  %1643 = vmatpush1.bf16.msra.mxu0 %v1563
  %1644 = vmatprep.subr.bf16.mxu0 0
  %1645 = vmatpush1.bf16.msra.mxu0 %v1564
  %1646 = vmatprep.subr.bf16.mxu0 0
  %1647 = vmatpush1.bf16.msra.mxu0 %v1565
  %1648 = vmatprep.subr.bf16.mxu0 0
  %1649 = vmatpush1.bf16.msra.mxu0 %v1566
  %1650 = vmatprep.subr.bf16.mxu0 0
  %1651 = vmatpush1.bf16.msra.mxu0 %v1567
  %1652 = vmatprep.subr.bf16.mxu0 0
  %1653 = vmatpush1.bf16.msra.mxu0 0
  %1654 = vmatprep.subr.bf16.mxu0 0
  %1655 = vmatpush1.bf16.msra.mxu0 0
  %1656 = vmatprep.subr.bf16.mxu0 0
  %1657 = vmatpush1.bf16.msra.mxu0 0
  %1658 = vmatprep.subr.bf16.mxu0 0
  %1659 = vmatpush1.bf16.msra.mxu0 0
  %1660 = vmatprep.mubr.bf16.mxu0 %v1581
  %1661 = vmatmul.mubr.bf16.gmra.mrb[0].mxu0 %v1112
  %v1662 = vpop.f32.mrb[0].mxu0
  %v1663 = vadd.f32 %v1382, %v1662
  %v1664 = vpop.f32.mrb[0].mxu0
  %v1665 = vpop.f32.mrb[0].mxu0
  %v1666 = vadd.f32 %v1385, %v1665
  %v1667 = vpop.f32.mrb[0].mxu0
  %1668 = vmatprep.mubr.bf16.mxu0 %v1584
  %1669 = vmatmul.mubr.bf16.gmra.mrb[0].mxu0 %v1114
  %v1670 = vpop.f32.mrb[0].mxu0
  %v1671 = vadd.f32 %v1390, %v1670
  %v1672 = vpop.f32.mrb[0].mxu0
  %v1673 = vpop.f32.mrb[0].mxu0
  %v1674 = vadd.f32 %v1393, %v1673
  %v1675 = vpop.f32.mrb[0].mxu0
  %1676 = vmatprep.mubr.bf16.mxu0 %v1587
  %1677 = vmatmul.mubr.bf16.gmra.mrb[0].mxu0 %v1116
  %v1678 = vpop.f32.mrb[0].mxu0
  %v1679 = vadd.f32 %v1398, %v1678
  %v1680 = vpop.f32.mrb[0].mxu0
  %v1681 = vpop.f32.mrb[0].mxu0
  %v1682 = vadd.f32 %v1401, %v1681
  %v1683 = vpop.f32.mrb[0].mxu0
  %1684 = vmatprep.mubr.bf16.mxu0 %v1590
  %1685 = vmatmul.mubr.bf16.gmra.mrb[0].mxu0 %v1118
  %v1686 = vpop.f32.mrb[0].mxu0
  %v1687 = vadd.f32 %v1406, %v1686
  %v1688 = vpop.f32.mrb[0].mxu0
  %v1689 = vpop.f32.mrb[0].mxu0
  %v1690 = vadd.f32 %v1409, %v1689
  %v1691 = vpop.f32.mrb[0].mxu0
  %1692 = vmatprep.mubr.bf16.mxu0 %v1593
  %1693 = vmatmul.mubr.bf16.gmra.mrb[0].mxu0 %v1120
  %v1694 = vpop.f32.mrb[0].mxu0
  %v1695 = vadd.f32 %v1414, %v1694
  %v1696 = vpop.f32.mrb[0].mxu0
  %v1697 = vpop.f32.mrb[0].mxu0
  %v1698 = vadd.f32 %v1417, %v1697
  %v1699 = vpop.f32.mrb[0].mxu0
  %1700 = vmatprep.mubr.bf16.mxu0 %v1596
  %1701 = vmatmul.mubr.bf16.gmra.mrb[0].mxu0 %v1122
  %v1702 = vpop.f32.mrb[0].mxu0
  %v1703 = vadd.f32 %v1422, %v1702
  %v1704 = vpop.f32.mrb[0].mxu0
  %v1705 = vpop.f32.mrb[0].mxu0
  %v1706 = vadd.f32 %v1425, %v1705
  %v1707 = vpop.f32.mrb[0].mxu0
  %1708 = vmatprep.mubr.bf16.mxu0 %v1599
  %1709 = vmatmul.mubr.bf16.gmra.mrb[0].mxu0 %v1124
  %v1710 = vpop.f32.mrb[0].mxu0
  %v1711 = vadd.f32 %v1430, %v1710
  %v1712 = vpop.f32.mrb[0].mxu0
  %v1713 = vpop.f32.mrb[0].mxu0
  %v1714 = vadd.f32 %v1433, %v1713
  %v1715 = vpop.f32.mrb[0].mxu0
  %1716 = vmatprep.mubr.bf16.mxu0 %v1602
  %1717 = vmatmul.mubr.bf16.gmra.mrb[0].mxu0 %v1126
  %v1718 = vpop.f32.mrb[0].mxu0
  %v1719 = vadd.f32 %v1438, %v1718
  %v1720 = vpop.f32.mrb[0].mxu0
  %v1721 = vpop.f32.mrb[0].mxu0
  %v1722 = vadd.f32 %v1441, %v1721
  %v1723 = vpop.f32.mrb[0].mxu0
  %1724 = vmatprep.mubr.bf16.mxu0 %v1605
  %1725 = vmatmul.mubr.bf16.gmra.mrb[0].mxu0 %v1128
  %v1726 = vpop.f32.mrb[0].mxu0
  %v1727 = vadd.f32 %v1446, %v1726
  %v1728 = vpop.f32.mrb[0].mxu0
  %v1729 = vpop.f32.mrb[0].mxu0
  %v1730 = vadd.f32 %v1449, %v1729
  %v1731 = vpop.f32.mrb[0].mxu0
  %1732 = vmatprep.mubr.bf16.mxu0 %v1608
  %1733 = vmatmul.mubr.bf16.gmra.mrb[0].mxu0 %v1130
  %v1734 = vpop.f32.mrb[0].mxu0
  %v1735 = vadd.f32 %v1454, %v1734
  %v1736 = vpop.f32.mrb[0].mxu0
  %v1737 = vpop.f32.mrb[0].mxu0
  %v1738 = vadd.f32 %v1457, %v1737
  %v1739 = vpop.f32.mrb[0].mxu0
  %1740 = vmatprep.mubr.bf16.mxu0 %v1611
  %1741 = vmatmul.mubr.bf16.gmra.mrb[0].mxu0 %v1132
  %v1742 = vpop.f32.mrb[0].mxu0
  %v1743 = vadd.f32 %v1462, %v1742
  %v1744 = vpop.f32.mrb[0].mxu0
  %v1745 = vpop.f32.mrb[0].mxu0
  %v1746 = vadd.f32 %v1465, %v1745
  %v1747 = vpop.f32.mrb[0].mxu0
  %1748 = vmatprep.mubr.bf16.mxu0 %v1614
  %1749 = vmatmul.mubr.bf16.gmra.mrb[0].mxu0 %v1134
  %v1750 = vpop.f32.mrb[0].mxu0
  %v1751 = vadd.f32 %v1470, %v1750
  %v1752 = vpop.f32.mrb[0].mxu0
  %v1753 = vpop.f32.mrb[0].mxu0
  %v1754 = vadd.f32 %v1473, %v1753
  %v1755 = vpop.f32.mrb[0].mxu0
  %1756 = vmatprep.mubr.bf16.mxu0 %v1617
  %1757 = vmatmul.mubr.bf16.gmra.mrb[0].mxu0 %v1136
  %v1758 = vpop.f32.mrb[0].mxu0
  %v1759 = vadd.f32 %v1478, %v1758
  %v1760 = vpop.f32.mrb[0].mxu0
  %v1761 = vpop.f32.mrb[0].mxu0
  %v1762 = vadd.f32 %v1481, %v1761
  %v1763 = vpop.f32.mrb[0].mxu0
  %1764 = vmatprep.mubr.bf16.mxu0 %v1620
  %1765 = vmatmul.mubr.bf16.gmra.mrb[0].mxu0 %v1138
  %v1766 = vpop.f32.mrb[0].mxu0
  %v1767 = vadd.f32 %v1486, %v1766
  %v1768 = vpop.f32.mrb[0].mxu0
  %v1769 = vpop.f32.mrb[0].mxu0
  %v1770 = vadd.f32 %v1489, %v1769
  %v1771 = vpop.f32.mrb[0].mxu0
  %1772 = vmatprep.mubr.bf16.mxu0 %v1623
  %1773 = vmatmul.mubr.bf16.gmra.mrb[0].mxu0 %v1140
  %v1774 = vpop.f32.mrb[0].mxu0
  %v1775 = vadd.f32 %v1494, %v1774
  %v1776 = vpop.f32.mrb[0].mxu0
  %v1777 = vpop.f32.mrb[0].mxu0
  %v1778 = vadd.f32 %v1497, %v1777
  %v1779 = vpop.f32.mrb[0].mxu0
  %1780 = vmatprep.mubr.bf16.mxu0 %v1626
  %1781 = vmatmul.mubr.bf16.gmra.mrb[0].mxu0 %v1142
  %v1782 = vpop.f32.mrb[0].mxu0
  %v1783 = vadd.f32 %v1502, %v1782
  %v1784 = vpop.f32.mrb[0].mxu0
  %v1785 = vpop.f32.mrb[0].mxu0
  %v1786 = vadd.f32 %v1505, %v1785
  %v1787 = vpop.f32.mrb[0].mxu0
  %1788 = vdwg.mxu0
  %s1789 = scalar_lea.vmem [#allocation2], 32
  %v1790 = vld [vmem:[%s1789] sm:$0xff]
  %v1791 = vld [vmem:[%s1789 + $0x8] sm:$0xff]
  %v1792 = vld [vmem:[%s1789 + $0x10] sm:$0xff]
  %v1793 = vld [vmem:[%s1789 + $0x18] sm:$0xff]
  %v1794 = vld [vmem:[%s1789 + $0x20] sm:$0xff]
  %v1795 = vld [vmem:[%s1789 + $0x28] sm:$0xff]
  %v1796 = vld [vmem:[%s1789 + $0x30] sm:$0xff]
  %v1797 = vld [vmem:[%s1789 + $0x38] sm:$0xff]
  %v1798 = vld [vmem:[%s1789 + $0x40] sm:$0xff]
  %v1799 = vld [vmem:[%s1789 + $0x48] sm:$0xff]
  %v1800 = vld [vmem:[%s1789 + $0x50] sm:$0xff]
  %v1801 = vld [vmem:[%s1789 + $0x58] sm:$0xff]
  %v1802 = vld [vmem:[%s1789 + $0x60] sm:$0xff]
  %v1803 = vld [vmem:[%s1789 + $0x68] sm:$0xff]
  %v1804 = vld [vmem:[%s1789 + $0x70] sm:$0xff]
  %v1805 = vld [vmem:[%s1789 + $0x78] sm:$0xff]
  %v1806 = vld [vmem:[%s1789 + $0x120] sm:$0xff]
  %v1807 = vld [vmem:[%s1789 + $0x128] sm:$0xff]
  %v1808 = vld [vmem:[%s1789 + $0x130] sm:$0xff]
  %v1809 = vld [vmem:[%s1789 + $0x138] sm:$0xff]
  %v1810 = vld [vmem:[%s1789 + $0x140] sm:$0xff]
  %v1811 = vld [vmem:[%s1789 + $0x148] sm:$0xff]
  %v1812 = vld [vmem:[%s1789 + $0x150] sm:$0xff]
  %v1813 = vld [vmem:[%s1789 + $0x158] sm:$0xff]
  %v1814 = vld [vmem:[%s1789 + $0x160] sm:$0xff]
  %v1815 = vld [vmem:[%s1789 + $0x168] sm:$0xff]
  %v1816 = vld [vmem:[%s1789 + $0x170] sm:$0xff]
  %v1817 = vld [vmem:[%s1789 + $0x178] sm:$0xff]
  %v1818 = vld [vmem:[%s1789 + $0x180] sm:$0xff]
  %v1819 = vld [vmem:[%s1789 + $0x188] sm:$0xff]
  %v1820 = vld [vmem:[%s1789 + $0x190] sm:$0xff]
  %v1821 = vld [vmem:[%s1789 + $0x198] sm:$0xff]
  %s1822 = scalar_lea.vmem %s1, 192
  %v1823 = vld [vmem:[%s1822] sm:$0xf]
  %v1824 = vld [vmem:[%s1822 + $0x4] sm:$0xf]
  %v1825 = vld [vmem:[%s1822 + $0x8] sm:$0xf]
  %v1826 = vld [vmem:[%s1822 + $0xc] sm:$0xf]
  %v1827 = vld [vmem:[%s1822 + $0x10] sm:$0xf]
  %v1828 = vld [vmem:[%s1822 + $0x14] sm:$0xf]
  %v1829 = vld [vmem:[%s1822 + $0x18] sm:$0xf]
  %v1830 = vld [vmem:[%s1822 + $0x1c] sm:$0xf]
  %v1831 = vld [vmem:[%s1822 + $0x20] sm:$0xf]
  %v1832 = vld [vmem:[%s1822 + $0x24] sm:$0xf]
  %v1833 = vld [vmem:[%s1822 + $0x28] sm:$0xf]
  %v1834 = vld [vmem:[%s1822 + $0x2c] sm:$0xf]
  %v1835 = vld [vmem:[%s1822 + $0x30] sm:$0xf]
  %v1836 = vld [vmem:[%s1822 + $0x34] sm:$0xf]
  %v1837 = vld [vmem:[%s1822 + $0x38] sm:$0xf]
  %v1838 = vld [vmem:[%s1822 + $0x3c] sm:$0xf]
  %v1839 = vld [vmem:[%s1822 + $0x40] sm:$0xf]
  %v1840 = vld [vmem:[%s1822 + $0x44] sm:$0xf]
  %v1841 = vld [vmem:[%s1822 + $0x48] sm:$0xf]
  %v1842 = vld [vmem:[%s1822 + $0x4c] sm:$0xf]
  %v1843 = vld [vmem:[%s1822 + $0x50] sm:$0xf]
  %v1844 = vld [vmem:[%s1822 + $0x54] sm:$0xf]
  %v1845 = vld [vmem:[%s1822 + $0x58] sm:$0xf]
  %v1846 = vld [vmem:[%s1822 + $0x5c] sm:$0xf]
  %v1871 = vunpack.c.l.b16 %v1823
  %v1872 = vunpack.c.l.b16 %v1824
  %v1873 = vunpack.c.l.b16 %v1825
  %v1874 = vunpack.c.l.b16 %v1826
  %v1875 = vunpack.c.l.b16 %v1827
  %v1876 = vunpack.c.l.b16 %v1828
  %v1877 = vunpack.c.l.b16 %v1829
  %v1878 = vunpack.c.l.b16 %v1830
  %v1879 = vunpack.c.l.b16 %v1831
  %v1880 = vunpack.c.l.b16 %v1832
  %v1881 = vunpack.c.l.b16 %v1833
  %v1882 = vunpack.c.l.b16 %v1834
  %v1883 = vunpack.c.l.b16 %v1835
  %v1884 = vunpack.c.l.b16 %v1836
  %v1885 = vunpack.c.l.b16 %v1837
  %v1886 = vunpack.c.l.b16 %v1838
  %v1887 = vunpack.c.l.b16 %v1839
  %v1888 = vunpack.c.l.b16 %v1840
  %v1889 = vunpack.c.l.b16 %v1841
  %v1890 = vunpack.c.l.b16 %v1842
  %v1891 = vunpack.c.l.b16 %v1843
  %v1892 = vunpack.c.l.b16 %v1844
  %v1893 = vunpack.c.l.b16 %v1845
  %v1894 = vunpack.c.l.b16 %v1846
  %v1895 = vpack.c.b16 %v1872, %v1871
  %v1896 = vpack.c.b16 %v1874, %v1873
  %v1897 = vpack.c.b16 %v1876, %v1875
  %v1898 = vpack.c.b16 %v1878, %v1877
  %v1899 = vpack.c.b16 %v1880, %v1879
  %v1900 = vpack.c.b16 %v1882, %v1881
  %v1901 = vpack.c.b16 %v1884, %v1883
  %v1902 = vpack.c.b16 %v1886, %v1885
  %v1903 = vpack.c.b16 %v1888, %v1887
  %v1904 = vpack.c.b16 %v1890, %v1889
  %v1905 = vpack.c.b16 %v1892, %v1891
  %v1906 = vpack.c.b16 %v1894, %v1893
  %v1920 = vsel %vm1298, %v1791, 0
  %v1923 = vsel %vm1298, %v1793, 0
  %v1926 = vsel %vm1298, %v1795, 0
  %v1929 = vsel %vm1298, %v1797, 0
  %v1932 = vsel %vm1298, %v1799, 0
  %v1935 = vsel %vm1298, %v1801, 0
  %v1938 = vsel %vm1298, %v1803, 0
  %v1941 = vsel %vm1298, %v1805, 0
  %v1944 = vsel %vm1298, %v1807, 0
  %v1947 = vsel %vm1298, %v1809, 0
  %v1950 = vsel %vm1298, %v1811, 0
  %v1953 = vsel %vm1298, %v1813, 0
  %v1956 = vsel %vm1298, %v1815, 0
  %v1959 = vsel %vm1298, %v1817, 0
  %v1962 = vsel %vm1298, %v1819, 0
  %v1965 = vsel %vm1298, %v1821, 0
  %1967 = vmatprep.subr.bf16.mxu0 0
  %1968 = vmatpush1.bf16.msra.mxu0 %v1895
  %1969 = vmatprep.subr.bf16.mxu0 0
  %1970 = vmatpush1.bf16.msra.mxu0 %v1896
  %1971 = vmatprep.subr.bf16.mxu0 0
  %1972 = vmatpush1.bf16.msra.mxu0 %v1897
  %1973 = vmatprep.subr.bf16.mxu0 0
  %1974 = vmatpush1.bf16.msra.mxu0 %v1898
  %1975 = vmatprep.subr.bf16.mxu0 0
  %1976 = vmatpush1.bf16.msra.mxu0 %v1899
  %1977 = vmatprep.subr.bf16.mxu0 0
  %1978 = vmatpush1.bf16.msra.mxu0 %v1900
  %1979 = vmatprep.subr.bf16.mxu0 0
  %1980 = vmatpush1.bf16.msra.mxu0 %v1901
  %1981 = vmatprep.subr.bf16.mxu0 0
  %1982 = vmatpush1.bf16.msra.mxu0 %v1902
  %1983 = vmatprep.subr.bf16.mxu0 0
  %1984 = vmatpush1.bf16.msra.mxu0 %v1903
  %1985 = vmatprep.subr.bf16.mxu0 0
  %1986 = vmatpush1.bf16.msra.mxu0 %v1904
  %1987 = vmatprep.subr.bf16.mxu0 0
  %1988 = vmatpush1.bf16.msra.mxu0 %v1905
  %1989 = vmatprep.subr.bf16.mxu0 0
  %1990 = vmatpush1.bf16.msra.mxu0 %v1906
  %1991 = vmatprep.subr.bf16.mxu0 0
  %1992 = vmatpush1.bf16.msra.mxu0 0
  %1993 = vmatprep.subr.bf16.mxu0 0
  %1994 = vmatpush1.bf16.msra.mxu0 0
  %1995 = vmatprep.subr.bf16.mxu0 0
  %1996 = vmatpush1.bf16.msra.mxu0 0
  %1997 = vmatprep.subr.bf16.mxu0 0
  %1998 = vmatpush1.bf16.msra.mxu0 0
  %1999 = vmatprep.mubr.bf16.mxu0 %v1920
  %2000 = vmatmul.mubr.bf16.gmra.mrb[0].mxu0 %v1790
  %v2001 = vpop.f32.mrb[0].mxu0
  %v2002 = vadd.f32 0.0, %v2001
  %v2003 = vpop.f32.mrb[0].mxu0
  %v2004 = vpop.f32.mrb[0].mxu0
  %v2005 = vadd.f32 0.0, %v2004
  %v2006 = vpop.f32.mrb[0].mxu0
  %2007 = vmatprep.mubr.bf16.mxu0 %v1923
  %2008 = vmatmul.mubr.bf16.gmra.mrb[0].mxu0 %v1792
  %v2009 = vpop.f32.mrb[0].mxu0
  %v2010 = vadd.f32 0.0, %v2009
  %v2011 = vpop.f32.mrb[0].mxu0
  %v2012 = vpop.f32.mrb[0].mxu0
  %v2013 = vadd.f32 0.0, %v2012
  %v2014 = vpop.f32.mrb[0].mxu0
  %2015 = vmatprep.mubr.bf16.mxu0 %v1926
  %2016 = vmatmul.mubr.bf16.gmra.mrb[0].mxu0 %v1794
  %v2017 = vpop.f32.mrb[0].mxu0
  %v2018 = vadd.f32 0.0, %v2017
  %v2019 = vpop.f32.mrb[0].mxu0
  %v2020 = vpop.f32.mrb[0].mxu0
  %v2021 = vadd.f32 0.0, %v2020
  %v2022 = vpop.f32.mrb[0].mxu0
  %2023 = vmatprep.mubr.bf16.mxu0 %v1929
  %2024 = vmatmul.mubr.bf16.gmra.mrb[0].mxu0 %v1796
  %v2025 = vpop.f32.mrb[0].mxu0
  %v2026 = vadd.f32 0.0, %v2025
  %v2027 = vpop.f32.mrb[0].mxu0
  %v2028 = vpop.f32.mrb[0].mxu0
  %v2029 = vadd.f32 0.0, %v2028
  %v2030 = vpop.f32.mrb[0].mxu0
  %2031 = vmatprep.mubr.bf16.mxu0 %v1932
  %2032 = vmatmul.mubr.bf16.gmra.mrb[0].mxu0 %v1798
  %v2033 = vpop.f32.mrb[0].mxu0
  %v2034 = vadd.f32 0.0, %v2033
  %v2035 = vpop.f32.mrb[0].mxu0
  %v2036 = vpop.f32.mrb[0].mxu0
  %v2037 = vadd.f32 0.0, %v2036
  %v2038 = vpop.f32.mrb[0].mxu0
  %2039 = vmatprep.mubr.bf16.mxu0 %v1935
  %2040 = vmatmul.mubr.bf16.gmra.mrb[0].mxu0 %v1800
  %v2041 = vpop.f32.mrb[0].mxu0
  %v2042 = vadd.f32 0.0, %v2041
  %v2043 = vpop.f32.mrb[0].mxu0
  %v2044 = vpop.f32.mrb[0].mxu0
  %v2045 = vadd.f32 0.0, %v2044
  %v2046 = vpop.f32.mrb[0].mxu0
  %2047 = vmatprep.mubr.bf16.mxu0 %v1938
  %2048 = vmatmul.mubr.bf16.gmra.mrb[0].mxu0 %v1802
  %v2049 = vpop.f32.mrb[0].mxu0
  %v2050 = vadd.f32 0.0, %v2049
  %v2051 = vpop.f32.mrb[0].mxu0
  %v2052 = vpop.f32.mrb[0].mxu0
  %v2053 = vadd.f32 0.0, %v2052
  %v2054 = vpop.f32.mrb[0].mxu0
  %2055 = vmatprep.mubr.bf16.mxu0 %v1941
  %2056 = vmatmul.mubr.bf16.gmra.mrb[0].mxu0 %v1804
  %v2057 = vpop.f32.mrb[0].mxu0
  %v2058 = vadd.f32 0.0, %v2057
  %v2059 = vpop.f32.mrb[0].mxu0
  %v2060 = vpop.f32.mrb[0].mxu0
  %v2061 = vadd.f32 0.0, %v2060
  %v2062 = vpop.f32.mrb[0].mxu0
  %2063 = vmatprep.mubr.bf16.mxu0 %v1944
  %2064 = vmatmul.mubr.bf16.gmra.mrb[0].mxu0 %v1806
  %v2065 = vpop.f32.mrb[0].mxu0
  %v2066 = vadd.f32 0.0, %v2065
  %v2067 = vpop.f32.mrb[0].mxu0
  %v2068 = vpop.f32.mrb[0].mxu0
  %v2069 = vadd.f32 0.0, %v2068
  %v2070 = vpop.f32.mrb[0].mxu0
  %2071 = vmatprep.mubr.bf16.mxu0 %v1947
  %2072 = vmatmul.mubr.bf16.gmra.mrb[0].mxu0 %v1808
  %v2073 = vpop.f32.mrb[0].mxu0
  %v2074 = vadd.f32 0.0, %v2073
  %v2075 = vpop.f32.mrb[0].mxu0
  %v2076 = vpop.f32.mrb[0].mxu0
  %v2077 = vadd.f32 0.0, %v2076
  %v2078 = vpop.f32.mrb[0].mxu0
  %2079 = vmatprep.mubr.bf16.mxu0 %v1950
  %2080 = vmatmul.mubr.bf16.gmra.mrb[0].mxu0 %v1810
  %v2081 = vpop.f32.mrb[0].mxu0
  %v2082 = vadd.f32 0.0, %v2081
  %v2083 = vpop.f32.mrb[0].mxu0
  %v2084 = vpop.f32.mrb[0].mxu0
  %v2085 = vadd.f32 0.0, %v2084
  %v2086 = vpop.f32.mrb[0].mxu0
  %2087 = vmatprep.mubr.bf16.mxu0 %v1953
  %2088 = vmatmul.mubr.bf16.gmra.mrb[0].mxu0 %v1812
  %v2089 = vpop.f32.mrb[0].mxu0
  %v2090 = vadd.f32 0.0, %v2089
  %v2091 = vpop.f32.mrb[0].mxu0
  %v2092 = vpop.f32.mrb[0].mxu0
  %v2093 = vadd.f32 0.0, %v2092
  %v2094 = vpop.f32.mrb[0].mxu0
  %2095 = vmatprep.mubr.bf16.mxu0 %v1956
  %2096 = vmatmul.mubr.bf16.gmra.mrb[0].mxu0 %v1814
  %v2097 = vpop.f32.mrb[0].mxu0
  %v2098 = vadd.f32 0.0, %v2097
  %v2099 = vpop.f32.mrb[0].mxu0
  %v2100 = vpop.f32.mrb[0].mxu0
  %v2101 = vadd.f32 0.0, %v2100
  %v2102 = vpop.f32.mrb[0].mxu0
  %2103 = vmatprep.mubr.bf16.mxu0 %v1959
  %2104 = vmatmul.mubr.bf16.gmra.mrb[0].mxu0 %v1816
  %v2105 = vpop.f32.mrb[0].mxu0
  %v2106 = vadd.f32 0.0, %v2105
  %v2107 = vpop.f32.mrb[0].mxu0
  %v2108 = vpop.f32.mrb[0].mxu0
  %v2109 = vadd.f32 0.0, %v2108
  %v2110 = vpop.f32.mrb[0].mxu0
  %2111 = vmatprep.mubr.bf16.mxu0 %v1962
  %2112 = vmatmul.mubr.bf16.gmra.mrb[0].mxu0 %v1818
  %v2113 = vpop.f32.mrb[0].mxu0
  %v2114 = vadd.f32 0.0, %v2113
  %v2115 = vpop.f32.mrb[0].mxu0
  %v2116 = vpop.f32.mrb[0].mxu0
  %v2117 = vadd.f32 0.0, %v2116
  %v2118 = vpop.f32.mrb[0].mxu0
  %2119 = vmatprep.mubr.bf16.mxu0 %v1965
  %2120 = vmatmul.mubr.bf16.gmra.mrb[0].mxu0 %v1820
  %v2121 = vpop.f32.mrb[0].mxu0
  %v2122 = vadd.f32 0.0, %v2121
  %v2123 = vpop.f32.mrb[0].mxu0
  %v2124 = vpop.f32.mrb[0].mxu0
  %v2125 = vadd.f32 0.0, %v2124
  %v2126 = vpop.f32.mrb[0].mxu0
  %2127 = vdwg.mxu0
  %v2128 = vadd.f32 %v1663, %v2002
  %v2129 = vadd.f32 %v1666, %v2005
  %v2130 = vadd.f32 %v1671, %v2010
  %v2131 = vadd.f32 %v1674, %v2013
  %v2132 = vadd.f32 %v1679, %v2018
  %v2133 = vadd.f32 %v1682, %v2021
  %v2134 = vadd.f32 %v1687, %v2026
  %v2135 = vadd.f32 %v1690, %v2029
  %v2136 = vadd.f32 %v1695, %v2034
  %v2137 = vadd.f32 %v1698, %v2037
  %v2138 = vadd.f32 %v1703, %v2042
  %v2139 = vadd.f32 %v1706, %v2045
  %v2140 = vadd.f32 %v1711, %v2050
  %v2141 = vadd.f32 %v1714, %v2053
  %v2142 = vadd.f32 %v1719, %v2058
  %v2143 = vadd.f32 %v1722, %v2061
  %v2144 = vadd.f32 %v1727, %v2066
  %v2145 = vadd.f32 %v1730, %v2069
  %v2146 = vadd.f32 %v1735, %v2074
  %v2147 = vadd.f32 %v1738, %v2077
  %v2148 = vadd.f32 %v1743, %v2082
  %v2149 = vadd.f32 %v1746, %v2085
  %v2150 = vadd.f32 %v1751, %v2090
  %v2151 = vadd.f32 %v1754, %v2093
  %v2152 = vadd.f32 %v1759, %v2098
  %v2153 = vadd.f32 %v1762, %v2101
  %v2154 = vadd.f32 %v1767, %v2106
  %v2155 = vadd.f32 %v1770, %v2109
  %v2156 = vadd.f32 %v1775, %v2114
  %v2157 = vadd.f32 %v1778, %v2117
  %v2158 = vadd.f32 %v1783, %v2122
  %v2159 = vadd.f32 %v1786, %v2125
  %2160 = vst.msk [vmem:[%s4] sm:$0xff] %vm1298, %v2128
  %2161 = vst.msk [vmem:[%s4 + $0x8] sm:$0xff] %vm1298, %v2129
  %2162 = vst.msk [vmem:[%s4 + $0x10] sm:$0xff] %vm1298, %v2130
  %2163 = vst.msk [vmem:[%s4 + $0x18] sm:$0xff] %vm1298, %v2131
  %2164 = vst.msk [vmem:[%s4 + $0x20] sm:$0xff] %vm1298, %v2132
  %2165 = vst.msk [vmem:[%s4 + $0x28] sm:$0xff] %vm1298, %v2133
  %2166 = vst.msk [vmem:[%s4 + $0x30] sm:$0xff] %vm1298, %v2134
  %2167 = vst.msk [vmem:[%s4 + $0x38] sm:$0xff] %vm1298, %v2135
  %2168 = vst.msk [vmem:[%s4 + $0x40] sm:$0xff] %vm1298, %v2136
  %2169 = vst.msk [vmem:[%s4 + $0x48] sm:$0xff] %vm1298, %v2137
  %2170 = vst.msk [vmem:[%s4 + $0x50] sm:$0xff] %vm1298, %v2138
  %2171 = vst.msk [vmem:[%s4 + $0x58] sm:$0xff] %vm1298, %v2139
  %2172 = vst.msk [vmem:[%s4 + $0x60] sm:$0xff] %vm1298, %v2140
  %2173 = vst.msk [vmem:[%s4 + $0x68] sm:$0xff] %vm1298, %v2141
  %2174 = vst.msk [vmem:[%s4 + $0x70] sm:$0xff] %vm1298, %v2142
  %2175 = vst.msk [vmem:[%s4 + $0x78] sm:$0xff] %vm1298, %v2143
  %2176 = vst.msk [vmem:[%s4 + $0x100] sm:$0xff] %vm1298, %v2144
  %2177 = vst.msk [vmem:[%s4 + $0x108] sm:$0xff] %vm1298, %v2145
  %2178 = vst.msk [vmem:[%s4 + $0x110] sm:$0xff] %vm1298, %v2146
  %2179 = vst.msk [vmem:[%s4 + $0x118] sm:$0xff] %vm1298, %v2147
  %2180 = vst.msk [vmem:[%s4 + $0x120] sm:$0xff] %vm1298, %v2148
  %2181 = vst.msk [vmem:[%s4 + $0x128] sm:$0xff] %vm1298, %v2149
  %2182 = vst.msk [vmem:[%s4 + $0x130] sm:$0xff] %vm1298, %v2150
  %2183 = vst.msk [vmem:[%s4 + $0x138] sm:$0xff] %vm1298, %v2151
  %2184 = vst.msk [vmem:[%s4 + $0x140] sm:$0xff] %vm1298, %v2152
  %2185 = vst.msk [vmem:[%s4 + $0x148] sm:$0xff] %vm1298, %v2153
  %2186 = vst.msk [vmem:[%s4 + $0x150] sm:$0xff] %vm1298, %v2154
  %2187 = vst.msk [vmem:[%s4 + $0x158] sm:$0xff] %vm1298, %v2155
  %2188 = vst.msk [vmem:[%s4 + $0x160] sm:$0xff] %vm1298, %v2156
  %2189 = vst.msk [vmem:[%s4 + $0x168] sm:$0xff] %vm1298, %v2157
  %2190 = vst.msk [vmem:[%s4 + $0x170] sm:$0xff] %vm1298, %v2158
  %2191 = vst.msk [vmem:[%s4 + $0x178] sm:$0xff] %vm1298, %v2159
  %v2192 = vsel %vm1298, %v2128, 0.0
  %v2193 = vsel %vm1298, %v2129, 0.0
  %v2194 = vadd.f32 %v2192, %v2193
  %v2195 = vsel %vm1298, %v2130, 0.0
  %v2196 = vadd.f32 %v2194, %v2195
  %v2197 = vsel %vm1298, %v2131, 0.0
  %v2198 = vadd.f32 %v2196, %v2197
  %v2199 = vsel %vm1298, %v2132, 0.0
  %v2200 = vadd.f32 %v2198, %v2199
  %v2201 = vsel %vm1298, %v2133, 0.0
  %v2202 = vadd.f32 %v2200, %v2201
  %v2203 = vsel %vm1298, %v2134, 0.0
  %v2204 = vadd.f32 %v2202, %v2203
  %v2205 = vsel %vm1298, %v2135, 0.0
  %v2206 = vadd.f32 %v2204, %v2205
  %v2207 = vsel %vm1298, %v2136, 0.0
  %v2208 = vadd.f32 %v2206, %v2207
  %v2209 = vsel %vm1298, %v2137, 0.0
  %v2210 = vadd.f32 %v2208, %v2209
  %v2211 = vsel %vm1298, %v2138, 0.0
  %v2212 = vadd.f32 %v2210, %v2211
  %v2213 = vsel %vm1298, %v2139, 0.0
  %v2214 = vadd.f32 %v2212, %v2213
  %v2215 = vsel %vm1298, %v2140, 0.0
  %v2216 = vadd.f32 %v2214, %v2215
  %v2217 = vsel %vm1298, %v2141, 0.0
  %v2218 = vadd.f32 %v2216, %v2217
  %v2219 = vsel %vm1298, %v2142, 0.0
  %v2220 = vadd.f32 %v2218, %v2219
  %v2221 = vsel %vm1298, %v2143, 0.0
  %v2222 = vadd.f32 %v2220, %v2221
  %v2223 = vsel %vm1298, %v2144, 0.0
  %v2224 = vadd.f32 %v2222, %v2223
  %v2225 = vsel %vm1298, %v2145, 0.0
  %v2226 = vadd.f32 %v2224, %v2225
  %v2227 = vsel %vm1298, %v2146, 0.0
  %v2228 = vadd.f32 %v2226, %v2227
  %v2229 = vsel %vm1298, %v2147, 0.0
  %v2230 = vadd.f32 %v2228, %v2229
  %v2231 = vsel %vm1298, %v2148, 0.0
  %v2232 = vadd.f32 %v2230, %v2231
  %v2233 = vsel %vm1298, %v2149, 0.0
  %v2234 = vadd.f32 %v2232, %v2233
  %v2235 = vsel %vm1298, %v2150, 0.0
  %v2236 = vadd.f32 %v2234, %v2235
  %v2237 = vsel %vm1298, %v2151, 0.0
  %v2238 = vadd.f32 %v2236, %v2237
  %v2239 = vsel %vm1298, %v2152, 0.0
  %v2240 = vadd.f32 %v2238, %v2239
  %v2241 = vsel %vm1298, %v2153, 0.0
  %v2242 = vadd.f32 %v2240, %v2241
  %v2243 = vsel %vm1298, %v2154, 0.0
  %v2244 = vadd.f32 %v2242, %v2243
  %v2245 = vsel %vm1298, %v2155, 0.0
  %v2246 = vadd.f32 %v2244, %v2245
  %v2247 = vsel %vm1298, %v2156, 0.0
  %v2248 = vadd.f32 %v2246, %v2247
  %v2249 = vsel %vm1298, %v2157, 0.0
  %v2250 = vadd.f32 %v2248, %v2249
  %v2251 = vsel %vm1298, %v2158, 0.0
  %v2252 = vadd.f32 %v2250, %v2251
  %v2253 = vsel %vm1298, %v2159, 0.0
  %v2254 = vadd.f32 %v2252, %v2253
  %v2255 = vrot.slane %v2254, 4
  %v2256 = vadd.f32 %v2254, %v2255
  %v2257 = vrot.slane %v2256, 2
  %v2258 = vadd.f32 %v2256, %v2257
  %v2259 = vrot.slane %v2258, 1
  %v2260 = vadd.f32 %v2258, %v2259
  %v2261 = vadd.f32 %v2260, 0.0
  %v2262 = vmul.f32 %v2128, %v2128
  %v2263 = vmul.f32 %v2129, %v2129
  %v2264 = vmul.f32 %v2130, %v2130
  %v2265 = vmul.f32 %v2131, %v2131
  %v2266 = vmul.f32 %v2132, %v2132
  %v2267 = vmul.f32 %v2133, %v2133
  %v2268 = vmul.f32 %v2134, %v2134
  %v2269 = vmul.f32 %v2135, %v2135
  %v2270 = vmul.f32 %v2136, %v2136
  %v2271 = vmul.f32 %v2137, %v2137
  %v2272 = vmul.f32 %v2138, %v2138
  %v2273 = vmul.f32 %v2139, %v2139
  %v2274 = vmul.f32 %v2140, %v2140
  %v2275 = vmul.f32 %v2141, %v2141
  %v2276 = vmul.f32 %v2142, %v2142
  %v2277 = vmul.f32 %v2143, %v2143
  %v2278 = vmul.f32 %v2144, %v2144
  %v2279 = vmul.f32 %v2145, %v2145
  %v2280 = vmul.f32 %v2146, %v2146
  %v2281 = vmul.f32 %v2147, %v2147
  %v2282 = vmul.f32 %v2148, %v2148
  %v2283 = vmul.f32 %v2149, %v2149
  %v2284 = vmul.f32 %v2150, %v2150
  %v2285 = vmul.f32 %v2151, %v2151
  %v2286 = vmul.f32 %v2152, %v2152
  %v2287 = vmul.f32 %v2153, %v2153
  %v2288 = vmul.f32 %v2154, %v2154
  %v2289 = vmul.f32 %v2155, %v2155
  %v2290 = vmul.f32 %v2156, %v2156
  %v2291 = vmul.f32 %v2157, %v2157
  %v2292 = vmul.f32 %v2158, %v2158
  %v2293 = vmul.f32 %v2159, %v2159
  %v2294 = vsel %vm1298, %v2262, 0.0
  %v2295 = vsel %vm1298, %v2263, 0.0
  %v2296 = vadd.f32 %v2294, %v2295
  %v2297 = vsel %vm1298, %v2264, 0.0
  %v2298 = vadd.f32 %v2296, %v2297
  %v2299 = vsel %vm1298, %v2265, 0.0
  %v2300 = vadd.f32 %v2298, %v2299
  %v2301 = vsel %vm1298, %v2266, 0.0
  %v2302 = vadd.f32 %v2300, %v2301
  %v2303 = vsel %vm1298, %v2267, 0.0
  %v2304 = vadd.f32 %v2302, %v2303
  %v2305 = vsel %vm1298, %v2268, 0.0
  %v2306 = vadd.f32 %v2304, %v2305
  %v2307 = vsel %vm1298, %v2269, 0.0
  %v2308 = vadd.f32 %v2306, %v2307
  %v2309 = vsel %vm1298, %v2270, 0.0
  %v2310 = vadd.f32 %v2308, %v2309
  %v2311 = vsel %vm1298, %v2271, 0.0
  %v2312 = vadd.f32 %v2310, %v2311
  %v2313 = vsel %vm1298, %v2272, 0.0
  %v2314 = vadd.f32 %v2312, %v2313
  %v2315 = vsel %vm1298, %v2273, 0.0
  %v2316 = vadd.f32 %v2314, %v2315
  %v2317 = vsel %vm1298, %v2274, 0.0
  %v2318 = vadd.f32 %v2316, %v2317
  %v2319 = vsel %vm1298, %v2275, 0.0
  %v2320 = vadd.f32 %v2318, %v2319
  %v2321 = vsel %vm1298, %v2276, 0.0
  %v2322 = vadd.f32 %v2320, %v2321
  %v2323 = vsel %vm1298, %v2277, 0.0
  %v2324 = vadd.f32 %v2322, %v2323
  %v2325 = vsel %vm1298, %v2278, 0.0
  %v2326 = vadd.f32 %v2324, %v2325
  %v2327 = vsel %vm1298, %v2279, 0.0
  %v2328 = vadd.f32 %v2326, %v2327
  %v2329 = vsel %vm1298, %v2280, 0.0
  %v2330 = vadd.f32 %v2328, %v2329
  %v2331 = vsel %vm1298, %v2281, 0.0
  %v2332 = vadd.f32 %v2330, %v2331
  %v2333 = vsel %vm1298, %v2282, 0.0
  %v2334 = vadd.f32 %v2332, %v2333
  %v2335 = vsel %vm1298, %v2283, 0.0
  %v2336 = vadd.f32 %v2334, %v2335
  %v2337 = vsel %vm1298, %v2284, 0.0
  %v2338 = vadd.f32 %v2336, %v2337
  %v2339 = vsel %vm1298, %v2285, 0.0
  %v2340 = vadd.f32 %v2338, %v2339
  %v2341 = vsel %vm1298, %v2286, 0.0
  %v2342 = vadd.f32 %v2340, %v2341
  %v2343 = vsel %vm1298, %v2287, 0.0
  %v2344 = vadd.f32 %v2342, %v2343
  %v2345 = vsel %vm1298, %v2288, 0.0
  %v2346 = vadd.f32 %v2344, %v2345
  %v2347 = vsel %vm1298, %v2289, 0.0
  %v2348 = vadd.f32 %v2346, %v2347
  %v2349 = vsel %vm1298, %v2290, 0.0
  %v2350 = vadd.f32 %v2348, %v2349
  %v2351 = vsel %vm1298, %v2291, 0.0
  %v2352 = vadd.f32 %v2350, %v2351
  %v2353 = vsel %vm1298, %v2292, 0.0
  %v2354 = vadd.f32 %v2352, %v2353
  %v2355 = vsel %vm1298, %v2293, 0.0
  %v2356 = vadd.f32 %v2354, %v2355
  %v2357 = vrot.slane %v2356, 4
  %v2358 = vadd.f32 %v2356, %v2357
  %v2359 = vrot.slane %v2358, 2
  %v2360 = vadd.f32 %v2358, %v2359
  %v2361 = vrot.slane %v2360, 1
  %v2362 = vadd.f32 %v2360, %v2361
  %v2363 = vadd.f32 %v2362, 0.0
  %s2364 = scalar_lea.vmem [#allocation2], 128
  %v2365 = vld [vmem:[%s2364] sm:$0xff]
  %v2366 = vld [vmem:[%s2364 + $0x8] sm:$0xff]
  %v2367 = vld [vmem:[%s2364 + $0x10] sm:$0xff]
  %v2368 = vld [vmem:[%s2364 + $0x18] sm:$0xff]
  %v2369 = vld [vmem:[%s2364 + $0x20] sm:$0xff]
  %v2370 = vld [vmem:[%s2364 + $0x28] sm:$0xff]
  %v2371 = vld [vmem:[%s2364 + $0x30] sm:$0xff]
  %v2372 = vld [vmem:[%s2364 + $0x38] sm:$0xff]
  %v2373 = vld [vmem:[%s2364 + $0x40] sm:$0xff]
  %v2374 = vld [vmem:[%s2364 + $0x48] sm:$0xff]
  %v2375 = vld [vmem:[%s2364 + $0x50] sm:$0xff]
  %v2376 = vld [vmem:[%s2364 + $0x58] sm:$0xff]
  %v2377 = vld [vmem:[%s2364 + $0x60] sm:$0xff]
  %v2378 = vld [vmem:[%s2364 + $0x68] sm:$0xff]
  %v2379 = vld [vmem:[%s2364 + $0x70] sm:$0xff]
  %v2380 = vld [vmem:[%s2364 + $0x78] sm:$0xff]
  %v2381 = vld [vmem:[%s2364 + $0x120] sm:$0xff]
  %v2382 = vld [vmem:[%s2364 + $0x128] sm:$0xff]
  %v2383 = vld [vmem:[%s2364 + $0x130] sm:$0xff]
  %v2384 = vld [vmem:[%s2364 + $0x138] sm:$0xff]
  %v2385 = vld [vmem:[%s2364 + $0x140] sm:$0xff]
  %v2386 = vld [vmem:[%s2364 + $0x148] sm:$0xff]
  %v2387 = vld [vmem:[%s2364 + $0x150] sm:$0xff]
  %v2388 = vld [vmem:[%s2364 + $0x158] sm:$0xff]
  %v2389 = vld [vmem:[%s2364 + $0x160] sm:$0xff]
  %v2390 = vld [vmem:[%s2364 + $0x168] sm:$0xff]
  %v2391 = vld [vmem:[%s2364 + $0x170] sm:$0xff]
  %v2392 = vld [vmem:[%s2364 + $0x178] sm:$0xff]
  %v2393 = vld [vmem:[%s2364 + $0x180] sm:$0xff]
  %v2394 = vld [vmem:[%s2364 + $0x188] sm:$0xff]
  %v2395 = vld [vmem:[%s2364 + $0x190] sm:$0xff]
  %v2396 = vld [vmem:[%s2364 + $0x198] sm:$0xff]
  %v2397 = vld [vmem:[%s1] sm:$0xf]
  %v2398 = vld [vmem:[%s1 + $0x4] sm:$0xf]
  %v2399 = vld [vmem:[%s1 + $0x8] sm:$0xf]
  %v2400 = vld [vmem:[%s1 + $0xc] sm:$0xf]
  %v2401 = vld [vmem:[%s1 + $0x10] sm:$0xf]
  %v2402 = vld [vmem:[%s1 + $0x14] sm:$0xf]
  %v2403 = vld [vmem:[%s1 + $0x18] sm:$0xf]
  %v2404 = vld [vmem:[%s1 + $0x1c] sm:$0xf]
  %v2405 = vld [vmem:[%s1 + $0x20] sm:$0xf]
  %v2406 = vld [vmem:[%s1 + $0x24] sm:$0xf]
  %v2407 = vld [vmem:[%s1 + $0x28] sm:$0xf]
  %v2408 = vld [vmem:[%s1 + $0x2c] sm:$0xf]
  %v2409 = vld [vmem:[%s1 + $0x30] sm:$0xf]
  %v2410 = vld [vmem:[%s1 + $0x34] sm:$0xf]
  %v2411 = vld [vmem:[%s1 + $0x38] sm:$0xf]
  %v2412 = vld [vmem:[%s1 + $0x3c] sm:$0xf]
  %v2413 = vld [vmem:[%s1 + $0x40] sm:$0xf]
  %v2414 = vld [vmem:[%s1 + $0x44] sm:$0xf]
  %v2415 = vld [vmem:[%s1 + $0x48] sm:$0xf]
  %v2416 = vld [vmem:[%s1 + $0x4c] sm:$0xf]
  %v2417 = vld [vmem:[%s1 + $0x50] sm:$0xf]
  %v2418 = vld [vmem:[%s1 + $0x54] sm:$0xf]
  %v2419 = vld [vmem:[%s1 + $0x58] sm:$0xf]
  %v2420 = vld [vmem:[%s1 + $0x5c] sm:$0xf]
  %s2421 = scalar_lea.vmem [#allocation2], 144
  %v2422 = vld [vmem:[%s2421] sm:$0xff]
  %v2423 = vld [vmem:[%s2421 + $0x8] sm:$0xff]
  %v2424 = vld [vmem:[%s2421 + $0x10] sm:$0xff]
  %v2425 = vld [vmem:[%s2421 + $0x18] sm:$0xff]
  %v2426 = vld [vmem:[%s2421 + $0x20] sm:$0xff]
  %v2427 = vld [vmem:[%s2421 + $0x28] sm:$0xff]
  %v2428 = vld [vmem:[%s2421 + $0x30] sm:$0xff]
  %v2429 = vld [vmem:[%s2421 + $0x38] sm:$0xff]
  %v2430 = vld [vmem:[%s2421 + $0x40] sm:$0xff]
  %v2431 = vld [vmem:[%s2421 + $0x48] sm:$0xff]
  %v2432 = vld [vmem:[%s2421 + $0x50] sm:$0xff]
  %v2433 = vld [vmem:[%s2421 + $0x58] sm:$0xff]
  %v2434 = vld [vmem:[%s2421 + $0x60] sm:$0xff]
  %v2435 = vld [vmem:[%s2421 + $0x68] sm:$0xff]
  %v2436 = vld [vmem:[%s2421 + $0x70] sm:$0xff]
  %v2437 = vld [vmem:[%s2421 + $0x78] sm:$0xff]
  %v2438 = vld [vmem:[%s2421 + $0x120] sm:$0xff]
  %v2439 = vld [vmem:[%s2421 + $0x128] sm:$0xff]
  %v2440 = vld [vmem:[%s2421 + $0x130] sm:$0xff]
  %v2441 = vld [vmem:[%s2421 + $0x138] sm:$0xff]
  %v2442 = vld [vmem:[%s2421 + $0x140] sm:$0xff]
  %v2443 = vld [vmem:[%s2421 + $0x148] sm:$0xff]
  %v2444 = vld [vmem:[%s2421 + $0x150] sm:$0xff]
  %v2445 = vld [vmem:[%s2421 + $0x158] sm:$0xff]
  %v2446 = vld [vmem:[%s2421 + $0x160] sm:$0xff]
  %v2447 = vld [vmem:[%s2421 + $0x168] sm:$0xff]
  %v2448 = vld [vmem:[%s2421 + $0x170] sm:$0xff]
  %v2449 = vld [vmem:[%s2421 + $0x178] sm:$0xff]
  %v2450 = vld [vmem:[%s2421 + $0x180] sm:$0xff]
  %v2451 = vld [vmem:[%s2421 + $0x188] sm:$0xff]
  %v2452 = vld [vmem:[%s2421 + $0x190] sm:$0xff]
  %v2453 = vld [vmem:[%s2421 + $0x198] sm:$0xff]
  %v2454 = vld [vmem:[%s1201] sm:$0xf]
  %v2455 = vld [vmem:[%s1201 + $0x4] sm:$0xf]
  %v2456 = vld [vmem:[%s1201 + $0x8] sm:$0xf]
  %v2457 = vld [vmem:[%s1201 + $0xc] sm:$0xf]
  %v2458 = vld [vmem:[%s1201 + $0x10] sm:$0xf]
  %v2459 = vld [vmem:[%s1201 + $0x14] sm:$0xf]
  %v2460 = vld [vmem:[%s1201 + $0x18] sm:$0xf]
  %v2461 = vld [vmem:[%s1201 + $0x1c] sm:$0xf]
  %v2462 = vld [vmem:[%s1201 + $0x20] sm:$0xf]
  %v2463 = vld [vmem:[%s1201 + $0x24] sm:$0xf]
  %v2464 = vld [vmem:[%s1201 + $0x28] sm:$0xf]
  %v2465 = vld [vmem:[%s1201 + $0x2c] sm:$0xf]
  %v2466 = vld [vmem:[%s1201 + $0x30] sm:$0xf]
  %v2467 = vld [vmem:[%s1201 + $0x34] sm:$0xf]
  %v2468 = vld [vmem:[%s1201 + $0x38] sm:$0xf]
  %v2469 = vld [vmem:[%s1201 + $0x3c] sm:$0xf]
  %v2470 = vld [vmem:[%s1201 + $0x40] sm:$0xf]
  %v2471 = vld [vmem:[%s1201 + $0x44] sm:$0xf]
  %v2472 = vld [vmem:[%s1201 + $0x48] sm:$0xf]
  %v2473 = vld [vmem:[%s1201 + $0x4c] sm:$0xf]
  %v2474 = vld [vmem:[%s1201 + $0x50] sm:$0xf]
  %v2475 = vld [vmem:[%s1201 + $0x54] sm:$0xf]
  %v2476 = vld [vmem:[%s1201 + $0x58] sm:$0xf]
  %v2477 = vld [vmem:[%s1201 + $0x5c] sm:$0xf]
  %v2502 = vunpack.c.l.b16 %v2454
  %v2503 = vunpack.c.l.b16 %v2455
  %v2504 = vunpack.c.l.b16 %v2456
  %v2505 = vunpack.c.l.b16 %v2457
  %v2506 = vunpack.c.l.b16 %v2458
  %v2507 = vunpack.c.l.b16 %v2459
  %v2508 = vunpack.c.l.b16 %v2460
  %v2509 = vunpack.c.l.b16 %v2461
  %v2510 = vunpack.c.l.b16 %v2462
  %v2511 = vunpack.c.l.b16 %v2463
  %v2512 = vunpack.c.l.b16 %v2464
  %v2513 = vunpack.c.l.b16 %v2465
  %v2514 = vunpack.c.l.b16 %v2466
  %v2515 = vunpack.c.l.b16 %v2467
  %v2516 = vunpack.c.l.b16 %v2468
  %v2517 = vunpack.c.l.b16 %v2469
  %v2518 = vunpack.c.l.b16 %v2470
  %v2519 = vunpack.c.l.b16 %v2471
  %v2520 = vunpack.c.l.b16 %v2472
  %v2521 = vunpack.c.l.b16 %v2473
  %v2522 = vunpack.c.l.b16 %v2474
  %v2523 = vunpack.c.l.b16 %v2475
  %v2524 = vunpack.c.l.b16 %v2476
  %v2525 = vunpack.c.l.b16 %v2477
  %v2526 = vpack.c.b16 %v2503, %v2502
  %v2527 = vpack.c.b16 %v2505, %v2504
  %v2528 = vpack.c.b16 %v2507, %v2506
  %v2529 = vpack.c.b16 %v2509, %v2508
  %v2530 = vpack.c.b16 %v2511, %v2510
  %v2531 = vpack.c.b16 %v2513, %v2512
  %v2532 = vpack.c.b16 %v2515, %v2514
  %v2533 = vpack.c.b16 %v2517, %v2516
  %v2534 = vpack.c.b16 %v2519, %v2518
  %v2535 = vpack.c.b16 %v2521, %v2520
  %v2536 = vpack.c.b16 %v2523, %v2522
  %v2537 = vpack.c.b16 %v2525, %v2524
  %v2551 = vsel %vm1298, %v2423, 0
  %v2554 = vsel %vm1298, %v2425, 0
  %v2557 = vsel %vm1298, %v2427, 0
  %v2560 = vsel %vm1298, %v2429, 0
  %v2563 = vsel %vm1298, %v2431, 0
  %v2566 = vsel %vm1298, %v2433, 0
  %v2569 = vsel %vm1298, %v2435, 0
  %v2572 = vsel %vm1298, %v2437, 0
  %v2575 = vsel %vm1298, %v2439, 0
  %v2578 = vsel %vm1298, %v2441, 0
  %v2581 = vsel %vm1298, %v2443, 0
  %v2584 = vsel %vm1298, %v2445, 0
  %v2587 = vsel %vm1298, %v2447, 0
  %v2590 = vsel %vm1298, %v2449, 0
  %v2593 = vsel %vm1298, %v2451, 0
  %v2596 = vsel %vm1298, %v2453, 0
  %2598 = vmatprep.subr.bf16.mxu0 0
  %2599 = vmatpush1.bf16.msra.mxu0 %v2526
  %2600 = vmatprep.subr.bf16.mxu0 0
  %2601 = vmatpush1.bf16.msra.mxu0 %v2527
  %2602 = vmatprep.subr.bf16.mxu0 0
  %2603 = vmatpush1.bf16.msra.mxu0 %v2528
  %2604 = vmatprep.subr.bf16.mxu0 0
  %2605 = vmatpush1.bf16.msra.mxu0 %v2529
  %2606 = vmatprep.subr.bf16.mxu0 0
  %2607 = vmatpush1.bf16.msra.mxu0 %v2530
  %2608 = vmatprep.subr.bf16.mxu0 0
  %2609 = vmatpush1.bf16.msra.mxu0 %v2531
  %2610 = vmatprep.subr.bf16.mxu0 0
  %2611 = vmatpush1.bf16.msra.mxu0 %v2532
  %2612 = vmatprep.subr.bf16.mxu0 0
  %2613 = vmatpush1.bf16.msra.mxu0 %v2533
  %2614 = vmatprep.subr.bf16.mxu0 0
  %2615 = vmatpush1.bf16.msra.mxu0 %v2534
  %2616 = vmatprep.subr.bf16.mxu0 0
  %2617 = vmatpush1.bf16.msra.mxu0 %v2535
  %2618 = vmatprep.subr.bf16.mxu0 0
  %2619 = vmatpush1.bf16.msra.mxu0 %v2536
  %2620 = vmatprep.subr.bf16.mxu0 0
  %2621 = vmatpush1.bf16.msra.mxu0 %v2537
  %2622 = vmatprep.subr.bf16.mxu0 0
  %2623 = vmatpush1.bf16.msra.mxu0 0
  %2624 = vmatprep.subr.bf16.mxu0 0
  %2625 = vmatpush1.bf16.msra.mxu0 0
  %2626 = vmatprep.subr.bf16.mxu0 0
  %2627 = vmatpush1.bf16.msra.mxu0 0
  %2628 = vmatprep.subr.bf16.mxu0 0
  %2629 = vmatpush1.bf16.msra.mxu0 0
  %2630 = vmatprep.mubr.bf16.mxu0 %v2551
  %2631 = vmatmul.mubr.bf16.gmra.mrb[0].mxu0 %v2422
  %v2632 = vpop.f32.mrb[0].mxu0
  %v2633 = vadd.f32 0.0, %v2632
  %v2634 = vpop.f32.mrb[0].mxu0
  %v2635 = vpop.f32.mrb[0].mxu0
  %v2636 = vadd.f32 0.0, %v2635
  %v2637 = vpop.f32.mrb[0].mxu0
  %2638 = vmatprep.mubr.bf16.mxu0 %v2554
  %2639 = vmatmul.mubr.bf16.gmra.mrb[0].mxu0 %v2424
  %v2640 = vpop.f32.mrb[0].mxu0
  %v2641 = vadd.f32 0.0, %v2640
  %v2642 = vpop.f32.mrb[0].mxu0
  %v2643 = vpop.f32.mrb[0].mxu0
  %v2644 = vadd.f32 0.0, %v2643
  %v2645 = vpop.f32.mrb[0].mxu0
  %2646 = vmatprep.mubr.bf16.mxu0 %v2557
  %2647 = vmatmul.mubr.bf16.gmra.mrb[0].mxu0 %v2426
  %v2648 = vpop.f32.mrb[0].mxu0
  %v2649 = vadd.f32 0.0, %v2648
  %v2650 = vpop.f32.mrb[0].mxu0
  %v2651 = vpop.f32.mrb[0].mxu0
  %v2652 = vadd.f32 0.0, %v2651
  %v2653 = vpop.f32.mrb[0].mxu0
  %2654 = vmatprep.mubr.bf16.mxu0 %v2560
  %2655 = vmatmul.mubr.bf16.gmra.mrb[0].mxu0 %v2428
  %v2656 = vpop.f32.mrb[0].mxu0
  %v2657 = vadd.f32 0.0, %v2656
  %v2658 = vpop.f32.mrb[0].mxu0
  %v2659 = vpop.f32.mrb[0].mxu0
  %v2660 = vadd.f32 0.0, %v2659
  %v2661 = vpop.f32.mrb[0].mxu0
  %2662 = vmatprep.mubr.bf16.mxu0 %v2563
  %2663 = vmatmul.mubr.bf16.gmra.mrb[0].mxu0 %v2430
  %v2664 = vpop.f32.mrb[0].mxu0
  %v2665 = vadd.f32 0.0, %v2664
  %v2666 = vpop.f32.mrb[0].mxu0
  %v2667 = vpop.f32.mrb[0].mxu0
  %v2668 = vadd.f32 0.0, %v2667
  %v2669 = vpop.f32.mrb[0].mxu0
  %2670 = vmatprep.mubr.bf16.mxu0 %v2566
  %2671 = vmatmul.mubr.bf16.gmra.mrb[0].mxu0 %v2432
  %v2672 = vpop.f32.mrb[0].mxu0
  %v2673 = vadd.f32 0.0, %v2672
  %v2674 = vpop.f32.mrb[0].mxu0
  %v2675 = vpop.f32.mrb[0].mxu0
  %v2676 = vadd.f32 0.0, %v2675
  %v2677 = vpop.f32.mrb[0].mxu0
  %2678 = vmatprep.mubr.bf16.mxu0 %v2569
  %2679 = vmatmul.mubr.bf16.gmra.mrb[0].mxu0 %v2434
  %v2680 = vpop.f32.mrb[0].mxu0
  %v2681 = vadd.f32 0.0, %v2680
  %v2682 = vpop.f32.mrb[0].mxu0
  %v2683 = vpop.f32.mrb[0].mxu0
  %v2684 = vadd.f32 0.0, %v2683
  %v2685 = vpop.f32.mrb[0].mxu0
  %2686 = vmatprep.mubr.bf16.mxu0 %v2572
  %2687 = vmatmul.mubr.bf16.gmra.mrb[0].mxu0 %v2436
  %v2688 = vpop.f32.mrb[0].mxu0
  %v2689 = vadd.f32 0.0, %v2688
  %v2690 = vpop.f32.mrb[0].mxu0
  %v2691 = vpop.f32.mrb[0].mxu0
  %v2692 = vadd.f32 0.0, %v2691
  %v2693 = vpop.f32.mrb[0].mxu0
  %2694 = vmatprep.mubr.bf16.mxu0 %v2575
  %2695 = vmatmul.mubr.bf16.gmra.mrb[0].mxu0 %v2438
  %v2696 = vpop.f32.mrb[0].mxu0
  %v2697 = vadd.f32 0.0, %v2696
  %v2698 = vpop.f32.mrb[0].mxu0
  %v2699 = vpop.f32.mrb[0].mxu0
  %v2700 = vadd.f32 0.0, %v2699
  %v2701 = vpop.f32.mrb[0].mxu0
  %2702 = vmatprep.mubr.bf16.mxu0 %v2578
  %2703 = vmatmul.mubr.bf16.gmra.mrb[0].mxu0 %v2440
  %v2704 = vpop.f32.mrb[0].mxu0
  %v2705 = vadd.f32 0.0, %v2704
  %v2706 = vpop.f32.mrb[0].mxu0
  %v2707 = vpop.f32.mrb[0].mxu0
  %v2708 = vadd.f32 0.0, %v2707
  %v2709 = vpop.f32.mrb[0].mxu0
  %2710 = vmatprep.mubr.bf16.mxu0 %v2581
  %2711 = vmatmul.mubr.bf16.gmra.mrb[0].mxu0 %v2442
  %v2712 = vpop.f32.mrb[0].mxu0
  %v2713 = vadd.f32 0.0, %v2712
  %v2714 = vpop.f32.mrb[0].mxu0
  %v2715 = vpop.f32.mrb[0].mxu0
  %v2716 = vadd.f32 0.0, %v2715
  %v2717 = vpop.f32.mrb[0].mxu0
  %2718 = vmatprep.mubr.bf16.mxu0 %v2584
  %2719 = vmatmul.mubr.bf16.gmra.mrb[0].mxu0 %v2444
  %v2720 = vpop.f32.mrb[0].mxu0
  %v2721 = vadd.f32 0.0, %v2720
  %v2722 = vpop.f32.mrb[0].mxu0
  %v2723 = vpop.f32.mrb[0].mxu0
  %v2724 = vadd.f32 0.0, %v2723
  %v2725 = vpop.f32.mrb[0].mxu0
  %2726 = vmatprep.mubr.bf16.mxu0 %v2587
  %2727 = vmatmul.mubr.bf16.gmra.mrb[0].mxu0 %v2446
  %v2728 = vpop.f32.mrb[0].mxu0
  %v2729 = vadd.f32 0.0, %v2728
  %v2730 = vpop.f32.mrb[0].mxu0
  %v2731 = vpop.f32.mrb[0].mxu0
  %v2732 = vadd.f32 0.0, %v2731
  %v2733 = vpop.f32.mrb[0].mxu0
  %2734 = vmatprep.mubr.bf16.mxu0 %v2590
  %2735 = vmatmul.mubr.bf16.gmra.mrb[0].mxu0 %v2448
  %v2736 = vpop.f32.mrb[0].mxu0
  %v2737 = vadd.f32 0.0, %v2736
  %v2738 = vpop.f32.mrb[0].mxu0
  %v2739 = vpop.f32.mrb[0].mxu0
  %v2740 = vadd.f32 0.0, %v2739
  %v2741 = vpop.f32.mrb[0].mxu0
  %2742 = vmatprep.mubr.bf16.mxu0 %v2593
  %2743 = vmatmul.mubr.bf16.gmra.mrb[0].mxu0 %v2450
  %v2744 = vpop.f32.mrb[0].mxu0
  %v2745 = vadd.f32 0.0, %v2744
  %v2746 = vpop.f32.mrb[0].mxu0
  %v2747 = vpop.f32.mrb[0].mxu0
  %v2748 = vadd.f32 0.0, %v2747
  %v2749 = vpop.f32.mrb[0].mxu0
  %2750 = vmatprep.mubr.bf16.mxu0 %v2596
  %2751 = vmatmul.mubr.bf16.gmra.mrb[0].mxu0 %v2452
  %v2752 = vpop.f32.mrb[0].mxu0
  %v2753 = vadd.f32 0.0, %v2752
  %v2754 = vpop.f32.mrb[0].mxu0
  %v2755 = vpop.f32.mrb[0].mxu0
  %v2756 = vadd.f32 0.0, %v2755
  %v2757 = vpop.f32.mrb[0].mxu0
  %2758 = vdwg.mxu0
  %v2783 = vunpack.c.l.b16 %v2397
  %v2784 = vunpack.c.l.b16 %v2398
  %v2785 = vunpack.c.l.b16 %v2399
  %v2786 = vunpack.c.l.b16 %v2400
  %v2787 = vunpack.c.l.b16 %v2401
  %v2788 = vunpack.c.l.b16 %v2402
  %v2789 = vunpack.c.l.b16 %v2403
  %v2790 = vunpack.c.l.b16 %v2404
  %v2791 = vunpack.c.l.b16 %v2405
  %v2792 = vunpack.c.l.b16 %v2406
  %v2793 = vunpack.c.l.b16 %v2407
  %v2794 = vunpack.c.l.b16 %v2408
  %v2795 = vunpack.c.l.b16 %v2409
  %v2796 = vunpack.c.l.b16 %v2410
  %v2797 = vunpack.c.l.b16 %v2411
  %v2798 = vunpack.c.l.b16 %v2412
  %v2799 = vunpack.c.l.b16 %v2413
  %v2800 = vunpack.c.l.b16 %v2414
  %v2801 = vunpack.c.l.b16 %v2415
  %v2802 = vunpack.c.l.b16 %v2416
  %v2803 = vunpack.c.l.b16 %v2417
  %v2804 = vunpack.c.l.b16 %v2418
  %v2805 = vunpack.c.l.b16 %v2419
  %v2806 = vunpack.c.l.b16 %v2420
  %v2807 = vpack.c.b16 %v2784, %v2783
  %v2808 = vpack.c.b16 %v2786, %v2785
  %v2809 = vpack.c.b16 %v2788, %v2787
  %v2810 = vpack.c.b16 %v2790, %v2789
  %v2811 = vpack.c.b16 %v2792, %v2791
  %v2812 = vpack.c.b16 %v2794, %v2793
  %v2813 = vpack.c.b16 %v2796, %v2795
  %v2814 = vpack.c.b16 %v2798, %v2797
  %v2815 = vpack.c.b16 %v2800, %v2799
  %v2816 = vpack.c.b16 %v2802, %v2801
  %v2817 = vpack.c.b16 %v2804, %v2803
  %v2818 = vpack.c.b16 %v2806, %v2805
  %v2832 = vsel %vm1298, %v2366, 0
  %v2835 = vsel %vm1298, %v2368, 0
  %v2838 = vsel %vm1298, %v2370, 0
  %v2841 = vsel %vm1298, %v2372, 0
  %v2844 = vsel %vm1298, %v2374, 0
  %v2847 = vsel %vm1298, %v2376, 0
  %v2850 = vsel %vm1298, %v2378, 0
  %v2853 = vsel %vm1298, %v2380, 0
  %v2856 = vsel %vm1298, %v2382, 0
  %v2859 = vsel %vm1298, %v2384, 0
  %v2862 = vsel %vm1298, %v2386, 0
  %v2865 = vsel %vm1298, %v2388, 0
  %v2868 = vsel %vm1298, %v2390, 0
  %v2871 = vsel %vm1298, %v2392, 0
  %v2874 = vsel %vm1298, %v2394, 0
  %v2877 = vsel %vm1298, %v2396, 0
  %2879 = vmatprep.subr.bf16.mxu0 0
  %2880 = vmatpush1.bf16.msra.mxu0 %v2807
  %2881 = vmatprep.subr.bf16.mxu0 0
  %2882 = vmatpush1.bf16.msra.mxu0 %v2808
  %2883 = vmatprep.subr.bf16.mxu0 0
  %2884 = vmatpush1.bf16.msra.mxu0 %v2809
  %2885 = vmatprep.subr.bf16.mxu0 0
  %2886 = vmatpush1.bf16.msra.mxu0 %v2810
  %2887 = vmatprep.subr.bf16.mxu0 0
  %2888 = vmatpush1.bf16.msra.mxu0 %v2811
  %2889 = vmatprep.subr.bf16.mxu0 0
  %2890 = vmatpush1.bf16.msra.mxu0 %v2812
  %2891 = vmatprep.subr.bf16.mxu0 0
  %2892 = vmatpush1.bf16.msra.mxu0 %v2813
  %2893 = vmatprep.subr.bf16.mxu0 0
  %2894 = vmatpush1.bf16.msra.mxu0 %v2814
  %2895 = vmatprep.subr.bf16.mxu0 0
  %2896 = vmatpush1.bf16.msra.mxu0 %v2815
  %2897 = vmatprep.subr.bf16.mxu0 0
  %2898 = vmatpush1.bf16.msra.mxu0 %v2816
  %2899 = vmatprep.subr.bf16.mxu0 0
  %2900 = vmatpush1.bf16.msra.mxu0 %v2817
  %2901 = vmatprep.subr.bf16.mxu0 0
  %2902 = vmatpush1.bf16.msra.mxu0 %v2818
  %2903 = vmatprep.subr.bf16.mxu0 0
  %2904 = vmatpush1.bf16.msra.mxu0 0
  %2905 = vmatprep.subr.bf16.mxu0 0
  %2906 = vmatpush1.bf16.msra.mxu0 0
  %2907 = vmatprep.subr.bf16.mxu0 0
  %2908 = vmatpush1.bf16.msra.mxu0 0
  %2909 = vmatprep.subr.bf16.mxu0 0
  %2910 = vmatpush1.bf16.msra.mxu0 0
  %2911 = vmatprep.mubr.bf16.mxu0 %v2832
  %2912 = vmatmul.mubr.bf16.gmra.mrb[0].mxu0 %v2365
  %v2913 = vpop.f32.mrb[0].mxu0
  %v2914 = vadd.f32 %v2633, %v2913
  %v2915 = vpop.f32.mrb[0].mxu0
  %v2916 = vpop.f32.mrb[0].mxu0
  %v2917 = vadd.f32 %v2636, %v2916
  %v2918 = vpop.f32.mrb[0].mxu0
  %2919 = vmatprep.mubr.bf16.mxu0 %v2835
  %2920 = vmatmul.mubr.bf16.gmra.mrb[0].mxu0 %v2367
  %v2921 = vpop.f32.mrb[0].mxu0
  %v2922 = vadd.f32 %v2641, %v2921
  %v2923 = vpop.f32.mrb[0].mxu0
  %v2924 = vpop.f32.mrb[0].mxu0
  %v2925 = vadd.f32 %v2644, %v2924
  %v2926 = vpop.f32.mrb[0].mxu0
  %2927 = vmatprep.mubr.bf16.mxu0 %v2838
  %2928 = vmatmul.mubr.bf16.gmra.mrb[0].mxu0 %v2369
  %v2929 = vpop.f32.mrb[0].mxu0
  %v2930 = vadd.f32 %v2649, %v2929
  %v2931 = vpop.f32.mrb[0].mxu0
  %v2932 = vpop.f32.mrb[0].mxu0
  %v2933 = vadd.f32 %v2652, %v2932
  %v2934 = vpop.f32.mrb[0].mxu0
  %2935 = vmatprep.mubr.bf16.mxu0 %v2841
  %2936 = vmatmul.mubr.bf16.gmra.mrb[0].mxu0 %v2371
  %v2937 = vpop.f32.mrb[0].mxu0
  %v2938 = vadd.f32 %v2657, %v2937
  %v2939 = vpop.f32.mrb[0].mxu0
  %v2940 = vpop.f32.mrb[0].mxu0
  %v2941 = vadd.f32 %v2660, %v2940
  %v2942 = vpop.f32.mrb[0].mxu0
  %2943 = vmatprep.mubr.bf16.mxu0 %v2844
  %2944 = vmatmul.mubr.bf16.gmra.mrb[0].mxu0 %v2373
  %v2945 = vpop.f32.mrb[0].mxu0
  %v2946 = vadd.f32 %v2665, %v2945
  %v2947 = vpop.f32.mrb[0].mxu0
  %v2948 = vpop.f32.mrb[0].mxu0
  %v2949 = vadd.f32 %v2668, %v2948
  %v2950 = vpop.f32.mrb[0].mxu0
  %2951 = vmatprep.mubr.bf16.mxu0 %v2847
  %2952 = vmatmul.mubr.bf16.gmra.mrb[0].mxu0 %v2375
  %v2953 = vpop.f32.mrb[0].mxu0
  %v2954 = vadd.f32 %v2673, %v2953
  %v2955 = vpop.f32.mrb[0].mxu0
  %v2956 = vpop.f32.mrb[0].mxu0
  %v2957 = vadd.f32 %v2676, %v2956
  %v2958 = vpop.f32.mrb[0].mxu0
  %2959 = vmatprep.mubr.bf16.mxu0 %v2850
  %2960 = vmatmul.mubr.bf16.gmra.mrb[0].mxu0 %v2377
  %v2961 = vpop.f32.mrb[0].mxu0
  %v2962 = vadd.f32 %v2681, %v2961
  %v2963 = vpop.f32.mrb[0].mxu0
  %v2964 = vpop.f32.mrb[0].mxu0
  %v2965 = vadd.f32 %v2684, %v2964
  %v2966 = vpop.f32.mrb[0].mxu0
  %2967 = vmatprep.mubr.bf16.mxu0 %v2853
  %2968 = vmatmul.mubr.bf16.gmra.mrb[0].mxu0 %v2379
  %v2969 = vpop.f32.mrb[0].mxu0
  %v2970 = vadd.f32 %v2689, %v2969
  %v2971 = vpop.f32.mrb[0].mxu0
  %v2972 = vpop.f32.mrb[0].mxu0
  %v2973 = vadd.f32 %v2692, %v2972
  %v2974 = vpop.f32.mrb[0].mxu0
  %2975 = vmatprep.mubr.bf16.mxu0 %v2856
  %2976 = vmatmul.mubr.bf16.gmra.mrb[0].mxu0 %v2381
  %v2977 = vpop.f32.mrb[0].mxu0
  %v2978 = vadd.f32 %v2697, %v2977
  %v2979 = vpop.f32.mrb[0].mxu0
  %v2980 = vpop.f32.mrb[0].mxu0
  %v2981 = vadd.f32 %v2700, %v2980
  %v2982 = vpop.f32.mrb[0].mxu0
  %2983 = vmatprep.mubr.bf16.mxu0 %v2859
  %2984 = vmatmul.mubr.bf16.gmra.mrb[0].mxu0 %v2383
  %v2985 = vpop.f32.mrb[0].mxu0
  %v2986 = vadd.f32 %v2705, %v2985
  %v2987 = vpop.f32.mrb[0].mxu0
  %v2988 = vpop.f32.mrb[0].mxu0
  %v2989 = vadd.f32 %v2708, %v2988
  %v2990 = vpop.f32.mrb[0].mxu0
  %2991 = vmatprep.mubr.bf16.mxu0 %v2862
  %2992 = vmatmul.mubr.bf16.gmra.mrb[0].mxu0 %v2385
  %v2993 = vpop.f32.mrb[0].mxu0
  %v2994 = vadd.f32 %v2713, %v2993
  %v2995 = vpop.f32.mrb[0].mxu0
  %v2996 = vpop.f32.mrb[0].mxu0
  %v2997 = vadd.f32 %v2716, %v2996
  %v2998 = vpop.f32.mrb[0].mxu0
  %2999 = vmatprep.mubr.bf16.mxu0 %v2865
  %3000 = vmatmul.mubr.bf16.gmra.mrb[0].mxu0 %v2387
  %v3001 = vpop.f32.mrb[0].mxu0
  %v3002 = vadd.f32 %v2721, %v3001
  %v3003 = vpop.f32.mrb[0].mxu0
  %v3004 = vpop.f32.mrb[0].mxu0
  %v3005 = vadd.f32 %v2724, %v3004
  %v3006 = vpop.f32.mrb[0].mxu0
  %3007 = vmatprep.mubr.bf16.mxu0 %v2868
  %3008 = vmatmul.mubr.bf16.gmra.mrb[0].mxu0 %v2389
  %v3009 = vpop.f32.mrb[0].mxu0
  %v3010 = vadd.f32 %v2729, %v3009
  %v3011 = vpop.f32.mrb[0].mxu0
  %v3012 = vpop.f32.mrb[0].mxu0
  %v3013 = vadd.f32 %v2732, %v3012
  %v3014 = vpop.f32.mrb[0].mxu0
  %3015 = vmatprep.mubr.bf16.mxu0 %v2871
  %3016 = vmatmul.mubr.bf16.gmra.mrb[0].mxu0 %v2391
  %v3017 = vpop.f32.mrb[0].mxu0
  %v3018 = vadd.f32 %v2737, %v3017
  %v3019 = vpop.f32.mrb[0].mxu0
  %v3020 = vpop.f32.mrb[0].mxu0
  %v3021 = vadd.f32 %v2740, %v3020
  %v3022 = vpop.f32.mrb[0].mxu0
  %3023 = vmatprep.mubr.bf16.mxu0 %v2874
  %3024 = vmatmul.mubr.bf16.gmra.mrb[0].mxu0 %v2393
  %v3025 = vpop.f32.mrb[0].mxu0
  %v3026 = vadd.f32 %v2745, %v3025
  %v3027 = vpop.f32.mrb[0].mxu0
  %v3028 = vpop.f32.mrb[0].mxu0
  %v3029 = vadd.f32 %v2748, %v3028
  %v3030 = vpop.f32.mrb[0].mxu0
  %3031 = vmatprep.mubr.bf16.mxu0 %v2877
  %3032 = vmatmul.mubr.bf16.gmra.mrb[0].mxu0 %v2395
  %v3033 = vpop.f32.mrb[0].mxu0
  %v3034 = vadd.f32 %v2753, %v3033
  %v3035 = vpop.f32.mrb[0].mxu0
  %v3036 = vpop.f32.mrb[0].mxu0
  %v3037 = vadd.f32 %v2756, %v3036
  %v3038 = vpop.f32.mrb[0].mxu0
  %3039 = vdwg.mxu0
  %s3040 = scalar_lea.vmem [#allocation2], 160
  %v3041 = vld [vmem:[%s3040] sm:$0xff]
  %v3042 = vld [vmem:[%s3040 + $0x8] sm:$0xff]
  %v3043 = vld [vmem:[%s3040 + $0x10] sm:$0xff]
  %v3044 = vld [vmem:[%s3040 + $0x18] sm:$0xff]
  %v3045 = vld [vmem:[%s3040 + $0x20] sm:$0xff]
  %v3046 = vld [vmem:[%s3040 + $0x28] sm:$0xff]
  %v3047 = vld [vmem:[%s3040 + $0x30] sm:$0xff]
  %v3048 = vld [vmem:[%s3040 + $0x38] sm:$0xff]
  %v3049 = vld [vmem:[%s3040 + $0x40] sm:$0xff]
  %v3050 = vld [vmem:[%s3040 + $0x48] sm:$0xff]
  %v3051 = vld [vmem:[%s3040 + $0x50] sm:$0xff]
  %v3052 = vld [vmem:[%s3040 + $0x58] sm:$0xff]
  %v3053 = vld [vmem:[%s3040 + $0x60] sm:$0xff]
  %v3054 = vld [vmem:[%s3040 + $0x68] sm:$0xff]
  %v3055 = vld [vmem:[%s3040 + $0x70] sm:$0xff]
  %v3056 = vld [vmem:[%s3040 + $0x78] sm:$0xff]
  %v3057 = vld [vmem:[%s3040 + $0x120] sm:$0xff]
  %v3058 = vld [vmem:[%s3040 + $0x128] sm:$0xff]
  %v3059 = vld [vmem:[%s3040 + $0x130] sm:$0xff]
  %v3060 = vld [vmem:[%s3040 + $0x138] sm:$0xff]
  %v3061 = vld [vmem:[%s3040 + $0x140] sm:$0xff]
  %v3062 = vld [vmem:[%s3040 + $0x148] sm:$0xff]
  %v3063 = vld [vmem:[%s3040 + $0x150] sm:$0xff]
  %v3064 = vld [vmem:[%s3040 + $0x158] sm:$0xff]
  %v3065 = vld [vmem:[%s3040 + $0x160] sm:$0xff]
  %v3066 = vld [vmem:[%s3040 + $0x168] sm:$0xff]
  %v3067 = vld [vmem:[%s3040 + $0x170] sm:$0xff]
  %v3068 = vld [vmem:[%s3040 + $0x178] sm:$0xff]
  %v3069 = vld [vmem:[%s3040 + $0x180] sm:$0xff]
  %v3070 = vld [vmem:[%s3040 + $0x188] sm:$0xff]
  %v3071 = vld [vmem:[%s3040 + $0x190] sm:$0xff]
  %v3072 = vld [vmem:[%s3040 + $0x198] sm:$0xff]
  %v3073 = vld [vmem:[%s1822] sm:$0xf]
  %v3074 = vld [vmem:[%s1822 + $0x4] sm:$0xf]
  %v3075 = vld [vmem:[%s1822 + $0x8] sm:$0xf]
  %v3076 = vld [vmem:[%s1822 + $0xc] sm:$0xf]
  %v3077 = vld [vmem:[%s1822 + $0x10] sm:$0xf]
  %v3078 = vld [vmem:[%s1822 + $0x14] sm:$0xf]
  %v3079 = vld [vmem:[%s1822 + $0x18] sm:$0xf]
  %v3080 = vld [vmem:[%s1822 + $0x1c] sm:$0xf]
  %v3081 = vld [vmem:[%s1822 + $0x20] sm:$0xf]
  %v3082 = vld [vmem:[%s1822 + $0x24] sm:$0xf]
  %v3083 = vld [vmem:[%s1822 + $0x28] sm:$0xf]
  %v3084 = vld [vmem:[%s1822 + $0x2c] sm:$0xf]
  %v3085 = vld [vmem:[%s1822 + $0x30] sm:$0xf]
  %v3086 = vld [vmem:[%s1822 + $0x34] sm:$0xf]
  %v3087 = vld [vmem:[%s1822 + $0x38] sm:$0xf]
  %v3088 = vld [vmem:[%s1822 + $0x3c] sm:$0xf]
  %v3089 = vld [vmem:[%s1822 + $0x40] sm:$0xf]
  %v3090 = vld [vmem:[%s1822 + $0x44] sm:$0xf]
  %v3091 = vld [vmem:[%s1822 + $0x48] sm:$0xf]
  %v3092 = vld [vmem:[%s1822 + $0x4c] sm:$0xf]
  %v3093 = vld [vmem:[%s1822 + $0x50] sm:$0xf]
  %v3094 = vld [vmem:[%s1822 + $0x54] sm:$0xf]
  %v3095 = vld [vmem:[%s1822 + $0x58] sm:$0xf]
  %v3096 = vld [vmem:[%s1822 + $0x5c] sm:$0xf]
  %v3121 = vunpack.c.l.b16 %v3073
  %v3122 = vunpack.c.l.b16 %v3074
  %v3123 = vunpack.c.l.b16 %v3075
  %v3124 = vunpack.c.l.b16 %v3076
  %v3125 = vunpack.c.l.b16 %v3077
  %v3126 = vunpack.c.l.b16 %v3078
  %v3127 = vunpack.c.l.b16 %v3079
  %v3128 = vunpack.c.l.b16 %v3080
  %v3129 = vunpack.c.l.b16 %v3081
  %v3130 = vunpack.c.l.b16 %v3082
  %v3131 = vunpack.c.l.b16 %v3083
  %v3132 = vunpack.c.l.b16 %v3084
  %v3133 = vunpack.c.l.b16 %v3085
  %v3134 = vunpack.c.l.b16 %v3086
  %v3135 = vunpack.c.l.b16 %v3087
  %v3136 = vunpack.c.l.b16 %v3088
  %v3137 = vunpack.c.l.b16 %v3089
  %v3138 = vunpack.c.l.b16 %v3090
  %v3139 = vunpack.c.l.b16 %v3091
  %v3140 = vunpack.c.l.b16 %v3092
  %v3141 = vunpack.c.l.b16 %v3093
  %v3142 = vunpack.c.l.b16 %v3094
  %v3143 = vunpack.c.l.b16 %v3095
  %v3144 = vunpack.c.l.b16 %v3096
  %v3145 = vpack.c.b16 %v3122, %v3121
  %v3146 = vpack.c.b16 %v3124, %v3123
  %v3147 = vpack.c.b16 %v3126, %v3125
  %v3148 = vpack.c.b16 %v3128, %v3127
  %v3149 = vpack.c.b16 %v3130, %v3129
  %v3150 = vpack.c.b16 %v3132, %v3131
  %v3151 = vpack.c.b16 %v3134, %v3133
  %v3152 = vpack.c.b16 %v3136, %v3135
  %v3153 = vpack.c.b16 %v3138, %v3137
  %v3154 = vpack.c.b16 %v3140, %v3139
  %v3155 = vpack.c.b16 %v3142, %v3141
  %v3156 = vpack.c.b16 %v3144, %v3143
  %v3170 = vsel %vm1298, %v3042, 0
  %v3173 = vsel %vm1298, %v3044, 0
  %v3176 = vsel %vm1298, %v3046, 0
  %v3179 = vsel %vm1298, %v3048, 0
  %v3182 = vsel %vm1298, %v3050, 0
  %v3185 = vsel %vm1298, %v3052, 0
  %v3188 = vsel %vm1298, %v3054, 0
  %v3191 = vsel %vm1298, %v3056, 0
  %v3194 = vsel %vm1298, %v3058, 0
  %v3197 = vsel %vm1298, %v3060, 0
  %v3200 = vsel %vm1298, %v3062, 0
  %v3203 = vsel %vm1298, %v3064, 0
  %v3206 = vsel %vm1298, %v3066, 0
  %v3209 = vsel %vm1298, %v3068, 0
  %v3212 = vsel %vm1298, %v3070, 0
  %v3215 = vsel %vm1298, %v3072, 0
  %3217 = vmatprep.subr.bf16.mxu0 0
  %3218 = vmatpush1.bf16.msra.mxu0 %v3145
  %3219 = vmatprep.subr.bf16.mxu0 0
  %3220 = vmatpush1.bf16.msra.mxu0 %v3146
  %3221 = vmatprep.subr.bf16.mxu0 0
  %3222 = vmatpush1.bf16.msra.mxu0 %v3147
  %3223 = vmatprep.subr.bf16.mxu0 0
  %3224 = vmatpush1.bf16.msra.mxu0 %v3148
  %3225 = vmatprep.subr.bf16.mxu0 0
  %3226 = vmatpush1.bf16.msra.mxu0 %v3149
  %3227 = vmatprep.subr.bf16.mxu0 0
  %3228 = vmatpush1.bf16.msra.mxu0 %v3150
  %3229 = vmatprep.subr.bf16.mxu0 0
  %3230 = vmatpush1.bf16.msra.mxu0 %v3151
  %3231 = vmatprep.subr.bf16.mxu0 0
  %3232 = vmatpush1.bf16.msra.mxu0 %v3152
  %3233 = vmatprep.subr.bf16.mxu0 0
  %3234 = vmatpush1.bf16.msra.mxu0 %v3153
  %3235 = vmatprep.subr.bf16.mxu0 0
  %3236 = vmatpush1.bf16.msra.mxu0 %v3154
  %3237 = vmatprep.subr.bf16.mxu0 0
  %3238 = vmatpush1.bf16.msra.mxu0 %v3155
  %3239 = vmatprep.subr.bf16.mxu0 0
  %3240 = vmatpush1.bf16.msra.mxu0 %v3156
  %3241 = vmatprep.subr.bf16.mxu0 0
  %3242 = vmatpush1.bf16.msra.mxu0 0
  %3243 = vmatprep.subr.bf16.mxu0 0
  %3244 = vmatpush1.bf16.msra.mxu0 0
  %3245 = vmatprep.subr.bf16.mxu0 0
  %3246 = vmatpush1.bf16.msra.mxu0 0
  %3247 = vmatprep.subr.bf16.mxu0 0
  %3248 = vmatpush1.bf16.msra.mxu0 0
  %3249 = vmatprep.mubr.bf16.mxu0 %v3170
  %3250 = vmatmul.mubr.bf16.gmra.mrb[0].mxu0 %v3041
  %v3251 = vpop.f32.mrb[0].mxu0
  %v3252 = vadd.f32 0.0, %v3251
  %v3253 = vpop.f32.mrb[0].mxu0
  %v3254 = vpop.f32.mrb[0].mxu0
  %v3255 = vadd.f32 0.0, %v3254
  %v3256 = vpop.f32.mrb[0].mxu0
  %3257 = vmatprep.mubr.bf16.mxu0 %v3173
  %3258 = vmatmul.mubr.bf16.gmra.mrb[0].mxu0 %v3043
  %v3259 = vpop.f32.mrb[0].mxu0
  %v3260 = vadd.f32 0.0, %v3259
  %v3261 = vpop.f32.mrb[0].mxu0
  %v3262 = vpop.f32.mrb[0].mxu0
  %v3263 = vadd.f32 0.0, %v3262
  %v3264 = vpop.f32.mrb[0].mxu0
  %3265 = vmatprep.mubr.bf16.mxu0 %v3176
  %3266 = vmatmul.mubr.bf16.gmra.mrb[0].mxu0 %v3045
  %v3267 = vpop.f32.mrb[0].mxu0
  %v3268 = vadd.f32 0.0, %v3267
  %v3269 = vpop.f32.mrb[0].mxu0
  %v3270 = vpop.f32.mrb[0].mxu0
  %v3271 = vadd.f32 0.0, %v3270
  %v3272 = vpop.f32.mrb[0].mxu0
  %3273 = vmatprep.mubr.bf16.mxu0 %v3179
  %3274 = vmatmul.mubr.bf16.gmra.mrb[0].mxu0 %v3047
  %v3275 = vpop.f32.mrb[0].mxu0
  %v3276 = vadd.f32 0.0, %v3275
  %v3277 = vpop.f32.mrb[0].mxu0
  %v3278 = vpop.f32.mrb[0].mxu0
  %v3279 = vadd.f32 0.0, %v3278
  %v3280 = vpop.f32.mrb[0].mxu0
  %3281 = vmatprep.mubr.bf16.mxu0 %v3182
  %3282 = vmatmul.mubr.bf16.gmra.mrb[0].mxu0 %v3049
  %v3283 = vpop.f32.mrb[0].mxu0
  %v3284 = vadd.f32 0.0, %v3283
  %v3285 = vpop.f32.mrb[0].mxu0
  %v3286 = vpop.f32.mrb[0].mxu0
  %v3287 = vadd.f32 0.0, %v3286
  %v3288 = vpop.f32.mrb[0].mxu0
  %3289 = vmatprep.mubr.bf16.mxu0 %v3185
  %3290 = vmatmul.mubr.bf16.gmra.mrb[0].mxu0 %v3051
  %v3291 = vpop.f32.mrb[0].mxu0
  %v3292 = vadd.f32 0.0, %v3291
  %v3293 = vpop.f32.mrb[0].mxu0
  %v3294 = vpop.f32.mrb[0].mxu0
  %v3295 = vadd.f32 0.0, %v3294
  %v3296 = vpop.f32.mrb[0].mxu0
  %3297 = vmatprep.mubr.bf16.mxu0 %v3188
  %3298 = vmatmul.mubr.bf16.gmra.mrb[0].mxu0 %v3053
  %v3299 = vpop.f32.mrb[0].mxu0
  %v3300 = vadd.f32 0.0, %v3299
  %v3301 = vpop.f32.mrb[0].mxu0
  %v3302 = vpop.f32.mrb[0].mxu0
  %v3303 = vadd.f32 0.0, %v3302
  %v3304 = vpop.f32.mrb[0].mxu0
  %3305 = vmatprep.mubr.bf16.mxu0 %v3191
  %3306 = vmatmul.mubr.bf16.gmra.mrb[0].mxu0 %v3055
  %v3307 = vpop.f32.mrb[0].mxu0
  %v3308 = vadd.f32 0.0, %v3307
  %v3309 = vpop.f32.mrb[0].mxu0
  %v3310 = vpop.f32.mrb[0].mxu0
  %v3311 = vadd.f32 0.0, %v3310
  %v3312 = vpop.f32.mrb[0].mxu0
  %3313 = vmatprep.mubr.bf16.mxu0 %v3194
  %3314 = vmatmul.mubr.bf16.gmra.mrb[0].mxu0 %v3057
  %v3315 = vpop.f32.mrb[0].mxu0
  %v3316 = vadd.f32 0.0, %v3315
  %v3317 = vpop.f32.mrb[0].mxu0
  %v3318 = vpop.f32.mrb[0].mxu0
  %v3319 = vadd.f32 0.0, %v3318
  %v3320 = vpop.f32.mrb[0].mxu0
  %3321 = vmatprep.mubr.bf16.mxu0 %v3197
  %3322 = vmatmul.mubr.bf16.gmra.mrb[0].mxu0 %v3059
  %v3323 = vpop.f32.mrb[0].mxu0
  %v3324 = vadd.f32 0.0, %v3323
  %v3325 = vpop.f32.mrb[0].mxu0
  %v3326 = vpop.f32.mrb[0].mxu0
  %v3327 = vadd.f32 0.0, %v3326
  %v3328 = vpop.f32.mrb[0].mxu0
  %3329 = vmatprep.mubr.bf16.mxu0 %v3200
  %3330 = vmatmul.mubr.bf16.gmra.mrb[0].mxu0 %v3061
  %v3331 = vpop.f32.mrb[0].mxu0
  %v3332 = vadd.f32 0.0, %v3331
  %v3333 = vpop.f32.mrb[0].mxu0
  %v3334 = vpop.f32.mrb[0].mxu0
  %v3335 = vadd.f32 0.0, %v3334
  %v3336 = vpop.f32.mrb[0].mxu0
  %3337 = vmatprep.mubr.bf16.mxu0 %v3203
  %3338 = vmatmul.mubr.bf16.gmra.mrb[0].mxu0 %v3063
  %v3339 = vpop.f32.mrb[0].mxu0
  %v3340 = vadd.f32 0.0, %v3339
  %v3341 = vpop.f32.mrb[0].mxu0
  %v3342 = vpop.f32.mrb[0].mxu0
  %v3343 = vadd.f32 0.0, %v3342
  %v3344 = vpop.f32.mrb[0].mxu0
  %3345 = vmatprep.mubr.bf16.mxu0 %v3206
  %3346 = vmatmul.mubr.bf16.gmra.mrb[0].mxu0 %v3065
  %v3347 = vpop.f32.mrb[0].mxu0
  %v3348 = vadd.f32 0.0, %v3347
  %v3349 = vpop.f32.mrb[0].mxu0
  %v3350 = vpop.f32.mrb[0].mxu0
  %v3351 = vadd.f32 0.0, %v3350
  %v3352 = vpop.f32.mrb[0].mxu0
  %3353 = vmatprep.mubr.bf16.mxu0 %v3209
  %3354 = vmatmul.mubr.bf16.gmra.mrb[0].mxu0 %v3067
  %v3355 = vpop.f32.mrb[0].mxu0
  %v3356 = vadd.f32 0.0, %v3355
  %v3357 = vpop.f32.mrb[0].mxu0
  %v3358 = vpop.f32.mrb[0].mxu0
  %v3359 = vadd.f32 0.0, %v3358
  %v3360 = vpop.f32.mrb[0].mxu0
  %3361 = vmatprep.mubr.bf16.mxu0 %v3212
  %3362 = vmatmul.mubr.bf16.gmra.mrb[0].mxu0 %v3069
  %v3363 = vpop.f32.mrb[0].mxu0
  %v3364 = vadd.f32 0.0, %v3363
  %v3365 = vpop.f32.mrb[0].mxu0
  %v3366 = vpop.f32.mrb[0].mxu0
  %v3367 = vadd.f32 0.0, %v3366
  %v3368 = vpop.f32.mrb[0].mxu0
  %3369 = vmatprep.mubr.bf16.mxu0 %v3215
  %3370 = vmatmul.mubr.bf16.gmra.mrb[0].mxu0 %v3071
  %v3371 = vpop.f32.mrb[0].mxu0
  %v3372 = vadd.f32 0.0, %v3371
  %v3373 = vpop.f32.mrb[0].mxu0
  %v3374 = vpop.f32.mrb[0].mxu0
  %v3375 = vadd.f32 0.0, %v3374
  %v3376 = vpop.f32.mrb[0].mxu0
  %3377 = vdwg.mxu0
  %v3378 = vadd.f32 %v2914, %v3252
  %v3379 = vadd.f32 %v2917, %v3255
  %v3380 = vadd.f32 %v2922, %v3260
  %v3381 = vadd.f32 %v2925, %v3263
  %v3382 = vadd.f32 %v2930, %v3268
  %v3383 = vadd.f32 %v2933, %v3271
  %v3384 = vadd.f32 %v2938, %v3276
  %v3385 = vadd.f32 %v2941, %v3279
  %v3386 = vadd.f32 %v2946, %v3284
  %v3387 = vadd.f32 %v2949, %v3287
  %v3388 = vadd.f32 %v2954, %v3292
  %v3389 = vadd.f32 %v2957, %v3295
  %v3390 = vadd.f32 %v2962, %v3300
  %v3391 = vadd.f32 %v2965, %v3303
  %v3392 = vadd.f32 %v2970, %v3308
  %v3393 = vadd.f32 %v2973, %v3311
  %v3394 = vadd.f32 %v2978, %v3316
  %v3395 = vadd.f32 %v2981, %v3319
  %v3396 = vadd.f32 %v2986, %v3324
  %v3397 = vadd.f32 %v2989, %v3327
  %v3398 = vadd.f32 %v2994, %v3332
  %v3399 = vadd.f32 %v2997, %v3335
  %v3400 = vadd.f32 %v3002, %v3340
  %v3401 = vadd.f32 %v3005, %v3343
  %v3402 = vadd.f32 %v3010, %v3348
  %v3403 = vadd.f32 %v3013, %v3351
  %v3404 = vadd.f32 %v3018, %v3356
  %v3405 = vadd.f32 %v3021, %v3359
  %v3406 = vadd.f32 %v3026, %v3364
  %v3407 = vadd.f32 %v3029, %v3367
  %v3408 = vadd.f32 %v3034, %v3372
  %v3409 = vadd.f32 %v3037, %v3375
  %s3410 = scalar_lea.vmem %s4, 128
  %3411 = vst.msk [vmem:[%s3410] sm:$0xff] %vm1298, %v3378
  %3412 = vst.msk [vmem:[%s3410 + $0x8] sm:$0xff] %vm1298, %v3379
  %3413 = vst.msk [vmem:[%s3410 + $0x10] sm:$0xff] %vm1298, %v3380
  %3414 = vst.msk [vmem:[%s3410 + $0x18] sm:$0xff] %vm1298, %v3381
  %3415 = vst.msk [vmem:[%s3410 + $0x20] sm:$0xff] %vm1298, %v3382
  %3416 = vst.msk [vmem:[%s3410 + $0x28] sm:$0xff] %vm1298, %v3383
  %3417 = vst.msk [vmem:[%s3410 + $0x30] sm:$0xff] %vm1298, %v3384
  %3418 = vst.msk [vmem:[%s3410 + $0x38] sm:$0xff] %vm1298, %v3385
  %3419 = vst.msk [vmem:[%s3410 + $0x40] sm:$0xff] %vm1298, %v3386
  %3420 = vst.msk [vmem:[%s3410 + $0x48] sm:$0xff] %vm1298, %v3387
  %3421 = vst.msk [vmem:[%s3410 + $0x50] sm:$0xff] %vm1298, %v3388
  %3422 = vst.msk [vmem:[%s3410 + $0x58] sm:$0xff] %vm1298, %v3389
  %3423 = vst.msk [vmem:[%s3410 + $0x60] sm:$0xff] %vm1298, %v3390
  %3424 = vst.msk [vmem:[%s3410 + $0x68] sm:$0xff] %vm1298, %v3391
  %3425 = vst.msk [vmem:[%s3410 + $0x70] sm:$0xff] %vm1298, %v3392
  %3426 = vst.msk [vmem:[%s3410 + $0x78] sm:$0xff] %vm1298, %v3393
  %3427 = vst.msk [vmem:[%s3410 + $0x100] sm:$0xff] %vm1298, %v3394
  %3428 = vst.msk [vmem:[%s3410 + $0x108] sm:$0xff] %vm1298, %v3395
  %3429 = vst.msk [vmem:[%s3410 + $0x110] sm:$0xff] %vm1298, %v3396
  %3430 = vst.msk [vmem:[%s3410 + $0x118] sm:$0xff] %vm1298, %v3397
  %3431 = vst.msk [vmem:[%s3410 + $0x120] sm:$0xff] %vm1298, %v3398
  %3432 = vst.msk [vmem:[%s3410 + $0x128] sm:$0xff] %vm1298, %v3399
  %3433 = vst.msk [vmem:[%s3410 + $0x130] sm:$0xff] %vm1298, %v3400
  %3434 = vst.msk [vmem:[%s3410 + $0x138] sm:$0xff] %vm1298, %v3401
  %3435 = vst.msk [vmem:[%s3410 + $0x140] sm:$0xff] %vm1298, %v3402
  %3436 = vst.msk [vmem:[%s3410 + $0x148] sm:$0xff] %vm1298, %v3403
  %3437 = vst.msk [vmem:[%s3410 + $0x150] sm:$0xff] %vm1298, %v3404
  %3438 = vst.msk [vmem:[%s3410 + $0x158] sm:$0xff] %vm1298, %v3405
  %3439 = vst.msk [vmem:[%s3410 + $0x160] sm:$0xff] %vm1298, %v3406
  %3440 = vst.msk [vmem:[%s3410 + $0x168] sm:$0xff] %vm1298, %v3407
  %3441 = vst.msk [vmem:[%s3410 + $0x170] sm:$0xff] %vm1298, %v3408
  %3442 = vst.msk [vmem:[%s3410 + $0x178] sm:$0xff] %vm1298, %v3409
  %v3443 = vsel %vm1298, %v3378, 0.0
  %v3444 = vsel %vm1298, %v3379, 0.0
  %v3445 = vadd.f32 %v3443, %v3444
  %v3446 = vsel %vm1298, %v3380, 0.0
  %v3447 = vadd.f32 %v3445, %v3446
  %v3448 = vsel %vm1298, %v3381, 0.0
  %v3449 = vadd.f32 %v3447, %v3448
  %v3450 = vsel %vm1298, %v3382, 0.0
  %v3451 = vadd.f32 %v3449, %v3450
  %v3452 = vsel %vm1298, %v3383, 0.0
  %v3453 = vadd.f32 %v3451, %v3452
  %v3454 = vsel %vm1298, %v3384, 0.0
  %v3455 = vadd.f32 %v3453, %v3454
  %v3456 = vsel %vm1298, %v3385, 0.0
  %v3457 = vadd.f32 %v3455, %v3456
  %v3458 = vsel %vm1298, %v3386, 0.0
  %v3459 = vadd.f32 %v3457, %v3458
  %v3460 = vsel %vm1298, %v3387, 0.0
  %v3461 = vadd.f32 %v3459, %v3460
  %v3462 = vsel %vm1298, %v3388, 0.0
  %v3463 = vadd.f32 %v3461, %v3462
  %v3464 = vsel %vm1298, %v3389, 0.0
  %v3465 = vadd.f32 %v3463, %v3464
  %v3466 = vsel %vm1298, %v3390, 0.0
  %v3467 = vadd.f32 %v3465, %v3466
  %v3468 = vsel %vm1298, %v3391, 0.0
  %v3469 = vadd.f32 %v3467, %v3468
  %v3470 = vsel %vm1298, %v3392, 0.0
  %v3471 = vadd.f32 %v3469, %v3470
  %v3472 = vsel %vm1298, %v3393, 0.0
  %v3473 = vadd.f32 %v3471, %v3472
  %v3474 = vsel %vm1298, %v3394, 0.0
  %v3475 = vadd.f32 %v3473, %v3474
  %v3476 = vsel %vm1298, %v3395, 0.0
  %v3477 = vadd.f32 %v3475, %v3476
  %v3478 = vsel %vm1298, %v3396, 0.0
  %v3479 = vadd.f32 %v3477, %v3478
  %v3480 = vsel %vm1298, %v3397, 0.0
  %v3481 = vadd.f32 %v3479, %v3480
  %v3482 = vsel %vm1298, %v3398, 0.0
  %v3483 = vadd.f32 %v3481, %v3482
  %v3484 = vsel %vm1298, %v3399, 0.0
  %v3485 = vadd.f32 %v3483, %v3484
  %v3486 = vsel %vm1298, %v3400, 0.0
  %v3487 = vadd.f32 %v3485, %v3486
  %v3488 = vsel %vm1298, %v3401, 0.0
  %v3489 = vadd.f32 %v3487, %v3488
  %v3490 = vsel %vm1298, %v3402, 0.0
  %v3491 = vadd.f32 %v3489, %v3490
  %v3492 = vsel %vm1298, %v3403, 0.0
  %v3493 = vadd.f32 %v3491, %v3492
  %v3494 = vsel %vm1298, %v3404, 0.0
  %v3495 = vadd.f32 %v3493, %v3494
  %v3496 = vsel %vm1298, %v3405, 0.0
  %v3497 = vadd.f32 %v3495, %v3496
  %v3498 = vsel %vm1298, %v3406, 0.0
  %v3499 = vadd.f32 %v3497, %v3498
  %v3500 = vsel %vm1298, %v3407, 0.0
  %v3501 = vadd.f32 %v3499, %v3500
  %v3502 = vsel %vm1298, %v3408, 0.0
  %v3503 = vadd.f32 %v3501, %v3502
  %v3504 = vsel %vm1298, %v3409, 0.0
  %v3505 = vadd.f32 %v3503, %v3504
  %v3506 = vrot.slane %v3505, 4
  %v3507 = vadd.f32 %v3505, %v3506
  %v3508 = vrot.slane %v3507, 2
  %v3509 = vadd.f32 %v3507, %v3508
  %v3510 = vrot.slane %v3509, 1
  %v3511 = vadd.f32 %v3509, %v3510
  %v3512 = vadd.f32 %v2261, %v3511
  %v3513 = vmul.f32 %v3378, %v3378
  %v3514 = vmul.f32 %v3379, %v3379
  %v3515 = vmul.f32 %v3380, %v3380
  %v3516 = vmul.f32 %v3381, %v3381
  %v3517 = vmul.f32 %v3382, %v3382
  %v3518 = vmul.f32 %v3383, %v3383
  %v3519 = vmul.f32 %v3384, %v3384
  %v3520 = vmul.f32 %v3385, %v3385
  %v3521 = vmul.f32 %v3386, %v3386
  %v3522 = vmul.f32 %v3387, %v3387
  %v3523 = vmul.f32 %v3388, %v3388
  %v3524 = vmul.f32 %v3389, %v3389
  %v3525 = vmul.f32 %v3390, %v3390
  %v3526 = vmul.f32 %v3391, %v3391
  %v3527 = vmul.f32 %v3392, %v3392
  %v3528 = vmul.f32 %v3393, %v3393
  %v3529 = vmul.f32 %v3394, %v3394
  %v3530 = vmul.f32 %v3395, %v3395
  %v3531 = vmul.f32 %v3396, %v3396
  %v3532 = vmul.f32 %v3397, %v3397
  %v3533 = vmul.f32 %v3398, %v3398
  %v3534 = vmul.f32 %v3399, %v3399
  %v3535 = vmul.f32 %v3400, %v3400
  %v3536 = vmul.f32 %v3401, %v3401
  %v3537 = vmul.f32 %v3402, %v3402
  %v3538 = vmul.f32 %v3403, %v3403
  %v3539 = vmul.f32 %v3404, %v3404
  %v3540 = vmul.f32 %v3405, %v3405
  %v3541 = vmul.f32 %v3406, %v3406
  %v3542 = vmul.f32 %v3407, %v3407
  %v3543 = vmul.f32 %v3408, %v3408
  %v3544 = vmul.f32 %v3409, %v3409
  %v3545 = vsel %vm1298, %v3513, 0.0
  %v3546 = vsel %vm1298, %v3514, 0.0
  %v3547 = vadd.f32 %v3545, %v3546
  %v3548 = vsel %vm1298, %v3515, 0.0
  %v3549 = vadd.f32 %v3547, %v3548
  %v3550 = vsel %vm1298, %v3516, 0.0
  %v3551 = vadd.f32 %v3549, %v3550
  %v3552 = vsel %vm1298, %v3517, 0.0
  %v3553 = vadd.f32 %v3551, %v3552
  %v3554 = vsel %vm1298, %v3518, 0.0
  %v3555 = vadd.f32 %v3553, %v3554
  %v3556 = vsel %vm1298, %v3519, 0.0
  %v3557 = vadd.f32 %v3555, %v3556
  %v3558 = vsel %vm1298, %v3520, 0.0
  %v3559 = vadd.f32 %v3557, %v3558
  %v3560 = vsel %vm1298, %v3521, 0.0
  %v3561 = vadd.f32 %v3559, %v3560
  %v3562 = vsel %vm1298, %v3522, 0.0
  %v3563 = vadd.f32 %v3561, %v3562
  %v3564 = vsel %vm1298, %v3523, 0.0
  %v3565 = vadd.f32 %v3563, %v3564
  %v3566 = vsel %vm1298, %v3524, 0.0
  %v3567 = vadd.f32 %v3565, %v3566
  %v3568 = vsel %vm1298, %v3525, 0.0
  %v3569 = vadd.f32 %v3567, %v3568
  %v3570 = vsel %vm1298, %v3526, 0.0
  %v3571 = vadd.f32 %v3569, %v3570
  %v3572 = vsel %vm1298, %v3527, 0.0
  %v3573 = vadd.f32 %v3571, %v3572
  %v3574 = vsel %vm1298, %v3528, 0.0
  %v3575 = vadd.f32 %v3573, %v3574
  %v3576 = vsel %vm1298, %v3529, 0.0
  %v3577 = vadd.f32 %v3575, %v3576
  %v3578 = vsel %vm1298, %v3530, 0.0
  %v3579 = vadd.f32 %v3577, %v3578
  %v3580 = vsel %vm1298, %v3531, 0.0
  %v3581 = vadd.f32 %v3579, %v3580
  %v3582 = vsel %vm1298, %v3532, 0.0
  %v3583 = vadd.f32 %v3581, %v3582
  %v3584 = vsel %vm1298, %v3533, 0.0
  %v3585 = vadd.f32 %v3583, %v3584
  %v3586 = vsel %vm1298, %v3534, 0.0
  %v3587 = vadd.f32 %v3585, %v3586
  %v3588 = vsel %vm1298, %v3535, 0.0
  %v3589 = vadd.f32 %v3587, %v3588
  %v3590 = vsel %vm1298, %v3536, 0.0
  %v3591 = vadd.f32 %v3589, %v3590
  %v3592 = vsel %vm1298, %v3537, 0.0
  %v3593 = vadd.f32 %v3591, %v3592
  %v3594 = vsel %vm1298, %v3538, 0.0
  %v3595 = vadd.f32 %v3593, %v3594
  %v3596 = vsel %vm1298, %v3539, 0.0
  %v3597 = vadd.f32 %v3595, %v3596
  %v3598 = vsel %vm1298, %v3540, 0.0
  %v3599 = vadd.f32 %v3597, %v3598
  %v3600 = vsel %vm1298, %v3541, 0.0
  %v3601 = vadd.f32 %v3599, %v3600
  %v3602 = vsel %vm1298, %v3542, 0.0
  %v3603 = vadd.f32 %v3601, %v3602
  %v3604 = vsel %vm1298, %v3543, 0.0
  %v3605 = vadd.f32 %v3603, %v3604
  %v3606 = vsel %vm1298, %v3544, 0.0
  %v3607 = vadd.f32 %v3605, %v3606
  %v3608 = vrot.slane %v3607, 4
  %v3609 = vadd.f32 %v3607, %v3608
  %v3610 = vrot.slane %v3609, 2
  %v3611 = vadd.f32 %v3609, %v3610
  %v3612 = vrot.slane %v3611, 1
  %v3613 = vadd.f32 %v3611, %v3612
  %v3614 = vadd.f32 %v2363, %v3613
  %vm3615 = vcmask 516096
  %3616 = vst.msk [vmem:[%s5] sm:$0x1] %vm3615, %v3512
  %3617 = vst.msk [vmem:[%s6] sm:$0x1] %vm3615, %v3614
  // Predicated region
  $region22: #{double_conv.4} parent=0 // pred_check
    _
  $region23: #{double_conv.4} parent=0 // pred_check_branch
    %3619 = sbr.rel (0) target = $region25
  $region24: #{double_conv.4} parent=0 // pred_region
    _
  $region25: #{double_conv.4} parent=0 // pred_fallthru
    _
  // Predicated region
  $region26: #{double_conv.4} parent=0 // pred_check
    _
  $region27: #{double_conv.4} parent=0 // pred_check_branch
    %3621 = sbr.rel (0) target = $region29
  $region28: #{double_conv.4} parent=0 // pred_region
    _
  $region29: #{double_conv.4} parent=0 // pred_fallthru
    _
  // Predicated region
  $region30: #{double_conv.4} parent=0 // pred_check
    _
  $region31: #{double_conv.4} parent=0 // pred_check_branch
    %3623 = sbr.rel (0) target = $region33
  $region32: #{double_conv.4} parent=0 // pred_region
    _
  $region33: #{double_conv.4} parent=0 // pred_fallthru
    _
  // Predicated region
  $region34: #{double_conv.4} parent=0 // pred_check
    _
  $region35: #{double_conv.4} parent=0 // pred_check_branch
    %3625 = sbr.rel (0) target = $region37
  $region36: #{double_conv.4} parent=0 // pred_region
    _
  $region37: #{double_conv.4} parent=0 // pred_fallthru
    _
  // Predicated region
  $region38: #{double_conv.4} parent=0 // pred_check
    _
  $region39: #{double_conv.4} parent=0 // pred_check_branch
    %3627 = sbr.rel (0) target = $region41
  $region40: #{double_conv.4} parent=0 // pred_region
    _
  $region41: #{double_conv.4} parent=0 // pred_fallthru
    _
  // Predicated region
  $region42: #{double_conv.4} parent=0 // pred_check
    _
  $region43: #{double_conv.4} parent=0 // pred_check_branch
    %3629 = sbr.rel (0) target = $region45
  $region44: #{double_conv.4} parent=0 // pred_region
    _
  $region45: #{double_conv.4} parent=0 // pred_fallthru
    _

</llo_original>
